<compile_context>
chip_gen: v7x
topology: tpu7x:2x2x1
jax: 0.10.0
libtpu: 0.0.40
codegen_flags: <defaults>
</compile_context>

<pallas_src>
import functools

import jax
import jax.numpy as jnp
from jax.experimental import pallas as pl
from jax.experimental.pallas import tpu as pltpu

COMPUTE_DTYPE = jnp.bfloat16        # matmul-operand dtype; accumulation stays f32
LANE = 128                          # channel dims are zero-padded to this
BLOCK_M = 512                       # row tile for the row-wise kernels (sweep 512-1024)
VMEM_LIMIT = 32 * 1024 * 1024       # safe on v5e/v6e/v7x; raise on 128-MiB-VMEM chips


def _rup(v, m):
    return ((v + m - 1) // m) * m


def _pad_axis(a, axis, size):
    if a.shape[axis] >= size:
        return a
    widths = [(0, 0)] * a.ndim
    widths[axis] = (0, size - a.shape[axis])
    return jnp.pad(a, widths)


# ----------------------------------------------------------------------------
# Pallas kernels
# ----------------------------------------------------------------------------
def _linear_kernel(x_ref, w_ref, b_ref, o_ref):
    """o = x @ w + b  (1x1 conv over channels, lane-dense padded output)."""
    o_ref[...] = (
        jnp.dot(x_ref[...], w_ref[...], preferred_element_type=jnp.float32) + b_ref[...]
    ).astype(o_ref.dtype)


def _head_kernel(h_ref, wsk_ref, bsk_ref, w1_ref, b1_ref, w2_ref, b2_ref, o_ref):
    """Fused output head: one K=L*GCNP skip matmul (== sum of per-layer skip convs),
    then ReLU -> end1 -> ReLU -> end2."""
    s = jnp.dot(h_ref[...], wsk_ref[...], preferred_element_type=jnp.float32) + bsk_ref[...]
    s = jnp.maximum(s, 0.0).astype(w1_ref.dtype)
    h1 = jnp.dot(s, w1_ref[...], preferred_element_type=jnp.float32) + b1_ref[...]
    h1 = jnp.maximum(h1, 0.0).astype(w2_ref.dtype)
    o_ref[...] = (
        jnp.dot(h1, w2_ref[...], preferred_element_type=jnp.float32) + b2_ref[...]
    ).astype(o_ref.dtype)


def _adj_prep_kernel(adjst_ref, e2t_ref, e1t_ref, o_ref, *, order):
    """Term-major slab of TRANSPOSED diffusion matrices (all f32):
       o[0] = I, then (A_s^T)^k for every fixed support and the adaptive one.
       A_adp = softmax_row(relu(E1 @ E2)); its transpose is computed directly as a
       column-softmax of relu(E2^T @ E1^T) (no in-kernel matrix transpose needed)."""
    n = o_ref.shape[1]
    n_fixed = adjst_ref.shape[0]

    m = jnp.dot(e2t_ref[...], e1t_ref[...], preferred_element_type=jnp.float32)
    m = jnp.maximum(m, 0.0)
    m = m - jnp.max(m, axis=0, keepdims=True)
    em = jnp.exp(m)
    a_adp_t = em / jnp.sum(em, axis=0, keepdims=True)

    row = jax.lax.broadcasted_iota(jnp.int32, (n, n), 0)
    col = jax.lax.broadcasted_iota(jnp.int32, (n, n), 1)
    o_ref[0] = (row == col).astype(jnp.float32)      # identity term (the "x" term)

    idx = 1
    for s in range(n_fixed + 1):
        a_t = adjst_ref[s] if s < n_fixed else a_adp_t
        p = a_t
        o_ref[idx] = p
        idx += 1
        for _ in range(order - 1):
            p = jnp.dot(a_t, p, preferred_element_type=jnp.float32)
            o_ref[idx] = p
            idx += 1


def _layer_kernel(x_ref, at_ref, wfg_ref, bfg_ref, wmlp_ref, bmlp_ref, xo_ref, hl_ref,
                  *, dilation, kernel_size, gcnp):
    """One fused GWNet layer for a single batch element (time-major (T, N, Cpad) layout):
       gated dilated TCN -> diffusion GCN (transposed-power matmuls) -> channel mix ->
       residual add, plus the last-time-step TCN output for the skip path."""
    t_in = x_ref.shape[1]
    n = x_ref.shape[2]
    cp = x_ref.shape[3]
    t_out = t_in - dilation * (kernel_size - 1)

    x = x_ref[0]                                                     # (T, N, CP)

    # --- gated temporal conv: taps are in-kernel slices of ONE full-T block (x read once) ---
    fg = bfg_ref[...]                                                # (1, 2*GCNP) f32
    taps = []
    for j in range(kernel_size):
        xj = x[j * dilation: j * dilation + t_out].reshape(t_out * n, cp)
        taps.append(xj)
        fg = fg + jnp.dot(xj, wfg_ref[j], preferred_element_type=jnp.float32)
    # lane-aligned gated split (gcnp is a multiple of 128)
    h = jnp.tanh(fg[:, :gcnp]) * jax.nn.sigmoid(fg[:, gcnp:])        # (t_out*N, GCNP) f32

    # last time step of the TCN output feeds the fused skip/output head
    hl_ref[0] = h.reshape(t_out, n, gcnp)[t_out - 1].astype(hl_ref.dtype)

    # --- diffusion GCN + channel mixing + residual (all resident, no HBM round trips) ---
    hc = h.astype(at_ref.dtype)
    resid = taps[kernel_size - 1]                                    # == x[:, -t_out:] residual
    n_terms = at_ref.shape[0]
    tcnp = wmlp_ref.shape[2]

    acc = (jnp.dot(hc, wmlp_ref[0], preferred_element_type=jnp.float32)   # identity term
           + bmlp_ref[...] + resid.astype(jnp.float32))
    acc3 = acc.reshape(t_out, n, tcnp)
    per_t = [acc3[t] for t in range(t_out)]
    for term in range(1, n_terms):
        # mix channels first (linearity lets mix/diffusion commute): one wide dot per term ...
        g = jnp.dot(hc, wmlp_ref[term], preferred_element_type=jnp.float32)
        g3 = g.astype(at_ref.dtype).reshape(t_out, n, tcnp)
        a_t = at_ref[term]                                           # (N, N) = (A^k)^T
        # ... then diffuse nodes per time step as a clean rank-2 MXU matmul
        for t in range(t_out):
            per_t[t] = per_t[t] + jnp.dot(a_t, g3[t], preferred_element_type=jnp.float32)
    for t in range(t_out):
        xo_ref[0, t] = per_t[t].astype(xo_ref.dtype)
    # TODO(synk): gcn_dropout skipped and bn=True BatchNorm2d treated as identity (eval mode).


# ----------------------------------------------------------------------------
# pallas_call wrappers
# ----------------------------------------------------------------------------
def _pallas_rows(kernel, out_cols, blocked_args, full_args, out_dtype):
    """Row-tiled matmul-style call.  Rows are padded up to the tile, a grid with
    dimension_semantics=("parallel",) is always emitted (>=2 programs when there is enough
    work, so both v7x TensorCores participate), and large inputs never degenerate into one
    giant VMEM block."""
    m = blocked_args[0].shape[0]
    rb = min(BLOCK_M, _rup(m, 8))
    if m > 8 and _rup(m, rb) // rb < 2:          # guarantee >=2 programs when possible
        rb = _rup((m + 1) // 2, 8)
    m_pad = _rup(m, rb)
    if m_pad != m:
        blocked_args = [_pad_axis(a, 0, m_pad) for a in blocked_args]
    in_specs = [pl.BlockSpec((rb, a.shape[1]), lambda i: (i, 0)) for a in blocked_args]
    in_specs += [pl.BlockSpec(a.shape, lambda i, nd=a.ndim: (0,) * nd) for a in full_args]
    out = pl.pallas_call(
        kernel,
        out_shape=jax.ShapeDtypeStruct((m_pad, out_cols), out_dtype),
        grid=(m_pad // rb,),
        in_specs=in_specs,
        out_specs=pl.BlockSpec((rb, out_cols), lambda i: (i, 0)),
        compiler_params=pltpu.CompilerParams(
            dimension_semantics=("parallel",), vmem_limit_bytes=VMEM_LIMIT),
    )(*blocked_args, *full_args)
    return out[:m] if m_pad != m else out


def _layer_call(x, a_stack, lp, *, dilation, kernel_size):
    """One fused layer; grid over batch (constant-index weight/adjacency blocks are fetched
    once by the pipeline, activations are read and written exactly once per layer)."""
    b, t_in, n, cp = x.shape
    t_out = t_in - dilation * (kernel_size - 1)
    gcnp = lp["wmlp"].shape[1]
    tcnp = lp["wmlp"].shape[2]
    kern = functools.partial(_layer_kernel, dilation=dilation,
                             kernel_size=kernel_size, gcnp=gcnp)
    return pl.pallas_call(
        kern,
        out_shape=(jax.ShapeDtypeStruct((b, t_out, n, tcnp), x.dtype),
                   jax.ShapeDtypeStruct((b, n, gcnp), x.dtype)),
        grid=(b,),
        in_specs=[
            pl.BlockSpec((1, t_in, n, cp), lambda i: (i, 0, 0, 0)),
            pl.BlockSpec(a_stack.shape, lambda i: (0, 0, 0)),
            pl.BlockSpec(lp["wfg"].shape, lambda i: (0, 0, 0)),
            pl.BlockSpec(lp["bfg"].shape, lambda i: (0, 0)),
            pl.BlockSpec(lp["wmlp"].shape, lambda i: (0, 0, 0)),
            pl.BlockSpec(lp["bmlp"].shape, lambda i: (0, 0)),
        ],
        out_specs=(pl.BlockSpec((1, t_out, n, tcnp), lambda i: (i, 0, 0, 0)),
                   pl.BlockSpec((1, n, gcnp), lambda i: (i, 0, 0))),
        compiler_params=pltpu.CompilerParams(
            dimension_semantics=("parallel",), vmem_limit_bytes=VMEM_LIMIT),
    )(x, a_stack, lp["wfg"], lp["bfg"], lp["wmlp"], lp["bmlp"])


# ----------------------------------------------------------------------------
# Model wiring (only reshapes / tiny transposes live outside the kernels)
# ----------------------------------------------------------------------------
def gwnet_forward(x_bpnc, adjs, params, cfg):
    """x_bpnc: (B, P, N, C); adjs: list of (N, N); returns (B, Q, N)."""
    cdt = params["w_in"].dtype
    x = x_bpnc                                    # already time-major (B, T, N, C)
    recep = cfg["receptive_field"]
    p_len = x.shape[1]
    if p_len < recep:                             # F.pad(x, (recep - p, 0)) on the time axis
        x = jnp.pad(x, ((0, 0), (recep - p_len, 0), (0, 0), (0, 0)))
    b, t, n, c_in = x.shape
    tcnp = params["w_in"].shape[1]

    # input 1x1 conv (row-tiled, lane-dense padded output width)
    x = _pallas_rows(
        _linear_kernel, tcnp,
        [x.reshape(b * t * n, c_in).astype(cdt)],
        [params["w_in"], params["b_in"]],
        out_dtype=cdt,
    ).reshape(b, t, n, tcnp)

    # adaptive adjacency + all transposed diffusion powers, built ONCE in f32, cast once
    order = cfg["gcn_depth"]
    n_terms = 1 + (len(adjs) + 1) * order
    assert n_terms == params["layers"][0]["wmlp"].shape[0], "n_adjs must equal len(adjs)+1"
    adjs_t = jnp.stack([a.T for a in adjs], axis=0).astype(jnp.float32)
    a_stack = pl.pallas_call(
        functools.partial(_adj_prep_kernel, order=order),
        out_shape=jax.ShapeDtypeStruct((n_terms, n, n), jnp.float32),
    )(adjs_t, params["e2"].T, params["e1"].T).astype(cdt)

    h_lasts = []
    for layer in range(cfg["n_layers"]):
        x, h_last = _layer_call(
            x, a_stack, params["layers"][layer],
            dilation=cfg["dilations"][layer], kernel_size=cfg["kernel_size"])
        h_lasts.append(h_last)

    assert x.shape[1] == 1, "Temporal dimension must be equal to 1."

    # fused head: sum_l skip_l(h_tcn_l[..., -1]) == concat(h_last_l) @ vstack(W_skip_l) + sum(b)
    h_cat = jnp.concatenate(h_lasts, axis=-1).reshape(b * n, -1)
    out = _pallas_rows(
        _head_kernel, params["w_end2"].shape[1],
        [h_cat],
        [params["w_skip_cat"], params["b_skip_sum"],
         params["w_end1"], params["b_end1"], params["w_end2"], params["b_end2"]],
        out_dtype=jnp.float32,
    )
    out = out[:, : cfg["out_len"]].reshape(b, n, cfg["out_len"])
    return jnp.transpose(out, (0, 2, 1))          # (B, Q, N)


# ----------------------------------------------------------------------------
# Parameters: logical (PyTorch-shaped) init + one-time padding / fusing / casting
# ----------------------------------------------------------------------------
def init_params(key, in_dim, skip_dim, end_dim, out_len, n_series, st):
    n_layers = st["n_layers"]
    tcn = st["tcn_in_dim"]
    gcn = st["gcn_in_dim"]
    k = st["kernel_size"]
    df = st["dilation_factor"]
    n_adjs = st["n_adjs"]
    depth = st["gcn_depth"]

    dilations = [df ** l for l in range(n_layers)]
    receptive = 1 + sum(d * (k - 1) for d in dilations)
    n_terms = 1 + n_adjs * depth                  # identity + every support's powers

    keys = iter(jax.random.split(key, 8 + 8 * n_layers))

    def w(shape, scale=0.1):
        return jax.random.normal(next(keys), shape, jnp.float32) * scale

    params = {
        "w_in": w((in_dim, tcn)), "b_in": w((tcn,)),
        "e1": w((n_series, 10), 1.0), "e2": w((10, n_series), 1.0),   # GWNetGSLearner
        "layers": [],
        "w_end1": w((skip_dim, end_dim)), "b_end1": w((end_dim,)),
        "w_end2": w((end_dim, out_len)), "b_end2": w((out_len,)),
    }
    for _ in range(n_layers):
        params["layers"].append({
            "w_filter": w((k, tcn, gcn)), "b_filter": w((gcn,)),
            "w_gate": w((k, tcn, gcn)), "b_gate": w((gcn,)),
            "w_mlp": w((n_terms * gcn, tcn)), "b_mlp": w((tcn,)),
            "w_skip": w((gcn, skip_dim)), "b_skip": w((skip_dim,)),
        })
    cfg = dict(
        n_layers=n_layers, kernel_size=k, dilations=dilations, gcn_depth=depth,
        n_terms=n_terms, receptive_field=receptive, out_len=out_len,
    )
    return params, cfg


def prepare_params(params, cfg, compute_dtype=COMPUTE_DTYPE):
    """Zero-pad channel dims to lane multiples, fuse [Wf|Wg] per tap, reshape w_mlp to a
    term-major (n_terms, GCNP, TCNP) slab, stack skip weights for the single-matmul head,
    and cast matmul operands to the compute dtype (biases stay f32). One-time, outside jit."""
    tcn = params["w_in"].shape[1]
    gcn = params["layers"][0]["w_skip"].shape[0]
    skip = params["w_end1"].shape[0]
    end = params["w_end1"].shape[1]
    out_len = params["w_end2"].shape[1]
    n_terms = cfg["n_terms"]
    tcnp, gcnp, skipp, endp, outp = (_rup(d, LANE) for d in (tcn, gcn, skip, end, out_len))

    def cast(a):
        return a.astype(compute_dtype)

    prep = {
        "w_in": cast(_pad_axis(params["w_in"], 1, tcnp)),
        "b_in": _pad_axis(params["b_in"], 0, tcnp).reshape(1, tcnp).astype(jnp.float32),
        "e1": params["e1"].astype(jnp.float32),
        "e2": params["e2"].astype(jnp.float32),
        "w_end1": cast(_pad_axis(_pad_axis(params["w_end1"], 0, skipp), 1, endp)),
        "b_end1": _pad_axis(params["b_end1"], 0, endp).reshape(1, endp).astype(jnp.float32),
        "w_end2": cast(_pad_axis(_pad_axis(params["w_end2"], 0, endp), 1, outp)),
        "b_end2": _pad_axis(params["b_end2"], 0, outp).reshape(1, outp).astype(jnp.float32),
        "layers": [],
    }
    w_skips, b_skips = [], []
    for lp in params["layers"]:
        wf = _pad_axis(_pad_axis(lp["w_filter"], 1, tcnp), 2, gcnp)    # (k, TCNP, GCNP)
        wg = _pad_axis(_pad_axis(lp["w_gate"], 1, tcnp), 2, gcnp)
        wfg = jnp.concatenate([wf, wg], axis=2)                        # (k, TCNP, 2*GCNP)
        bfg = jnp.concatenate(
            [_pad_axis(lp["b_filter"], 0, gcnp), _pad_axis(lp["b_gate"], 0, gcnp)]
        ).reshape(1, 2 * gcnp).astype(jnp.float32)
        wmlp = lp["w_mlp"].reshape(n_terms, gcn, tcn)                  # term-major rows
        wmlp = _pad_axis(_pad_axis(wmlp, 1, gcnp), 2, tcnp)            # (n_terms, GCNP, TCNP)
        prep["layers"].append({
            "wfg": cast(wfg), "bfg": bfg,
            "wmlp": cast(wmlp),
            "bmlp": _pad_axis(lp["b_mlp"], 0, tcnp).reshape(1, tcnp).astype(jnp.float32),
        })
        w_skips.append(_pad_axis(_pad_axis(lp["w_skip"], 0, gcnp), 1, skipp))
        b_skips.append(_pad_axis(lp["b_skip"], 0, skipp))
    prep["w_skip_cat"] = cast(jnp.concatenate(w_skips, axis=0))        # (L*GCNP, SKIPP)
    prep["b_skip_sum"] = sum(b_skips).reshape(1, skipp).astype(jnp.float32)
    return prep


if __name__ == "__main__":
    # Small, forward-consistent shapes.
    B, P, N, C = 2, 3, 8, 2            # batch, input seq len, series (nodes), features
    skip_dim, end_dim, out_len = 16, 32, 4
    st_params = dict(
        n_layers=2, tcn_in_dim=8, gcn_in_dim=8, kernel_size=2, dilation_factor=2,
        n_adjs=3, gcn_depth=2, gcn_dropout=0.3, bn=True,
    )  # receptive field = 1 + 1 + 2 = 4 -> time collapses to 1 at the last layer

    key = jax.random.PRNGKey(0)
    k_par, k_x, k_a1, k_a2 = jax.random.split(key, 4)
    params, cfg = init_params(k_par, C, skip_dim, end_dim, out_len, N, st_params)
    prep = prepare_params(params, cfg)   # one-time pad / fuse / cast (hoisted out of forward)

    x = jax.random.normal(k_x, (B, P, N, C), jnp.float32)
    # two pre-normalized transition matrices (row-stochastic); the adaptive one is learned
    A1 = jax.nn.softmax(jax.random.normal(k_a1, (N, N), jnp.float32), axis=1)
    A2 = jax.nn.softmax(jax.random.normal(k_a2, (N, N), jnp.float32), axis=1)

    fwd = jax.jit(functools.partial(gwnet_forward, cfg=cfg))
    out = fwd(x, [A1, A2], prep)
    out = jax.block_until_ready(out)
    assert out.shape == (B, out_len, N), out.shape
    assert bool(jnp.all(jnp.isfinite(out)))
    print("KERNEL_OK")
</pallas_src>

<mosaic_0001>
module attributes {stable_mosaic.version = 11 : i64} {
  func.func @_adj_prep_kernel(%arg0: memref<2x8x8xf32, #tpu.memory_space<vmem>>, %arg1: memref<8x10xf32, #tpu.memory_space<vmem>>, %arg2: memref<10x8xf32, #tpu.memory_space<vmem>>, %arg3: memref<7x8x8xf32, #tpu.memory_space<vmem>>) attributes {dimension_semantics = [], scalar_prefetch = 0 : i64, scratch_operands = 0 : i64, tpu.core_type = #tpu.core_type<tc>} {
    %c0 = arith.constant 0 : index
    %c0_0 = arith.constant 0 : index
    %0 = vector.load %arg1[%c0, %c0_0] : memref<8x10xf32, #tpu.memory_space<vmem>>, vector<8x10xf32>
    %c0_1 = arith.constant 0 : index
    %c0_2 = arith.constant 0 : index
    %1 = vector.load %arg2[%c0_1, %c0_2] : memref<10x8xf32, #tpu.memory_space<vmem>>, vector<10x8xf32>
    %cst = arith.constant dense<0.000000e+00> : vector<8x8xf32>
    %2 = tpu.matmul %0, %1, %cst {dimension_numbers = #tpu.dot_dimension_numbers<[1], [0], [0], [1], [0, 0, 1, 1], [], []>} : vector<8x10xf32>, vector<10x8xf32>, vector<8x8xf32> -> vector<8x8xf32>
    %cst_3 = arith.constant 0.000000e+00 : f32
    %3 = vector.broadcast %cst_3 : f32 to vector<8x8xf32>
    %4 = arith.maximumf %2, %3 : vector<8x8xf32>
    %cst_4 = arith.constant dense<0xFF800000> : vector<8xf32>
    %5 = vector.multi_reduction <maximumf>, %4, %cst_4 [0] : vector<8x8xf32> to vector<8xf32>
    %6 = vector.shape_cast %5 : vector<8xf32> to vector<1x8xf32>
    %7 = vector.broadcast %6 : vector<1x8xf32> to vector<8x8xf32>
    %8 = arith.subf %4, %7 : vector<8x8xf32>
    %9 = math.exp %8 : vector<8x8xf32>
    %cst_5 = arith.constant dense<0.000000e+00> : vector<8xf32>
    %10 = vector.multi_reduction <add>, %9, %cst_5 [0] : vector<8x8xf32> to vector<8xf32>
    %11 = vector.shape_cast %10 : vector<8xf32> to vector<1x8xf32>
    %12 = vector.broadcast %11 : vector<1x8xf32> to vector<8x8xf32>
    %13 = arith.divf %9, %12 : vector<8x8xf32>
    %14 = tpu.iota {dimensions = array<i32: 0>} : vector<8x8xi32>
    %15 = tpu.iota {dimensions = array<i32: 1>} : vector<8x8xi32>
    %16 = arith.cmpi eq, %14, %15 : vector<8x8xi32>
    %17 = arith.extui %16 : vector<8x8xi1> to vector<8x8xi32>
    %18 = arith.sitofp %17 : vector<8x8xi32> to vector<8x8xf32>
    %c0_6 = arith.constant 0 : index
    %c0_7 = arith.constant 0 : index
    %c0_8 = arith.constant 0 : index
    %19 = vector.load %arg3[%c0_6, %c0_7, %c0_8] : memref<7x8x8xf32, #tpu.memory_space<vmem>>, vector<1x8x8xf32>
    %20 = vector.shape_cast %19 : vector<1x8x8xf32> to vector<8x8xf32>
    %21 = vector.shape_cast %18 : vector<8x8xf32> to vector<1x8x8xf32>
    tpu.vector_store %arg3[%c0_6, %c0_7, %c0_8], %21 {strides = array<i32>} : memref<7x8x8xf32, #tpu.memory_space<vmem>>, vector<1x8x8xf32>,
    %c0_9 = arith.constant 0 : index
    %c0_10 = arith.constant 0 : index
    %c0_11 = arith.constant 0 : index
    %22 = vector.load %arg0[%c0_9, %c0_10, %c0_11] : memref<2x8x8xf32, #tpu.memory_space<vmem>>, vector<1x8x8xf32>
    %23 = vector.shape_cast %22 : vector<1x8x8xf32> to vector<8x8xf32>
    %c1 = arith.constant 1 : index
    %c0_12 = arith.constant 0 : index
    %c0_13 = arith.constant 0 : index
    %24 = vector.load %arg3[%c1, %c0_12, %c0_13] : memref<7x8x8xf32, #tpu.memory_space<vmem>>, vector<1x8x8xf32>
    %25 = vector.shape_cast %24 : vector<1x8x8xf32> to vector<8x8xf32>
    %26 = vector.shape_cast %23 : vector<8x8xf32> to vector<1x8x8xf32>
    tpu.vector_store %arg3[%c1, %c0_12, %c0_13], %26 {strides = array<i32>} : memref<7x8x8xf32, #tpu.memory_space<vmem>>, vector<1x8x8xf32>,
    %cst_14 = arith.constant dense<0.000000e+00> : vector<8x8xf32>
    %27 = tpu.matmul %23, %23, %cst_14 {dimension_numbers = #tpu.dot_dimension_numbers<[1], [0], [0], [1], [0, 0, 1, 1], [], []>} : vector<8x8xf32>, vector<8x8xf32>, vector<8x8xf32> -> vector<8x8xf32>
    %c2 = arith.constant 2 : index
    %c0_15 = arith.constant 0 : index
    %c0_16 = arith.constant 0 : index
    %28 = vector.load %arg3[%c2, %c0_15, %c0_16] : memref<7x8x8xf32, #tpu.memory_space<vmem>>, vector<1x8x8xf32>
    %29 = vector.shape_cast %28 : vector<1x8x8xf32> to vector<8x8xf32>
    %30 = vector.shape_cast %27 : vector<8x8xf32> to vector<1x8x8xf32>
    tpu.vector_store %arg3[%c2, %c0_15, %c0_16], %30 {strides = array<i32>} : memref<7x8x8xf32, #tpu.memory_space<vmem>>, vector<1x8x8xf32>,
    %c1_17 = arith.constant 1 : index
    %c0_18 = arith.constant 0 : index
    %c0_19 = arith.constant 0 : index
    %31 = vector.load %arg0[%c1_17, %c0_18, %c0_19] : memref<2x8x8xf32, #tpu.memory_space<vmem>>, vector<1x8x8xf32>
    %32 = vector.shape_cast %31 : vector<1x8x8xf32> to vector<8x8xf32>
    %c3 = arith.constant 3 : index
    %c0_20 = arith.constant 0 : index
    %c0_21 = arith.constant 0 : index
    %33 = vector.load %arg3[%c3, %c0_20, %c0_21] : memref<7x8x8xf32, #tpu.memory_space<vmem>>, vector<1x8x8xf32>
    %34 = vector.shape_cast %33 : vector<1x8x8xf32> to vector<8x8xf32>
    %35 = vector.shape_cast %32 : vector<8x8xf32> to vector<1x8x8xf32>
    tpu.vector_store %arg3[%c3, %c0_20, %c0_21], %35 {strides = array<i32>} : memref<7x8x8xf32, #tpu.memory_space<vmem>>, vector<1x8x8xf32>,
    %cst_22 = arith.constant dense<0.000000e+00> : vector<8x8xf32>
    %36 = tpu.matmul %32, %32, %cst_22 {dimension_numbers = #tpu.dot_dimension_numbers<[1], [0], [0], [1], [0, 0, 1, 1], [], []>} : vector<8x8xf32>, vector<8x8xf32>, vector<8x8xf32> -> vector<8x8xf32>
    %c4 = arith.constant 4 : index
    %c0_23 = arith.constant 0 : index
    %c0_24 = arith.constant 0 : index
    %37 = vector.load %arg3[%c4, %c0_23, %c0_24] : memref<7x8x8xf32, #tpu.memory_space<vmem>>, vector<1x8x8xf32>
    %38 = vector.shape_cast %37 : vector<1x8x8xf32> to vector<8x8xf32>
    %39 = vector.shape_cast %36 : vector<8x8xf32> to vector<1x8x8xf32>
    tpu.vector_store %arg3[%c4, %c0_23, %c0_24], %39 {strides = array<i32>} : memref<7x8x8xf32, #tpu.memory_space<vmem>>, vector<1x8x8xf32>,
    %c5 = arith.constant 5 : index
    %c0_25 = arith.constant 0 : index
    %c0_26 = arith.constant 0 : index
    %40 = vector.load %arg3[%c5, %c0_25, %c0_26] : memref<7x8x8xf32, #tpu.memory_space<vmem>>, vector<1x8x8xf32>
    %41 = vector.shape_cast %40 : vector<1x8x8xf32> to vector<8x8xf32>
    %42 = vector.shape_cast %13 : vector<8x8xf32> to vector<1x8x8xf32>
    tpu.vector_store %arg3[%c5, %c0_25, %c0_26], %42 {strides = array<i32>} : memref<7x8x8xf32, #tpu.memory_space<vmem>>, vector<1x8x8xf32>,
    %cst_27 = arith.constant dense<0.000000e+00> : vector<8x8xf32>
    %43 = tpu.matmul %13, %13, %cst_27 {dimension_numbers = #tpu.dot_dimension_numbers<[1], [0], [0], [1], [0, 0, 1, 1], [], []>} : vector<8x8xf32>, vector<8x8xf32>, vector<8x8xf32> -> vector<8x8xf32>
    %c6 = arith.constant 6 : index
    %c0_28 = arith.constant 0 : index
    %c0_29 = arith.constant 0 : index
    %44 = vector.load %arg3[%c6, %c0_28, %c0_29] : memref<7x8x8xf32, #tpu.memory_space<vmem>>, vector<1x8x8xf32>
    %45 = vector.shape_cast %44 : vector<1x8x8xf32> to vector<8x8xf32>
    %46 = vector.shape_cast %43 : vector<8x8xf32> to vector<1x8x8xf32>
    tpu.vector_store %arg3[%c6, %c0_28, %c0_29], %46 {strides = array<i32>} : memref<7x8x8xf32, #tpu.memory_space<vmem>>, vector<1x8x8xf32>,
    return
  }
}

module attributes {stable_mosaic.version = 11 : i64} {
  func.func @_linear_kernel(%arg0: i32, %arg1: memref<32x2xbf16, #tpu.memory_space<vmem>>, %arg2: memref<2x128xbf16, #tpu.memory_space<vmem>>, %arg3: memref<1x128xf32, #tpu.memory_space<vmem>>, %arg4: memref<32x128xbf16, #tpu.memory_space<vmem>>) attributes {dimension_semantics = [#tpu.dimension_semantics<parallel>], iteration_bounds = array<i64: 2>, scalar_prefetch = 0 : i64, scratch_operands = 0 : i64, tpu.core_type = #tpu.core_type<tc>, window_params = [{transform_indices = @transform_0, window_bounds = array<i64: 32, 2>}, {pipeline_mode = #tpu.pipeline_mode<synchronous>, transform_indices = @transform_1, window_bounds = array<i64: 2, 128>}, {pipeline_mode = #tpu.pipeline_mode<synchronous>, transform_indices = @transform_2, window_bounds = array<i64: 1, 128>}, {transform_indices = @transform_3, window_bounds = array<i64: 32, 128>}]} {
    %c0 = arith.constant 0 : index
    %c0_0 = arith.constant 0 : index
    %0 = vector.load %arg1[%c0, %c0_0] : memref<32x2xbf16, #tpu.memory_space<vmem>>, vector<32x2xbf16>
    %c0_1 = arith.constant 0 : index
    %c0_2 = arith.constant 0 : index
    %1 = vector.load %arg2[%c0_1, %c0_2] : memref<2x128xbf16, #tpu.memory_space<vmem>>, vector<2x128xbf16>
    %cst = arith.constant dense<0.000000e+00> : vector<32x128xf32>
    %2 = tpu.matmul %0, %1, %cst {dimension_numbers = #tpu.dot_dimension_numbers<[1], [0], [0], [1], [0, 0, 1, 1], [], []>} : vector<32x2xbf16>, vector<2x128xbf16>, vector<32x128xf32> -> vector<32x128xf32>
    %c0_3 = arith.constant 0 : index
    %c0_4 = arith.constant 0 : index
    %3 = vector.load %arg3[%c0_3, %c0_4] : memref<1x128xf32, #tpu.memory_space<vmem>>, vector<1x128xf32>
    %4 = vector.broadcast %3 : vector<1x128xf32> to vector<32x128xf32>
    %5 = arith.addf %2, %4 : vector<32x128xf32>
    %6 = arith.truncf %5 : vector<32x128xf32> to vector<32x128xbf16>
    %c0_5 = arith.constant 0 : index
    %c0_6 = arith.constant 0 : index
    %7 = vector.load %arg4[%c0_5, %c0_6] : memref<32x128xbf16, #tpu.memory_space<vmem>>, vector<32x128xbf16>
    tpu.vector_store %arg4[%c0_5, %c0_6], %6 {strides = array<i32>} : memref<32x128xbf16, #tpu.memory_space<vmem>>, vector<32x128xbf16>,
    return
  }
  func.func @transform_0(%arg0: i32) -> (i32, i32) {
    %c0_i32 = arith.constant 0 : i32
    %c0_i32_0 = arith.constant 0 : i32
    return %arg0, %c0_i32 : i32, i32
  }
  func.func @transform_1(%arg0: i32) -> (i32, i32) {
    %c0_i32 = arith.constant 0 : i32
    %c0_i32_0 = arith.constant 0 : i32
    %c0_i32_1 = arith.constant 0 : i32
    return %c0_i32, %c0_i32_0 : i32, i32
  }
  func.func @transform_2(%arg0: i32) -> (i32, i32) {
    %c0_i32 = arith.constant 0 : i32
    %c0_i32_0 = arith.constant 0 : i32
    %c0_i32_1 = arith.constant 0 : i32
    return %c0_i32, %c0_i32_0 : i32, i32
  }
  func.func @transform_3(%arg0: i32) -> (i32, i32) {
    %c0_i32 = arith.constant 0 : i32
    %c0_i32_0 = arith.constant 0 : i32
    return %arg0, %c0_i32 : i32, i32
  }
}

module attributes {stable_mosaic.version = 11 : i64} {
  func.func @_layer_kernel(%arg0: i32, %arg1: memref<1x3x8x128xbf16, #tpu.memory_space<vmem>>, %arg2: memref<7x8x8xbf16, #tpu.memory_space<vmem>>, %arg3: memref<2x128x256xbf16, #tpu.memory_space<vmem>>, %arg4: memref<1x256xf32, #tpu.memory_space<vmem>>, %arg5: memref<7x128x128xbf16, #tpu.memory_space<vmem>>, %arg6: memref<1x128xf32, #tpu.memory_space<vmem>>, %arg7: memref<1x1x8x128xbf16, #tpu.memory_space<vmem>>, %arg8: memref<1x8x128xbf16, #tpu.memory_space<vmem>>) attributes {dimension_semantics = [#tpu.dimension_semantics<parallel>], iteration_bounds = array<i64: 2>, scalar_prefetch = 0 : i64, scratch_operands = 0 : i64, tpu.core_type = #tpu.core_type<tc>, window_params = [{transform_indices = @transform_0, window_bounds = array<i64: 1, 3, 8, 128>}, {pipeline_mode = #tpu.pipeline_mode<synchronous>, transform_indices = @transform_1, window_bounds = array<i64: 7, 8, 8>}, {pipeline_mode = #tpu.pipeline_mode<synchronous>, transform_indices = @transform_2, window_bounds = array<i64: 2, 128, 256>}, {pipeline_mode = #tpu.pipeline_mode<synchronous>, transform_indices = @transform_3, window_bounds = array<i64: 1, 256>}, {pipeline_mode = #tpu.pipeline_mode<synchronous>, transform_indices = @transform_4, window_bounds = array<i64: 7, 128, 128>}, {pipeline_mode = #tpu.pipeline_mode<synchronous>, transform_indices = @transform_5, window_bounds = array<i64: 1, 128>}, {transform_indices = @transform_6, window_bounds = array<i64: 1, 1, 8, 128>}, {transform_indices = @transform_7, window_bounds = array<i64: 1, 8, 128>}]} {
    %c0 = arith.constant 0 : index
    %c0_0 = arith.constant 0 : index
    %c0_1 = arith.constant 0 : index
    %c0_2 = arith.constant 0 : index
    %0 = vector.load %arg1[%c0, %c0_0, %c0_1, %c0_2] : memref<1x3x8x128xbf16, #tpu.memory_space<vmem>>, vector<1x3x8x128xbf16>
    %1 = vector.shape_cast %0 : vector<1x3x8x128xbf16> to vector<3x8x128xbf16>
    %c0_3 = arith.constant 0 : index
    %c0_4 = arith.constant 0 : index
    %2 = vector.load %arg4[%c0_3, %c0_4] : memref<1x256xf32, #tpu.memory_space<vmem>>, vector<1x256xf32>
    %3 = vector.extract_strided_slice %1 {offsets = [0, 0, 0], sizes = [1, 8, 128], strides = [1, 1, 1]} : vector<3x8x128xbf16> to vector<1x8x128xbf16>
    %4 = vector.shape_cast %3 : vector<1x8x128xbf16> to vector<8x128xbf16>
    %c0_5 = arith.constant 0 : index
    %c0_6 = arith.constant 0 : index
    %c0_7 = arith.constant 0 : index
    %5 = vector.load %arg3[%c0_5, %c0_6, %c0_7] : memref<2x128x256xbf16, #tpu.memory_space<vmem>>, vector<1x128x256xbf16>
    %6 = vector.shape_cast %5 : vector<1x128x256xbf16> to vector<128x256xbf16>
    %cst = arith.constant dense<0.000000e+00> : vector<8x256xf32>
    %7 = tpu.matmul %4, %6, %cst {dimension_numbers = #tpu.dot_dimension_numbers<[1], [0], [0], [1], [0, 0, 1, 1], [], []>} : vector<8x128xbf16>, vector<128x256xbf16>, vector<8x256xf32> -> vector<8x256xf32>
    %8 = vector.broadcast %2 : vector<1x256xf32> to vector<8x256xf32>
    %9 = arith.addf %8, %7 : vector<8x256xf32>
    %10 = vector.extract_strided_slice %1 {offsets = [2, 0, 0], sizes = [1, 8, 128], strides = [1, 1, 1]} : vector<3x8x128xbf16> to vector<1x8x128xbf16>
    %11 = vector.shape_cast %10 : vector<1x8x128xbf16> to vector<8x128xbf16>
    %c1 = arith.constant 1 : index
    %c0_8 = arith.constant 0 : index
    %c0_9 = arith.constant 0 : index
    %12 = vector.load %arg3[%c1, %c0_8, %c0_9] : memref<2x128x256xbf16, #tpu.memory_space<vmem>>, vector<1x128x256xbf16>
    %13 = vector.shape_cast %12 : vector<1x128x256xbf16> to vector<128x256xbf16>
    %cst_10 = arith.constant dense<0.000000e+00> : vector<8x256xf32>
    %14 = tpu.matmul %11, %13, %cst_10 {dimension_numbers = #tpu.dot_dimension_numbers<[1], [0], [0], [1], [0, 0, 1, 1], [], []>} : vector<8x128xbf16>, vector<128x256xbf16>, vector<8x256xf32> -> vector<8x256xf32>
    %15 = arith.addf %9, %14 : vector<8x256xf32>
    %16 = vector.extract_strided_slice %15 {offsets = [0, 0], sizes = [8, 128], strides = [1, 1]} : vector<8x256xf32> to vector<8x128xf32>
    %17 = math.tanh %16 : vector<8x128xf32>
    %18 = vector.extract_strided_slice %15 {offsets = [0, 128], sizes = [8, 128], strides = [1, 1]} : vector<8x256xf32> to vector<8x128xf32>
    %19 = arith.negf %18 : vector<8x128xf32>
    %20 = math.exp %19 : vector<8x128xf32>
    %cst_11 = arith.constant 1.000000e+00 : f32
    %21 = vector.broadcast %cst_11 : f32 to vector<8x128xf32>
    %22 = arith.addf %21, %20 : vector<8x128xf32>
    %23 = arith.divf %21, %22 : vector<8x128xf32>
    %24 = arith.mulf %17, %23 : vector<8x128xf32>
    %25 = vector.shape_cast %24 : vector<8x128xf32> to vector<1x8x128xf32>
    %26 = vector.shape_cast %25 : vector<1x8x128xf32> to vector<8x128xf32>
    %27 = arith.truncf %26 : vector<8x128xf32> to vector<8x128xbf16>
    %c0_12 = arith.constant 0 : index
    %c0_13 = arith.constant 0 : index
    %c0_14 = arith.constant 0 : index
    %28 = vector.load %arg8[%c0_12, %c0_13, %c0_14] : memref<1x8x128xbf16, #tpu.memory_space<vmem>>, vector<1x8x128xbf16>
    %29 = vector.shape_cast %28 : vector<1x8x128xbf16> to vector<8x128xbf16>
    %30 = vector.shape_cast %27 : vector<8x128xbf16> to vector<1x8x128xbf16>
    tpu.vector_store %arg8[%c0_12, %c0_13, %c0_14], %30 {strides = array<i32>} : memref<1x8x128xbf16, #tpu.memory_space<vmem>>, vector<1x8x128xbf16>,
    %31 = arith.truncf %24 : vector<8x128xf32> to vector<8x128xbf16>
    %c0_15 = arith.constant 0 : index
    %c0_16 = arith.constant 0 : index
    %c0_17 = arith.constant 0 : index
    %32 = vector.load %arg5[%c0_15, %c0_16, %c0_17] : memref<7x128x128xbf16, #tpu.memory_space<vmem>>, vector<1x128x128xbf16>
    %33 = vector.shape_cast %32 : vector<1x128x128xbf16> to vector<128x128xbf16>
    %cst_18 = arith.constant dense<0.000000e+00> : vector<8x128xf32>
    %34 = tpu.matmul %31, %33, %cst_18 {dimension_numbers = #tpu.dot_dimension_numbers<[1], [0], [0], [1], [0, 0, 1, 1], [], []>} : vector<8x128xbf16>, vector<128x128xbf16>, vector<8x128xf32> -> vector<8x128xf32>
    %c0_19 = arith.constant 0 : index
    %c0_20 = arith.constant 0 : index
    %35 = vector.load %arg6[%c0_19, %c0_20] : memref<1x128xf32, #tpu.memory_space<vmem>>, vector<1x128xf32>
    %36 = vector.broadcast %35 : vector<1x128xf32> to vector<8x128xf32>
    %37 = arith.addf %34, %36 : vector<8x128xf32>
    %38 = arith.extf %11 : vector<8x128xbf16> to vector<8x128xf32>
    %39 = arith.addf %37, %38 : vector<8x128xf32>
    %40 = vector.shape_cast %39 : vector<8x128xf32> to vector<1x8x128xf32>
    %41 = vector.shape_cast %40 : vector<1x8x128xf32> to vector<8x128xf32>
    %c1_21 = arith.constant 1 : index
    %c0_22 = arith.constant 0 : index
    %c0_23 = arith.constant 0 : index
    %42 = vector.load %arg5[%c1_21, %c0_22, %c0_23] : memref<7x128x128xbf16, #tpu.memory_space<vmem>>, vector<1x128x128xbf16>
    %43 = vector.shape_cast %42 : vector<1x128x128xbf16> to vector<128x128xbf16>
    %cst_24 = arith.constant dense<0.000000e+00> : vector<8x128xf32>
    %44 = tpu.matmul %31, %43, %cst_24 {dimension_numbers = #tpu.dot_dimension_numbers<[1], [0], [0], [1], [0, 0, 1, 1], [], []>} : vector<8x128xbf16>, vector<128x128xbf16>, vector<8x128xf32> -> vector<8x128xf32>
    %45 = arith.truncf %44 : vector<8x128xf32> to vector<8x128xbf16>
    %46 = vector.shape_cast %45 : vector<8x128xbf16> to vector<1x8x128xbf16>
    %c1_25 = arith.constant 1 : index
    %c0_26 = arith.constant 0 : index
    %c0_27 = arith.constant 0 : index
    %47 = vector.load %arg2[%c1_25, %c0_26, %c0_27] : memref<7x8x8xbf16, #tpu.memory_space<vmem>>, vector<1x8x8xbf16>
    %48 = vector.shape_cast %47 : vector<1x8x8xbf16> to vector<8x8xbf16>
    %49 = vector.shape_cast %46 : vector<1x8x128xbf16> to vector<8x128xbf16>
    %cst_28 = arith.constant dense<0.000000e+00> : vector<8x128xf32>
    %50 = tpu.matmul %48, %49, %cst_28 {dimension_numbers = #tpu.dot_dimension_numbers<[1], [0], [0], [1], [0, 0, 1, 1], [], []>} : vector<8x8xbf16>, vector<8x128xbf16>, vector<8x128xf32> -> vector<8x128xf32>
    %51 = arith.addf %41, %50 : vector<8x128xf32>
    %c2 = arith.constant 2 : index
    %c0_29 = arith.constant 0 : index
    %c0_30 = arith.constant 0 : index
    %52 = vector.load %arg5[%c2, %c0_29, %c0_30] : memref<7x128x128xbf16, #tpu.memory_space<vmem>>, vector<1x128x128xbf16>
    %53 = vector.shape_cast %52 : vector<1x128x128xbf16> to vector<128x128xbf16>
    %cst_31 = arith.constant dense<0.000000e+00> : vector<8x128xf32>
    %54 = tpu.matmul %31, %53, %cst_31 {dimension_numbers = #tpu.dot_dimension_numbers<[1], [0], [0], [1], [0, 0, 1, 1], [], []>} : vector<8x128xbf16>, vector<128x128xbf16>, vector<8x128xf32> -> vector<8x128xf32>
    %55 = arith.truncf %54 : vector<8x128xf32> to vector<8x128xbf16>
    %56 = vector.shape_cast %55 : vector<8x128xbf16> to vector<1x8x128xbf16>
    %c2_32 = arith.constant 2 : index
    %c0_33 = arith.constant 0 : index
    %c0_34 = arith.constant 0 : index
    %57 = vector.load %arg2[%c2_32, %c0_33, %c0_34] : memref<7x8x8xbf16, #tpu.memory_space<vmem>>, vector<1x8x8xbf16>
    %58 = vector.shape_cast %57 : vector<1x8x8xbf16> to vector<8x8xbf16>
    %59 = vector.shape_cast %56 : vector<1x8x128xbf16> to vector<8x128xbf16>
    %cst_35 = arith.constant dense<0.000000e+00> : vector<8x128xf32>
    %60 = tpu.matmul %58, %59, %cst_35 {dimension_numbers = #tpu.dot_dimension_numbers<[1], [0], [0], [1], [0, 0, 1, 1], [], []>} : vector<8x8xbf16>, vector<8x128xbf16>, vector<8x128xf32> -> vector<8x128xf32>
    %61 = arith.addf %51, %60 : vector<8x128xf32>
    %c3 = arith.constant 3 : index
    %c0_36 = arith.constant 0 : index
    %c0_37 = arith.constant 0 : index
    %62 = vector.load %arg5[%c3, %c0_36, %c0_37] : memref<7x128x128xbf16, #tpu.memory_space<vmem>>, vector<1x128x128xbf16>
    %63 = vector.shape_cast %62 : vector<1x128x128xbf16> to vector<128x128xbf16>
    %cst_38 = arith.constant dense<0.000000e+00> : vector<8x128xf32>
    %64 = tpu.matmul %31, %63, %cst_38 {dimension_numbers = #tpu.dot_dimension_numbers<[1], [0], [0], [1], [0, 0, 1, 1], [], []>} : vector<8x128xbf16>, vector<128x128xbf16>, vector<8x128xf32> -> vector<8x128xf32>
    %65 = arith.truncf %64 : vector<8x128xf32> to vector<8x128xbf16>
    %66 = vector.shape_cast %65 : vector<8x128xbf16> to vector<1x8x128xbf16>
    %c3_39 = arith.constant 3 : index
    %c0_40 = arith.constant 0 : index
    %c0_41 = arith.constant 0 : index
    %67 = vector.load %arg2[%c3_39, %c0_40, %c0_41] : memref<7x8x8xbf16, #tpu.memory_space<vmem>>, vector<1x8x8xbf16>
    %68 = vector.shape_cast %67 : vector<1x8x8xbf16> to vector<8x8xbf16>
    %69 = vector.shape_cast %66 : vector<1x8x128xbf16> to vector<8x128xbf16>
    %cst_42 = arith.constant dense<0.000000e+00> : vector<8x128xf32>
    %70 = tpu.matmul %68, %69, %cst_42 {dimension_numbers = #tpu.dot_dimension_numbers<[1], [0], [0], [1], [0, 0, 1, 1], [], []>} : vector<8x8xbf16>, vector<8x128xbf16>, vector<8x128xf32> -> vector<8x128xf32>
    %71 = arith.addf %61, %70 : vector<8x128xf32>
    %c4 = arith.constant 4 : index
    %c0_43 = arith.constant 0 : index
    %c0_44 = arith.constant 0 : index
    %72 = vector.load %arg5[%c4, %c0_43, %c0_44] : memref<7x128x128xbf16, #tpu.memory_space<vmem>>, vector<1x128x128xbf16>
    %73 = vector.shape_cast %72 : vector<1x128x128xbf16> to vector<128x128xbf16>
    %cst_45 = arith.constant dense<0.000000e+00> : vector<8x128xf32>
    %74 = tpu.matmul %31, %73, %cst_45 {dimension_numbers = #tpu.dot_dimension_numbers<[1], [0], [0], [1], [0, 0, 1, 1], [], []>} : vector<8x128xbf16>, vector<128x128xbf16>, vector<8x128xf32> -> vector<8x128xf32>
    %75 = arith.truncf %74 : vector<8x128xf32> to vector<8x128xbf16>
    %76 = vector.shape_cast %75 : vector<8x128xbf16> to vector<1x8x128xbf16>
    %c4_46 = arith.constant 4 : index
    %c0_47 = arith.constant 0 : index
    %c0_48 = arith.constant 0 : index
    %77 = vector.load %arg2[%c4_46, %c0_47, %c0_48] : memref<7x8x8xbf16, #tpu.memory_space<vmem>>, vector<1x8x8xbf16>
    %78 = vector.shape_cast %77 : vector<1x8x8xbf16> to vector<8x8xbf16>
    %79 = vector.shape_cast %76 : vector<1x8x128xbf16> to vector<8x128xbf16>
    %cst_49 = arith.constant dense<0.000000e+00> : vector<8x128xf32>
    %80 = tpu.matmul %78, %79, %cst_49 {dimension_numbers = #tpu.dot_dimension_numbers<[1], [0], [0], [1], [0, 0, 1, 1], [], []>} : vector<8x8xbf16>, vector<8x128xbf16>, vector<8x128xf32> -> vector<8x128xf32>
    %81 = arith.addf %71, %80 : vector<8x128xf32>
    %c5 = arith.constant 5 : index
    %c0_50 = arith.constant 0 : index
    %c0_51 = arith.constant 0 : index
    %82 = vector.load %arg5[%c5, %c0_50, %c0_51] : memref<7x128x128xbf16, #tpu.memory_space<vmem>>, vector<1x128x128xbf16>
    %83 = vector.shape_cast %82 : vector<1x128x128xbf16> to vector<128x128xbf16>
    %cst_52 = arith.constant dense<0.000000e+00> : vector<8x128xf32>
    %84 = tpu.matmul %31, %83, %cst_52 {dimension_numbers = #tpu.dot_dimension_numbers<[1], [0], [0], [1], [0, 0, 1, 1], [], []>} : vector<8x128xbf16>, vector<128x128xbf16>, vector<8x128xf32> -> vector<8x128xf32>
    %85 = arith.truncf %84 : vector<8x128xf32> to vector<8x128xbf16>
    %86 = vector.shape_cast %85 : vector<8x128xbf16> to vector<1x8x128xbf16>
    %c5_53 = arith.constant 5 : index
    %c0_54 = arith.constant 0 : index
    %c0_55 = arith.constant 0 : index
    %87 = vector.load %arg2[%c5_53, %c0_54, %c0_55] : memref<7x8x8xbf16, #tpu.memory_space<vmem>>, vector<1x8x8xbf16>
    %88 = vector.shape_cast %87 : vector<1x8x8xbf16> to vector<8x8xbf16>
    %89 = vector.shape_cast %86 : vector<1x8x128xbf16> to vector<8x128xbf16>
    %cst_56 = arith.constant dense<0.000000e+00> : vector<8x128xf32>
    %90 = tpu.matmul %88, %89, %cst_56 {dimension_numbers = #tpu.dot_dimension_numbers<[1], [0], [0], [1], [0, 0, 1, 1], [], []>} : vector<8x8xbf16>, vector<8x128xbf16>, vector<8x128xf32> -> vector<8x128xf32>
    %91 = arith.addf %81, %90 : vector<8x128xf32>
    %c6 = arith.constant 6 : index
    %c0_57 = arith.constant 0 : index
    %c0_58 = arith.constant 0 : index
    %92 = vector.load %arg5[%c6, %c0_57, %c0_58] : memref<7x128x128xbf16, #tpu.memory_space<vmem>>, vector<1x128x128xbf16>
    %93 = vector.shape_cast %92 : vector<1x128x128xbf16> to vector<128x128xbf16>
    %cst_59 = arith.constant dense<0.000000e+00> : vector<8x128xf32>
    %94 = tpu.matmul %31, %93, %cst_59 {dimension_numbers = #tpu.dot_dimension_numbers<[1], [0], [0], [1], [0, 0, 1, 1], [], []>} : vector<8x128xbf16>, vector<128x128xbf16>, vector<8x128xf32> -> vector<8x128xf32>
    %95 = arith.truncf %94 : vector<8x128xf32> to vector<8x128xbf16>
    %96 = vector.shape_cast %95 : vector<8x128xbf16> to vector<1x8x128xbf16>
    %c6_60 = arith.constant 6 : index
    %c0_61 = arith.constant 0 : index
    %c0_62 = arith.constant 0 : index
    %97 = vector.load %arg2[%c6_60, %c0_61, %c0_62] : memref<7x8x8xbf16, #tpu.memory_space<vmem>>, vector<1x8x8xbf16>
    %98 = vector.shape_cast %97 : vector<1x8x8xbf16> to vector<8x8xbf16>
    %99 = vector.shape_cast %96 : vector<1x8x128xbf16> to vector<8x128xbf16>
    %cst_63 = arith.constant dense<0.000000e+00> : vector<8x128xf32>
    %100 = tpu.matmul %98, %99, %cst_63 {dimension_numbers = #tpu.dot_dimension_numbers<[1], [0], [0], [1], [0, 0, 1, 1], [], []>} : vector<8x8xbf16>, vector<8x128xbf16>, vector<8x128xf32> -> vector<8x128xf32>
    %101 = arith.addf %91, %100 : vector<8x128xf32>
    %102 = arith.truncf %101 : vector<8x128xf32> to vector<8x128xbf16>
    %c0_64 = arith.constant 0 : index
    %c0_65 = arith.constant 0 : index
    %c0_66 = arith.constant 0 : index
    %c0_67 = arith.constant 0 : index
    %103 = vector.load %arg7[%c0_64, %c0_65, %c0_66, %c0_67] : memref<1x1x8x128xbf16, #tpu.memory_space<vmem>>, vector<1x1x8x128xbf16>
    %104 = vector.shape_cast %103 : vector<1x1x8x128xbf16> to vector<8x128xbf16>
    %105 = vector.shape_cast %102 : vector<8x128xbf16> to vector<1x1x8x128xbf16>
    tpu.vector_store %arg7[%c0_64, %c0_65, %c0_66, %c0_67], %105 {strides = array<i32>} : memref<1x1x8x128xbf16, #tpu.memory_space<vmem>>, vector<1x1x8x128xbf16>,
    return
  }
  func.func @transform_0(%arg0: i32) -> (i32, i32, i32, i32) {
    %c0_i32 = arith.constant 0 : i32
    %c0_i32_0 = arith.constant 0 : i32
    %c0_i32_1 = arith.constant 0 : i32
    %c0_i32_2 = arith.constant 0 : i32
    return %arg0, %c0_i32, %c0_i32_0, %c0_i32_1 : i32, i32, i32, i32
  }
  func.func @transform_1(%arg0: i32) -> (i32, i32, i32) {
    %c0_i32 = arith.constant 0 : i32
    %c0_i32_0 = arith.constant 0 : i32
    %c0_i32_1 = arith.constant 0 : i32
    %c0_i32_2 = arith.constant 0 : i32
    return %c0_i32, %c0_i32_0, %c0_i32_1 : i32, i32, i32
  }
  func.func @transform_2(%arg0: i32) -> (i32, i32, i32) {
    %c0_i32 = arith.constant 0 : i32
    %c0_i32_0 = arith.constant 0 : i32
    %c0_i32_1 = arith.constant 0 : i32
    %c0_i32_2 = arith.constant 0 : i32
    return %c0_i32, %c0_i32_0, %c0_i32_1 : i32, i32, i32
  }
  func.func @transform_3(%arg0: i32) -> (i32, i32) {
    %c0_i32 = arith.constant 0 : i32
    %c0_i32_0 = arith.constant 0 : i32
    %c0_i32_1 = arith.constant 0 : i32
    return %c0_i32, %c0_i32_0 : i32, i32
  }
  func.func @transform_4(%arg0: i32) -> (i32, i32, i32) {
    %c0_i32 = arith.constant 0 : i32
    %c0_i32_0 = arith.constant 0 : i32
    %c0_i32_1 = arith.constant 0 : i32
    %c0_i32_2 = arith.constant 0 : i32
    return %c0_i32, %c0_i32_0, %c0_i32_1 : i32, i32, i32
  }
  func.func @transform_5(%arg0: i32) -> (i32, i32) {
    %c0_i32 = arith.constant 0 : i32
    %c0_i32_0 = arith.constant 0 : i32
    %c0_i32_1 = arith.constant 0 : i32
    return %c0_i32, %c0_i32_0 : i32, i32
  }
  func.func @transform_6(%arg0: i32) -> (i32, i32, i32, i32) {
    %c0_i32 = arith.constant 0 : i32
    %c0_i32_0 = arith.constant 0 : i32
    %c0_i32_1 = arith.constant 0 : i32
    %c0_i32_2 = arith.constant 0 : i32
    return %arg0, %c0_i32, %c0_i32_0, %c0_i32_1 : i32, i32, i32, i32
  }
  func.func @transform_7(%arg0: i32) -> (i32, i32, i32) {
    %c0_i32 = arith.constant 0 : i32
    %c0_i32_0 = arith.constant 0 : i32
    %c0_i32_1 = arith.constant 0 : i32
    return %arg0, %c0_i32, %c0_i32_0 : i32, i32, i32
  }
}

module attributes {stable_mosaic.version = 11 : i64} {
  func.func @_layer_kernel(%arg0: i32, %arg1: memref<1x4x8x128xbf16, #tpu.memory_space<vmem>>, %arg2: memref<7x8x8xbf16, #tpu.memory_space<vmem>>, %arg3: memref<2x128x256xbf16, #tpu.memory_space<vmem>>, %arg4: memref<1x256xf32, #tpu.memory_space<vmem>>, %arg5: memref<7x128x128xbf16, #tpu.memory_space<vmem>>, %arg6: memref<1x128xf32, #tpu.memory_space<vmem>>, %arg7: memref<1x3x8x128xbf16, #tpu.memory_space<vmem>>, %arg8: memref<1x8x128xbf16, #tpu.memory_space<vmem>>) attributes {dimension_semantics = [#tpu.dimension_semantics<parallel>], iteration_bounds = array<i64: 2>, scalar_prefetch = 0 : i64, scratch_operands = 0 : i64, tpu.core_type = #tpu.core_type<tc>, window_params = [{transform_indices = @transform_0, window_bounds = array<i64: 1, 4, 8, 128>}, {pipeline_mode = #tpu.pipeline_mode<synchronous>, transform_indices = @transform_1, window_bounds = array<i64: 7, 8, 8>}, {pipeline_mode = #tpu.pipeline_mode<synchronous>, transform_indices = @transform_2, window_bounds = array<i64: 2, 128, 256>}, {pipeline_mode = #tpu.pipeline_mode<synchronous>, transform_indices = @transform_3, window_bounds = array<i64: 1, 256>}, {pipeline_mode = #tpu.pipeline_mode<synchronous>, transform_indices = @transform_4, window_bounds = array<i64: 7, 128, 128>}, {pipeline_mode = #tpu.pipeline_mode<synchronous>, transform_indices = @transform_5, window_bounds = array<i64: 1, 128>}, {transform_indices = @transform_6, window_bounds = array<i64: 1, 3, 8, 128>}, {transform_indices = @transform_7, window_bounds = array<i64: 1, 8, 128>}]} {
    %c0 = arith.constant 0 : index
    %c0_0 = arith.constant 0 : index
    %c0_1 = arith.constant 0 : index
    %c0_2 = arith.constant 0 : index
    %0 = vector.load %arg1[%c0, %c0_0, %c0_1, %c0_2] : memref<1x4x8x128xbf16, #tpu.memory_space<vmem>>, vector<1x4x8x128xbf16>
    %1 = vector.shape_cast %0 : vector<1x4x8x128xbf16> to vector<4x8x128xbf16>
    %c0_3 = arith.constant 0 : index
    %c0_4 = arith.constant 0 : index
    %2 = vector.load %arg4[%c0_3, %c0_4] : memref<1x256xf32, #tpu.memory_space<vmem>>, vector<1x256xf32>
    %3 = vector.extract_strided_slice %1 {offsets = [0, 0, 0], sizes = [3, 8, 128], strides = [1, 1, 1]} : vector<4x8x128xbf16> to vector<3x8x128xbf16>
    %4 = vector.shape_cast %3 : vector<3x8x128xbf16> to vector<24x128xbf16>
    %c0_5 = arith.constant 0 : index
    %c0_6 = arith.constant 0 : index
    %c0_7 = arith.constant 0 : index
    %5 = vector.load %arg3[%c0_5, %c0_6, %c0_7] : memref<2x128x256xbf16, #tpu.memory_space<vmem>>, vector<1x128x256xbf16>
    %6 = vector.shape_cast %5 : vector<1x128x256xbf16> to vector<128x256xbf16>
    %cst = arith.constant dense<0.000000e+00> : vector<24x256xf32>
    %7 = tpu.matmul %4, %6, %cst {dimension_numbers = #tpu.dot_dimension_numbers<[1], [0], [0], [1], [0, 0, 1, 1], [], []>} : vector<24x128xbf16>, vector<128x256xbf16>, vector<24x256xf32> -> vector<24x256xf32>
    %8 = vector.broadcast %2 : vector<1x256xf32> to vector<24x256xf32>
    %9 = arith.addf %8, %7 : vector<24x256xf32>
    %10 = vector.extract_strided_slice %1 {offsets = [1, 0, 0], sizes = [3, 8, 128], strides = [1, 1, 1]} : vector<4x8x128xbf16> to vector<3x8x128xbf16>
    %11 = vector.shape_cast %10 : vector<3x8x128xbf16> to vector<24x128xbf16>
    %c1 = arith.constant 1 : index
    %c0_8 = arith.constant 0 : index
    %c0_9 = arith.constant 0 : index
    %12 = vector.load %arg3[%c1, %c0_8, %c0_9] : memref<2x128x256xbf16, #tpu.memory_space<vmem>>, vector<1x128x256xbf16>
    %13 = vector.shape_cast %12 : vector<1x128x256xbf16> to vector<128x256xbf16>
    %cst_10 = arith.constant dense<0.000000e+00> : vector<24x256xf32>
    %14 = tpu.matmul %11, %13, %cst_10 {dimension_numbers = #tpu.dot_dimension_numbers<[1], [0], [0], [1], [0, 0, 1, 1], [], []>} : vector<24x128xbf16>, vector<128x256xbf16>, vector<24x256xf32> -> vector<24x256xf32>
    %15 = arith.addf %9, %14 : vector<24x256xf32>
    %16 = vector.extract_strided_slice %15 {offsets = [0, 0], sizes = [24, 128], strides = [1, 1]} : vector<24x256xf32> to vector<24x128xf32>
    %17 = math.tanh %16 : vector<24x128xf32>
    %18 = vector.extract_strided_slice %15 {offsets = [0, 128], sizes = [24, 128], strides = [1, 1]} : vector<24x256xf32> to vector<24x128xf32>
    %19 = arith.negf %18 : vector<24x128xf32>
    %20 = math.exp %19 : vector<24x128xf32>
    %cst_11 = arith.constant 1.000000e+00 : f32
    %21 = vector.broadcast %cst_11 : f32 to vector<24x128xf32>
    %22 = arith.addf %21, %20 : vector<24x128xf32>
    %23 = arith.divf %21, %22 : vector<24x128xf32>
    %24 = arith.mulf %17, %23 : vector<24x128xf32>
    %25 = vector.shape_cast %24 : vector<24x128xf32> to vector<3x8x128xf32>
    %26 = vector.extract_strided_slice %25 {offsets = [2, 0, 0], sizes = [1, 8, 128], strides = [1, 1, 1]} : vector<3x8x128xf32> to vector<1x8x128xf32>
    %27 = vector.shape_cast %26 : vector<1x8x128xf32> to vector<8x128xf32>
    %28 = arith.truncf %27 : vector<8x128xf32> to vector<8x128xbf16>
    %c0_12 = arith.constant 0 : index
    %c0_13 = arith.constant 0 : index
    %c0_14 = arith.constant 0 : index
    %29 = vector.load %arg8[%c0_12, %c0_13, %c0_14] : memref<1x8x128xbf16, #tpu.memory_space<vmem>>, vector<1x8x128xbf16>
    %30 = vector.shape_cast %29 : vector<1x8x128xbf16> to vector<8x128xbf16>
    %31 = vector.shape_cast %28 : vector<8x128xbf16> to vector<1x8x128xbf16>
    tpu.vector_store %arg8[%c0_12, %c0_13, %c0_14], %31 {strides = array<i32>} : memref<1x8x128xbf16, #tpu.memory_space<vmem>>, vector<1x8x128xbf16>,
    %32 = arith.truncf %24 : vector<24x128xf32> to vector<24x128xbf16>
    %c0_15 = arith.constant 0 : index
    %c0_16 = arith.constant 0 : index
    %c0_17 = arith.constant 0 : index
    %33 = vector.load %arg5[%c0_15, %c0_16, %c0_17] : memref<7x128x128xbf16, #tpu.memory_space<vmem>>, vector<1x128x128xbf16>
    %34 = vector.shape_cast %33 : vector<1x128x128xbf16> to vector<128x128xbf16>
    %cst_18 = arith.constant dense<0.000000e+00> : vector<24x128xf32>
    %35 = tpu.matmul %32, %34, %cst_18 {dimension_numbers = #tpu.dot_dimension_numbers<[1], [0], [0], [1], [0, 0, 1, 1], [], []>} : vector<24x128xbf16>, vector<128x128xbf16>, vector<24x128xf32> -> vector<24x128xf32>
    %c0_19 = arith.constant 0 : index
    %c0_20 = arith.constant 0 : index
    %36 = vector.load %arg6[%c0_19, %c0_20] : memref<1x128xf32, #tpu.memory_space<vmem>>, vector<1x128xf32>
    %37 = vector.broadcast %36 : vector<1x128xf32> to vector<24x128xf32>
    %38 = arith.addf %35, %37 : vector<24x128xf32>
    %39 = arith.extf %11 : vector<24x128xbf16> to vector<24x128xf32>
    %40 = arith.addf %38, %39 : vector<24x128xf32>
    %41 = vector.shape_cast %40 : vector<24x128xf32> to vector<3x8x128xf32>
    %42 = vector.extract_strided_slice %41 {offsets = [0, 0, 0], sizes = [1, 8, 128], strides = [1, 1, 1]} : vector<3x8x128xf32> to vector<1x8x128xf32>
    %43 = vector.shape_cast %42 : vector<1x8x128xf32> to vector<8x128xf32>
    %44 = vector.extract_strided_slice %41 {offsets = [1, 0, 0], sizes = [1, 8, 128], strides = [1, 1, 1]} : vector<3x8x128xf32> to vector<1x8x128xf32>
    %45 = vector.shape_cast %44 : vector<1x8x128xf32> to vector<8x128xf32>
    %46 = vector.extract_strided_slice %41 {offsets = [2, 0, 0], sizes = [1, 8, 128], strides = [1, 1, 1]} : vector<3x8x128xf32> to vector<1x8x128xf32>
    %47 = vector.shape_cast %46 : vector<1x8x128xf32> to vector<8x128xf32>
    %c1_21 = arith.constant 1 : index
    %c0_22 = arith.constant 0 : index
    %c0_23 = arith.constant 0 : index
    %48 = vector.load %arg5[%c1_21, %c0_22, %c0_23] : memref<7x128x128xbf16, #tpu.memory_space<vmem>>, vector<1x128x128xbf16>
    %49 = vector.shape_cast %48 : vector<1x128x128xbf16> to vector<128x128xbf16>
    %cst_24 = arith.constant dense<0.000000e+00> : vector<24x128xf32>
    %50 = tpu.matmul %32, %49, %cst_24 {dimension_numbers = #tpu.dot_dimension_numbers<[1], [0], [0], [1], [0, 0, 1, 1], [], []>} : vector<24x128xbf16>, vector<128x128xbf16>, vector<24x128xf32> -> vector<24x128xf32>
    %51 = arith.truncf %50 : vector<24x128xf32> to vector<24x128xbf16>
    %52 = vector.shape_cast %51 : vector<24x128xbf16> to vector<3x8x128xbf16>
    %c1_25 = arith.constant 1 : index
    %c0_26 = arith.constant 0 : index
    %c0_27 = arith.constant 0 : index
    %53 = vector.load %arg2[%c1_25, %c0_26, %c0_27] : memref<7x8x8xbf16, #tpu.memory_space<vmem>>, vector<1x8x8xbf16>
    %54 = vector.shape_cast %53 : vector<1x8x8xbf16> to vector<8x8xbf16>
    %55 = vector.extract_strided_slice %52 {offsets = [0, 0, 0], sizes = [1, 8, 128], strides = [1, 1, 1]} : vector<3x8x128xbf16> to vector<1x8x128xbf16>
    %56 = vector.shape_cast %55 : vector<1x8x128xbf16> to vector<8x128xbf16>
    %cst_28 = arith.constant dense<0.000000e+00> : vector<8x128xf32>
    %57 = tpu.matmul %54, %56, %cst_28 {dimension_numbers = #tpu.dot_dimension_numbers<[1], [0], [0], [1], [0, 0, 1, 1], [], []>} : vector<8x8xbf16>, vector<8x128xbf16>, vector<8x128xf32> -> vector<8x128xf32>
    %58 = arith.addf %43, %57 : vector<8x128xf32>
    %59 = vector.extract_strided_slice %52 {offsets = [1, 0, 0], sizes = [1, 8, 128], strides = [1, 1, 1]} : vector<3x8x128xbf16> to vector<1x8x128xbf16>
    %60 = vector.shape_cast %59 : vector<1x8x128xbf16> to vector<8x128xbf16>
    %cst_29 = arith.constant dense<0.000000e+00> : vector<8x128xf32>
    %61 = tpu.matmul %54, %60, %cst_29 {dimension_numbers = #tpu.dot_dimension_numbers<[1], [0], [0], [1], [0, 0, 1, 1], [], []>} : vector<8x8xbf16>, vector<8x128xbf16>, vector<8x128xf32> -> vector<8x128xf32>
    %62 = arith.addf %45, %61 : vector<8x128xf32>
    %63 = vector.extract_strided_slice %52 {offsets = [2, 0, 0], sizes = [1, 8, 128], strides = [1, 1, 1]} : vector<3x8x128xbf16> to vector<1x8x128xbf16>
    %64 = vector.shape_cast %63 : vector<1x8x128xbf16> to vector<8x128xbf16>
    %cst_30 = arith.constant dense<0.000000e+00> : vector<8x128xf32>
    %65 = tpu.matmul %54, %64, %cst_30 {dimension_numbers = #tpu.dot_dimension_numbers<[1], [0], [0], [1], [0, 0, 1, 1], [], []>} : vector<8x8xbf16>, vector<8x128xbf16>, vector<8x128xf32> -> vector<8x128xf32>
    %66 = arith.addf %47, %65 : vector<8x128xf32>
    %c2 = arith.constant 2 : index
    %c0_31 = arith.constant 0 : index
    %c0_32 = arith.constant 0 : index
    %67 = vector.load %arg5[%c2, %c0_31, %c0_32] : memref<7x128x128xbf16, #tpu.memory_space<vmem>>, vector<1x128x128xbf16>
    %68 = vector.shape_cast %67 : vector<1x128x128xbf16> to vector<128x128xbf16>
    %cst_33 = arith.constant dense<0.000000e+00> : vector<24x128xf32>
    %69 = tpu.matmul %32, %68, %cst_33 {dimension_numbers = #tpu.dot_dimension_numbers<[1], [0], [0], [1], [0, 0, 1, 1], [], []>} : vector<24x128xbf16>, vector<128x128xbf16>, vector<24x128xf32> -> vector<24x128xf32>
    %70 = arith.truncf %69 : vector<24x128xf32> to vector<24x128xbf16>
    %71 = vector.shape_cast %70 : vector<24x128xbf16> to vector<3x8x128xbf16>
    %c2_34 = arith.constant 2 : index
    %c0_35 = arith.constant 0 : index
    %c0_36 = arith.constant 0 : index
    %72 = vector.load %arg2[%c2_34, %c0_35, %c0_36] : memref<7x8x8xbf16, #tpu.memory_space<vmem>>, vector<1x8x8xbf16>
    %73 = vector.shape_cast %72 : vector<1x8x8xbf16> to vector<8x8xbf16>
    %74 = vector.extract_strided_slice %71 {offsets = [0, 0, 0], sizes = [1, 8, 128], strides = [1, 1, 1]} : vector<3x8x128xbf16> to vector<1x8x128xbf16>
    %75 = vector.shape_cast %74 : vector<1x8x128xbf16> to vector<8x128xbf16>
    %cst_37 = arith.constant dense<0.000000e+00> : vector<8x128xf32>
    %76 = tpu.matmul %73, %75, %cst_37 {dimension_numbers = #tpu.dot_dimension_numbers<[1], [0], [0], [1], [0, 0, 1, 1], [], []>} : vector<8x8xbf16>, vector<8x128xbf16>, vector<8x128xf32> -> vector<8x128xf32>
    %77 = arith.addf %58, %76 : vector<8x128xf32>
    %78 = vector.extract_strided_slice %71 {offsets = [1, 0, 0], sizes = [1, 8, 128], strides = [1, 1, 1]} : vector<3x8x128xbf16> to vector<1x8x128xbf16>
    %79 = vector.shape_cast %78 : vector<1x8x128xbf16> to vector<8x128xbf16>
    %cst_38 = arith.constant dense<0.000000e+00> : vector<8x128xf32>
    %80 = tpu.matmul %73, %79, %cst_38 {dimension_numbers = #tpu.dot_dimension_numbers<[1], [0], [0], [1], [0, 0, 1, 1], [], []>} : vector<8x8xbf16>, vector<8x128xbf16>, vector<8x128xf32> -> vector<8x128xf32>
    %81 = arith.addf %62, %80 : vector<8x128xf32>
    %82 = vector.extract_strided_slice %71 {offsets = [2, 0, 0], sizes = [1, 8, 128], strides = [1, 1, 1]} : vector<3x8x128xbf16> to vector<1x8x128xbf16>
    %83 = vector.shape_cast %82 : vector<1x8x128xbf16> to vector<8x128xbf16>
    %cst_39 = arith.constant dense<0.000000e+00> : vector<8x128xf32>
    %84 = tpu.matmul %73, %83, %cst_39 {dimension_numbers = #tpu.dot_dimension_numbers<[1], [0], [0], [1], [0, 0, 1, 1], [], []>} : vector<8x8xbf16>, vector<8x128xbf16>, vector<8x128xf32> -> vector<8x128xf32>
    %85 = arith.addf %66, %84 : vector<8x128xf32>
    %c3 = arith.constant 3 : index
    %c0_40 = arith.constant 0 : index
    %c0_41 = arith.constant 0 : index
    %86 = vector.load %arg5[%c3, %c0_40, %c0_41] : memref<7x128x128xbf16, #tpu.memory_space<vmem>>, vector<1x128x128xbf16>
    %87 = vector.shape_cast %86 : vector<1x128x128xbf16> to vector<128x128xbf16>
    %cst_42 = arith.constant dense<0.000000e+00> : vector<24x128xf32>
    %88 = tpu.matmul %32, %87, %cst_42 {dimension_numbers = #tpu.dot_dimension_numbers<[1], [0], [0], [1], [0, 0, 1, 1], [], []>} : vector<24x128xbf16>, vector<128x128xbf16>, vector<24x128xf32> -> vector<24x128xf32>
    %89 = arith.truncf %88 : vector<24x128xf32> to vector<24x128xbf16>
    %90 = vector.shape_cast %89 : vector<24x128xbf16> to vector<3x8x128xbf16>
    %c3_43 = arith.constant 3 : index
    %c0_44 = arith.constant 0 : index
    %c0_45 = arith.constant 0 : index
    %91 = vector.load %arg2[%c3_43, %c0_44, %c0_45] : memref<7x8x8xbf16, #tpu.memory_space<vmem>>, vector<1x8x8xbf16>
    %92 = vector.shape_cast %91 : vector<1x8x8xbf16> to vector<8x8xbf16>
    %93 = vector.extract_strided_slice %90 {offsets = [0, 0, 0], sizes = [1, 8, 128], strides = [1, 1, 1]} : vector<3x8x128xbf16> to vector<1x8x128xbf16>
    %94 = vector.shape_cast %93 : vector<1x8x128xbf16> to vector<8x128xbf16>
    %cst_46 = arith.constant dense<0.000000e+00> : vector<8x128xf32>
    %95 = tpu.matmul %92, %94, %cst_46 {dimension_numbers = #tpu.dot_dimension_numbers<[1], [0], [0], [1], [0, 0, 1, 1], [], []>} : vector<8x8xbf16>, vector<8x128xbf16>, vector<8x128xf32> -> vector<8x128xf32>
    %96 = arith.addf %77, %95 : vector<8x128xf32>
    %97 = vector.extract_strided_slice %90 {offsets = [1, 0, 0], sizes = [1, 8, 128], strides = [1, 1, 1]} : vector<3x8x128xbf16> to vector<1x8x128xbf16>
    %98 = vector.shape_cast %97 : vector<1x8x128xbf16> to vector<8x128xbf16>
    %cst_47 = arith.constant dense<0.000000e+00> : vector<8x128xf32>
    %99 = tpu.matmul %92, %98, %cst_47 {dimension_numbers = #tpu.dot_dimension_numbers<[1], [0], [0], [1], [0, 0, 1, 1], [], []>} : vector<8x8xbf16>, vector<8x128xbf16>, vector<8x128xf32> -> vector<8x128xf32>
    %100 = arith.addf %81, %99 : vector<8x128xf32>
    %101 = vector.extract_strided_slice %90 {offsets = [2, 0, 0], sizes = [1, 8, 128], strides = [1, 1, 1]} : vector<3x8x128xbf16> to vector<1x8x128xbf16>
    %102 = vector.shape_cast %101 : vector<1x8x128xbf16> to vector<8x128xbf16>
    %cst_48 = arith.constant dense<0.000000e+00> : vector<8x128xf32>
    %103 = tpu.matmul %92, %102, %cst_48 {dimension_numbers = #tpu.dot_dimension_numbers<[1], [0], [0], [1], [0, 0, 1, 1], [], []>} : vector<8x8xbf16>, vector<8x128xbf16>, vector<8x128xf32> -> vector<8x128xf32>
    %104 = arith.addf %85, %103 : vector<8x128xf32>
    %c4 = arith.constant 4 : index
    %c0_49 = arith.constant 0 : index
    %c0_50 = arith.constant 0 : index
    %105 = vector.load %arg5[%c4, %c0_49, %c0_50] : memref<7x128x128xbf16, #tpu.memory_space<vmem>>, vector<1x128x128xbf16>
    %106 = vector.shape_cast %105 : vector<1x128x128xbf16> to vector<128x128xbf16>
    %cst_51 = arith.constant dense<0.000000e+00> : vector<24x128xf32>
    %107 = tpu.matmul %32, %106, %cst_51 {dimension_numbers = #tpu.dot_dimension_numbers<[1], [0], [0], [1], [0, 0, 1, 1], [], []>} : vector<24x128xbf16>, vector<128x128xbf16>, vector<24x128xf32> -> vector<24x128xf32>
    %108 = arith.truncf %107 : vector<24x128xf32> to vector<24x128xbf16>
    %109 = vector.shape_cast %108 : vector<24x128xbf16> to vector<3x8x128xbf16>
    %c4_52 = arith.constant 4 : index
    %c0_53 = arith.constant 0 : index
    %c0_54 = arith.constant 0 : index
    %110 = vector.load %arg2[%c4_52, %c0_53, %c0_54] : memref<7x8x8xbf16, #tpu.memory_space<vmem>>, vector<1x8x8xbf16>
    %111 = vector.shape_cast %110 : vector<1x8x8xbf16> to vector<8x8xbf16>
    %112 = vector.extract_strided_slice %109 {offsets = [0, 0, 0], sizes = [1, 8, 128], strides = [1, 1, 1]} : vector<3x8x128xbf16> to vector<1x8x128xbf16>
    %113 = vector.shape_cast %112 : vector<1x8x128xbf16> to vector<8x128xbf16>
    %cst_55 = arith.constant dense<0.000000e+00> : vector<8x128xf32>
    %114 = tpu.matmul %111, %113, %cst_55 {dimension_numbers = #tpu.dot_dimension_numbers<[1], [0], [0], [1], [0, 0, 1, 1], [], []>} : vector<8x8xbf16>, vector<8x128xbf16>, vector<8x128xf32> -> vector<8x128xf32>
    %115 = arith.addf %96, %114 : vector<8x128xf32>
    %116 = vector.extract_strided_slice %109 {offsets = [1, 0, 0], sizes = [1, 8, 128], strides = [1, 1, 1]} : vector<3x8x128xbf16> to vector<1x8x128xbf16>
    %117 = vector.shape_cast %116 : vector<1x8x128xbf16> to vector<8x128xbf16>
    %cst_56 = arith.constant dense<0.000000e+00> : vector<8x128xf32>
    %118 = tpu.matmul %111, %117, %cst_56 {dimension_numbers = #tpu.dot_dimension_numbers<[1], [0], [0], [1], [0, 0, 1, 1], [], []>} : vector<8x8xbf16>, vector<8x128xbf16>, vector<8x128xf32> -> vector<8x128xf32>
    %119 = arith.addf %100, %118 : vector<8x128xf32>
    %120 = vector.extract_strided_slice %109 {offsets = [2, 0, 0], sizes = [1, 8, 128], strides = [1, 1, 1]} : vector<3x8x128xbf16> to vector<1x8x128xbf16>
    %121 = vector.shape_cast %120 : vector<1x8x128xbf16> to vector<8x128xbf16>
    %cst_57 = arith.constant dense<0.000000e+00> : vector<8x128xf32>
    %122 = tpu.matmul %111, %121, %cst_57 {dimension_numbers = #tpu.dot_dimension_numbers<[1], [0], [0], [1], [0, 0, 1, 1], [], []>} : vector<8x8xbf16>, vector<8x128xbf16>, vector<8x128xf32> -> vector<8x128xf32>
    %123 = arith.addf %104, %122 : vector<8x128xf32>
    %c5 = arith.constant 5 : index
    %c0_58 = arith.constant 0 : index
    %c0_59 = arith.constant 0 : index
    %124 = vector.load %arg5[%c5, %c0_58, %c0_59] : memref<7x128x128xbf16, #tpu.memory_space<vmem>>, vector<1x128x128xbf16>
    %125 = vector.shape_cast %124 : vector<1x128x128xbf16> to vector<128x128xbf16>
    %cst_60 = arith.constant dense<0.000000e+00> : vector<24x128xf32>
    %126 = tpu.matmul %32, %125, %cst_60 {dimension_numbers = #tpu.dot_dimension_numbers<[1], [0], [0], [1], [0, 0, 1, 1], [], []>} : vector<24x128xbf16>, vector<128x128xbf16>, vector<24x128xf32> -> vector<24x128xf32>
    %127 = arith.truncf %126 : vector<24x128xf32> to vector<24x128xbf16>
    %128 = vector.shape_cast %127 : vector<24x128xbf16> to vector<3x8x128xbf16>
    %c5_61 = arith.constant 5 : index
    %c0_62 = arith.constant 0 : index
    %c0_63 = arith.constant 0 : index
    %129 = vector.load %arg2[%c5_61, %c0_62, %c0_63] : memref<7x8x8xbf16, #tpu.memory_space<vmem>>, vector<1x8x8xbf16>
    %130 = vector.shape_cast %129 : vector<1x8x8xbf16> to vector<8x8xbf16>
    %131 = vector.extract_strided_slice %128 {offsets = [0, 0, 0], sizes = [1, 8, 128], strides = [1, 1, 1]} : vector<3x8x128xbf16> to vector<1x8x128xbf16>
    %132 = vector.shape_cast %131 : vector<1x8x128xbf16> to vector<8x128xbf16>
    %cst_64 = arith.constant dense<0.000000e+00> : vector<8x128xf32>
    %133 = tpu.matmul %130, %132, %cst_64 {dimension_numbers = #tpu.dot_dimension_numbers<[1], [0], [0], [1], [0, 0, 1, 1], [], []>} : vector<8x8xbf16>, vector<8x128xbf16>, vector<8x128xf32> -> vector<8x128xf32>
    %134 = arith.addf %115, %133 : vector<8x128xf32>
    %135 = vector.extract_strided_slice %128 {offsets = [1, 0, 0], sizes = [1, 8, 128], strides = [1, 1, 1]} : vector<3x8x128xbf16> to vector<1x8x128xbf16>
    %136 = vector.shape_cast %135 : vector<1x8x128xbf16> to vector<8x128xbf16>
    %cst_65 = arith.constant dense<0.000000e+00> : vector<8x128xf32>
    %137 = tpu.matmul %130, %136, %cst_65 {dimension_numbers = #tpu.dot_dimension_numbers<[1], [0], [0], [1], [0, 0, 1, 1], [], []>} : vector<8x8xbf16>, vector<8x128xbf16>, vector<8x128xf32> -> vector<8x128xf32>
    %138 = arith.addf %119, %137 : vector<8x128xf32>
    %139 = vector.extract_strided_slice %128 {offsets = [2, 0, 0], sizes = [1, 8, 128], strides = [1, 1, 1]} : vector<3x8x128xbf16> to vector<1x8x128xbf16>
    %140 = vector.shape_cast %139 : vector<1x8x128xbf16> to vector<8x128xbf16>
    %cst_66 = arith.constant dense<0.000000e+00> : vector<8x128xf32>
    %141 = tpu.matmul %130, %140, %cst_66 {dimension_numbers = #tpu.dot_dimension_numbers<[1], [0], [0], [1], [0, 0, 1, 1], [], []>} : vector<8x8xbf16>, vector<8x128xbf16>, vector<8x128xf32> -> vector<8x128xf32>
    %142 = arith.addf %123, %141 : vector<8x128xf32>
    %c6 = arith.constant 6 : index
    %c0_67 = arith.constant 0 : index
    %c0_68 = arith.constant 0 : index
    %143 = vector.load %arg5[%c6, %c0_67, %c0_68] : memref<7x128x128xbf16, #tpu.memory_space<vmem>>, vector<1x128x128xbf16>
    %144 = vector.shape_cast %143 : vector<1x128x128xbf16> to vector<128x128xbf16>
    %cst_69 = arith.constant dense<0.000000e+00> : vector<24x128xf32>
    %145 = tpu.matmul %32, %144, %cst_69 {dimension_numbers = #tpu.dot_dimension_numbers<[1], [0], [0], [1], [0, 0, 1, 1], [], []>} : vector<24x128xbf16>, vector<128x128xbf16>, vector<24x128xf32> -> vector<24x128xf32>
    %146 = arith.truncf %145 : vector<24x128xf32> to vector<24x128xbf16>
    %147 = vector.shape_cast %146 : vector<24x128xbf16> to vector<3x8x128xbf16>
    %c6_70 = arith.constant 6 : index
    %c0_71 = arith.constant 0 : index
    %c0_72 = arith.constant 0 : index
    %148 = vector.load %arg2[%c6_70, %c0_71, %c0_72] : memref<7x8x8xbf16, #tpu.memory_space<vmem>>, vector<1x8x8xbf16>
    %149 = vector.shape_cast %148 : vector<1x8x8xbf16> to vector<8x8xbf16>
    %150 = vector.extract_strided_slice %147 {offsets = [0, 0, 0], sizes = [1, 8, 128], strides = [1, 1, 1]} : vector<3x8x128xbf16> to vector<1x8x128xbf16>
    %151 = vector.shape_cast %150 : vector<1x8x128xbf16> to vector<8x128xbf16>
    %cst_73 = arith.constant dense<0.000000e+00> : vector<8x128xf32>
    %152 = tpu.matmul %149, %151, %cst_73 {dimension_numbers = #tpu.dot_dimension_numbers<[1], [0], [0], [1], [0, 0, 1, 1], [], []>} : vector<8x8xbf16>, vector<8x128xbf16>, vector<8x128xf32> -> vector<8x128xf32>
    %153 = arith.addf %134, %152 : vector<8x128xf32>
    %154 = vector.extract_strided_slice %147 {offsets = [1, 0, 0], sizes = [1, 8, 128], strides = [1, 1, 1]} : vector<3x8x128xbf16> to vector<1x8x128xbf16>
    %155 = vector.shape_cast %154 : vector<1x8x128xbf16> to vector<8x128xbf16>
    %cst_74 = arith.constant dense<0.000000e+00> : vector<8x128xf32>
    %156 = tpu.matmul %149, %155, %cst_74 {dimension_numbers = #tpu.dot_dimension_numbers<[1], [0], [0], [1], [0, 0, 1, 1], [], []>} : vector<8x8xbf16>, vector<8x128xbf16>, vector<8x128xf32> -> vector<8x128xf32>
    %157 = arith.addf %138, %156 : vector<8x128xf32>
    %158 = vector.extract_strided_slice %147 {offsets = [2, 0, 0], sizes = [1, 8, 128], strides = [1, 1, 1]} : vector<3x8x128xbf16> to vector<1x8x128xbf16>
    %159 = vector.shape_cast %158 : vector<1x8x128xbf16> to vector<8x128xbf16>
    %cst_75 = arith.constant dense<0.000000e+00> : vector<8x128xf32>
    %160 = tpu.matmul %149, %159, %cst_75 {dimension_numbers = #tpu.dot_dimension_numbers<[1], [0], [0], [1], [0, 0, 1, 1], [], []>} : vector<8x8xbf16>, vector<8x128xbf16>, vector<8x128xf32> -> vector<8x128xf32>
    %161 = arith.addf %142, %160 : vector<8x128xf32>
    %162 = arith.truncf %153 : vector<8x128xf32> to vector<8x128xbf16>
    %c0_76 = arith.constant 0 : index
    %c0_77 = arith.constant 0 : index
    %c0_78 = arith.constant 0 : index
    %c0_79 = arith.constant 0 : index
    %163 = vector.load %arg7[%c0_76, %c0_77, %c0_78, %c0_79] : memref<1x3x8x128xbf16, #tpu.memory_space<vmem>>, vector<1x1x8x128xbf16>
    %164 = vector.shape_cast %163 : vector<1x1x8x128xbf16> to vector<8x128xbf16>
    %165 = vector.shape_cast %162 : vector<8x128xbf16> to vector<1x1x8x128xbf16>
    tpu.vector_store %arg7[%c0_76, %c0_77, %c0_78, %c0_79], %165 {strides = array<i32>} : memref<1x3x8x128xbf16, #tpu.memory_space<vmem>>, vector<1x1x8x128xbf16>,
    %166 = arith.truncf %157 : vector<8x128xf32> to vector<8x128xbf16>
    %c0_80 = arith.constant 0 : index
    %c1_81 = arith.constant 1 : index
    %c0_82 = arith.constant 0 : index
    %c0_83 = arith.constant 0 : index
    %167 = vector.load %arg7[%c0_80, %c1_81, %c0_82, %c0_83] : memref<1x3x8x128xbf16, #tpu.memory_space<vmem>>, vector<1x1x8x128xbf16>
    %168 = vector.shape_cast %167 : vector<1x1x8x128xbf16> to vector<8x128xbf16>
    %169 = vector.shape_cast %166 : vector<8x128xbf16> to vector<1x1x8x128xbf16>
    tpu.vector_store %arg7[%c0_80, %c1_81, %c0_82, %c0_83], %169 {strides = array<i32>} : memref<1x3x8x128xbf16, #tpu.memory_space<vmem>>, vector<1x1x8x128xbf16>,
    %170 = arith.truncf %161 : vector<8x128xf32> to vector<8x128xbf16>
    %c0_84 = arith.constant 0 : index
    %c2_85 = arith.constant 2 : index
    %c0_86 = arith.constant 0 : index
    %c0_87 = arith.constant 0 : index
    %171 = vector.load %arg7[%c0_84, %c2_85, %c0_86, %c0_87] : memref<1x3x8x128xbf16, #tpu.memory_space<vmem>>, vector<1x1x8x128xbf16>
    %172 = vector.shape_cast %171 : vector<1x1x8x128xbf16> to vector<8x128xbf16>
    %173 = vector.shape_cast %170 : vector<8x128xbf16> to vector<1x1x8x128xbf16>
    tpu.vector_store %arg7[%c0_84, %c2_85, %c0_86, %c0_87], %173 {strides = array<i32>} : memref<1x3x8x128xbf16, #tpu.memory_space<vmem>>, vector<1x1x8x128xbf16>,
    return
  }
  func.func @transform_0(%arg0: i32) -> (i32, i32, i32, i32) {
    %c0_i32 = arith.constant 0 : i32
    %c0_i32_0 = arith.constant 0 : i32
    %c0_i32_1 = arith.constant 0 : i32
    %c0_i32_2 = arith.constant 0 : i32
    return %arg0, %c0_i32, %c0_i32_0, %c0_i32_1 : i32, i32, i32, i32
  }
  func.func @transform_1(%arg0: i32) -> (i32, i32, i32) {
    %c0_i32 = arith.constant 0 : i32
    %c0_i32_0 = arith.constant 0 : i32
    %c0_i32_1 = arith.constant 0 : i32
    %c0_i32_2 = arith.constant 0 : i32
    return %c0_i32, %c0_i32_0, %c0_i32_1 : i32, i32, i32
  }
  func.func @transform_2(%arg0: i32) -> (i32, i32, i32) {
    %c0_i32 = arith.constant 0 : i32
    %c0_i32_0 = arith.constant 0 : i32
    %c0_i32_1 = arith.constant 0 : i32
    %c0_i32_2 = arith.constant 0 : i32
    return %c0_i32, %c0_i32_0, %c0_i32_1 : i32, i32, i32
  }
  func.func @transform_3(%arg0: i32) -> (i32, i32) {
    %c0_i32 = arith.constant 0 : i32
    %c0_i32_0 = arith.constant 0 : i32
    %c0_i32_1 = arith.constant 0 : i32
    return %c0_i32, %c0_i32_0 : i32, i32
  }
  func.func @transform_4(%arg0: i32) -> (i32, i32, i32) {
    %c0_i32 = arith.constant 0 : i32
    %c0_i32_0 = arith.constant 0 : i32
    %c0_i32_1 = arith.constant 0 : i32
    %c0_i32_2 = arith.constant 0 : i32
    return %c0_i32, %c0_i32_0, %c0_i32_1 : i32, i32, i32
  }
  func.func @transform_5(%arg0: i32) -> (i32, i32) {
    %c0_i32 = arith.constant 0 : i32
    %c0_i32_0 = arith.constant 0 : i32
    %c0_i32_1 = arith.constant 0 : i32
    return %c0_i32, %c0_i32_0 : i32, i32
  }
  func.func @transform_6(%arg0: i32) -> (i32, i32, i32, i32) {
    %c0_i32 = arith.constant 0 : i32
    %c0_i32_0 = arith.constant 0 : i32
    %c0_i32_1 = arith.constant 0 : i32
    %c0_i32_2 = arith.constant 0 : i32
    return %arg0, %c0_i32, %c0_i32_0, %c0_i32_1 : i32, i32, i32, i32
  }
  func.func @transform_7(%arg0: i32) -> (i32, i32, i32) {
    %c0_i32 = arith.constant 0 : i32
    %c0_i32_0 = arith.constant 0 : i32
    %c0_i32_1 = arith.constant 0 : i32
    return %arg0, %c0_i32, %c0_i32_0 : i32, i32, i32
  }
}

module attributes {stable_mosaic.version = 11 : i64} {
  func.func @_head_kernel(%arg0: i32, %arg1: memref<8x256xbf16, #tpu.memory_space<vmem>>, %arg2: memref<256x128xbf16, #tpu.memory_space<vmem>>, %arg3: memref<1x128xf32, #tpu.memory_space<vmem>>, %arg4: memref<128x128xbf16, #tpu.memory_space<vmem>>, %arg5: memref<1x128xf32, #tpu.memory_space<vmem>>, %arg6: memref<128x128xbf16, #tpu.memory_space<vmem>>, %arg7: memref<1x128xf32, #tpu.memory_space<vmem>>, %arg8: memref<8x128xf32, #tpu.memory_space<vmem>>) attributes {dimension_semantics = [#tpu.dimension_semantics<parallel>], iteration_bounds = array<i64: 2>, scalar_prefetch = 0 : i64, scratch_operands = 0 : i64, tpu.core_type = #tpu.core_type<tc>, window_params = [{transform_indices = @transform_0, window_bounds = array<i64: 8, 256>}, {pipeline_mode = #tpu.pipeline_mode<synchronous>, transform_indices = @transform_1, window_bounds = array<i64: 256, 128>}, {pipeline_mode = #tpu.pipeline_mode<synchronous>, transform_indices = @transform_2, window_bounds = array<i64: 1, 128>}, {pipeline_mode = #tpu.pipeline_mode<synchronous>, transform_indices = @transform_3, window_bounds = array<i64: 128, 128>}, {pipeline_mode = #tpu.pipeline_mode<synchronous>, transform_indices = @transform_4, window_bounds = array<i64: 1, 128>}, {pipeline_mode = #tpu.pipeline_mode<synchronous>, transform_indices = @transform_5, window_bounds = array<i64: 128, 128>}, {pipeline_mode = #tpu.pipeline_mode<synchronous>, transform_indices = @transform_6, window_bounds = array<i64: 1, 128>}, {transform_indices = @transform_7, window_bounds = array<i64: 8, 128>}]} {
    %c0 = arith.constant 0 : index
    %c0_0 = arith.constant 0 : index
    %0 = vector.load %arg1[%c0, %c0_0] : memref<8x256xbf16, #tpu.memory_space<vmem>>, vector<8x256xbf16>
    %c0_1 = arith.constant 0 : index
    %c0_2 = arith.constant 0 : index
    %1 = vector.load %arg2[%c0_1, %c0_2] : memref<256x128xbf16, #tpu.memory_space<vmem>>, vector<256x128xbf16>
    %cst = arith.constant dense<0.000000e+00> : vector<8x128xf32>
    %2 = tpu.matmul %0, %1, %cst {dimension_numbers = #tpu.dot_dimension_numbers<[1], [0], [0], [1], [0, 0, 1, 1], [], []>} : vector<8x256xbf16>, vector<256x128xbf16>, vector<8x128xf32> -> vector<8x128xf32>
    %c0_3 = arith.constant 0 : index
    %c0_4 = arith.constant 0 : index
    %3 = vector.load %arg3[%c0_3, %c0_4] : memref<1x128xf32, #tpu.memory_space<vmem>>, vector<1x128xf32>
    %4 = vector.broadcast %3 : vector<1x128xf32> to vector<8x128xf32>
    %5 = arith.addf %2, %4 : vector<8x128xf32>
    %cst_5 = arith.constant 0.000000e+00 : f32
    %6 = vector.broadcast %cst_5 : f32 to vector<8x128xf32>
    %7 = arith.maximumf %5, %6 : vector<8x128xf32>
    %8 = arith.truncf %7 : vector<8x128xf32> to vector<8x128xbf16>
    %c0_6 = arith.constant 0 : index
    %c0_7 = arith.constant 0 : index
    %9 = vector.load %arg4[%c0_6, %c0_7] : memref<128x128xbf16, #tpu.memory_space<vmem>>, vector<128x128xbf16>
    %cst_8 = arith.constant dense<0.000000e+00> : vector<8x128xf32>
    %10 = tpu.matmul %8, %9, %cst_8 {dimension_numbers = #tpu.dot_dimension_numbers<[1], [0], [0], [1], [0, 0, 1, 1], [], []>} : vector<8x128xbf16>, vector<128x128xbf16>, vector<8x128xf32> -> vector<8x128xf32>
    %c0_9 = arith.constant 0 : index
    %c0_10 = arith.constant 0 : index
    %11 = vector.load %arg5[%c0_9, %c0_10] : memref<1x128xf32, #tpu.memory_space<vmem>>, vector<1x128xf32>
    %12 = vector.broadcast %11 : vector<1x128xf32> to vector<8x128xf32>
    %13 = arith.addf %10, %12 : vector<8x128xf32>
    %cst_11 = arith.constant 0.000000e+00 : f32
    %14 = vector.broadcast %cst_11 : f32 to vector<8x128xf32>
    %15 = arith.maximumf %13, %14 : vector<8x128xf32>
    %16 = arith.truncf %15 : vector<8x128xf32> to vector<8x128xbf16>
    %c0_12 = arith.constant 0 : index
    %c0_13 = arith.constant 0 : index
    %17 = vector.load %arg6[%c0_12, %c0_13] : memref<128x128xbf16, #tpu.memory_space<vmem>>, vector<128x128xbf16>
    %cst_14 = arith.constant dense<0.000000e+00> : vector<8x128xf32>
    %18 = tpu.matmul %16, %17, %cst_14 {dimension_numbers = #tpu.dot_dimension_numbers<[1], [0], [0], [1], [0, 0, 1, 1], [], []>} : vector<8x128xbf16>, vector<128x128xbf16>, vector<8x128xf32> -> vector<8x128xf32>
    %c0_15 = arith.constant 0 : index
    %c0_16 = arith.constant 0 : index
    %19 = vector.load %arg7[%c0_15, %c0_16] : memref<1x128xf32, #tpu.memory_space<vmem>>, vector<1x128xf32>
    %20 = vector.broadcast %19 : vector<1x128xf32> to vector<8x128xf32>
    %21 = arith.addf %18, %20 : vector<8x128xf32>
    %c0_17 = arith.constant 0 : index
    %c0_18 = arith.constant 0 : index
    %22 = vector.load %arg8[%c0_17, %c0_18] : memref<8x128xf32, #tpu.memory_space<vmem>>, vector<8x128xf32>
    tpu.vector_store %arg8[%c0_17, %c0_18], %21 {strides = array<i32>} : memref<8x128xf32, #tpu.memory_space<vmem>>, vector<8x128xf32>,
    return
  }
  func.func @transform_0(%arg0: i32) -> (i32, i32) {
    %c0_i32 = arith.constant 0 : i32
    %c0_i32_0 = arith.constant 0 : i32
    return %arg0, %c0_i32 : i32, i32
  }
  func.func @transform_1(%arg0: i32) -> (i32, i32) {
    %c0_i32 = arith.constant 0 : i32
    %c0_i32_0 = arith.constant 0 : i32
    %c0_i32_1 = arith.constant 0 : i32
    return %c0_i32, %c0_i32_0 : i32, i32
  }
  func.func @transform_2(%arg0: i32) -> (i32, i32) {
    %c0_i32 = arith.constant 0 : i32
    %c0_i32_0 = arith.constant 0 : i32
    %c0_i32_1 = arith.constant 0 : i32
    return %c0_i32, %c0_i32_0 : i32, i32
  }
  func.func @transform_3(%arg0: i32) -> (i32, i32) {
    %c0_i32 = arith.constant 0 : i32
    %c0_i32_0 = arith.constant 0 : i32
    %c0_i32_1 = arith.constant 0 : i32
    return %c0_i32, %c0_i32_0 : i32, i32
  }
  func.func @transform_4(%arg0: i32) -> (i32, i32) {
    %c0_i32 = arith.constant 0 : i32
    %c0_i32_0 = arith.constant 0 : i32
    %c0_i32_1 = arith.constant 0 : i32
    return %c0_i32, %c0_i32_0 : i32, i32
  }
  func.func @transform_5(%arg0: i32) -> (i32, i32) {
    %c0_i32 = arith.constant 0 : i32
    %c0_i32_0 = arith.constant 0 : i32
    %c0_i32_1 = arith.constant 0 : i32
    return %c0_i32, %c0_i32_0 : i32, i32
  }
  func.func @transform_6(%arg0: i32) -> (i32, i32) {
    %c0_i32 = arith.constant 0 : i32
    %c0_i32_0 = arith.constant 0 : i32
    %c0_i32_1 = arith.constant 0 : i32
    return %c0_i32, %c0_i32_0 : i32, i32
  }
  func.func @transform_7(%arg0: i32) -> (i32, i32) {
    %c0_i32 = arith.constant 0 : i32
    %c0_i32_0 = arith.constant 0 : i32
    return %arg0, %c0_i32 : i32, i32
  }
}

</mosaic_0001>

<llo_original>
// kernel: gwnet_forward.5
$region0: #{gwnet_forward.5}
  #allocation0 [shape = 'u32[]', space=smem, size = 0x4, offset = 0x4, fixed_abs, tag = 'smem constant byte address 0x4 - core index']
  #allocation1 [shape = 'u32[144,128]{1,0:T(1,128)}', space=vmem, size = 0x12000, scoped, tag = 'internal scratch']
  %s0 = inlined_call_operand.vmem [shape: bf16[64,2], index: 0, kind: input, shape index: {}]
  %s1 = inlined_call_operand.vmem [shape: bf16[2,128], index: 1, kind: input, shape index: {}]
  %s2 = inlined_call_operand.vmem [shape: f32[1,128], index: 2, kind: input, shape index: {}]
  %s3 = inlined_call_operand.vmem [shape: bf16[64,128], index: 3, kind: output, shape index: {}]
  %s4 = sld [smem:[#allocation0]]
  $region45: #{gwnet_forward.5} parent=0
    _
  %s6 = ssub.s32 1, %s4
  %s7 = scalar_select 0, %s6, %s4
  loop: start=0, step=1, limit=4
  $region2: #{gwnet_forward.5} parent=0 // loop_pre_header
    _
  $region3: #{gwnet_forward.5} parent=0 // loop_header
    %s9 = sphi 0, %s13
    %p10 = scmp.ge.s32.totalorder %s9, 4
    %s19 = sphi 0, %s21
    %s22 = sphi 0, %s19
    %s23 = sphi 0, %s22
    %s39 = sphi 0, %s23
    %s43 = sphi 0, %s43
    %s45 = sphi 0, %s43
    %s46 = sphi 0, %s45
    %s60 = sphi 0, %s46
    %s64 = sphi 0, %s64
    %s66 = sphi 0, %s64
    %s67 = sphi 0, %s66
    %s81 = sphi 0, %s67
    %s87 = sphi 0, %s89
    %s90 = sphi 0, %s87
    %s91 = sphi 0, %s90
    %s107 = sphi 0, %s91
  $region4: #{gwnet_forward.5} parent=0 // loop_header_branch
    %12 = sbr.rel (%p10) target = $region8
  $region5: #{gwnet_forward.5} parent=0 // loop_body
    %s14 = ssub.s32 %s9, 1
    %s15 = ssub.s32 %s9, 2
    %s16 = sadd.s32 %s9, 1
    %s17 = ssub.s32 %s9, %s16
    %p18 = scmp.eq.s32.totalorder %s17, 0
    %s20 = sadd.s32 %s19, 1
    %s21 = scalar_select %p18, %s19, %s20
    %p24 = pneg %p18
    %p25 = scmp.eq.s32.totalorder %s9, 1
    %p26 = por %p24, %p25
    %p27 = scmp.ne.s32.totalorder %s19, %s22
    %p28 = scmp.eq.s32.totalorder %s9, 0
    %p29 = por %p27, %p28
    %p30 = scmp.ne.s32.totalorder %s19, %s22
    %p31 = scmp.eq.s32.totalorder %s14, 1
    %p32 = por %p30, %p31
    %p33 = scmp.ne.s32.totalorder %s22, %s23
    %p34 = scmp.eq.s32.totalorder %s14, 0
    %p35 = por %p33, %p34
    %p36 = scmp.ne.s32.totalorder %s22, %s23
    %p37 = scmp.eq.s32.totalorder %s15, 1
    %p38 = por %p36, %p37
    %p40 = scmp.ne.s32.totalorder %s23, %s39
    %p41 = scmp.eq.s32.totalorder %s15, 0
    %p42 = por %p40, %p41
    %s44 = sadd.s32 %s43, 1
    %p47 = scmp.eq.s32.totalorder %s9, 1
    %p48 = scmp.ne.s32.totalorder %s43, %s45
    %p49 = scmp.eq.s32.totalorder %s9, 0
    %p50 = por %p48, %p49
    %p51 = scmp.ne.s32.totalorder %s43, %s45
    %p52 = scmp.eq.s32.totalorder %s14, 1
    %p53 = por %p51, %p52
    %p54 = scmp.ne.s32.totalorder %s45, %s46
    %p55 = scmp.eq.s32.totalorder %s14, 0
    %p56 = por %p54, %p55
    %p57 = scmp.ne.s32.totalorder %s45, %s46
    %p58 = scmp.eq.s32.totalorder %s15, 1
    %p59 = por %p57, %p58
    %p61 = scmp.ne.s32.totalorder %s46, %s60
    %p62 = scmp.eq.s32.totalorder %s15, 0
    %p63 = por %p61, %p62
    %s65 = sadd.s32 %s64, 1
    %p68 = scmp.eq.s32.totalorder %s9, 1
    %p69 = scmp.ne.s32.totalorder %s64, %s66
    %p70 = scmp.eq.s32.totalorder %s9, 0
    %p71 = por %p69, %p70
    %p72 = scmp.ne.s32.totalorder %s64, %s66
    %p73 = scmp.eq.s32.totalorder %s14, 1
    %p74 = por %p72, %p73
    %p75 = scmp.ne.s32.totalorder %s66, %s67
    %p76 = scmp.eq.s32.totalorder %s14, 0
    %p77 = por %p75, %p76
    %p78 = scmp.ne.s32.totalorder %s66, %s67
    %p79 = scmp.eq.s32.totalorder %s15, 1
    %p80 = por %p78, %p79
    %p82 = scmp.ne.s32.totalorder %s67, %s81
    %p83 = scmp.eq.s32.totalorder %s15, 0
    %p84 = por %p82, %p83
    %s85 = ssub.s32 %s9, %s16
    %p86 = scmp.eq.s32.totalorder %s85, 0
    %s88 = sadd.s32 %s87, 1
    %s89 = scalar_select %p86, %s87, %s88
    %p92 = pneg %p86
    %p93 = scmp.eq.s32.totalorder %s9, 1
    %p94 = por %p92, %p93
    %p95 = scmp.ne.s32.totalorder %s87, %s90
    %p96 = scmp.eq.s32.totalorder %s9, 0
    %p97 = por %p95, %p96
    %p98 = scmp.ne.s32.totalorder %s87, %s90
    %p99 = scmp.eq.s32.totalorder %s14, 1
    %p100 = por %p98, %p99
    %p101 = scmp.ne.s32.totalorder %s90, %s91
    %p102 = scmp.eq.s32.totalorder %s14, 0
    %p103 = por %p101, %p102
    %p104 = scmp.ne.s32.totalorder %s90, %s91
    %p105 = scmp.eq.s32.totalorder %s15, 1
    %p106 = por %p104, %p105
    %p108 = scmp.ne.s32.totalorder %s91, %s107
    %p109 = scmp.eq.s32.totalorder %s15, 0
    %p110 = por %p108, %p109
    %p111 = scmp.le.s32.totalorder 1, %s9
    %p112 = scmp.lt.s32.totalorder %s9, 3
    %p113 = pnand %p111, %p112
    %p114 = pneg %p113
    // Predicated region
    $region9: #{gwnet_forward.5} parent=5 // pred_check
      _
    $region10: #{gwnet_forward.5} parent=5 // pred_check_branch
      %116 = sbr.rel (%p113) target = $region12
    $region11: #{gwnet_forward.5} parent=5 // pred_region
      %s117 = ssub.s32 %s9, 1
      // Predicated region
      $region13: #{gwnet_forward.5} parent=11 // pred_check
        %p118 = pneg %p56
      $region14: #{gwnet_forward.5} parent=11 // pred_check_branch
        %120 = sbr.rel (%p118) target = $region16
      $region15: #{gwnet_forward.5} parent=11 // pred_region
        _
      $region16: #{gwnet_forward.5} parent=11 // pred_fallthru
        _
      // Predicated region
      $region17: #{gwnet_forward.5} parent=11 // pred_check
        %p121 = pneg %p77
      $region18: #{gwnet_forward.5} parent=11 // pred_check_branch
        %123 = sbr.rel (%p121) target = $region20
      $region19: #{gwnet_forward.5} parent=11 // pred_region
        _
      $region20: #{gwnet_forward.5} parent=11 // pred_fallthru
        _
    $region12: #{gwnet_forward.5} parent=5 // pred_fallthru
      _
    %p124 = scmp.lt.s32.totalorder %s9, 2
    // Predicated region
    $region21: #{gwnet_forward.5} parent=5 // pred_check
      %p125 = pneg %p124
    $region22: #{gwnet_forward.5} parent=5 // pred_check_branch
      %127 = sbr.rel (%p125) target = $region24
    $region23: #{gwnet_forward.5} parent=5 // pred_region
      // Predicated region
      $region25: #{gwnet_forward.5} parent=23 // pred_check
        %p128 = pneg %p29
      $region26: #{gwnet_forward.5} parent=23 // pred_check_branch
        %130 = sbr.rel (%p128) target = $region28
      $region27: #{gwnet_forward.5} parent=23 // pred_region
        %s131 = smul.u32 4, %s9
        %p132 = scmp.lt.s32.totalorder %s131, 7
        %s133 = scalar_select %p132, %s131, 7
        %s134 = smul.addr %s133, 4
        %s135 = scalar_lea.vmem %s0, %s134
        %s136 = smul.u32 4, %s9
      $region28: #{gwnet_forward.5} parent=23 // pred_fallthru
        _
    $region24: #{gwnet_forward.5} parent=5 // pred_fallthru
      _
    %p137 = scmp.le.s32.totalorder 1, %s9
    %p138 = scmp.lt.s32.totalorder %s9, 3
    %p139 = pnand %p137, %p138
    %p140 = pneg %p139
    // Predicated region
    $region29: #{gwnet_forward.5} parent=5 // pred_check
      _
    $region30: #{gwnet_forward.5} parent=5 // pred_check_branch
      %142 = sbr.rel (%p139) target = $region32
    $region31: #{gwnet_forward.5} parent=5 // pred_region
      %s143 = ssub.s32 %s9, 1
      %s144 = smul.u32 4, %s14
      %p145 = scmp.lt.s32.totalorder %s144, 7
      %s146 = scalar_select %p145, %s144, 7
      %s147 = smul.addr %s146, 4
      %s148 = scalar_lea.vmem %s0, %s147
      %p149 = pneg %p35
      %p150 = pneg %p32
      %p151 = pneg %p56
      %p152 = pneg %p53
      %p153 = pneg %p77
      %p154 = pneg %p74
      %p155 = pneg %p103
      %p156 = pneg %p100
      %s157 = smul.u32 4, %s14
      %p158 = scmp.lt.s32.totalorder %s157, 7
      %s159 = scalar_select %p158, %s157, 7
      %s160 = smul.addr %s159, 4
      %s161 = scalar_lea.vmem %s3, %s160
      %s162 = smul.u32 4, %s14
      %p163 = scmp.lt.s32.totalorder %s162, 7
      %s164 = scalar_select %p163, %s162, 7
      %s165 = smul.addr %s164, 4
      %s166 = scalar_lea.vmem %s0, %s165
      %s167 = smul.u32 4, %s14
      %s168 = smul.u32 4, %s14
      %p169 = scmp.lt.s32.totalorder %s168, 7
      %s170 = scalar_select %p169, %s168, 7
      %s171 = smul.addr %s170, 4
      %s172 = scalar_lea.vmem %s3, %s171
      %s173 = smul.u32 4, %s14
      %v175 = vld [vmem:[%s166] sm:$0xf]
      %v176 = vld [vmem:[%s166 + $0x4] sm:$0xf]
      %v177 = vld [vmem:[%s166 + $0x8] sm:$0xf]
      %v178 = vld [vmem:[%s166 + $0xc] sm:$0xf]
      %v179 = vld [vmem:[%s1] sm:$0x1]
      %v180 = vld [vmem:[%s2] sm:$0x1]
      %v182 = vlaneseq
      %v183 = vshrl.u32 %v182, 7
      %v184 = vsub.s32 0, %v183
      %v185 = vrot.slane %v180, %v184
      %v191 = vunpack.c.l.b16 %v175
      %v192 = vunpack.c.l.b16 %v176
      %v193 = vunpack.c.l.b16 %v177
      %v194 = vunpack.c.l.b16 %v178
      %v195 = vpack.c.b16 %v192, %v191
      %v196 = vpack.c.b16 %v194, %v193
      %vm197 = vcmask 15360
      %v199 = vsel %vm197, %v195, 0
      %v202 = vsel %vm197, %v196, 0
      %vm204 = vcmask 1040384
      %v206 = vsel %vm204, %v179, 0
      %208 = vmatprep.subr.bf16.mxu0 0
      %209 = vmatpush1.bf16.msra.mxu0 %v206
      %210 = vmatprep.subr.bf16.mxu0 0
      %211 = vmatpush1.bf16.msra.mxu0 0
      %212 = vmatprep.subr.bf16.mxu0 0
      %213 = vmatpush1.bf16.msra.mxu0 0
      %214 = vmatprep.subr.bf16.mxu0 0
      %215 = vmatpush1.bf16.msra.mxu0 0
      %216 = vmatprep.subr.bf16.mxu0 0
      %217 = vmatpush1.bf16.msra.mxu0 0
      %218 = vmatprep.subr.bf16.mxu0 0
      %219 = vmatpush1.bf16.msra.mxu0 0
      %220 = vmatprep.subr.bf16.mxu0 0
      %221 = vmatpush1.bf16.msra.mxu0 0
      %222 = vmatprep.subr.bf16.mxu0 0
      %223 = vmatpush1.bf16.msra.mxu0 0
      %224 = vmatprep.subr.bf16.mxu0 0
      %225 = vmatpush1.bf16.msra.mxu0 0
      %226 = vmatprep.subr.bf16.mxu0 0
      %227 = vmatpush1.bf16.msra.mxu0 0
      %228 = vmatprep.subr.bf16.mxu0 0
      %229 = vmatpush1.bf16.msra.mxu0 0
      %230 = vmatprep.subr.bf16.mxu0 0
      %231 = vmatpush1.bf16.msra.mxu0 0
      %232 = vmatprep.subr.bf16.mxu0 0
      %233 = vmatpush1.bf16.msra.mxu0 0
      %234 = vmatprep.subr.bf16.mxu0 0
      %235 = vmatpush1.bf16.msra.mxu0 0
      %236 = vmatprep.subr.bf16.mxu0 0
      %237 = vmatpush1.bf16.msra.mxu0 0
      %238 = vmatprep.subr.bf16.mxu0 0
      %239 = vmatpush1.bf16.msra.mxu0 0
      %240 = vmatprep.mubr.bf16.mxu0 0
      %241 = vmatmul.mubr.bf16.gmra.mrb[0].mxu0 %v199
      %v242 = vpop.f32.mrb[0].mxu0
      %v243 = vadd.f32 %v185, %v242
      %v244 = vpop.f32.mrb[0].mxu0
      %v245 = vpop.f32.mrb[0].mxu0
      %v246 = vadd.f32 %v185, %v245
      %v247 = vpop.f32.mrb[0].mxu0
      %248 = vmatprep.mubr.bf16.mxu0 0
      %249 = vmatmul.mubr.bf16.gmra.mrb[0].mxu0 %v202
      %v250 = vpop.f32.mrb[0].mxu0
      %v251 = vadd.f32 %v185, %v250
      %v252 = vpop.f32.mrb[0].mxu0
      %v253 = vpop.f32.mrb[0].mxu0
      %v254 = vadd.f32 %v185, %v253
      %v255 = vpop.f32.mrb[0].mxu0
      %256 = vdwg.mxu0
      %v257 = vpack.c.bf16 %v246, %v243
      %v258 = vpack.c.bf16 %v254, %v251
      %v261 = vunpack.c.l.b16 %v257
      %v262 = vunpack.c.h.b16 %v257
      %v263 = vunpack.c.l.b16 %v258
      %v264 = vunpack.c.h.b16 %v258
      %v265 = vpack.c.b16 %v261, %v261
      %v266 = vpack.c.b16 %v262, %v262
      %v267 = vpack.c.b16 %v263, %v263
      %v268 = vpack.c.b16 %v264, %v264
      %273 = vst [vmem:[%s172] sm:$0xf] %v265
      %274 = vst [vmem:[%s172 + $0x4] sm:$0xf] %v266
      %275 = vst [vmem:[%s172 + $0x8] sm:$0xf] %v267
      %276 = vst [vmem:[%s172 + $0xc] sm:$0xf] %v268
      %s277 = smul.u32 4, %s14
      %p278 = scmp.lt.s32.totalorder %s277, 7
      %s279 = scalar_select %p278, %s277, 7
      %s280 = smul.addr %s279, 4
      %s281 = scalar_lea.vmem %s3, %s280
      // Predicated region
      $region33: #{gwnet_forward.5} parent=31 // pred_check
        %p282 = pneg %p100
      $region34: #{gwnet_forward.5} parent=31 // pred_check_branch
        %284 = sbr.rel (%p282) target = $region36
      $region35: #{gwnet_forward.5} parent=31 // pred_region
        %s285 = smul.u32 4, %s14
      $region36: #{gwnet_forward.5} parent=31 // pred_fallthru
        _
    $region32: #{gwnet_forward.5} parent=5 // pred_fallthru
      _
    %p286 = scmp.le.s32.totalorder 2, %s9
    // Predicated region
    $region37: #{gwnet_forward.5} parent=5 // pred_check
      %p287 = pneg %p286
    $region38: #{gwnet_forward.5} parent=5 // pred_check_branch
      %289 = sbr.rel (%p287) target = $region40
    $region39: #{gwnet_forward.5} parent=5 // pred_region
      %s290 = ssub.s32 %s9, 2
      // Predicated region
      $region41: #{gwnet_forward.5} parent=39 // pred_check
        %p291 = pneg %p106
      $region42: #{gwnet_forward.5} parent=39 // pred_check_branch
        %293 = sbr.rel (%p291) target = $region44
      $region43: #{gwnet_forward.5} parent=39 // pred_region
        %s294 = smul.u32 4, %s15
        %p295 = scmp.lt.s32.totalorder %s294, 7
        %s296 = scalar_select %p295, %s294, 7
        %s297 = smul.addr %s296, 4
        %s298 = scalar_lea.vmem %s3, %s297
      $region44: #{gwnet_forward.5} parent=39 // pred_fallthru
        _
    $region40: #{gwnet_forward.5} parent=5 // pred_fallthru
      _
  $region6: #{gwnet_forward.5} parent=0 // loop_footer
    %s13 = sadd.s32 1, %s9
  $region7: #{gwnet_forward.5} parent=0 // loop_footer_branch
    %8 = sbr.rel target = $region3
  $region8: #{gwnet_forward.5} parent=0 // loop_exit
    _

// kernel: gwnet_forward.6
$region0: #{gwnet_forward.6}
  #allocation0 [shape = 'u32[]', space=smem, size = 0x4, offset = 0x4, fixed_abs, tag = 'smem constant byte address 0x4 - core index']
  #allocation1 [shape = 'u32[144,128]{1,0:T(1,128)}', space=vmem, size = 0x12000, scoped, tag = 'internal scratch']
  %s0 = inlined_call_operand.vmem [shape: f32[2,8,8], index: 0, kind: input, shape index: {}]
  %s1 = inlined_call_operand.vmem [shape: f32[8,10], index: 1, kind: input, shape index: {}]
  %s2 = inlined_call_operand.vmem [shape: f32[10,8], index: 2, kind: input, shape index: {}]
  %s3 = inlined_call_operand.vmem [shape: f32[7,8,8], index: 3, kind: output, shape index: {}]
  %s4 = sld [smem:[#allocation0]]
  $region22: #{gwnet_forward.6} parent=0
    _
  %s6 = ssub.s32 1, %s4
  %s7 = scalar_select 0, %s6, %s4
  // Predicated region
  $region2: #{gwnet_forward.6} parent=0 // pred_check
    _
  $region3: #{gwnet_forward.6} parent=0 // pred_check_branch
    %9 = sbr.rel (0) target = $region5
  $region4: #{gwnet_forward.6} parent=0 // pred_region
    _
  $region5: #{gwnet_forward.6} parent=0 // pred_fallthru
    _
  // Predicated region
  $region6: #{gwnet_forward.6} parent=0 // pred_check
    _
  $region7: #{gwnet_forward.6} parent=0 // pred_check_branch
    %11 = sbr.rel (0) target = $region9
  $region8: #{gwnet_forward.6} parent=0 // pred_region
    _
  $region9: #{gwnet_forward.6} parent=0 // pred_fallthru
    _
  // Predicated region
  $region10: #{gwnet_forward.6} parent=0 // pred_check
    _
  $region11: #{gwnet_forward.6} parent=0 // pred_check_branch
    %13 = sbr.rel (0) target = $region13
  $region12: #{gwnet_forward.6} parent=0 // pred_region
    _
  $region13: #{gwnet_forward.6} parent=0 // pred_fallthru
    _
  %v14 = vld [vmem:[%s1] sm:$0xff]
  %v15 = vld [vmem:[%s2] sm:$0xff]
  %v16 = vld [vmem:[%s2 + $0x8] sm:$0x3]
  %vm17 = vcmask 80896
  %v19 = vsel %vm17, %v14, 0
  %vm21 = vcmask 1041408
  %v23 = vsel %vm21, %v16, 0
  %25 = vmatprep.subr.mxu0 0.0
  %26 = vmatpush1.msra.mxu0 %v15
  %27 = vmatprep.subr.mxu0 0.0
  %28 = vmatpush1.msra.mxu0 %v23
  %29 = vmatprep.subr.mxu0 0.0
  %30 = vmatpush1.msra.mxu0 0.0
  %31 = vmatprep.subr.mxu0 0.0
  %32 = vmatpush1.msra.mxu0 0.0
  %33 = vmatprep.subr.mxu0 0.0
  %34 = vmatpush1.msra.mxu0 0.0
  %35 = vmatprep.subr.mxu0 0.0
  %36 = vmatpush1.msra.mxu0 0.0
  %37 = vmatprep.subr.mxu0 0.0
  %38 = vmatpush1.msra.mxu0 0.0
  %39 = vmatprep.subr.mxu0 0.0
  %40 = vmatpush1.msra.mxu0 0.0
  %41 = vmatprep.subr.mxu0 0.0
  %42 = vmatpush1.msra.mxu0 0.0
  %43 = vmatprep.subr.mxu0 0.0
  %44 = vmatpush1.msra.mxu0 0.0
  %45 = vmatprep.subr.mxu0 0.0
  %46 = vmatpush1.msra.mxu0 0.0
  %47 = vmatprep.subr.mxu0 0.0
  %48 = vmatpush1.msra.mxu0 0.0
  %49 = vmatprep.subr.mxu0 0.0
  %50 = vmatpush1.msra.mxu0 0.0
  %51 = vmatprep.subr.mxu0 0.0
  %52 = vmatpush1.msra.mxu0 0.0
  %53 = vmatprep.subr.mxu0 0.0
  %54 = vmatpush1.msra.mxu0 0.0
  %55 = vmatprep.subr.mxu0 0.0
  %56 = vmatpush1.msra.mxu0 0.0
  %57 = vmatprep.subr.mxu0 0.0
  %58 = vmatpush1.msra.mxu0 0.0
  %59 = vmatprep.subr.mxu0 0.0
  %60 = vmatpush1.msra.mxu0 0.0
  %61 = vmatprep.subr.mxu0 0.0
  %62 = vmatpush1.msra.mxu0 0.0
  %63 = vmatprep.subr.mxu0 0.0
  %64 = vmatpush1.msra.mxu0 0.0
  %65 = vmatprep.subr.mxu0 0.0
  %66 = vmatpush1.msra.mxu0 0.0
  %67 = vmatprep.subr.mxu0 0.0
  %68 = vmatpush1.msra.mxu0 0.0
  %69 = vmatprep.subr.mxu0 0.0
  %70 = vmatpush1.msra.mxu0 0.0
  %71 = vmatprep.subr.mxu0 0.0
  %72 = vmatpush1.msra.mxu0 0.0
  %73 = vmatprep.subr.mxu0 0.0
  %74 = vmatpush1.msra.mxu0 0.0
  %75 = vmatprep.subr.mxu0 0.0
  %76 = vmatpush1.msra.mxu0 0.0
  %77 = vmatprep.subr.mxu0 0.0
  %78 = vmatpush1.msra.mxu0 0.0
  %79 = vmatprep.subr.mxu0 0.0
  %80 = vmatpush1.msra.mxu0 0.0
  %81 = vmatprep.subr.mxu0 0.0
  %82 = vmatpush1.msra.mxu0 0.0
  %83 = vmatprep.subr.mxu0 0.0
  %84 = vmatpush1.msra.mxu0 0.0
  %85 = vmatprep.subr.mxu0 0.0
  %86 = vmatpush1.msra.mxu0 0.0
  %87 = vmatprep.subr.mxu0 0.0
  %88 = vmatpush1.msra.mxu0 0.0
  %89 = vmatprep.mubr.f32.mxu0 0.0
  %90 = vmatmul.mubr.f32.gmra.mrb[0].mxu0 %v19
  %v91 = vpop.f32.mrb[0].mxu0
  %v92 = vadd.f32 0.0, %v91
  %v93 = vpop.f32.mrb[0].mxu0
  %94 = vdwg.mxu0
  %v95 = vmax.f32 %v92, 0.0
  %vm96 = vcmask 64512
  %v97 = vsel %vm96, %v95, -inf
  %v98 = vrot.slane %v97, 4
  %v99 = vmax.f32 %v97, %v98
  %v100 = vrot.slane %v99, 2
  %v101 = vmax.f32 %v99, %v100
  %v102 = vrot.slane %v101, 1
  %v103 = vmax.f32 %v101, %v102
  %v104 = vsub.f32 %v95, %v103
  %v105 = vmul.f32 %v104, 1.442695
  %v106 = vpow.pop %v105
  %v107 = vsel %vm96, %v106, 0.0
  %v108 = vrot.slane %v107, 4
  %v109 = vadd.f32 %v107, %v108
  %v110 = vrot.slane %v109, 2
  %v111 = vadd.f32 %v109, %v110
  %v112 = vrot.slane %v111, 1
  %v113 = vadd.f32 %v111, %v112
  %v114 = vrcp.pop %v113
  %v115 = vmul.f32 %v106, %v114
  %v116 = vlaneseq
  %v117 = vshrl.u32 %v116, 7
  %v118 = vlaneseq
  %v119 = vand.u32 %v118, 127
  %vm120 = vcmp.eq.s32.totalorder %v117, %v119
  %v121 = vsel %vm120, 1, 0
  %v122 = vcvt.s32.f32 %v121
  %123 = vst.msk [vmem:[%s3] sm:$0xff] %vm96, %v122
  %v124 = vld [vmem:[%s0] sm:$0xff]
  %s125 = scalar_lea.vmem %s3, 8
  %126 = vst.msk [vmem:[%s125] sm:$0xff] %vm96, %v124
  %v128 = vsel %vm96, %v124, 0
  %130 = vmatprep.subr.mxu0 0.0
  %131 = vmatpush1.msra.mxu0 %v124
  %132 = vmatprep.subr.mxu0 0.0
  %133 = vmatpush1.msra.mxu0 0.0
  %134 = vmatprep.subr.mxu0 0.0
  %135 = vmatpush1.msra.mxu0 0.0
  %136 = vmatprep.subr.mxu0 0.0
  %137 = vmatpush1.msra.mxu0 0.0
  %138 = vmatprep.subr.mxu0 0.0
  %139 = vmatpush1.msra.mxu0 0.0
  %140 = vmatprep.subr.mxu0 0.0
  %141 = vmatpush1.msra.mxu0 0.0
  %142 = vmatprep.subr.mxu0 0.0
  %143 = vmatpush1.msra.mxu0 0.0
  %144 = vmatprep.subr.mxu0 0.0
  %145 = vmatpush1.msra.mxu0 0.0
  %146 = vmatprep.subr.mxu0 0.0
  %147 = vmatpush1.msra.mxu0 0.0
  %148 = vmatprep.subr.mxu0 0.0
  %149 = vmatpush1.msra.mxu0 0.0
  %150 = vmatprep.subr.mxu0 0.0
  %151 = vmatpush1.msra.mxu0 0.0
  %152 = vmatprep.subr.mxu0 0.0
  %153 = vmatpush1.msra.mxu0 0.0
  %154 = vmatprep.subr.mxu0 0.0
  %155 = vmatpush1.msra.mxu0 0.0
  %156 = vmatprep.subr.mxu0 0.0
  %157 = vmatpush1.msra.mxu0 0.0
  %158 = vmatprep.subr.mxu0 0.0
  %159 = vmatpush1.msra.mxu0 0.0
  %160 = vmatprep.subr.mxu0 0.0
  %161 = vmatpush1.msra.mxu0 0.0
  %162 = vmatprep.subr.mxu0 0.0
  %163 = vmatpush1.msra.mxu0 0.0
  %164 = vmatprep.subr.mxu0 0.0
  %165 = vmatpush1.msra.mxu0 0.0
  %166 = vmatprep.subr.mxu0 0.0
  %167 = vmatpush1.msra.mxu0 0.0
  %168 = vmatprep.subr.mxu0 0.0
  %169 = vmatpush1.msra.mxu0 0.0
  %170 = vmatprep.subr.mxu0 0.0
  %171 = vmatpush1.msra.mxu0 0.0
  %172 = vmatprep.subr.mxu0 0.0
  %173 = vmatpush1.msra.mxu0 0.0
  %174 = vmatprep.subr.mxu0 0.0
  %175 = vmatpush1.msra.mxu0 0.0
  %176 = vmatprep.subr.mxu0 0.0
  %177 = vmatpush1.msra.mxu0 0.0
  %178 = vmatprep.subr.mxu0 0.0
  %179 = vmatpush1.msra.mxu0 0.0
  %180 = vmatprep.subr.mxu0 0.0
  %181 = vmatpush1.msra.mxu0 0.0
  %182 = vmatprep.subr.mxu0 0.0
  %183 = vmatpush1.msra.mxu0 0.0
  %184 = vmatprep.subr.mxu0 0.0
  %185 = vmatpush1.msra.mxu0 0.0
  %186 = vmatprep.subr.mxu0 0.0
  %187 = vmatpush1.msra.mxu0 0.0
  %188 = vmatprep.subr.mxu0 0.0
  %189 = vmatpush1.msra.mxu0 0.0
  %190 = vmatprep.subr.mxu0 0.0
  %191 = vmatpush1.msra.mxu0 0.0
  %192 = vmatprep.subr.mxu0 0.0
  %193 = vmatpush1.msra.mxu0 0.0
  %194 = vmatprep.mubr.f32.mxu0 0.0
  %195 = vmatmul.mubr.f32.gmra.mrb[0].mxu0 %v128
  %v196 = vpop.f32.mrb[0].mxu0
  %v197 = vadd.f32 0.0, %v196
  %v198 = vpop.f32.mrb[0].mxu0
  %199 = vdwg.mxu0
  %s200 = scalar_lea.vmem %s3, 16
  %201 = vst.msk [vmem:[%s200] sm:$0xff] %vm96, %v197
  %s202 = scalar_lea.vmem %s0, 8
  %v203 = vld [vmem:[%s202] sm:$0xff]
  %s204 = scalar_lea.vmem %s3, 24
  %205 = vst.msk [vmem:[%s204] sm:$0xff] %vm96, %v203
  %v207 = vsel %vm96, %v203, 0
  %209 = vmatprep.subr.mxu0 0.0
  %210 = vmatpush1.msra.mxu0 %v203
  %211 = vmatprep.subr.mxu0 0.0
  %212 = vmatpush1.msra.mxu0 0.0
  %213 = vmatprep.subr.mxu0 0.0
  %214 = vmatpush1.msra.mxu0 0.0
  %215 = vmatprep.subr.mxu0 0.0
  %216 = vmatpush1.msra.mxu0 0.0
  %217 = vmatprep.subr.mxu0 0.0
  %218 = vmatpush1.msra.mxu0 0.0
  %219 = vmatprep.subr.mxu0 0.0
  %220 = vmatpush1.msra.mxu0 0.0
  %221 = vmatprep.subr.mxu0 0.0
  %222 = vmatpush1.msra.mxu0 0.0
  %223 = vmatprep.subr.mxu0 0.0
  %224 = vmatpush1.msra.mxu0 0.0
  %225 = vmatprep.subr.mxu0 0.0
  %226 = vmatpush1.msra.mxu0 0.0
  %227 = vmatprep.subr.mxu0 0.0
  %228 = vmatpush1.msra.mxu0 0.0
  %229 = vmatprep.subr.mxu0 0.0
  %230 = vmatpush1.msra.mxu0 0.0
  %231 = vmatprep.subr.mxu0 0.0
  %232 = vmatpush1.msra.mxu0 0.0
  %233 = vmatprep.subr.mxu0 0.0
  %234 = vmatpush1.msra.mxu0 0.0
  %235 = vmatprep.subr.mxu0 0.0
  %236 = vmatpush1.msra.mxu0 0.0
  %237 = vmatprep.subr.mxu0 0.0
  %238 = vmatpush1.msra.mxu0 0.0
  %239 = vmatprep.subr.mxu0 0.0
  %240 = vmatpush1.msra.mxu0 0.0
  %241 = vmatprep.subr.mxu0 0.0
  %242 = vmatpush1.msra.mxu0 0.0
  %243 = vmatprep.subr.mxu0 0.0
  %244 = vmatpush1.msra.mxu0 0.0
  %245 = vmatprep.subr.mxu0 0.0
  %246 = vmatpush1.msra.mxu0 0.0
  %247 = vmatprep.subr.mxu0 0.0
  %248 = vmatpush1.msra.mxu0 0.0
  %249 = vmatprep.subr.mxu0 0.0
  %250 = vmatpush1.msra.mxu0 0.0
  %251 = vmatprep.subr.mxu0 0.0
  %252 = vmatpush1.msra.mxu0 0.0
  %253 = vmatprep.subr.mxu0 0.0
  %254 = vmatpush1.msra.mxu0 0.0
  %255 = vmatprep.subr.mxu0 0.0
  %256 = vmatpush1.msra.mxu0 0.0
  %257 = vmatprep.subr.mxu0 0.0
  %258 = vmatpush1.msra.mxu0 0.0
  %259 = vmatprep.subr.mxu0 0.0
  %260 = vmatpush1.msra.mxu0 0.0
  %261 = vmatprep.subr.mxu0 0.0
  %262 = vmatpush1.msra.mxu0 0.0
  %263 = vmatprep.subr.mxu0 0.0
  %264 = vmatpush1.msra.mxu0 0.0
  %265 = vmatprep.subr.mxu0 0.0
  %266 = vmatpush1.msra.mxu0 0.0
  %267 = vmatprep.subr.mxu0 0.0
  %268 = vmatpush1.msra.mxu0 0.0
  %269 = vmatprep.subr.mxu0 0.0
  %270 = vmatpush1.msra.mxu0 0.0
  %271 = vmatprep.subr.mxu0 0.0
  %272 = vmatpush1.msra.mxu0 0.0
  %273 = vmatprep.mubr.f32.mxu0 0.0
  %274 = vmatmul.mubr.f32.gmra.mrb[0].mxu0 %v207
  %v275 = vpop.f32.mrb[0].mxu0
  %v276 = vadd.f32 0.0, %v275
  %v277 = vpop.f32.mrb[0].mxu0
  %278 = vdwg.mxu0
  %s279 = scalar_lea.vmem %s3, 32
  %280 = vst.msk [vmem:[%s279] sm:$0xff] %vm96, %v276
  %s281 = scalar_lea.vmem %s3, 40
  %282 = vst.msk [vmem:[%s281] sm:$0xff] %vm96, %v115
  %v284 = vsel %vm96, %v115, 0
  %286 = vmatprep.subr.mxu0 0.0
  %287 = vmatpush1.msra.mxu0 %v115
  %288 = vmatprep.subr.mxu0 0.0
  %289 = vmatpush1.msra.mxu0 0.0
  %290 = vmatprep.subr.mxu0 0.0
  %291 = vmatpush1.msra.mxu0 0.0
  %292 = vmatprep.subr.mxu0 0.0
  %293 = vmatpush1.msra.mxu0 0.0
  %294 = vmatprep.subr.mxu0 0.0
  %295 = vmatpush1.msra.mxu0 0.0
  %296 = vmatprep.subr.mxu0 0.0
  %297 = vmatpush1.msra.mxu0 0.0
  %298 = vmatprep.subr.mxu0 0.0
  %299 = vmatpush1.msra.mxu0 0.0
  %300 = vmatprep.subr.mxu0 0.0
  %301 = vmatpush1.msra.mxu0 0.0
  %302 = vmatprep.subr.mxu0 0.0
  %303 = vmatpush1.msra.mxu0 0.0
  %304 = vmatprep.subr.mxu0 0.0
  %305 = vmatpush1.msra.mxu0 0.0
  %306 = vmatprep.subr.mxu0 0.0
  %307 = vmatpush1.msra.mxu0 0.0
  %308 = vmatprep.subr.mxu0 0.0
  %309 = vmatpush1.msra.mxu0 0.0
  %310 = vmatprep.subr.mxu0 0.0
  %311 = vmatpush1.msra.mxu0 0.0
  %312 = vmatprep.subr.mxu0 0.0
  %313 = vmatpush1.msra.mxu0 0.0
  %314 = vmatprep.subr.mxu0 0.0
  %315 = vmatpush1.msra.mxu0 0.0
  %316 = vmatprep.subr.mxu0 0.0
  %317 = vmatpush1.msra.mxu0 0.0
  %318 = vmatprep.subr.mxu0 0.0
  %319 = vmatpush1.msra.mxu0 0.0
  %320 = vmatprep.subr.mxu0 0.0
  %321 = vmatpush1.msra.mxu0 0.0
  %322 = vmatprep.subr.mxu0 0.0
  %323 = vmatpush1.msra.mxu0 0.0
  %324 = vmatprep.subr.mxu0 0.0
  %325 = vmatpush1.msra.mxu0 0.0
  %326 = vmatprep.subr.mxu0 0.0
  %327 = vmatpush1.msra.mxu0 0.0
  %328 = vmatprep.subr.mxu0 0.0
  %329 = vmatpush1.msra.mxu0 0.0
  %330 = vmatprep.subr.mxu0 0.0
  %331 = vmatpush1.msra.mxu0 0.0
  %332 = vmatprep.subr.mxu0 0.0
  %333 = vmatpush1.msra.mxu0 0.0
  %334 = vmatprep.subr.mxu0 0.0
  %335 = vmatpush1.msra.mxu0 0.0
  %336 = vmatprep.subr.mxu0 0.0
  %337 = vmatpush1.msra.mxu0 0.0
  %338 = vmatprep.subr.mxu0 0.0
  %339 = vmatpush1.msra.mxu0 0.0
  %340 = vmatprep.subr.mxu0 0.0
  %341 = vmatpush1.msra.mxu0 0.0
  %342 = vmatprep.subr.mxu0 0.0
  %343 = vmatpush1.msra.mxu0 0.0
  %344 = vmatprep.subr.mxu0 0.0
  %345 = vmatpush1.msra.mxu0 0.0
  %346 = vmatprep.subr.mxu0 0.0
  %347 = vmatpush1.msra.mxu0 0.0
  %348 = vmatprep.subr.mxu0 0.0
  %349 = vmatpush1.msra.mxu0 0.0
  %350 = vmatprep.mubr.f32.mxu0 0.0
  %351 = vmatmul.mubr.f32.gmra.mrb[0].mxu0 %v284
  %v352 = vpop.f32.mrb[0].mxu0
  %v353 = vadd.f32 0.0, %v352
  %v354 = vpop.f32.mrb[0].mxu0
  %355 = vdwg.mxu0
  %s356 = scalar_lea.vmem %s3, 48
  %357 = vst.msk [vmem:[%s356] sm:$0xff] %vm96, %v353
  // Predicated region
  $region14: #{gwnet_forward.6} parent=0 // pred_check
    _
  $region15: #{gwnet_forward.6} parent=0 // pred_check_branch
    %359 = sbr.rel (0) target = $region17
  $region16: #{gwnet_forward.6} parent=0 // pred_region
    _
  $region17: #{gwnet_forward.6} parent=0 // pred_fallthru
    _
  // Predicated region
  $region18: #{gwnet_forward.6} parent=0 // pred_check
    _
  $region19: #{gwnet_forward.6} parent=0 // pred_check_branch
    %361 = sbr.rel (0) target = $region21
  $region20: #{gwnet_forward.6} parent=0 // pred_region
    _
  $region21: #{gwnet_forward.6} parent=0 // pred_fallthru
    _

// kernel: gwnet_forward.8
$region0: #{gwnet_forward.8}
  #allocation0 [shape = 'u32[]', space=smem, size = 0x4, offset = 0x4, fixed_abs, tag = 'smem constant byte address 0x4 - core index']
  #allocation1 [shape = 'u32[144,128]{1,0:T(1,128)}', space=vmem, size = 0x12000, scoped, tag = 'internal scratch']
  %s0 = inlined_call_operand.vmem [shape: bf16[2,3,8,128], index: 0, kind: input, shape index: {}]
  %s1 = inlined_call_operand.vmem [shape: bf16[7,8,8], index: 1, kind: input, shape index: {}]
  %s2 = inlined_call_operand.vmem [shape: bf16[2,128,256], index: 2, kind: input, shape index: {}]
  %s3 = inlined_call_operand.vmem [shape: f32[1,256], index: 3, kind: input, shape index: {}]
  %s4 = inlined_call_operand.vmem [shape: bf16[7,128,128], index: 4, kind: input, shape index: {}]
  %s5 = inlined_call_operand.vmem [shape: f32[1,128], index: 5, kind: input, shape index: {}]
  %s6 = inlined_call_operand.hbm [shape: bf16[2,1,8,128], index: 6, kind: output, shape index: {0}]
  %s7 = inlined_call_operand.vmem [shape: bf16[2,8,128], index: 7, kind: output, shape index: {1}]
  %8 = xla_tuple %s6, %s7
  %s9 = sld [smem:[#allocation0]]
  $region65: #{gwnet_forward.8} parent=0
    _
  %s11 = ssub.s32 1, %s9
  %s12 = scalar_select 0, %s11, %s9
  $region1: #{gwnet_forward.8} parent=0
    #allocation2 [shape = 'u8[4096]{0}', space=vmem, size = 0x1000, scoped, tag = 'output window, operand 0']
    #allocation3 [shape = 's32[2]{0}', space=sflag, size = 0x8, scoped, tag = 'scoped memory for gwnet_forward.8']
    %13 = vsyncpa [#allocation3], 0
    %s14 = scalar_lea.sflag [#allocation3], 1
    %15 = vsyncpa %s14, 0
    loop: start=0, step=1, limit=4
    $region2: #{gwnet_forward.8} parent=1 // loop_pre_header
      _
    $region3: #{gwnet_forward.8} parent=1 // loop_header
      %s17 = sphi 0, %s21
      %p18 = scmp.ge.s32.totalorder %s17, 4
      %s27 = sphi 0, %s29
      %s30 = sphi 0, %s27
      %s31 = sphi 0, %s30
      %s47 = sphi 0, %s31
      %s51 = sphi 0, %s51
      %s53 = sphi 0, %s51
      %s54 = sphi 0, %s53
      %s68 = sphi 0, %s54
      %s72 = sphi 0, %s72
      %s74 = sphi 0, %s72
      %s75 = sphi 0, %s74
      %s89 = sphi 0, %s75
      %s93 = sphi 0, %s93
      %s95 = sphi 0, %s93
      %s96 = sphi 0, %s95
      %s110 = sphi 0, %s96
      %s114 = sphi 0, %s114
      %s116 = sphi 0, %s114
      %s117 = sphi 0, %s116
      %s131 = sphi 0, %s117
      %s135 = sphi 0, %s135
      %s137 = sphi 0, %s135
      %s138 = sphi 0, %s137
      %s152 = sphi 0, %s138
      %s158 = sphi 0, %s160
      %s161 = sphi 0, %s158
      %s162 = sphi 0, %s161
      %s178 = sphi 0, %s162
      %s184 = sphi 0, %s186
      %s187 = sphi 0, %s184
      %s188 = sphi 0, %s187
      %s204 = sphi 0, %s188
    $region4: #{gwnet_forward.8} parent=1 // loop_header_branch
      %20 = sbr.rel (%p18) target = $region8
    $region5: #{gwnet_forward.8} parent=1 // loop_body
      %s22 = ssub.s32 %s17, 1
      %s23 = ssub.s32 %s17, 2
      %s24 = sadd.s32 %s17, 1
      %s25 = ssub.s32 %s17, %s24
      %p26 = scmp.eq.s32.totalorder %s25, 0
      %s28 = sadd.s32 %s27, 1
      %s29 = scalar_select %p26, %s27, %s28
      %p32 = pneg %p26
      %p33 = scmp.eq.s32.totalorder %s17, 1
      %p34 = por %p32, %p33
      %p35 = scmp.ne.s32.totalorder %s27, %s30
      %p36 = scmp.eq.s32.totalorder %s17, 0
      %p37 = por %p35, %p36
      %p38 = scmp.ne.s32.totalorder %s27, %s30
      %p39 = scmp.eq.s32.totalorder %s22, 1
      %p40 = por %p38, %p39
      %p41 = scmp.ne.s32.totalorder %s30, %s31
      %p42 = scmp.eq.s32.totalorder %s22, 0
      %p43 = por %p41, %p42
      %p44 = scmp.ne.s32.totalorder %s30, %s31
      %p45 = scmp.eq.s32.totalorder %s23, 1
      %p46 = por %p44, %p45
      %p48 = scmp.ne.s32.totalorder %s31, %s47
      %p49 = scmp.eq.s32.totalorder %s23, 0
      %p50 = por %p48, %p49
      %s52 = sadd.s32 %s51, 1
      %p55 = scmp.eq.s32.totalorder %s17, 1
      %p56 = scmp.ne.s32.totalorder %s51, %s53
      %p57 = scmp.eq.s32.totalorder %s17, 0
      %p58 = por %p56, %p57
      %p59 = scmp.ne.s32.totalorder %s51, %s53
      %p60 = scmp.eq.s32.totalorder %s22, 1
      %p61 = por %p59, %p60
      %p62 = scmp.ne.s32.totalorder %s53, %s54
      %p63 = scmp.eq.s32.totalorder %s22, 0
      %p64 = por %p62, %p63
      %p65 = scmp.ne.s32.totalorder %s53, %s54
      %p66 = scmp.eq.s32.totalorder %s23, 1
      %p67 = por %p65, %p66
      %p69 = scmp.ne.s32.totalorder %s54, %s68
      %p70 = scmp.eq.s32.totalorder %s23, 0
      %p71 = por %p69, %p70
      %s73 = sadd.s32 %s72, 1
      %p76 = scmp.eq.s32.totalorder %s17, 1
      %p77 = scmp.ne.s32.totalorder %s72, %s74
      %p78 = scmp.eq.s32.totalorder %s17, 0
      %p79 = por %p77, %p78
      %p80 = scmp.ne.s32.totalorder %s72, %s74
      %p81 = scmp.eq.s32.totalorder %s22, 1
      %p82 = por %p80, %p81
      %p83 = scmp.ne.s32.totalorder %s74, %s75
      %p84 = scmp.eq.s32.totalorder %s22, 0
      %p85 = por %p83, %p84
      %p86 = scmp.ne.s32.totalorder %s74, %s75
      %p87 = scmp.eq.s32.totalorder %s23, 1
      %p88 = por %p86, %p87
      %p90 = scmp.ne.s32.totalorder %s75, %s89
      %p91 = scmp.eq.s32.totalorder %s23, 0
      %p92 = por %p90, %p91
      %s94 = sadd.s32 %s93, 1
      %p97 = scmp.eq.s32.totalorder %s17, 1
      %p98 = scmp.ne.s32.totalorder %s93, %s95
      %p99 = scmp.eq.s32.totalorder %s17, 0
      %p100 = por %p98, %p99
      %p101 = scmp.ne.s32.totalorder %s93, %s95
      %p102 = scmp.eq.s32.totalorder %s22, 1
      %p103 = por %p101, %p102
      %p104 = scmp.ne.s32.totalorder %s95, %s96
      %p105 = scmp.eq.s32.totalorder %s22, 0
      %p106 = por %p104, %p105
      %p107 = scmp.ne.s32.totalorder %s95, %s96
      %p108 = scmp.eq.s32.totalorder %s23, 1
      %p109 = por %p107, %p108
      %p111 = scmp.ne.s32.totalorder %s96, %s110
      %p112 = scmp.eq.s32.totalorder %s23, 0
      %p113 = por %p111, %p112
      %s115 = sadd.s32 %s114, 1
      %p118 = scmp.eq.s32.totalorder %s17, 1
      %p119 = scmp.ne.s32.totalorder %s114, %s116
      %p120 = scmp.eq.s32.totalorder %s17, 0
      %p121 = por %p119, %p120
      %p122 = scmp.ne.s32.totalorder %s114, %s116
      %p123 = scmp.eq.s32.totalorder %s22, 1
      %p124 = por %p122, %p123
      %p125 = scmp.ne.s32.totalorder %s116, %s117
      %p126 = scmp.eq.s32.totalorder %s22, 0
      %p127 = por %p125, %p126
      %p128 = scmp.ne.s32.totalorder %s116, %s117
      %p129 = scmp.eq.s32.totalorder %s23, 1
      %p130 = por %p128, %p129
      %p132 = scmp.ne.s32.totalorder %s117, %s131
      %p133 = scmp.eq.s32.totalorder %s23, 0
      %p134 = por %p132, %p133
      %s136 = sadd.s32 %s135, 1
      %p139 = scmp.eq.s32.totalorder %s17, 1
      %p140 = scmp.ne.s32.totalorder %s135, %s137
      %p141 = scmp.eq.s32.totalorder %s17, 0
      %p142 = por %p140, %p141
      %p143 = scmp.ne.s32.totalorder %s135, %s137
      %p144 = scmp.eq.s32.totalorder %s22, 1
      %p145 = por %p143, %p144
      %p146 = scmp.ne.s32.totalorder %s137, %s138
      %p147 = scmp.eq.s32.totalorder %s22, 0
      %p148 = por %p146, %p147
      %p149 = scmp.ne.s32.totalorder %s137, %s138
      %p150 = scmp.eq.s32.totalorder %s23, 1
      %p151 = por %p149, %p150
      %p153 = scmp.ne.s32.totalorder %s138, %s152
      %p154 = scmp.eq.s32.totalorder %s23, 0
      %p155 = por %p153, %p154
      %s156 = ssub.s32 %s17, %s24
      %p157 = scmp.eq.s32.totalorder %s156, 0
      %s159 = sadd.s32 %s158, 1
      %s160 = scalar_select %p157, %s158, %s159
      %p163 = pneg %p157
      %p164 = scmp.eq.s32.totalorder %s17, 1
      %p165 = por %p163, %p164
      %p166 = scmp.ne.s32.totalorder %s158, %s161
      %p167 = scmp.eq.s32.totalorder %s17, 0
      %p168 = por %p166, %p167
      %p169 = scmp.ne.s32.totalorder %s158, %s161
      %p170 = scmp.eq.s32.totalorder %s22, 1
      %p171 = por %p169, %p170
      %p172 = scmp.ne.s32.totalorder %s161, %s162
      %p173 = scmp.eq.s32.totalorder %s22, 0
      %p174 = por %p172, %p173
      %p175 = scmp.ne.s32.totalorder %s161, %s162
      %p176 = scmp.eq.s32.totalorder %s23, 1
      %p177 = por %p175, %p176
      %p179 = scmp.ne.s32.totalorder %s162, %s178
      %p180 = scmp.eq.s32.totalorder %s23, 0
      %p181 = por %p179, %p180
      %s182 = ssub.s32 %s17, %s24
      %p183 = scmp.eq.s32.totalorder %s182, 0
      %s185 = sadd.s32 %s184, 1
      %s186 = scalar_select %p183, %s184, %s185
      %p189 = pneg %p183
      %p190 = scmp.eq.s32.totalorder %s17, 1
      %p191 = por %p189, %p190
      %p192 = scmp.ne.s32.totalorder %s184, %s187
      %p193 = scmp.eq.s32.totalorder %s17, 0
      %p194 = por %p192, %p193
      %p195 = scmp.ne.s32.totalorder %s184, %s187
      %p196 = scmp.eq.s32.totalorder %s22, 1
      %p197 = por %p195, %p196
      %p198 = scmp.ne.s32.totalorder %s187, %s188
      %p199 = scmp.eq.s32.totalorder %s22, 0
      %p200 = por %p198, %p199
      %p201 = scmp.ne.s32.totalorder %s187, %s188
      %p202 = scmp.eq.s32.totalorder %s23, 1
      %p203 = por %p201, %p202
      %p205 = scmp.ne.s32.totalorder %s188, %s204
      %p206 = scmp.eq.s32.totalorder %s23, 0
      %p207 = por %p205, %p206
      %p208 = scmp.le.s32.totalorder 1, %s17
      %p209 = scmp.lt.s32.totalorder %s17, 3
      %p210 = pnand %p208, %p209
      %p211 = pneg %p210
      // Predicated region
      $region9: #{gwnet_forward.8} parent=5 // pred_check
        _
      $region10: #{gwnet_forward.8} parent=5 // pred_check_branch
        %213 = sbr.rel (%p210) target = $region12
      $region11: #{gwnet_forward.8} parent=5 // pred_region
        %s214 = ssub.s32 %s17, 1
        // Predicated region
        $region13: #{gwnet_forward.8} parent=11 // pred_check
          %p215 = pneg %p64
        $region14: #{gwnet_forward.8} parent=11 // pred_check_branch
          %217 = sbr.rel (%p215) target = $region16
        $region15: #{gwnet_forward.8} parent=11 // pred_region
          _
        $region16: #{gwnet_forward.8} parent=11 // pred_fallthru
          _
        // Predicated region
        $region17: #{gwnet_forward.8} parent=11 // pred_check
          %p218 = pneg %p85
        $region18: #{gwnet_forward.8} parent=11 // pred_check_branch
          %220 = sbr.rel (%p218) target = $region20
        $region19: #{gwnet_forward.8} parent=11 // pred_region
          _
        $region20: #{gwnet_forward.8} parent=11 // pred_fallthru
          _
        // Predicated region
        $region21: #{gwnet_forward.8} parent=11 // pred_check
          %p221 = pneg %p106
        $region22: #{gwnet_forward.8} parent=11 // pred_check_branch
          %223 = sbr.rel (%p221) target = $region24
        $region23: #{gwnet_forward.8} parent=11 // pred_region
          _
        $region24: #{gwnet_forward.8} parent=11 // pred_fallthru
          _
        // Predicated region
        $region25: #{gwnet_forward.8} parent=11 // pred_check
          %p224 = pneg %p127
        $region26: #{gwnet_forward.8} parent=11 // pred_check_branch
          %226 = sbr.rel (%p224) target = $region28
        $region27: #{gwnet_forward.8} parent=11 // pred_region
          _
        $region28: #{gwnet_forward.8} parent=11 // pred_fallthru
          _
        // Predicated region
        $region29: #{gwnet_forward.8} parent=11 // pred_check
          %p227 = pneg %p148
        $region30: #{gwnet_forward.8} parent=11 // pred_check_branch
          %229 = sbr.rel (%p227) target = $region32
        $region31: #{gwnet_forward.8} parent=11 // pred_region
          _
        $region32: #{gwnet_forward.8} parent=11 // pred_fallthru
          _
      $region12: #{gwnet_forward.8} parent=5 // pred_fallthru
        _
      %p230 = scmp.lt.s32.totalorder %s17, 2
      // Predicated region
      $region33: #{gwnet_forward.8} parent=5 // pred_check
        %p231 = pneg %p230
      $region34: #{gwnet_forward.8} parent=5 // pred_check_branch
        %233 = sbr.rel (%p231) target = $region36
      $region35: #{gwnet_forward.8} parent=5 // pred_region
        // Predicated region
        $region37: #{gwnet_forward.8} parent=35 // pred_check
          %p234 = pneg %p37
        $region38: #{gwnet_forward.8} parent=35 // pred_check_branch
          %236 = sbr.rel (%p234) target = $region40
        $region39: #{gwnet_forward.8} parent=35 // pred_region
          %p237 = scmp.lt.s32.totalorder %s17, 1
          %s238 = scalar_select %p237, %s17, 1
          %s239 = smul.addr %s238, 3
          %s240 = smul.addr %s239, 4
          %s241 = scalar_lea.vmem %s0, %s240
        $region40: #{gwnet_forward.8} parent=35 // pred_fallthru
          _
      $region36: #{gwnet_forward.8} parent=5 // pred_fallthru
        _
      %p242 = scmp.le.s32.totalorder 1, %s17
      %p243 = scmp.lt.s32.totalorder %s17, 3
      %p244 = pnand %p242, %p243
      %p245 = pneg %p244
      // Predicated region
      $region41: #{gwnet_forward.8} parent=5 // pred_check
        _
      $region42: #{gwnet_forward.8} parent=5 // pred_check_branch
        %247 = sbr.rel (%p244) target = $region44
      $region43: #{gwnet_forward.8} parent=5 // pred_region
        %s248 = ssub.s32 %s17, 1
        %p249 = scmp.lt.s32.totalorder %s22, 1
        %s250 = scalar_select %p249, %s22, 1
        %s251 = smul.addr %s250, 3
        %s252 = smul.addr %s251, 4
        %s253 = scalar_lea.vmem %s0, %s252
        %p254 = pneg %p43
        %p255 = pneg %p40
        %p256 = pneg %p64
        %p257 = pneg %p61
        %p258 = pneg %p85
        %p259 = pneg %p82
        %p260 = pneg %p106
        %p261 = pneg %p103
        %p262 = pneg %p127
        %p263 = pneg %p124
        %p264 = pneg %p148
        %p265 = pneg %p145
        %p266 = pneg %p174
        %p267 = pneg %p171
        %s268 = sand.u32 %s161, 1
        %s269 = scalar_lea.sflag [#allocation3], %s268
        %s270 = sand.u32 %s161, 1
        %s271 = smul.addr %s270, 4
        %s272 = scalar_lea.vmem [#allocation2], %s271
        %p273 = pneg %p200
        %p274 = pneg %p197
        %p275 = scmp.lt.s32.totalorder %s22, 1
        %s276 = scalar_select %p275, %s22, 1
        %s277 = smul.addr %s276, 4
        %s278 = scalar_lea.vmem %s7, %s277
        %p279 = scmp.lt.s32.totalorder %s22, 1
        %s280 = scalar_select %p279, %s22, 1
        %s281 = smul.addr %s280, 3
        %s282 = smul.addr %s281, 4
        %s283 = scalar_lea.vmem %s0, %s282
        %p284 = scmp.lt.s32.totalorder %s22, 1
        %s285 = scalar_select %p284, %s22, 1
        %s286 = smul.addr %s285, 4
        %s287 = scalar_lea.vmem %s7, %s286
        %v289 = vld [vmem:[%s283] sm:$0xf]
        %v290 = vld [vmem:[%s283 + $0x8] sm:$0xf]
        %v291 = vld [vmem:[%s3] sm:$0x3]
        %v292 = vld [vmem:[%s2] sm:$0xff]
        %v293 = vld [vmem:[%s2 + $0x8] sm:$0xff]
        %v294 = vld [vmem:[%s2 + $0x10] sm:$0xff]
        %v295 = vld [vmem:[%s2 + $0x18] sm:$0xff]
        %v296 = vld [vmem:[%s2 + $0x20] sm:$0xff]
        %v297 = vld [vmem:[%s2 + $0x28] sm:$0xff]
        %v298 = vld [vmem:[%s2 + $0x30] sm:$0xff]
        %v299 = vld [vmem:[%s2 + $0x38] sm:$0xff]
        %v300 = vld [vmem:[%s2 + $0x40] sm:$0xff]
        %v301 = vld [vmem:[%s2 + $0x48] sm:$0xff]
        %v302 = vld [vmem:[%s2 + $0x50] sm:$0xff]
        %v303 = vld [vmem:[%s2 + $0x58] sm:$0xff]
        %v304 = vld [vmem:[%s2 + $0x60] sm:$0xff]
        %v305 = vld [vmem:[%s2 + $0x68] sm:$0xff]
        %v306 = vld [vmem:[%s2 + $0x70] sm:$0xff]
        %v307 = vld [vmem:[%s2 + $0x78] sm:$0xff]
        %v324 = vunpack.c.l.b16 %v292
        %v325 = vunpack.c.h.b16 %v292
        %v326 = vunpack.c.l.b16 %v293
        %v327 = vunpack.c.h.b16 %v293
        %v328 = vunpack.c.l.b16 %v294
        %v329 = vunpack.c.h.b16 %v294
        %v330 = vunpack.c.l.b16 %v295
        %v331 = vunpack.c.h.b16 %v295
        %v332 = vunpack.c.l.b16 %v296
        %v333 = vunpack.c.h.b16 %v296
        %v334 = vunpack.c.l.b16 %v297
        %v335 = vunpack.c.h.b16 %v297
        %v336 = vunpack.c.l.b16 %v298
        %v337 = vunpack.c.h.b16 %v298
        %v338 = vunpack.c.l.b16 %v299
        %v339 = vunpack.c.h.b16 %v299
        %v340 = vunpack.c.l.b16 %v300
        %v341 = vunpack.c.h.b16 %v300
        %v342 = vunpack.c.l.b16 %v301
        %v343 = vunpack.c.h.b16 %v301
        %v344 = vunpack.c.l.b16 %v302
        %v345 = vunpack.c.h.b16 %v302
        %v346 = vunpack.c.l.b16 %v303
        %v347 = vunpack.c.h.b16 %v303
        %v348 = vunpack.c.l.b16 %v304
        %v349 = vunpack.c.h.b16 %v304
        %v350 = vunpack.c.l.b16 %v305
        %v351 = vunpack.c.h.b16 %v305
        %v352 = vunpack.c.l.b16 %v306
        %v353 = vunpack.c.h.b16 %v306
        %v354 = vunpack.c.l.b16 %v307
        %v355 = vunpack.c.h.b16 %v307
        %v356 = vpack.c.b16 %v326, %v324
        %v357 = vpack.c.b16 %v327, %v325
        %v358 = vpack.c.b16 %v330, %v328
        %v359 = vpack.c.b16 %v331, %v329
        %v360 = vpack.c.b16 %v334, %v332
        %v361 = vpack.c.b16 %v335, %v333
        %v362 = vpack.c.b16 %v338, %v336
        %v363 = vpack.c.b16 %v339, %v337
        %v364 = vpack.c.b16 %v342, %v340
        %v365 = vpack.c.b16 %v343, %v341
        %v366 = vpack.c.b16 %v346, %v344
        %v367 = vpack.c.b16 %v347, %v345
        %v368 = vpack.c.b16 %v350, %v348
        %v369 = vpack.c.b16 %v351, %v349
        %v370 = vpack.c.b16 %v354, %v352
        %v371 = vpack.c.b16 %v355, %v353
        %388 = vmatprep.subr.bf16.mxu0 %v357
        %389 = vmatpush1.bf16.msra.mxu0 %v356
        %390 = vmatprep.subr.bf16.mxu0 %v359
        %391 = vmatpush1.bf16.msra.mxu0 %v358
        %392 = vmatprep.subr.bf16.mxu0 %v361
        %393 = vmatpush1.bf16.msra.mxu0 %v360
        %394 = vmatprep.subr.bf16.mxu0 %v363
        %395 = vmatpush1.bf16.msra.mxu0 %v362
        %396 = vmatprep.subr.bf16.mxu0 %v365
        %397 = vmatpush1.bf16.msra.mxu0 %v364
        %398 = vmatprep.subr.bf16.mxu0 %v367
        %399 = vmatpush1.bf16.msra.mxu0 %v366
        %400 = vmatprep.subr.bf16.mxu0 %v369
        %401 = vmatpush1.bf16.msra.mxu0 %v368
        %402 = vmatprep.subr.bf16.mxu0 %v371
        %403 = vmatpush1.bf16.msra.mxu0 %v370
        %404 = vmatprep.subr.bf16.mxu0 0
        %405 = vmatpush1.bf16.msra.mxu0 0
        %406 = vmatprep.subr.bf16.mxu0 0
        %407 = vmatpush1.bf16.msra.mxu0 0
        %408 = vmatprep.subr.bf16.mxu0 0
        %409 = vmatpush1.bf16.msra.mxu0 0
        %410 = vmatprep.subr.bf16.mxu0 0
        %411 = vmatpush1.bf16.msra.mxu0 0
        %412 = vmatprep.subr.bf16.mxu0 0
        %413 = vmatpush1.bf16.msra.mxu0 0
        %414 = vmatprep.subr.bf16.mxu0 0
        %415 = vmatpush1.bf16.msra.mxu0 0
        %416 = vmatprep.subr.bf16.mxu0 0
        %417 = vmatpush1.bf16.msra.mxu0 0
        %418 = vmatprep.subr.bf16.mxu0 0
        %419 = vmatpush1.bf16.msra.mxu0 0
        %420 = vmatprep.mubr.bf16.mxu0 0
        %421 = vmatmul.mubr.bf16.gmra.mrb[0].mxu0 %v289
        %v422 = vpop.f32.mrb[0].mxu0
        %v423 = vadd.f32 0.0, %v422
        %v424 = vpop.f32.mrb[0].mxu0
        %v425 = vadd.f32 0.0, %v424
        %v426 = vpop.f32.mrb[0].mxu0
        %v427 = vpop.f32.mrb[0].mxu0
        %428 = vdwg.mxu0
        %v430 = vlaneseq
        %v431 = vshrl.u32 %v430, 7
        %v432 = vsub.s32 0, %v431
        %v433 = vrot.slane %v291, %v432
        %v434 = vlaneseq
        %v435 = vshrl.u32 %v434, 7
        %v436 = vsub.s32 1, %v435
        %v437 = vrot.slane %v291, %v436
        %v440 = vadd.f32 %v433, %v423
        %v441 = vadd.f32 %v437, %v425
        %s442 = scalar_lea.vmem %s2, 128
        %v443 = vld [vmem:[%s442] sm:$0xff]
        %v444 = vld [vmem:[%s442 + $0x8] sm:$0xff]
        %v445 = vld [vmem:[%s442 + $0x10] sm:$0xff]
        %v446 = vld [vmem:[%s442 + $0x18] sm:$0xff]
        %v447 = vld [vmem:[%s442 + $0x20] sm:$0xff]
        %v448 = vld [vmem:[%s442 + $0x28] sm:$0xff]
        %v449 = vld [vmem:[%s442 + $0x30] sm:$0xff]
        %v450 = vld [vmem:[%s442 + $0x38] sm:$0xff]
        %v451 = vld [vmem:[%s442 + $0x40] sm:$0xff]
        %v452 = vld [vmem:[%s442 + $0x48] sm:$0xff]
        %v453 = vld [vmem:[%s442 + $0x50] sm:$0xff]
        %v454 = vld [vmem:[%s442 + $0x58] sm:$0xff]
        %v455 = vld [vmem:[%s442 + $0x60] sm:$0xff]
        %v456 = vld [vmem:[%s442 + $0x68] sm:$0xff]
        %v457 = vld [vmem:[%s442 + $0x70] sm:$0xff]
        %v458 = vld [vmem:[%s442 + $0x78] sm:$0xff]
        %v475 = vunpack.c.l.b16 %v443
        %v476 = vunpack.c.h.b16 %v443
        %v477 = vunpack.c.l.b16 %v444
        %v478 = vunpack.c.h.b16 %v444
        %v479 = vunpack.c.l.b16 %v445
        %v480 = vunpack.c.h.b16 %v445
        %v481 = vunpack.c.l.b16 %v446
        %v482 = vunpack.c.h.b16 %v446
        %v483 = vunpack.c.l.b16 %v447
        %v484 = vunpack.c.h.b16 %v447
        %v485 = vunpack.c.l.b16 %v448
        %v486 = vunpack.c.h.b16 %v448
        %v487 = vunpack.c.l.b16 %v449
        %v488 = vunpack.c.h.b16 %v449
        %v489 = vunpack.c.l.b16 %v450
        %v490 = vunpack.c.h.b16 %v450
        %v491 = vunpack.c.l.b16 %v451
        %v492 = vunpack.c.h.b16 %v451
        %v493 = vunpack.c.l.b16 %v452
        %v494 = vunpack.c.h.b16 %v452
        %v495 = vunpack.c.l.b16 %v453
        %v496 = vunpack.c.h.b16 %v453
        %v497 = vunpack.c.l.b16 %v454
        %v498 = vunpack.c.h.b16 %v454
        %v499 = vunpack.c.l.b16 %v455
        %v500 = vunpack.c.h.b16 %v455
        %v501 = vunpack.c.l.b16 %v456
        %v502 = vunpack.c.h.b16 %v456
        %v503 = vunpack.c.l.b16 %v457
        %v504 = vunpack.c.h.b16 %v457
        %v505 = vunpack.c.l.b16 %v458
        %v506 = vunpack.c.h.b16 %v458
        %v507 = vpack.c.b16 %v477, %v475
        %v508 = vpack.c.b16 %v478, %v476
        %v509 = vpack.c.b16 %v481, %v479
        %v510 = vpack.c.b16 %v482, %v480
        %v511 = vpack.c.b16 %v485, %v483
        %v512 = vpack.c.b16 %v486, %v484
        %v513 = vpack.c.b16 %v489, %v487
        %v514 = vpack.c.b16 %v490, %v488
        %v515 = vpack.c.b16 %v493, %v491
        %v516 = vpack.c.b16 %v494, %v492
        %v517 = vpack.c.b16 %v497, %v495
        %v518 = vpack.c.b16 %v498, %v496
        %v519 = vpack.c.b16 %v501, %v499
        %v520 = vpack.c.b16 %v502, %v500
        %v521 = vpack.c.b16 %v505, %v503
        %v522 = vpack.c.b16 %v506, %v504
        %539 = vmatprep.subr.bf16.mxu0 %v508
        %540 = vmatpush1.bf16.msra.mxu0 %v507
        %541 = vmatprep.subr.bf16.mxu0 %v510
        %542 = vmatpush1.bf16.msra.mxu0 %v509
        %543 = vmatprep.subr.bf16.mxu0 %v512
        %544 = vmatpush1.bf16.msra.mxu0 %v511
        %545 = vmatprep.subr.bf16.mxu0 %v514
        %546 = vmatpush1.bf16.msra.mxu0 %v513
        %547 = vmatprep.subr.bf16.mxu0 %v516
        %548 = vmatpush1.bf16.msra.mxu0 %v515
        %549 = vmatprep.subr.bf16.mxu0 %v518
        %550 = vmatpush1.bf16.msra.mxu0 %v517
        %551 = vmatprep.subr.bf16.mxu0 %v520
        %552 = vmatpush1.bf16.msra.mxu0 %v519
        %553 = vmatprep.subr.bf16.mxu0 %v522
        %554 = vmatpush1.bf16.msra.mxu0 %v521
        %555 = vmatprep.subr.bf16.mxu0 0
        %556 = vmatpush1.bf16.msra.mxu0 0
        %557 = vmatprep.subr.bf16.mxu0 0
        %558 = vmatpush1.bf16.msra.mxu0 0
        %559 = vmatprep.subr.bf16.mxu0 0
        %560 = vmatpush1.bf16.msra.mxu0 0
        %561 = vmatprep.subr.bf16.mxu0 0
        %562 = vmatpush1.bf16.msra.mxu0 0
        %563 = vmatprep.subr.bf16.mxu0 0
        %564 = vmatpush1.bf16.msra.mxu0 0
        %565 = vmatprep.subr.bf16.mxu0 0
        %566 = vmatpush1.bf16.msra.mxu0 0
        %567 = vmatprep.subr.bf16.mxu0 0
        %568 = vmatpush1.bf16.msra.mxu0 0
        %569 = vmatprep.subr.bf16.mxu0 0
        %570 = vmatpush1.bf16.msra.mxu0 0
        %571 = vmatprep.mubr.bf16.mxu0 0
        %572 = vmatmul.mubr.bf16.gmra.mrb[0].mxu0 %v290
        %v573 = vpop.f32.mrb[0].mxu0
        %v574 = vadd.f32 0.0, %v573
        %v575 = vpop.f32.mrb[0].mxu0
        %v576 = vadd.f32 0.0, %v575
        %v577 = vpop.f32.mrb[0].mxu0
        %v578 = vpop.f32.mrb[0].mxu0
        %579 = vdwg.mxu0
        %v580 = vadd.f32 %v440, %v574
        %v581 = vadd.f32 %v441, %v576
        %v582 = vtanh.pop %v580
        %v583 = vxor.u32 %v581, 2147483648
        %v584 = vmul.f32 %v583, 1.442695
        %v585 = vpow.pop %v584
        %v586 = vadd.f32 %v585, 1.0
        %v587 = vrcp.pop %v586
        %v588 = vmul.f32 1.0, %v587
        %v589 = vmul.f32 %v582, %v588
        %v590 = vpack.c.bf16 %v589, %v589
        %591 = vst [vmem:[%s287] sm:$0xf] %v590
        %v592 = vld [vmem:[%s4] sm:$0xf]
        %v593 = vld [vmem:[%s4 + $0x4] sm:$0xf]
        %v594 = vld [vmem:[%s4 + $0x8] sm:$0xf]
        %v595 = vld [vmem:[%s4 + $0xc] sm:$0xf]
        %v596 = vld [vmem:[%s4 + $0x10] sm:$0xf]
        %v597 = vld [vmem:[%s4 + $0x14] sm:$0xf]
        %v598 = vld [vmem:[%s4 + $0x18] sm:$0xf]
        %v599 = vld [vmem:[%s4 + $0x1c] sm:$0xf]
        %v600 = vld [vmem:[%s4 + $0x20] sm:$0xf]
        %v601 = vld [vmem:[%s4 + $0x24] sm:$0xf]
        %v602 = vld [vmem:[%s4 + $0x28] sm:$0xf]
        %v603 = vld [vmem:[%s4 + $0x2c] sm:$0xf]
        %v604 = vld [vmem:[%s4 + $0x30] sm:$0xf]
        %v605 = vld [vmem:[%s4 + $0x34] sm:$0xf]
        %v606 = vld [vmem:[%s4 + $0x38] sm:$0xf]
        %v607 = vld [vmem:[%s4 + $0x3c] sm:$0xf]
        %v608 = vld [vmem:[%s5] sm:$0x1]
        %v610 = vlaneseq
        %v611 = vshrl.u32 %v610, 7
        %v612 = vsub.s32 0, %v611
        %v613 = vrot.slane %v608, %v612
        %v631 = vunpack.c.l.b16 %v592
        %v632 = vunpack.c.l.b16 %v593
        %v633 = vunpack.c.l.b16 %v594
        %v634 = vunpack.c.l.b16 %v595
        %v635 = vunpack.c.l.b16 %v596
        %v636 = vunpack.c.l.b16 %v597
        %v637 = vunpack.c.l.b16 %v598
        %v638 = vunpack.c.l.b16 %v599
        %v639 = vunpack.c.l.b16 %v600
        %v640 = vunpack.c.l.b16 %v601
        %v641 = vunpack.c.l.b16 %v602
        %v642 = vunpack.c.l.b16 %v603
        %v643 = vunpack.c.l.b16 %v604
        %v644 = vunpack.c.l.b16 %v605
        %v645 = vunpack.c.l.b16 %v606
        %v646 = vunpack.c.l.b16 %v607
        %v647 = vpack.c.b16 %v632, %v631
        %v648 = vpack.c.b16 %v634, %v633
        %v649 = vpack.c.b16 %v636, %v635
        %v650 = vpack.c.b16 %v638, %v637
        %v651 = vpack.c.b16 %v640, %v639
        %v652 = vpack.c.b16 %v642, %v641
        %v653 = vpack.c.b16 %v644, %v643
        %v654 = vpack.c.b16 %v646, %v645
        %663 = vmatprep.subr.bf16.mxu0 0
        %664 = vmatpush1.bf16.msra.mxu0 %v647
        %665 = vmatprep.subr.bf16.mxu0 0
        %666 = vmatpush1.bf16.msra.mxu0 %v648
        %667 = vmatprep.subr.bf16.mxu0 0
        %668 = vmatpush1.bf16.msra.mxu0 %v649
        %669 = vmatprep.subr.bf16.mxu0 0
        %670 = vmatpush1.bf16.msra.mxu0 %v650
        %671 = vmatprep.subr.bf16.mxu0 0
        %672 = vmatpush1.bf16.msra.mxu0 %v651
        %673 = vmatprep.subr.bf16.mxu0 0
        %674 = vmatpush1.bf16.msra.mxu0 %v652
        %675 = vmatprep.subr.bf16.mxu0 0
        %676 = vmatpush1.bf16.msra.mxu0 %v653
        %677 = vmatprep.subr.bf16.mxu0 0
        %678 = vmatpush1.bf16.msra.mxu0 %v654
        %679 = vmatprep.subr.bf16.mxu0 0
        %680 = vmatpush1.bf16.msra.mxu0 0
        %681 = vmatprep.subr.bf16.mxu0 0
        %682 = vmatpush1.bf16.msra.mxu0 0
        %683 = vmatprep.subr.bf16.mxu0 0
        %684 = vmatpush1.bf16.msra.mxu0 0
        %685 = vmatprep.subr.bf16.mxu0 0
        %686 = vmatpush1.bf16.msra.mxu0 0
        %687 = vmatprep.subr.bf16.mxu0 0
        %688 = vmatpush1.bf16.msra.mxu0 0
        %689 = vmatprep.subr.bf16.mxu0 0
        %690 = vmatpush1.bf16.msra.mxu0 0
        %691 = vmatprep.subr.bf16.mxu0 0
        %692 = vmatpush1.bf16.msra.mxu0 0
        %693 = vmatprep.subr.bf16.mxu0 0
        %694 = vmatpush1.bf16.msra.mxu0 0
        %695 = vmatprep.mubr.bf16.mxu0 0
        %696 = vmatmul.mubr.bf16.gmra.mrb[0].mxu0 %v590
        %v697 = vpop.f32.mrb[0].mxu0
        %v698 = vadd.f32 %v613, %v697
        %v699 = vpop.f32.mrb[0].mxu0
        %v700 = vpop.f32.mrb[0].mxu0
        %v701 = vpop.f32.mrb[0].mxu0
        %702 = vdwg.mxu0
        %v703 = vunpack.c.l.bf16 %v290
        %v704 = vadd.f32 %v698, %v703
        %s705 = scalar_lea.vmem %s4, 64
        %v706 = vld [vmem:[%s705] sm:$0xf]
        %v707 = vld [vmem:[%s705 + $0x4] sm:$0xf]
        %v708 = vld [vmem:[%s705 + $0x8] sm:$0xf]
        %v709 = vld [vmem:[%s705 + $0xc] sm:$0xf]
        %v710 = vld [vmem:[%s705 + $0x10] sm:$0xf]
        %v711 = vld [vmem:[%s705 + $0x14] sm:$0xf]
        %v712 = vld [vmem:[%s705 + $0x18] sm:$0xf]
        %v713 = vld [vmem:[%s705 + $0x1c] sm:$0xf]
        %v714 = vld [vmem:[%s705 + $0x20] sm:$0xf]
        %v715 = vld [vmem:[%s705 + $0x24] sm:$0xf]
        %v716 = vld [vmem:[%s705 + $0x28] sm:$0xf]
        %v717 = vld [vmem:[%s705 + $0x2c] sm:$0xf]
        %v718 = vld [vmem:[%s705 + $0x30] sm:$0xf]
        %v719 = vld [vmem:[%s705 + $0x34] sm:$0xf]
        %v720 = vld [vmem:[%s705 + $0x38] sm:$0xf]
        %v721 = vld [vmem:[%s705 + $0x3c] sm:$0xf]
        %v738 = vunpack.c.l.b16 %v706
        %v739 = vunpack.c.l.b16 %v707
        %v740 = vunpack.c.l.b16 %v708
        %v741 = vunpack.c.l.b16 %v709
        %v742 = vunpack.c.l.b16 %v710
        %v743 = vunpack.c.l.b16 %v711
        %v744 = vunpack.c.l.b16 %v712
        %v745 = vunpack.c.l.b16 %v713
        %v746 = vunpack.c.l.b16 %v714
        %v747 = vunpack.c.l.b16 %v715
        %v748 = vunpack.c.l.b16 %v716
        %v749 = vunpack.c.l.b16 %v717
        %v750 = vunpack.c.l.b16 %v718
        %v751 = vunpack.c.l.b16 %v719
        %v752 = vunpack.c.l.b16 %v720
        %v753 = vunpack.c.l.b16 %v721
        %v754 = vpack.c.b16 %v739, %v738
        %v755 = vpack.c.b16 %v741, %v740
        %v756 = vpack.c.b16 %v743, %v742
        %v757 = vpack.c.b16 %v745, %v744
        %v758 = vpack.c.b16 %v747, %v746
        %v759 = vpack.c.b16 %v749, %v748
        %v760 = vpack.c.b16 %v751, %v750
        %v761 = vpack.c.b16 %v753, %v752
        %770 = vmatprep.subr.bf16.mxu0 0
        %771 = vmatpush1.bf16.msra.mxu0 %v754
        %772 = vmatprep.subr.bf16.mxu0 0
        %773 = vmatpush1.bf16.msra.mxu0 %v755
        %774 = vmatprep.subr.bf16.mxu0 0
        %775 = vmatpush1.bf16.msra.mxu0 %v756
        %776 = vmatprep.subr.bf16.mxu0 0
        %777 = vmatpush1.bf16.msra.mxu0 %v757
        %778 = vmatprep.subr.bf16.mxu0 0
        %779 = vmatpush1.bf16.msra.mxu0 %v758
        %780 = vmatprep.subr.bf16.mxu0 0
        %781 = vmatpush1.bf16.msra.mxu0 %v759
        %782 = vmatprep.subr.bf16.mxu0 0
        %783 = vmatpush1.bf16.msra.mxu0 %v760
        %784 = vmatprep.subr.bf16.mxu0 0
        %785 = vmatpush1.bf16.msra.mxu0 %v761
        %786 = vmatprep.subr.bf16.mxu0 0
        %787 = vmatpush1.bf16.msra.mxu0 0
        %788 = vmatprep.subr.bf16.mxu0 0
        %789 = vmatpush1.bf16.msra.mxu0 0
        %790 = vmatprep.subr.bf16.mxu0 0
        %791 = vmatpush1.bf16.msra.mxu0 0
        %792 = vmatprep.subr.bf16.mxu0 0
        %793 = vmatpush1.bf16.msra.mxu0 0
        %794 = vmatprep.subr.bf16.mxu0 0
        %795 = vmatpush1.bf16.msra.mxu0 0
        %796 = vmatprep.subr.bf16.mxu0 0
        %797 = vmatpush1.bf16.msra.mxu0 0
        %798 = vmatprep.subr.bf16.mxu0 0
        %799 = vmatpush1.bf16.msra.mxu0 0
        %800 = vmatprep.subr.bf16.mxu0 0
        %801 = vmatpush1.bf16.msra.mxu0 0
        %802 = vmatprep.mubr.bf16.mxu0 0
        %803 = vmatmul.mubr.bf16.gmra.mrb[0].mxu0 %v590
        %v804 = vpop.f32.mrb[0].mxu0
        %v805 = vadd.f32 0.0, %v804
        %v806 = vpop.f32.mrb[0].mxu0
        %v807 = vpop.f32.mrb[0].mxu0
        %v808 = vpop.f32.mrb[0].mxu0
        %809 = vdwg.mxu0
        %v810 = vpack.c.bf16 %v805, %v805
        %s811 = scalar_lea.vmem %s1, 4
        %v812 = vld [vmem:[%s811] sm:$0xf]
        %vm813 = vcmask 64512
        %v815 = vsel %vm813, %v812, 0
        %vm817 = vcmask 1043456
        %v819 = vsel %vm817, %v810, 0
        %821 = vmatprep.subr.bf16.mxu0 0
        %822 = vmatpush1.bf16.msra.mxu0 %v819
        %823 = vmatprep.subr.bf16.mxu0 0
        %824 = vmatpush1.bf16.msra.mxu0 0
        %825 = vmatprep.subr.bf16.mxu0 0
        %826 = vmatpush1.bf16.msra.mxu0 0
        %827 = vmatprep.subr.bf16.mxu0 0
        %828 = vmatpush1.bf16.msra.mxu0 0
        %829 = vmatprep.subr.bf16.mxu0 0
        %830 = vmatpush1.bf16.msra.mxu0 0
        %831 = vmatprep.subr.bf16.mxu0 0
        %832 = vmatpush1.bf16.msra.mxu0 0
        %833 = vmatprep.subr.bf16.mxu0 0
        %834 = vmatpush1.bf16.msra.mxu0 0
        %835 = vmatprep.subr.bf16.mxu0 0
        %836 = vmatpush1.bf16.msra.mxu0 0
        %837 = vmatprep.subr.bf16.mxu0 0
        %838 = vmatpush1.bf16.msra.mxu0 0
        %839 = vmatprep.subr.bf16.mxu0 0
        %840 = vmatpush1.bf16.msra.mxu0 0
        %841 = vmatprep.subr.bf16.mxu0 0
        %842 = vmatpush1.bf16.msra.mxu0 0
        %843 = vmatprep.subr.bf16.mxu0 0
        %844 = vmatpush1.bf16.msra.mxu0 0
        %845 = vmatprep.subr.bf16.mxu0 0
        %846 = vmatpush1.bf16.msra.mxu0 0
        %847 = vmatprep.subr.bf16.mxu0 0
        %848 = vmatpush1.bf16.msra.mxu0 0
        %849 = vmatprep.subr.bf16.mxu0 0
        %850 = vmatpush1.bf16.msra.mxu0 0
        %851 = vmatprep.subr.bf16.mxu0 0
        %852 = vmatpush1.bf16.msra.mxu0 0
        %853 = vmatprep.mubr.bf16.mxu0 0
        %854 = vmatmul.mubr.bf16.gmra.mrb[0].mxu0 %v815
        %v855 = vpop.f32.mrb[0].mxu0
        %v856 = vadd.f32 0.0, %v855
        %v857 = vpop.f32.mrb[0].mxu0
        %v858 = vpop.f32.mrb[0].mxu0
        %v859 = vpop.f32.mrb[0].mxu0
        %860 = vdwg.mxu0
        %v861 = vadd.f32 %v704, %v856
        %s862 = scalar_lea.vmem %s4, 128
        %v863 = vld [vmem:[%s862] sm:$0xf]
        %v864 = vld [vmem:[%s862 + $0x4] sm:$0xf]
        %v865 = vld [vmem:[%s862 + $0x8] sm:$0xf]
        %v866 = vld [vmem:[%s862 + $0xc] sm:$0xf]
        %v867 = vld [vmem:[%s862 + $0x10] sm:$0xf]
        %v868 = vld [vmem:[%s862 + $0x14] sm:$0xf]
        %v869 = vld [vmem:[%s862 + $0x18] sm:$0xf]
        %v870 = vld [vmem:[%s862 + $0x1c] sm:$0xf]
        %v871 = vld [vmem:[%s862 + $0x20] sm:$0xf]
        %v872 = vld [vmem:[%s862 + $0x24] sm:$0xf]
        %v873 = vld [vmem:[%s862 + $0x28] sm:$0xf]
        %v874 = vld [vmem:[%s862 + $0x2c] sm:$0xf]
        %v875 = vld [vmem:[%s862 + $0x30] sm:$0xf]
        %v876 = vld [vmem:[%s862 + $0x34] sm:$0xf]
        %v877 = vld [vmem:[%s862 + $0x38] sm:$0xf]
        %v878 = vld [vmem:[%s862 + $0x3c] sm:$0xf]
        %v895 = vunpack.c.l.b16 %v863
        %v896 = vunpack.c.l.b16 %v864
        %v897 = vunpack.c.l.b16 %v865
        %v898 = vunpack.c.l.b16 %v866
        %v899 = vunpack.c.l.b16 %v867
        %v900 = vunpack.c.l.b16 %v868
        %v901 = vunpack.c.l.b16 %v869
        %v902 = vunpack.c.l.b16 %v870
        %v903 = vunpack.c.l.b16 %v871
        %v904 = vunpack.c.l.b16 %v872
        %v905 = vunpack.c.l.b16 %v873
        %v906 = vunpack.c.l.b16 %v874
        %v907 = vunpack.c.l.b16 %v875
        %v908 = vunpack.c.l.b16 %v876
        %v909 = vunpack.c.l.b16 %v877
        %v910 = vunpack.c.l.b16 %v878
        %v911 = vpack.c.b16 %v896, %v895
        %v912 = vpack.c.b16 %v898, %v897
        %v913 = vpack.c.b16 %v900, %v899
        %v914 = vpack.c.b16 %v902, %v901
        %v915 = vpack.c.b16 %v904, %v903
        %v916 = vpack.c.b16 %v906, %v905
        %v917 = vpack.c.b16 %v908, %v907
        %v918 = vpack.c.b16 %v910, %v909
        %927 = vmatprep.subr.bf16.mxu0 0
        %928 = vmatpush1.bf16.msra.mxu0 %v911
        %929 = vmatprep.subr.bf16.mxu0 0
        %930 = vmatpush1.bf16.msra.mxu0 %v912
        %931 = vmatprep.subr.bf16.mxu0 0
        %932 = vmatpush1.bf16.msra.mxu0 %v913
        %933 = vmatprep.subr.bf16.mxu0 0
        %934 = vmatpush1.bf16.msra.mxu0 %v914
        %935 = vmatprep.subr.bf16.mxu0 0
        %936 = vmatpush1.bf16.msra.mxu0 %v915
        %937 = vmatprep.subr.bf16.mxu0 0
        %938 = vmatpush1.bf16.msra.mxu0 %v916
        %939 = vmatprep.subr.bf16.mxu0 0
        %940 = vmatpush1.bf16.msra.mxu0 %v917
        %941 = vmatprep.subr.bf16.mxu0 0
        %942 = vmatpush1.bf16.msra.mxu0 %v918
        %943 = vmatprep.subr.bf16.mxu0 0
        %944 = vmatpush1.bf16.msra.mxu0 0
        %945 = vmatprep.subr.bf16.mxu0 0
        %946 = vmatpush1.bf16.msra.mxu0 0
        %947 = vmatprep.subr.bf16.mxu0 0
        %948 = vmatpush1.bf16.msra.mxu0 0
        %949 = vmatprep.subr.bf16.mxu0 0
        %950 = vmatpush1.bf16.msra.mxu0 0
        %951 = vmatprep.subr.bf16.mxu0 0
        %952 = vmatpush1.bf16.msra.mxu0 0
        %953 = vmatprep.subr.bf16.mxu0 0
        %954 = vmatpush1.bf16.msra.mxu0 0
        %955 = vmatprep.subr.bf16.mxu0 0
        %956 = vmatpush1.bf16.msra.mxu0 0
        %957 = vmatprep.subr.bf16.mxu0 0
        %958 = vmatpush1.bf16.msra.mxu0 0
        %959 = vmatprep.mubr.bf16.mxu0 0
        %960 = vmatmul.mubr.bf16.gmra.mrb[0].mxu0 %v590
        %v961 = vpop.f32.mrb[0].mxu0
        %v962 = vadd.f32 0.0, %v961
        %v963 = vpop.f32.mrb[0].mxu0
        %v964 = vpop.f32.mrb[0].mxu0
        %v965 = vpop.f32.mrb[0].mxu0
        %966 = vdwg.mxu0
        %v967 = vpack.c.bf16 %v962, %v962
        %s968 = scalar_lea.vmem %s1, 8
        %v969 = vld [vmem:[%s968] sm:$0xf]
        %v971 = vsel %vm813, %v969, 0
        %v974 = vsel %vm817, %v967, 0
        %976 = vmatprep.subr.bf16.mxu0 0
        %977 = vmatpush1.bf16.msra.mxu0 %v974
        %978 = vmatprep.subr.bf16.mxu0 0
        %979 = vmatpush1.bf16.msra.mxu0 0
        %980 = vmatprep.subr.bf16.mxu0 0
        %981 = vmatpush1.bf16.msra.mxu0 0
        %982 = vmatprep.subr.bf16.mxu0 0
        %983 = vmatpush1.bf16.msra.mxu0 0
        %984 = vmatprep.subr.bf16.mxu0 0
        %985 = vmatpush1.bf16.msra.mxu0 0
        %986 = vmatprep.subr.bf16.mxu0 0
        %987 = vmatpush1.bf16.msra.mxu0 0
        %988 = vmatprep.subr.bf16.mxu0 0
        %989 = vmatpush1.bf16.msra.mxu0 0
        %990 = vmatprep.subr.bf16.mxu0 0
        %991 = vmatpush1.bf16.msra.mxu0 0
        %992 = vmatprep.subr.bf16.mxu0 0
        %993 = vmatpush1.bf16.msra.mxu0 0
        %994 = vmatprep.subr.bf16.mxu0 0
        %995 = vmatpush1.bf16.msra.mxu0 0
        %996 = vmatprep.subr.bf16.mxu0 0
        %997 = vmatpush1.bf16.msra.mxu0 0
        %998 = vmatprep.subr.bf16.mxu0 0
        %999 = vmatpush1.bf16.msra.mxu0 0
        %1000 = vmatprep.subr.bf16.mxu0 0
        %1001 = vmatpush1.bf16.msra.mxu0 0
        %1002 = vmatprep.subr.bf16.mxu0 0
        %1003 = vmatpush1.bf16.msra.mxu0 0
        %1004 = vmatprep.subr.bf16.mxu0 0
        %1005 = vmatpush1.bf16.msra.mxu0 0
        %1006 = vmatprep.subr.bf16.mxu0 0
        %1007 = vmatpush1.bf16.msra.mxu0 0
        %1008 = vmatprep.mubr.bf16.mxu0 0
        %1009 = vmatmul.mubr.bf16.gmra.mrb[0].mxu0 %v971
        %v1010 = vpop.f32.mrb[0].mxu0
        %v1011 = vadd.f32 0.0, %v1010
        %v1012 = vpop.f32.mrb[0].mxu0
        %v1013 = vpop.f32.mrb[0].mxu0
        %v1014 = vpop.f32.mrb[0].mxu0
        %1015 = vdwg.mxu0
        %v1016 = vadd.f32 %v861, %v1011
        %s1017 = scalar_lea.vmem %s4, 192
        %v1018 = vld [vmem:[%s1017] sm:$0xf]
        %v1019 = vld [vmem:[%s1017 + $0x4] sm:$0xf]
        %v1020 = vld [vmem:[%s1017 + $0x8] sm:$0xf]
        %v1021 = vld [vmem:[%s1017 + $0xc] sm:$0xf]
        %v1022 = vld [vmem:[%s1017 + $0x10] sm:$0xf]
        %v1023 = vld [vmem:[%s1017 + $0x14] sm:$0xf]
        %v1024 = vld [vmem:[%s1017 + $0x18] sm:$0xf]
        %v1025 = vld [vmem:[%s1017 + $0x1c] sm:$0xf]
        %v1026 = vld [vmem:[%s1017 + $0x20] sm:$0xf]
        %v1027 = vld [vmem:[%s1017 + $0x24] sm:$0xf]
        %v1028 = vld [vmem:[%s1017 + $0x28] sm:$0xf]
        %v1029 = vld [vmem:[%s1017 + $0x2c] sm:$0xf]
        %v1030 = vld [vmem:[%s1017 + $0x30] sm:$0xf]
        %v1031 = vld [vmem:[%s1017 + $0x34] sm:$0xf]
        %v1032 = vld [vmem:[%s1017 + $0x38] sm:$0xf]
        %v1033 = vld [vmem:[%s1017 + $0x3c] sm:$0xf]
        %v1050 = vunpack.c.l.b16 %v1018
        %v1051 = vunpack.c.l.b16 %v1019
        %v1052 = vunpack.c.l.b16 %v1020
        %v1053 = vunpack.c.l.b16 %v1021
        %v1054 = vunpack.c.l.b16 %v1022
        %v1055 = vunpack.c.l.b16 %v1023
        %v1056 = vunpack.c.l.b16 %v1024
        %v1057 = vunpack.c.l.b16 %v1025
        %v1058 = vunpack.c.l.b16 %v1026
        %v1059 = vunpack.c.l.b16 %v1027
        %v1060 = vunpack.c.l.b16 %v1028
        %v1061 = vunpack.c.l.b16 %v1029
        %v1062 = vunpack.c.l.b16 %v1030
        %v1063 = vunpack.c.l.b16 %v1031
        %v1064 = vunpack.c.l.b16 %v1032
        %v1065 = vunpack.c.l.b16 %v1033
        %v1066 = vpack.c.b16 %v1051, %v1050
        %v1067 = vpack.c.b16 %v1053, %v1052
        %v1068 = vpack.c.b16 %v1055, %v1054
        %v1069 = vpack.c.b16 %v1057, %v1056
        %v1070 = vpack.c.b16 %v1059, %v1058
        %v1071 = vpack.c.b16 %v1061, %v1060
        %v1072 = vpack.c.b16 %v1063, %v1062
        %v1073 = vpack.c.b16 %v1065, %v1064
        %1082 = vmatprep.subr.bf16.mxu0 0
        %1083 = vmatpush1.bf16.msra.mxu0 %v1066
        %1084 = vmatprep.subr.bf16.mxu0 0
        %1085 = vmatpush1.bf16.msra.mxu0 %v1067
        %1086 = vmatprep.subr.bf16.mxu0 0
        %1087 = vmatpush1.bf16.msra.mxu0 %v1068
        %1088 = vmatprep.subr.bf16.mxu0 0
        %1089 = vmatpush1.bf16.msra.mxu0 %v1069
        %1090 = vmatprep.subr.bf16.mxu0 0
        %1091 = vmatpush1.bf16.msra.mxu0 %v1070
        %1092 = vmatprep.subr.bf16.mxu0 0
        %1093 = vmatpush1.bf16.msra.mxu0 %v1071
        %1094 = vmatprep.subr.bf16.mxu0 0
        %1095 = vmatpush1.bf16.msra.mxu0 %v1072
        %1096 = vmatprep.subr.bf16.mxu0 0
        %1097 = vmatpush1.bf16.msra.mxu0 %v1073
        %1098 = vmatprep.subr.bf16.mxu0 0
        %1099 = vmatpush1.bf16.msra.mxu0 0
        %1100 = vmatprep.subr.bf16.mxu0 0
        %1101 = vmatpush1.bf16.msra.mxu0 0
        %1102 = vmatprep.subr.bf16.mxu0 0
        %1103 = vmatpush1.bf16.msra.mxu0 0
        %1104 = vmatprep.subr.bf16.mxu0 0
        %1105 = vmatpush1.bf16.msra.mxu0 0
        %1106 = vmatprep.subr.bf16.mxu0 0
        %1107 = vmatpush1.bf16.msra.mxu0 0
        %1108 = vmatprep.subr.bf16.mxu0 0
        %1109 = vmatpush1.bf16.msra.mxu0 0
        %1110 = vmatprep.subr.bf16.mxu0 0
        %1111 = vmatpush1.bf16.msra.mxu0 0
        %1112 = vmatprep.subr.bf16.mxu0 0
        %1113 = vmatpush1.bf16.msra.mxu0 0
        %1114 = vmatprep.mubr.bf16.mxu0 0
        %1115 = vmatmul.mubr.bf16.gmra.mrb[0].mxu0 %v590
        %v1116 = vpop.f32.mrb[0].mxu0
        %v1117 = vadd.f32 0.0, %v1116
        %v1118 = vpop.f32.mrb[0].mxu0
        %v1119 = vpop.f32.mrb[0].mxu0
        %v1120 = vpop.f32.mrb[0].mxu0
        %1121 = vdwg.mxu0
        %v1122 = vpack.c.bf16 %v1117, %v1117
        %s1123 = scalar_lea.vmem %s1, 12
        %v1124 = vld [vmem:[%s1123] sm:$0xf]
        %v1126 = vsel %vm813, %v1124, 0
        %v1129 = vsel %vm817, %v1122, 0
        %1131 = vmatprep.subr.bf16.mxu0 0
        %1132 = vmatpush1.bf16.msra.mxu0 %v1129
        %1133 = vmatprep.subr.bf16.mxu0 0
        %1134 = vmatpush1.bf16.msra.mxu0 0
        %1135 = vmatprep.subr.bf16.mxu0 0
        %1136 = vmatpush1.bf16.msra.mxu0 0
        %1137 = vmatprep.subr.bf16.mxu0 0
        %1138 = vmatpush1.bf16.msra.mxu0 0
        %1139 = vmatprep.subr.bf16.mxu0 0
        %1140 = vmatpush1.bf16.msra.mxu0 0
        %1141 = vmatprep.subr.bf16.mxu0 0
        %1142 = vmatpush1.bf16.msra.mxu0 0
        %1143 = vmatprep.subr.bf16.mxu0 0
        %1144 = vmatpush1.bf16.msra.mxu0 0
        %1145 = vmatprep.subr.bf16.mxu0 0
        %1146 = vmatpush1.bf16.msra.mxu0 0
        %1147 = vmatprep.subr.bf16.mxu0 0
        %1148 = vmatpush1.bf16.msra.mxu0 0
        %1149 = vmatprep.subr.bf16.mxu0 0
        %1150 = vmatpush1.bf16.msra.mxu0 0
        %1151 = vmatprep.subr.bf16.mxu0 0
        %1152 = vmatpush1.bf16.msra.mxu0 0
        %1153 = vmatprep.subr.bf16.mxu0 0
        %1154 = vmatpush1.bf16.msra.mxu0 0
        %1155 = vmatprep.subr.bf16.mxu0 0
        %1156 = vmatpush1.bf16.msra.mxu0 0
        %1157 = vmatprep.subr.bf16.mxu0 0
        %1158 = vmatpush1.bf16.msra.mxu0 0
        %1159 = vmatprep.subr.bf16.mxu0 0
        %1160 = vmatpush1.bf16.msra.mxu0 0
        %1161 = vmatprep.subr.bf16.mxu0 0
        %1162 = vmatpush1.bf16.msra.mxu0 0
        %1163 = vmatprep.mubr.bf16.mxu0 0
        %1164 = vmatmul.mubr.bf16.gmra.mrb[0].mxu0 %v1126
        %v1165 = vpop.f32.mrb[0].mxu0
        %v1166 = vadd.f32 0.0, %v1165
        %v1167 = vpop.f32.mrb[0].mxu0
        %v1168 = vpop.f32.mrb[0].mxu0
        %v1169 = vpop.f32.mrb[0].mxu0
        %1170 = vdwg.mxu0
        %v1171 = vadd.f32 %v1016, %v1166
        %s1172 = scalar_lea.vmem %s4, 256
        %v1173 = vld [vmem:[%s1172] sm:$0xf]
        %v1174 = vld [vmem:[%s1172 + $0x4] sm:$0xf]
        %v1175 = vld [vmem:[%s1172 + $0x8] sm:$0xf]
        %v1176 = vld [vmem:[%s1172 + $0xc] sm:$0xf]
        %v1177 = vld [vmem:[%s1172 + $0x10] sm:$0xf]
        %v1178 = vld [vmem:[%s1172 + $0x14] sm:$0xf]
        %v1179 = vld [vmem:[%s1172 + $0x18] sm:$0xf]
        %v1180 = vld [vmem:[%s1172 + $0x1c] sm:$0xf]
        %v1181 = vld [vmem:[%s1172 + $0x20] sm:$0xf]
        %v1182 = vld [vmem:[%s1172 + $0x24] sm:$0xf]
        %v1183 = vld [vmem:[%s1172 + $0x28] sm:$0xf]
        %v1184 = vld [vmem:[%s1172 + $0x2c] sm:$0xf]
        %v1185 = vld [vmem:[%s1172 + $0x30] sm:$0xf]
        %v1186 = vld [vmem:[%s1172 + $0x34] sm:$0xf]
        %v1187 = vld [vmem:[%s1172 + $0x38] sm:$0xf]
        %v1188 = vld [vmem:[%s1172 + $0x3c] sm:$0xf]
        %v1205 = vunpack.c.l.b16 %v1173
        %v1206 = vunpack.c.l.b16 %v1174
        %v1207 = vunpack.c.l.b16 %v1175
        %v1208 = vunpack.c.l.b16 %v1176
        %v1209 = vunpack.c.l.b16 %v1177
        %v1210 = vunpack.c.l.b16 %v1178
        %v1211 = vunpack.c.l.b16 %v1179
        %v1212 = vunpack.c.l.b16 %v1180
        %v1213 = vunpack.c.l.b16 %v1181
        %v1214 = vunpack.c.l.b16 %v1182
        %v1215 = vunpack.c.l.b16 %v1183
        %v1216 = vunpack.c.l.b16 %v1184
        %v1217 = vunpack.c.l.b16 %v1185
        %v1218 = vunpack.c.l.b16 %v1186
        %v1219 = vunpack.c.l.b16 %v1187
        %v1220 = vunpack.c.l.b16 %v1188
        %v1221 = vpack.c.b16 %v1206, %v1205
        %v1222 = vpack.c.b16 %v1208, %v1207
        %v1223 = vpack.c.b16 %v1210, %v1209
        %v1224 = vpack.c.b16 %v1212, %v1211
        %v1225 = vpack.c.b16 %v1214, %v1213
        %v1226 = vpack.c.b16 %v1216, %v1215
        %v1227 = vpack.c.b16 %v1218, %v1217
        %v1228 = vpack.c.b16 %v1220, %v1219
        %1237 = vmatprep.subr.bf16.mxu0 0
        %1238 = vmatpush1.bf16.msra.mxu0 %v1221
        %1239 = vmatprep.subr.bf16.mxu0 0
        %1240 = vmatpush1.bf16.msra.mxu0 %v1222
        %1241 = vmatprep.subr.bf16.mxu0 0
        %1242 = vmatpush1.bf16.msra.mxu0 %v1223
        %1243 = vmatprep.subr.bf16.mxu0 0
        %1244 = vmatpush1.bf16.msra.mxu0 %v1224
        %1245 = vmatprep.subr.bf16.mxu0 0
        %1246 = vmatpush1.bf16.msra.mxu0 %v1225
        %1247 = vmatprep.subr.bf16.mxu0 0
        %1248 = vmatpush1.bf16.msra.mxu0 %v1226
        %1249 = vmatprep.subr.bf16.mxu0 0
        %1250 = vmatpush1.bf16.msra.mxu0 %v1227
        %1251 = vmatprep.subr.bf16.mxu0 0
        %1252 = vmatpush1.bf16.msra.mxu0 %v1228
        %1253 = vmatprep.subr.bf16.mxu0 0
        %1254 = vmatpush1.bf16.msra.mxu0 0
        %1255 = vmatprep.subr.bf16.mxu0 0
        %1256 = vmatpush1.bf16.msra.mxu0 0
        %1257 = vmatprep.subr.bf16.mxu0 0
        %1258 = vmatpush1.bf16.msra.mxu0 0
        %1259 = vmatprep.subr.bf16.mxu0 0
        %1260 = vmatpush1.bf16.msra.mxu0 0
        %1261 = vmatprep.subr.bf16.mxu0 0
        %1262 = vmatpush1.bf16.msra.mxu0 0
        %1263 = vmatprep.subr.bf16.mxu0 0
        %1264 = vmatpush1.bf16.msra.mxu0 0
        %1265 = vmatprep.subr.bf16.mxu0 0
        %1266 = vmatpush1.bf16.msra.mxu0 0
        %1267 = vmatprep.subr.bf16.mxu0 0
        %1268 = vmatpush1.bf16.msra.mxu0 0
        %1269 = vmatprep.mubr.bf16.mxu0 0
        %1270 = vmatmul.mubr.bf16.gmra.mrb[0].mxu0 %v590
        %v1271 = vpop.f32.mrb[0].mxu0
        %v1272 = vadd.f32 0.0, %v1271
        %v1273 = vpop.f32.mrb[0].mxu0
        %v1274 = vpop.f32.mrb[0].mxu0
        %v1275 = vpop.f32.mrb[0].mxu0
        %1276 = vdwg.mxu0
        %v1277 = vpack.c.bf16 %v1272, %v1272
        %s1278 = scalar_lea.vmem %s1, 16
        %v1279 = vld [vmem:[%s1278] sm:$0xf]
        %v1281 = vsel %vm813, %v1279, 0
        %v1284 = vsel %vm817, %v1277, 0
        %1286 = vmatprep.subr.bf16.mxu0 0
        %1287 = vmatpush1.bf16.msra.mxu0 %v1284
        %1288 = vmatprep.subr.bf16.mxu0 0
        %1289 = vmatpush1.bf16.msra.mxu0 0
        %1290 = vmatprep.subr.bf16.mxu0 0
        %1291 = vmatpush1.bf16.msra.mxu0 0
        %1292 = vmatprep.subr.bf16.mxu0 0
        %1293 = vmatpush1.bf16.msra.mxu0 0
        %1294 = vmatprep.subr.bf16.mxu0 0
        %1295 = vmatpush1.bf16.msra.mxu0 0
        %1296 = vmatprep.subr.bf16.mxu0 0
        %1297 = vmatpush1.bf16.msra.mxu0 0
        %1298 = vmatprep.subr.bf16.mxu0 0
        %1299 = vmatpush1.bf16.msra.mxu0 0
        %1300 = vmatprep.subr.bf16.mxu0 0
        %1301 = vmatpush1.bf16.msra.mxu0 0
        %1302 = vmatprep.subr.bf16.mxu0 0
        %1303 = vmatpush1.bf16.msra.mxu0 0
        %1304 = vmatprep.subr.bf16.mxu0 0
        %1305 = vmatpush1.bf16.msra.mxu0 0
        %1306 = vmatprep.subr.bf16.mxu0 0
        %1307 = vmatpush1.bf16.msra.mxu0 0
        %1308 = vmatprep.subr.bf16.mxu0 0
        %1309 = vmatpush1.bf16.msra.mxu0 0
        %1310 = vmatprep.subr.bf16.mxu0 0
        %1311 = vmatpush1.bf16.msra.mxu0 0
        %1312 = vmatprep.subr.bf16.mxu0 0
        %1313 = vmatpush1.bf16.msra.mxu0 0
        %1314 = vmatprep.subr.bf16.mxu0 0
        %1315 = vmatpush1.bf16.msra.mxu0 0
        %1316 = vmatprep.subr.bf16.mxu0 0
        %1317 = vmatpush1.bf16.msra.mxu0 0
        %1318 = vmatprep.mubr.bf16.mxu0 0
        %1319 = vmatmul.mubr.bf16.gmra.mrb[0].mxu0 %v1281
        %v1320 = vpop.f32.mrb[0].mxu0
        %v1321 = vadd.f32 0.0, %v1320
        %v1322 = vpop.f32.mrb[0].mxu0
        %v1323 = vpop.f32.mrb[0].mxu0
        %v1324 = vpop.f32.mrb[0].mxu0
        %1325 = vdwg.mxu0
        %v1326 = vadd.f32 %v1171, %v1321
        %s1327 = scalar_lea.vmem %s4, 320
        %v1328 = vld [vmem:[%s1327] sm:$0xf]
        %v1329 = vld [vmem:[%s1327 + $0x4] sm:$0xf]
        %v1330 = vld [vmem:[%s1327 + $0x8] sm:$0xf]
        %v1331 = vld [vmem:[%s1327 + $0xc] sm:$0xf]
        %v1332 = vld [vmem:[%s1327 + $0x10] sm:$0xf]
        %v1333 = vld [vmem:[%s1327 + $0x14] sm:$0xf]
        %v1334 = vld [vmem:[%s1327 + $0x18] sm:$0xf]
        %v1335 = vld [vmem:[%s1327 + $0x1c] sm:$0xf]
        %v1336 = vld [vmem:[%s1327 + $0x20] sm:$0xf]
        %v1337 = vld [vmem:[%s1327 + $0x24] sm:$0xf]
        %v1338 = vld [vmem:[%s1327 + $0x28] sm:$0xf]
        %v1339 = vld [vmem:[%s1327 + $0x2c] sm:$0xf]
        %v1340 = vld [vmem:[%s1327 + $0x30] sm:$0xf]
        %v1341 = vld [vmem:[%s1327 + $0x34] sm:$0xf]
        %v1342 = vld [vmem:[%s1327 + $0x38] sm:$0xf]
        %v1343 = vld [vmem:[%s1327 + $0x3c] sm:$0xf]
        %v1360 = vunpack.c.l.b16 %v1328
        %v1361 = vunpack.c.l.b16 %v1329
        %v1362 = vunpack.c.l.b16 %v1330
        %v1363 = vunpack.c.l.b16 %v1331
        %v1364 = vunpack.c.l.b16 %v1332
        %v1365 = vunpack.c.l.b16 %v1333
        %v1366 = vunpack.c.l.b16 %v1334
        %v1367 = vunpack.c.l.b16 %v1335
        %v1368 = vunpack.c.l.b16 %v1336
        %v1369 = vunpack.c.l.b16 %v1337
        %v1370 = vunpack.c.l.b16 %v1338
        %v1371 = vunpack.c.l.b16 %v1339
        %v1372 = vunpack.c.l.b16 %v1340
        %v1373 = vunpack.c.l.b16 %v1341
        %v1374 = vunpack.c.l.b16 %v1342
        %v1375 = vunpack.c.l.b16 %v1343
        %v1376 = vpack.c.b16 %v1361, %v1360
        %v1377 = vpack.c.b16 %v1363, %v1362
        %v1378 = vpack.c.b16 %v1365, %v1364
        %v1379 = vpack.c.b16 %v1367, %v1366
        %v1380 = vpack.c.b16 %v1369, %v1368
        %v1381 = vpack.c.b16 %v1371, %v1370
        %v1382 = vpack.c.b16 %v1373, %v1372
        %v1383 = vpack.c.b16 %v1375, %v1374
        %1392 = vmatprep.subr.bf16.mxu0 0
        %1393 = vmatpush1.bf16.msra.mxu0 %v1376
        %1394 = vmatprep.subr.bf16.mxu0 0
        %1395 = vmatpush1.bf16.msra.mxu0 %v1377
        %1396 = vmatprep.subr.bf16.mxu0 0
        %1397 = vmatpush1.bf16.msra.mxu0 %v1378
        %1398 = vmatprep.subr.bf16.mxu0 0
        %1399 = vmatpush1.bf16.msra.mxu0 %v1379
        %1400 = vmatprep.subr.bf16.mxu0 0
        %1401 = vmatpush1.bf16.msra.mxu0 %v1380
        %1402 = vmatprep.subr.bf16.mxu0 0
        %1403 = vmatpush1.bf16.msra.mxu0 %v1381
        %1404 = vmatprep.subr.bf16.mxu0 0
        %1405 = vmatpush1.bf16.msra.mxu0 %v1382
        %1406 = vmatprep.subr.bf16.mxu0 0
        %1407 = vmatpush1.bf16.msra.mxu0 %v1383
        %1408 = vmatprep.subr.bf16.mxu0 0
        %1409 = vmatpush1.bf16.msra.mxu0 0
        %1410 = vmatprep.subr.bf16.mxu0 0
        %1411 = vmatpush1.bf16.msra.mxu0 0
        %1412 = vmatprep.subr.bf16.mxu0 0
        %1413 = vmatpush1.bf16.msra.mxu0 0
        %1414 = vmatprep.subr.bf16.mxu0 0
        %1415 = vmatpush1.bf16.msra.mxu0 0
        %1416 = vmatprep.subr.bf16.mxu0 0
        %1417 = vmatpush1.bf16.msra.mxu0 0
        %1418 = vmatprep.subr.bf16.mxu0 0
        %1419 = vmatpush1.bf16.msra.mxu0 0
        %1420 = vmatprep.subr.bf16.mxu0 0
        %1421 = vmatpush1.bf16.msra.mxu0 0
        %1422 = vmatprep.subr.bf16.mxu0 0
        %1423 = vmatpush1.bf16.msra.mxu0 0
        %1424 = vmatprep.mubr.bf16.mxu0 0
        %1425 = vmatmul.mubr.bf16.gmra.mrb[0].mxu0 %v590
        %v1426 = vpop.f32.mrb[0].mxu0
        %v1427 = vadd.f32 0.0, %v1426
        %v1428 = vpop.f32.mrb[0].mxu0
        %v1429 = vpop.f32.mrb[0].mxu0
        %v1430 = vpop.f32.mrb[0].mxu0
        %1431 = vdwg.mxu0
        %v1432 = vpack.c.bf16 %v1427, %v1427
        %s1433 = scalar_lea.vmem %s1, 20
        %v1434 = vld [vmem:[%s1433] sm:$0xf]
        %v1436 = vsel %vm813, %v1434, 0
        %v1439 = vsel %vm817, %v1432, 0
        %1441 = vmatprep.subr.bf16.mxu0 0
        %1442 = vmatpush1.bf16.msra.mxu0 %v1439
        %1443 = vmatprep.subr.bf16.mxu0 0
        %1444 = vmatpush1.bf16.msra.mxu0 0
        %1445 = vmatprep.subr.bf16.mxu0 0
        %1446 = vmatpush1.bf16.msra.mxu0 0
        %1447 = vmatprep.subr.bf16.mxu0 0
        %1448 = vmatpush1.bf16.msra.mxu0 0
        %1449 = vmatprep.subr.bf16.mxu0 0
        %1450 = vmatpush1.bf16.msra.mxu0 0
        %1451 = vmatprep.subr.bf16.mxu0 0
        %1452 = vmatpush1.bf16.msra.mxu0 0
        %1453 = vmatprep.subr.bf16.mxu0 0
        %1454 = vmatpush1.bf16.msra.mxu0 0
        %1455 = vmatprep.subr.bf16.mxu0 0
        %1456 = vmatpush1.bf16.msra.mxu0 0
        %1457 = vmatprep.subr.bf16.mxu0 0
        %1458 = vmatpush1.bf16.msra.mxu0 0
        %1459 = vmatprep.subr.bf16.mxu0 0
        %1460 = vmatpush1.bf16.msra.mxu0 0
        %1461 = vmatprep.subr.bf16.mxu0 0
        %1462 = vmatpush1.bf16.msra.mxu0 0
        %1463 = vmatprep.subr.bf16.mxu0 0
        %1464 = vmatpush1.bf16.msra.mxu0 0
        %1465 = vmatprep.subr.bf16.mxu0 0
        %1466 = vmatpush1.bf16.msra.mxu0 0
        %1467 = vmatprep.subr.bf16.mxu0 0
        %1468 = vmatpush1.bf16.msra.mxu0 0
        %1469 = vmatprep.subr.bf16.mxu0 0
        %1470 = vmatpush1.bf16.msra.mxu0 0
        %1471 = vmatprep.subr.bf16.mxu0 0
        %1472 = vmatpush1.bf16.msra.mxu0 0
        %1473 = vmatprep.mubr.bf16.mxu0 0
        %1474 = vmatmul.mubr.bf16.gmra.mrb[0].mxu0 %v1436
        %v1475 = vpop.f32.mrb[0].mxu0
        %v1476 = vadd.f32 0.0, %v1475
        %v1477 = vpop.f32.mrb[0].mxu0
        %v1478 = vpop.f32.mrb[0].mxu0
        %v1479 = vpop.f32.mrb[0].mxu0
        %1480 = vdwg.mxu0
        %v1481 = vadd.f32 %v1326, %v1476
        %s1482 = scalar_lea.vmem %s4, 384
        %v1483 = vld [vmem:[%s1482] sm:$0xf]
        %v1484 = vld [vmem:[%s1482 + $0x4] sm:$0xf]
        %v1485 = vld [vmem:[%s1482 + $0x8] sm:$0xf]
        %v1486 = vld [vmem:[%s1482 + $0xc] sm:$0xf]
        %v1487 = vld [vmem:[%s1482 + $0x10] sm:$0xf]
        %v1488 = vld [vmem:[%s1482 + $0x14] sm:$0xf]
        %v1489 = vld [vmem:[%s1482 + $0x18] sm:$0xf]
        %v1490 = vld [vmem:[%s1482 + $0x1c] sm:$0xf]
        %v1491 = vld [vmem:[%s1482 + $0x20] sm:$0xf]
        %v1492 = vld [vmem:[%s1482 + $0x24] sm:$0xf]
        %v1493 = vld [vmem:[%s1482 + $0x28] sm:$0xf]
        %v1494 = vld [vmem:[%s1482 + $0x2c] sm:$0xf]
        %v1495 = vld [vmem:[%s1482 + $0x30] sm:$0xf]
        %v1496 = vld [vmem:[%s1482 + $0x34] sm:$0xf]
        %v1497 = vld [vmem:[%s1482 + $0x38] sm:$0xf]
        %v1498 = vld [vmem:[%s1482 + $0x3c] sm:$0xf]
        %v1515 = vunpack.c.l.b16 %v1483
        %v1516 = vunpack.c.l.b16 %v1484
        %v1517 = vunpack.c.l.b16 %v1485
        %v1518 = vunpack.c.l.b16 %v1486
        %v1519 = vunpack.c.l.b16 %v1487
        %v1520 = vunpack.c.l.b16 %v1488
        %v1521 = vunpack.c.l.b16 %v1489
        %v1522 = vunpack.c.l.b16 %v1490
        %v1523 = vunpack.c.l.b16 %v1491
        %v1524 = vunpack.c.l.b16 %v1492
        %v1525 = vunpack.c.l.b16 %v1493
        %v1526 = vunpack.c.l.b16 %v1494
        %v1527 = vunpack.c.l.b16 %v1495
        %v1528 = vunpack.c.l.b16 %v1496
        %v1529 = vunpack.c.l.b16 %v1497
        %v1530 = vunpack.c.l.b16 %v1498
        %v1531 = vpack.c.b16 %v1516, %v1515
        %v1532 = vpack.c.b16 %v1518, %v1517
        %v1533 = vpack.c.b16 %v1520, %v1519
        %v1534 = vpack.c.b16 %v1522, %v1521
        %v1535 = vpack.c.b16 %v1524, %v1523
        %v1536 = vpack.c.b16 %v1526, %v1525
        %v1537 = vpack.c.b16 %v1528, %v1527
        %v1538 = vpack.c.b16 %v1530, %v1529
        %1547 = vmatprep.subr.bf16.mxu0 0
        %1548 = vmatpush1.bf16.msra.mxu0 %v1531
        %1549 = vmatprep.subr.bf16.mxu0 0
        %1550 = vmatpush1.bf16.msra.mxu0 %v1532
        %1551 = vmatprep.subr.bf16.mxu0 0
        %1552 = vmatpush1.bf16.msra.mxu0 %v1533
        %1553 = vmatprep.subr.bf16.mxu0 0
        %1554 = vmatpush1.bf16.msra.mxu0 %v1534
        %1555 = vmatprep.subr.bf16.mxu0 0
        %1556 = vmatpush1.bf16.msra.mxu0 %v1535
        %1557 = vmatprep.subr.bf16.mxu0 0
        %1558 = vmatpush1.bf16.msra.mxu0 %v1536
        %1559 = vmatprep.subr.bf16.mxu0 0
        %1560 = vmatpush1.bf16.msra.mxu0 %v1537
        %1561 = vmatprep.subr.bf16.mxu0 0
        %1562 = vmatpush1.bf16.msra.mxu0 %v1538
        %1563 = vmatprep.subr.bf16.mxu0 0
        %1564 = vmatpush1.bf16.msra.mxu0 0
        %1565 = vmatprep.subr.bf16.mxu0 0
        %1566 = vmatpush1.bf16.msra.mxu0 0
        %1567 = vmatprep.subr.bf16.mxu0 0
        %1568 = vmatpush1.bf16.msra.mxu0 0
        %1569 = vmatprep.subr.bf16.mxu0 0
        %1570 = vmatpush1.bf16.msra.mxu0 0
        %1571 = vmatprep.subr.bf16.mxu0 0
        %1572 = vmatpush1.bf16.msra.mxu0 0
        %1573 = vmatprep.subr.bf16.mxu0 0
        %1574 = vmatpush1.bf16.msra.mxu0 0
        %1575 = vmatprep.subr.bf16.mxu0 0
        %1576 = vmatpush1.bf16.msra.mxu0 0
        %1577 = vmatprep.subr.bf16.mxu0 0
        %1578 = vmatpush1.bf16.msra.mxu0 0
        %1579 = vmatprep.mubr.bf16.mxu0 0
        %1580 = vmatmul.mubr.bf16.gmra.mrb[0].mxu0 %v590
        %v1581 = vpop.f32.mrb[0].mxu0
        %v1582 = vadd.f32 0.0, %v1581
        %v1583 = vpop.f32.mrb[0].mxu0
        %v1584 = vpop.f32.mrb[0].mxu0
        %v1585 = vpop.f32.mrb[0].mxu0
        %1586 = vdwg.mxu0
        %v1587 = vpack.c.bf16 %v1582, %v1582
        %s1588 = scalar_lea.vmem %s1, 24
        %v1589 = vld [vmem:[%s1588] sm:$0xf]
        %v1591 = vsel %vm813, %v1589, 0
        %v1594 = vsel %vm817, %v1587, 0
        %1596 = vmatprep.subr.bf16.mxu0 0
        %1597 = vmatpush1.bf16.msra.mxu0 %v1594
        %1598 = vmatprep.subr.bf16.mxu0 0
        %1599 = vmatpush1.bf16.msra.mxu0 0
        %1600 = vmatprep.subr.bf16.mxu0 0
        %1601 = vmatpush1.bf16.msra.mxu0 0
        %1602 = vmatprep.subr.bf16.mxu0 0
        %1603 = vmatpush1.bf16.msra.mxu0 0
        %1604 = vmatprep.subr.bf16.mxu0 0
        %1605 = vmatpush1.bf16.msra.mxu0 0
        %1606 = vmatprep.subr.bf16.mxu0 0
        %1607 = vmatpush1.bf16.msra.mxu0 0
        %1608 = vmatprep.subr.bf16.mxu0 0
        %1609 = vmatpush1.bf16.msra.mxu0 0
        %1610 = vmatprep.subr.bf16.mxu0 0
        %1611 = vmatpush1.bf16.msra.mxu0 0
        %1612 = vmatprep.subr.bf16.mxu0 0
        %1613 = vmatpush1.bf16.msra.mxu0 0
        %1614 = vmatprep.subr.bf16.mxu0 0
        %1615 = vmatpush1.bf16.msra.mxu0 0
        %1616 = vmatprep.subr.bf16.mxu0 0
        %1617 = vmatpush1.bf16.msra.mxu0 0
        %1618 = vmatprep.subr.bf16.mxu0 0
        %1619 = vmatpush1.bf16.msra.mxu0 0
        %1620 = vmatprep.subr.bf16.mxu0 0
        %1621 = vmatpush1.bf16.msra.mxu0 0
        %1622 = vmatprep.subr.bf16.mxu0 0
        %1623 = vmatpush1.bf16.msra.mxu0 0
        %1624 = vmatprep.subr.bf16.mxu0 0
        %1625 = vmatpush1.bf16.msra.mxu0 0
        %1626 = vmatprep.subr.bf16.mxu0 0
        %1627 = vmatpush1.bf16.msra.mxu0 0
        %1628 = vmatprep.mubr.bf16.mxu0 0
        %1629 = vmatmul.mubr.bf16.gmra.mrb[0].mxu0 %v1591
        %v1630 = vpop.f32.mrb[0].mxu0
        %v1631 = vadd.f32 0.0, %v1630
        %v1632 = vpop.f32.mrb[0].mxu0
        %v1633 = vpop.f32.mrb[0].mxu0
        %v1634 = vpop.f32.mrb[0].mxu0
        %1635 = vdwg.mxu0
        %v1636 = vadd.f32 %v1481, %v1631
        %v1637 = vpack.c.bf16 %v1636, %v1636
        %1638 = vst [vmem:[%s272] sm:$0xf] %v1637
        %s1639 = sand.u32 %s161, 1
        %s1640 = scalar_lea.sflag [#allocation3], %s1639
        %s1641 = sand.u32 %s161, 1
        %s1642 = smul.addr %s1641, 4
        %s1643 = scalar_lea.vmem [#allocation2], %s1642
        %p1644 = scmp.lt.s32.totalorder %s22, 1
        %s1645 = scalar_select %p1644, %s22, 1
        %s1646 = smul.addr %s1645, 4
        %s1647 = scalar_lea.vmem %s7, %s1646
        // Predicated region
        $region45: #{gwnet_forward.8} parent=43 // pred_check
          %p1648 = pneg %p171
        $region46: #{gwnet_forward.8} parent=43 // pred_check_branch
          %1650 = sbr.rel (%p1648) target = $region48
        $region47: #{gwnet_forward.8} parent=43 // pred_region
          %s1652 = ssub.s32 64, 64
          %1653 = vsyncadd %s1640, %s1652
          %s1654 = smul.addr %s22, 64
          %s1655 = scalar_lea.hbm %s6, %s1654
          %s1657 = sshll.u32 %s1643, 4
          %s1658 = int_to_ptr.vmem [resolvable:$true] %s1657
          %1660 = dma.vmem_to_hbm [thread:$0]  %s1658, 64, %s1655, %s1640
        $region48: #{gwnet_forward.8} parent=43 // pred_fallthru
          _
        // Predicated region
        $region49: #{gwnet_forward.8} parent=43 // pred_check
          %p1661 = pneg %p197
        $region50: #{gwnet_forward.8} parent=43 // pred_check_branch
          %1663 = sbr.rel (%p1661) target = $region52
        $region51: #{gwnet_forward.8} parent=43 // pred_region
          _
        $region52: #{gwnet_forward.8} parent=43 // pred_fallthru
          _
      $region44: #{gwnet_forward.8} parent=5 // pred_fallthru
        _
      %p1664 = scmp.le.s32.totalorder 2, %s17
      // Predicated region
      $region53: #{gwnet_forward.8} parent=5 // pred_check
        %p1665 = pneg %p1664
      $region54: #{gwnet_forward.8} parent=5 // pred_check_branch
        %1667 = sbr.rel (%p1665) target = $region56
      $region55: #{gwnet_forward.8} parent=5 // pred_region
        %s1668 = ssub.s32 %s17, 2
        // Predicated region
        $region57: #{gwnet_forward.8} parent=55 // pred_check
          %p1669 = pneg %p177
        $region58: #{gwnet_forward.8} parent=55 // pred_check_branch
          %1671 = sbr.rel (%p1669) target = $region60
        $region59: #{gwnet_forward.8} parent=55 // pred_region
          %s1672 = sand.u32 %s162, 1
          %s1673 = scalar_lea.sflag [#allocation3], %s1672
          %s1674 = sand.u32 %s162, 1
          %s1675 = smul.addr %s1674, 4
          %s1676 = scalar_lea.vmem [#allocation2], %s1675
          %1677 = dma.done %s1673, 64
        $region60: #{gwnet_forward.8} parent=55 // pred_fallthru
          _
        // Predicated region
        $region61: #{gwnet_forward.8} parent=55 // pred_check
          %p1678 = pneg %p203
        $region62: #{gwnet_forward.8} parent=55 // pred_check_branch
          %1680 = sbr.rel (%p1678) target = $region64
        $region63: #{gwnet_forward.8} parent=55 // pred_region
          %p1681 = scmp.lt.s32.totalorder %s23, 1
          %s1682 = scalar_select %p1681, %s23, 1
          %s1683 = smul.addr %s1682, 4
          %s1684 = scalar_lea.vmem %s7, %s1683
        $region64: #{gwnet_forward.8} parent=55 // pred_fallthru
          _
      $region56: #{gwnet_forward.8} parent=5 // pred_fallthru
        _
    $region6: #{gwnet_forward.8} parent=1 // loop_footer
      %s21 = sadd.s32 1, %s17
    $region7: #{gwnet_forward.8} parent=1 // loop_footer_branch
      %16 = sbr.rel target = $region3
    $region8: #{gwnet_forward.8} parent=1 // loop_exit
      _
    %1685 = vsyncpa [#allocation3], 1
    %s1686 = scalar_lea.sflag [#allocation3], 1
    %1687 = vsyncpa %s1686, 1

// kernel: gwnet_forward.9
$region0: #{gwnet_forward.9}
  #allocation0 [shape = 'u32[]', space=smem, size = 0x4, offset = 0x4, fixed_abs, tag = 'smem constant byte address 0x4 - core index']
  #allocation1 [shape = 'u32[144,128]{1,0:T(1,128)}', space=vmem, size = 0x12000, scoped, tag = 'internal scratch']
  %s0 = inlined_call_operand.vmem [shape: bf16[16,256], index: 0, kind: input, shape index: {}]
  %s1 = inlined_call_operand.vmem [shape: bf16[256,128], index: 1, kind: input, shape index: {}]
  %s2 = inlined_call_operand.vmem [shape: f32[1,128], index: 2, kind: input, shape index: {}]
  %s3 = inlined_call_operand.vmem [shape: bf16[128,128], index: 3, kind: input, shape index: {}]
  %s4 = inlined_call_operand.vmem [shape: f32[1,128], index: 4, kind: input, shape index: {}]
  %s5 = inlined_call_operand.vmem [shape: bf16[128,128], index: 5, kind: input, shape index: {}]
  %s6 = inlined_call_operand.vmem [shape: f32[1,128], index: 6, kind: input, shape index: {}]
  %s7 = inlined_call_operand.vmem [shape: f32[16,128], index: 7, kind: output, shape index: {}]
  %s8 = sld [smem:[#allocation0]]
  $region61: #{gwnet_forward.9} parent=0
    _
  %s10 = ssub.s32 1, %s8
  %s11 = scalar_select 0, %s10, %s8
  loop: start=0, step=1, limit=4
  $region2: #{gwnet_forward.9} parent=0 // loop_pre_header
    _
  $region3: #{gwnet_forward.9} parent=0 // loop_header
    %s13 = sphi 0, %s17
    %p14 = scmp.ge.s32.totalorder %s13, 4
    %s23 = sphi 0, %s25
    %s26 = sphi 0, %s23
    %s27 = sphi 0, %s26
    %s43 = sphi 0, %s27
    %s47 = sphi 0, %s47
    %s49 = sphi 0, %s47
    %s50 = sphi 0, %s49
    %s64 = sphi 0, %s50
    %s68 = sphi 0, %s68
    %s70 = sphi 0, %s68
    %s71 = sphi 0, %s70
    %s85 = sphi 0, %s71
    %s89 = sphi 0, %s89
    %s91 = sphi 0, %s89
    %s92 = sphi 0, %s91
    %s106 = sphi 0, %s92
    %s110 = sphi 0, %s110
    %s112 = sphi 0, %s110
    %s113 = sphi 0, %s112
    %s127 = sphi 0, %s113
    %s131 = sphi 0, %s131
    %s133 = sphi 0, %s131
    %s134 = sphi 0, %s133
    %s148 = sphi 0, %s134
    %s152 = sphi 0, %s152
    %s154 = sphi 0, %s152
    %s155 = sphi 0, %s154
    %s169 = sphi 0, %s155
    %s175 = sphi 0, %s177
    %s178 = sphi 0, %s175
    %s179 = sphi 0, %s178
    %s195 = sphi 0, %s179
  $region4: #{gwnet_forward.9} parent=0 // loop_header_branch
    %16 = sbr.rel (%p14) target = $region8
  $region5: #{gwnet_forward.9} parent=0 // loop_body
    %s18 = ssub.s32 %s13, 1
    %s19 = ssub.s32 %s13, 2
    %s20 = sadd.s32 %s13, 1
    %s21 = ssub.s32 %s13, %s20
    %p22 = scmp.eq.s32.totalorder %s21, 0
    %s24 = sadd.s32 %s23, 1
    %s25 = scalar_select %p22, %s23, %s24
    %p28 = pneg %p22
    %p29 = scmp.eq.s32.totalorder %s13, 1
    %p30 = por %p28, %p29
    %p31 = scmp.ne.s32.totalorder %s23, %s26
    %p32 = scmp.eq.s32.totalorder %s13, 0
    %p33 = por %p31, %p32
    %p34 = scmp.ne.s32.totalorder %s23, %s26
    %p35 = scmp.eq.s32.totalorder %s18, 1
    %p36 = por %p34, %p35
    %p37 = scmp.ne.s32.totalorder %s26, %s27
    %p38 = scmp.eq.s32.totalorder %s18, 0
    %p39 = por %p37, %p38
    %p40 = scmp.ne.s32.totalorder %s26, %s27
    %p41 = scmp.eq.s32.totalorder %s19, 1
    %p42 = por %p40, %p41
    %p44 = scmp.ne.s32.totalorder %s27, %s43
    %p45 = scmp.eq.s32.totalorder %s19, 0
    %p46 = por %p44, %p45
    %s48 = sadd.s32 %s47, 1
    %p51 = scmp.eq.s32.totalorder %s13, 1
    %p52 = scmp.ne.s32.totalorder %s47, %s49
    %p53 = scmp.eq.s32.totalorder %s13, 0
    %p54 = por %p52, %p53
    %p55 = scmp.ne.s32.totalorder %s47, %s49
    %p56 = scmp.eq.s32.totalorder %s18, 1
    %p57 = por %p55, %p56
    %p58 = scmp.ne.s32.totalorder %s49, %s50
    %p59 = scmp.eq.s32.totalorder %s18, 0
    %p60 = por %p58, %p59
    %p61 = scmp.ne.s32.totalorder %s49, %s50
    %p62 = scmp.eq.s32.totalorder %s19, 1
    %p63 = por %p61, %p62
    %p65 = scmp.ne.s32.totalorder %s50, %s64
    %p66 = scmp.eq.s32.totalorder %s19, 0
    %p67 = por %p65, %p66
    %s69 = sadd.s32 %s68, 1
    %p72 = scmp.eq.s32.totalorder %s13, 1
    %p73 = scmp.ne.s32.totalorder %s68, %s70
    %p74 = scmp.eq.s32.totalorder %s13, 0
    %p75 = por %p73, %p74
    %p76 = scmp.ne.s32.totalorder %s68, %s70
    %p77 = scmp.eq.s32.totalorder %s18, 1
    %p78 = por %p76, %p77
    %p79 = scmp.ne.s32.totalorder %s70, %s71
    %p80 = scmp.eq.s32.totalorder %s18, 0
    %p81 = por %p79, %p80
    %p82 = scmp.ne.s32.totalorder %s70, %s71
    %p83 = scmp.eq.s32.totalorder %s19, 1
    %p84 = por %p82, %p83
    %p86 = scmp.ne.s32.totalorder %s71, %s85
    %p87 = scmp.eq.s32.totalorder %s19, 0
    %p88 = por %p86, %p87
    %s90 = sadd.s32 %s89, 1
    %p93 = scmp.eq.s32.totalorder %s13, 1
    %p94 = scmp.ne.s32.totalorder %s89, %s91
    %p95 = scmp.eq.s32.totalorder %s13, 0
    %p96 = por %p94, %p95
    %p97 = scmp.ne.s32.totalorder %s89, %s91
    %p98 = scmp.eq.s32.totalorder %s18, 1
    %p99 = por %p97, %p98
    %p100 = scmp.ne.s32.totalorder %s91, %s92
    %p101 = scmp.eq.s32.totalorder %s18, 0
    %p102 = por %p100, %p101
    %p103 = scmp.ne.s32.totalorder %s91, %s92
    %p104 = scmp.eq.s32.totalorder %s19, 1
    %p105 = por %p103, %p104
    %p107 = scmp.ne.s32.totalorder %s92, %s106
    %p108 = scmp.eq.s32.totalorder %s19, 0
    %p109 = por %p107, %p108
    %s111 = sadd.s32 %s110, 1
    %p114 = scmp.eq.s32.totalorder %s13, 1
    %p115 = scmp.ne.s32.totalorder %s110, %s112
    %p116 = scmp.eq.s32.totalorder %s13, 0
    %p117 = por %p115, %p116
    %p118 = scmp.ne.s32.totalorder %s110, %s112
    %p119 = scmp.eq.s32.totalorder %s18, 1
    %p120 = por %p118, %p119
    %p121 = scmp.ne.s32.totalorder %s112, %s113
    %p122 = scmp.eq.s32.totalorder %s18, 0
    %p123 = por %p121, %p122
    %p124 = scmp.ne.s32.totalorder %s112, %s113
    %p125 = scmp.eq.s32.totalorder %s19, 1
    %p126 = por %p124, %p125
    %p128 = scmp.ne.s32.totalorder %s113, %s127
    %p129 = scmp.eq.s32.totalorder %s19, 0
    %p130 = por %p128, %p129
    %s132 = sadd.s32 %s131, 1
    %p135 = scmp.eq.s32.totalorder %s13, 1
    %p136 = scmp.ne.s32.totalorder %s131, %s133
    %p137 = scmp.eq.s32.totalorder %s13, 0
    %p138 = por %p136, %p137
    %p139 = scmp.ne.s32.totalorder %s131, %s133
    %p140 = scmp.eq.s32.totalorder %s18, 1
    %p141 = por %p139, %p140
    %p142 = scmp.ne.s32.totalorder %s133, %s134
    %p143 = scmp.eq.s32.totalorder %s18, 0
    %p144 = por %p142, %p143
    %p145 = scmp.ne.s32.totalorder %s133, %s134
    %p146 = scmp.eq.s32.totalorder %s19, 1
    %p147 = por %p145, %p146
    %p149 = scmp.ne.s32.totalorder %s134, %s148
    %p150 = scmp.eq.s32.totalorder %s19, 0
    %p151 = por %p149, %p150
    %s153 = sadd.s32 %s152, 1
    %p156 = scmp.eq.s32.totalorder %s13, 1
    %p157 = scmp.ne.s32.totalorder %s152, %s154
    %p158 = scmp.eq.s32.totalorder %s13, 0
    %p159 = por %p157, %p158
    %p160 = scmp.ne.s32.totalorder %s152, %s154
    %p161 = scmp.eq.s32.totalorder %s18, 1
    %p162 = por %p160, %p161
    %p163 = scmp.ne.s32.totalorder %s154, %s155
    %p164 = scmp.eq.s32.totalorder %s18, 0
    %p165 = por %p163, %p164
    %p166 = scmp.ne.s32.totalorder %s154, %s155
    %p167 = scmp.eq.s32.totalorder %s19, 1
    %p168 = por %p166, %p167
    %p170 = scmp.ne.s32.totalorder %s155, %s169
    %p171 = scmp.eq.s32.totalorder %s19, 0
    %p172 = por %p170, %p171
    %s173 = ssub.s32 %s13, %s20
    %p174 = scmp.eq.s32.totalorder %s173, 0
    %s176 = sadd.s32 %s175, 1
    %s177 = scalar_select %p174, %s175, %s176
    %p180 = pneg %p174
    %p181 = scmp.eq.s32.totalorder %s13, 1
    %p182 = por %p180, %p181
    %p183 = scmp.ne.s32.totalorder %s175, %s178
    %p184 = scmp.eq.s32.totalorder %s13, 0
    %p185 = por %p183, %p184
    %p186 = scmp.ne.s32.totalorder %s175, %s178
    %p187 = scmp.eq.s32.totalorder %s18, 1
    %p188 = por %p186, %p187
    %p189 = scmp.ne.s32.totalorder %s178, %s179
    %p190 = scmp.eq.s32.totalorder %s18, 0
    %p191 = por %p189, %p190
    %p192 = scmp.ne.s32.totalorder %s178, %s179
    %p193 = scmp.eq.s32.totalorder %s19, 1
    %p194 = por %p192, %p193
    %p196 = scmp.ne.s32.totalorder %s179, %s195
    %p197 = scmp.eq.s32.totalorder %s19, 0
    %p198 = por %p196, %p197
    %p199 = scmp.le.s32.totalorder 1, %s13
    %p200 = scmp.lt.s32.totalorder %s13, 3
    %p201 = pnand %p199, %p200
    %p202 = pneg %p201
    // Predicated region
    $region9: #{gwnet_forward.9} parent=5 // pred_check
      _
    $region10: #{gwnet_forward.9} parent=5 // pred_check_branch
      %204 = sbr.rel (%p201) target = $region12
    $region11: #{gwnet_forward.9} parent=5 // pred_region
      %s205 = ssub.s32 %s13, 1
      // Predicated region
      $region13: #{gwnet_forward.9} parent=11 // pred_check
        %p206 = pneg %p60
      $region14: #{gwnet_forward.9} parent=11 // pred_check_branch
        %208 = sbr.rel (%p206) target = $region16
      $region15: #{gwnet_forward.9} parent=11 // pred_region
        _
      $region16: #{gwnet_forward.9} parent=11 // pred_fallthru
        _
      // Predicated region
      $region17: #{gwnet_forward.9} parent=11 // pred_check
        %p209 = pneg %p81
      $region18: #{gwnet_forward.9} parent=11 // pred_check_branch
        %211 = sbr.rel (%p209) target = $region20
      $region19: #{gwnet_forward.9} parent=11 // pred_region
        _
      $region20: #{gwnet_forward.9} parent=11 // pred_fallthru
        _
      // Predicated region
      $region21: #{gwnet_forward.9} parent=11 // pred_check
        %p212 = pneg %p102
      $region22: #{gwnet_forward.9} parent=11 // pred_check_branch
        %214 = sbr.rel (%p212) target = $region24
      $region23: #{gwnet_forward.9} parent=11 // pred_region
        _
      $region24: #{gwnet_forward.9} parent=11 // pred_fallthru
        _
      // Predicated region
      $region25: #{gwnet_forward.9} parent=11 // pred_check
        %p215 = pneg %p123
      $region26: #{gwnet_forward.9} parent=11 // pred_check_branch
        %217 = sbr.rel (%p215) target = $region28
      $region27: #{gwnet_forward.9} parent=11 // pred_region
        _
      $region28: #{gwnet_forward.9} parent=11 // pred_fallthru
        _
      // Predicated region
      $region29: #{gwnet_forward.9} parent=11 // pred_check
        %p218 = pneg %p144
      $region30: #{gwnet_forward.9} parent=11 // pred_check_branch
        %220 = sbr.rel (%p218) target = $region32
      $region31: #{gwnet_forward.9} parent=11 // pred_region
        _
      $region32: #{gwnet_forward.9} parent=11 // pred_fallthru
        _
      // Predicated region
      $region33: #{gwnet_forward.9} parent=11 // pred_check
        %p221 = pneg %p165
      $region34: #{gwnet_forward.9} parent=11 // pred_check_branch
        %223 = sbr.rel (%p221) target = $region36
      $region35: #{gwnet_forward.9} parent=11 // pred_region
        _
      $region36: #{gwnet_forward.9} parent=11 // pred_fallthru
        _
    $region12: #{gwnet_forward.9} parent=5 // pred_fallthru
      _
    %p224 = scmp.lt.s32.totalorder %s13, 2
    // Predicated region
    $region37: #{gwnet_forward.9} parent=5 // pred_check
      %p225 = pneg %p224
    $region38: #{gwnet_forward.9} parent=5 // pred_check_branch
      %227 = sbr.rel (%p225) target = $region40
    $region39: #{gwnet_forward.9} parent=5 // pred_region
      // Predicated region
      $region41: #{gwnet_forward.9} parent=39 // pred_check
        %p228 = pneg %p33
      $region42: #{gwnet_forward.9} parent=39 // pred_check_branch
        %230 = sbr.rel (%p228) target = $region44
      $region43: #{gwnet_forward.9} parent=39 // pred_region
        %p231 = scmp.lt.s32.totalorder %s13, 1
        %s232 = scalar_select %p231, %s13, 1
        %s233 = smul.addr %s232, 2
        %s234 = smul.addr %s233, 4
        %s235 = scalar_lea.vmem %s0, %s234
      $region44: #{gwnet_forward.9} parent=39 // pred_fallthru
        _
    $region40: #{gwnet_forward.9} parent=5 // pred_fallthru
      _
    %p236 = scmp.le.s32.totalorder 1, %s13
    %p237 = scmp.lt.s32.totalorder %s13, 3
    %p238 = pnand %p236, %p237
    %p239 = pneg %p238
    // Predicated region
    $region45: #{gwnet_forward.9} parent=5 // pred_check
      _
    $region46: #{gwnet_forward.9} parent=5 // pred_check_branch
      %241 = sbr.rel (%p238) target = $region48
    $region47: #{gwnet_forward.9} parent=5 // pred_region
      %s242 = ssub.s32 %s13, 1
      %p243 = scmp.lt.s32.totalorder %s18, 1
      %s244 = scalar_select %p243, %s18, 1
      %s245 = smul.addr %s244, 2
      %s246 = smul.addr %s245, 4
      %s247 = scalar_lea.vmem %s0, %s246
      %p248 = pneg %p39
      %p249 = pneg %p36
      %p250 = pneg %p60
      %p251 = pneg %p57
      %p252 = pneg %p81
      %p253 = pneg %p78
      %p254 = pneg %p102
      %p255 = pneg %p99
      %p256 = pneg %p123
      %p257 = pneg %p120
      %p258 = pneg %p144
      %p259 = pneg %p141
      %p260 = pneg %p165
      %p261 = pneg %p162
      %p262 = pneg %p191
      %p263 = pneg %p188
      %p264 = scmp.lt.s32.totalorder %s18, 1
      %s265 = scalar_select %p264, %s18, 1
      %s266 = smul.addr %s265, 8
      %s267 = scalar_lea.vmem %s7, %s266
      %p268 = scmp.lt.s32.totalorder %s18, 1
      %s269 = scalar_select %p268, %s18, 1
      %s270 = smul.addr %s269, 2
      %s271 = smul.addr %s270, 4
      %s272 = scalar_lea.vmem %s0, %s271
      %p273 = scmp.lt.s32.totalorder %s18, 1
      %s274 = scalar_select %p273, %s18, 1
      %s275 = smul.addr %s274, 8
      %s276 = scalar_lea.vmem %s7, %s275
      %v278 = vld [vmem:[%s272] sm:$0xff]
      %v279 = vld [vmem:[%s1] sm:$0xf]
      %v280 = vld [vmem:[%s1 + $0x4] sm:$0xf]
      %v281 = vld [vmem:[%s1 + $0x8] sm:$0xf]
      %v282 = vld [vmem:[%s1 + $0xc] sm:$0xf]
      %v283 = vld [vmem:[%s1 + $0x10] sm:$0xf]
      %v284 = vld [vmem:[%s1 + $0x14] sm:$0xf]
      %v285 = vld [vmem:[%s1 + $0x18] sm:$0xf]
      %v286 = vld [vmem:[%s1 + $0x1c] sm:$0xf]
      %v287 = vld [vmem:[%s1 + $0x20] sm:$0xf]
      %v288 = vld [vmem:[%s1 + $0x24] sm:$0xf]
      %v289 = vld [vmem:[%s1 + $0x28] sm:$0xf]
      %v290 = vld [vmem:[%s1 + $0x2c] sm:$0xf]
      %v291 = vld [vmem:[%s1 + $0x30] sm:$0xf]
      %v292 = vld [vmem:[%s1 + $0x34] sm:$0xf]
      %v293 = vld [vmem:[%s1 + $0x38] sm:$0xf]
      %v294 = vld [vmem:[%s1 + $0x3c] sm:$0xf]
      %v295 = vld [vmem:[%s1 + $0x40] sm:$0xf]
      %v296 = vld [vmem:[%s1 + $0x44] sm:$0xf]
      %v297 = vld [vmem:[%s1 + $0x48] sm:$0xf]
      %v298 = vld [vmem:[%s1 + $0x4c] sm:$0xf]
      %v299 = vld [vmem:[%s1 + $0x50] sm:$0xf]
      %v300 = vld [vmem:[%s1 + $0x54] sm:$0xf]
      %v301 = vld [vmem:[%s1 + $0x58] sm:$0xf]
      %v302 = vld [vmem:[%s1 + $0x5c] sm:$0xf]
      %v303 = vld [vmem:[%s1 + $0x60] sm:$0xf]
      %v304 = vld [vmem:[%s1 + $0x64] sm:$0xf]
      %v305 = vld [vmem:[%s1 + $0x68] sm:$0xf]
      %v306 = vld [vmem:[%s1 + $0x6c] sm:$0xf]
      %v307 = vld [vmem:[%s1 + $0x70] sm:$0xf]
      %v308 = vld [vmem:[%s1 + $0x74] sm:$0xf]
      %v309 = vld [vmem:[%s1 + $0x78] sm:$0xf]
      %v310 = vld [vmem:[%s1 + $0x7c] sm:$0xf]
      %v311 = vld [vmem:[%s2] sm:$0x1]
      %v313 = vlaneseq
      %v314 = vshrl.u32 %v313, 7
      %v315 = vsub.s32 0, %v314
      %v316 = vrot.slane %v311, %v315
      %v319 = vunpack.c.l.b16 %v278
      %v320 = vunpack.c.h.b16 %v278
      %v321 = vpack.c.b16 %v319, %v319
      %v322 = vpack.c.b16 %v320, %v320
      %v357 = vunpack.c.l.b16 %v279
      %v358 = vunpack.c.l.b16 %v280
      %v359 = vunpack.c.l.b16 %v281
      %v360 = vunpack.c.l.b16 %v282
      %v361 = vunpack.c.l.b16 %v283
      %v362 = vunpack.c.l.b16 %v284
      %v363 = vunpack.c.l.b16 %v285
      %v364 = vunpack.c.l.b16 %v286
      %v365 = vunpack.c.l.b16 %v287
      %v366 = vunpack.c.l.b16 %v288
      %v367 = vunpack.c.l.b16 %v289
      %v368 = vunpack.c.l.b16 %v290
      %v369 = vunpack.c.l.b16 %v291
      %v370 = vunpack.c.l.b16 %v292
      %v371 = vunpack.c.l.b16 %v293
      %v372 = vunpack.c.l.b16 %v294
      %v373 = vunpack.c.l.b16 %v295
      %v374 = vunpack.c.l.b16 %v296
      %v375 = vunpack.c.l.b16 %v297
      %v376 = vunpack.c.l.b16 %v298
      %v377 = vunpack.c.l.b16 %v299
      %v378 = vunpack.c.l.b16 %v300
      %v379 = vunpack.c.l.b16 %v301
      %v380 = vunpack.c.l.b16 %v302
      %v381 = vunpack.c.l.b16 %v303
      %v382 = vunpack.c.l.b16 %v304
      %v383 = vunpack.c.l.b16 %v305
      %v384 = vunpack.c.l.b16 %v306
      %v385 = vunpack.c.l.b16 %v307
      %v386 = vunpack.c.l.b16 %v308
      %v387 = vunpack.c.l.b16 %v309
      %v388 = vunpack.c.l.b16 %v310
      %v389 = vpack.c.b16 %v358, %v357
      %v390 = vpack.c.b16 %v360, %v359
      %v391 = vpack.c.b16 %v362, %v361
      %v392 = vpack.c.b16 %v364, %v363
      %v393 = vpack.c.b16 %v366, %v365
      %v394 = vpack.c.b16 %v368, %v367
      %v395 = vpack.c.b16 %v370, %v369
      %v396 = vpack.c.b16 %v372, %v371
      %v397 = vpack.c.b16 %v374, %v373
      %v398 = vpack.c.b16 %v376, %v375
      %v399 = vpack.c.b16 %v378, %v377
      %v400 = vpack.c.b16 %v380, %v379
      %v401 = vpack.c.b16 %v382, %v381
      %v402 = vpack.c.b16 %v384, %v383
      %v403 = vpack.c.b16 %v386, %v385
      %v404 = vpack.c.b16 %v388, %v387
      %421 = vmatprep.subr.bf16.mxu0 0
      %422 = vmatpush1.bf16.msra.mxu0 %v389
      %423 = vmatprep.subr.bf16.mxu0 0
      %424 = vmatpush1.bf16.msra.mxu0 %v390
      %425 = vmatprep.subr.bf16.mxu0 0
      %426 = vmatpush1.bf16.msra.mxu0 %v391
      %427 = vmatprep.subr.bf16.mxu0 0
      %428 = vmatpush1.bf16.msra.mxu0 %v392
      %429 = vmatprep.subr.bf16.mxu0 0
      %430 = vmatpush1.bf16.msra.mxu0 %v393
      %431 = vmatprep.subr.bf16.mxu0 0
      %432 = vmatpush1.bf16.msra.mxu0 %v394
      %433 = vmatprep.subr.bf16.mxu0 0
      %434 = vmatpush1.bf16.msra.mxu0 %v395
      %435 = vmatprep.subr.bf16.mxu0 0
      %436 = vmatpush1.bf16.msra.mxu0 %v396
      %437 = vmatprep.subr.bf16.mxu0 0
      %438 = vmatpush1.bf16.msra.mxu0 %v397
      %439 = vmatprep.subr.bf16.mxu0 0
      %440 = vmatpush1.bf16.msra.mxu0 %v398
      %441 = vmatprep.subr.bf16.mxu0 0
      %442 = vmatpush1.bf16.msra.mxu0 %v399
      %443 = vmatprep.subr.bf16.mxu0 0
      %444 = vmatpush1.bf16.msra.mxu0 %v400
      %445 = vmatprep.subr.bf16.mxu0 0
      %446 = vmatpush1.bf16.msra.mxu0 %v401
      %447 = vmatprep.subr.bf16.mxu0 0
      %448 = vmatpush1.bf16.msra.mxu0 %v402
      %449 = vmatprep.subr.bf16.mxu0 0
      %450 = vmatpush1.bf16.msra.mxu0 %v403
      %451 = vmatprep.subr.bf16.mxu0 0
      %452 = vmatpush1.bf16.msra.mxu0 %v404
      %453 = vmatprep.mubr.bf16.mxu0 %v322
      %454 = vmatmul.mubr.bf16.gmra.mrb[0].mxu0 %v321
      %v455 = vpop.f32.mrb[0].mxu0
      %v456 = vadd.f32 %v316, %v455
      %v457 = vpop.f32.mrb[0].mxu0
      %v458 = vpop.f32.mrb[0].mxu0
      %v459 = vpop.f32.mrb[0].mxu0
      %460 = vdwg.mxu0
      %v461 = vmax.f32 %v456, 0.0
      %v462 = vpack.c.bf16 %v461, %v461
      %v463 = vld [vmem:[%s3] sm:$0xf]
      %v464 = vld [vmem:[%s3 + $0x4] sm:$0xf]
      %v465 = vld [vmem:[%s3 + $0x8] sm:$0xf]
      %v466 = vld [vmem:[%s3 + $0xc] sm:$0xf]
      %v467 = vld [vmem:[%s3 + $0x10] sm:$0xf]
      %v468 = vld [vmem:[%s3 + $0x14] sm:$0xf]
      %v469 = vld [vmem:[%s3 + $0x18] sm:$0xf]
      %v470 = vld [vmem:[%s3 + $0x1c] sm:$0xf]
      %v471 = vld [vmem:[%s3 + $0x20] sm:$0xf]
      %v472 = vld [vmem:[%s3 + $0x24] sm:$0xf]
      %v473 = vld [vmem:[%s3 + $0x28] sm:$0xf]
      %v474 = vld [vmem:[%s3 + $0x2c] sm:$0xf]
      %v475 = vld [vmem:[%s3 + $0x30] sm:$0xf]
      %v476 = vld [vmem:[%s3 + $0x34] sm:$0xf]
      %v477 = vld [vmem:[%s3 + $0x38] sm:$0xf]
      %v478 = vld [vmem:[%s3 + $0x3c] sm:$0xf]
      %v479 = vld [vmem:[%s4] sm:$0x1]
      %v481 = vlaneseq
      %v482 = vshrl.u32 %v481, 7
      %v483 = vsub.s32 0, %v482
      %v484 = vrot.slane %v479, %v483
      %v502 = vunpack.c.l.b16 %v463
      %v503 = vunpack.c.l.b16 %v464
      %v504 = vunpack.c.l.b16 %v465
      %v505 = vunpack.c.l.b16 %v466
      %v506 = vunpack.c.l.b16 %v467
      %v507 = vunpack.c.l.b16 %v468
      %v508 = vunpack.c.l.b16 %v469
      %v509 = vunpack.c.l.b16 %v470
      %v510 = vunpack.c.l.b16 %v471
      %v511 = vunpack.c.l.b16 %v472
      %v512 = vunpack.c.l.b16 %v473
      %v513 = vunpack.c.l.b16 %v474
      %v514 = vunpack.c.l.b16 %v475
      %v515 = vunpack.c.l.b16 %v476
      %v516 = vunpack.c.l.b16 %v477
      %v517 = vunpack.c.l.b16 %v478
      %v518 = vpack.c.b16 %v503, %v502
      %v519 = vpack.c.b16 %v505, %v504
      %v520 = vpack.c.b16 %v507, %v506
      %v521 = vpack.c.b16 %v509, %v508
      %v522 = vpack.c.b16 %v511, %v510
      %v523 = vpack.c.b16 %v513, %v512
      %v524 = vpack.c.b16 %v515, %v514
      %v525 = vpack.c.b16 %v517, %v516
      %534 = vmatprep.subr.bf16.mxu0 0
      %535 = vmatpush1.bf16.msra.mxu0 %v518
      %536 = vmatprep.subr.bf16.mxu0 0
      %537 = vmatpush1.bf16.msra.mxu0 %v519
      %538 = vmatprep.subr.bf16.mxu0 0
      %539 = vmatpush1.bf16.msra.mxu0 %v520
      %540 = vmatprep.subr.bf16.mxu0 0
      %541 = vmatpush1.bf16.msra.mxu0 %v521
      %542 = vmatprep.subr.bf16.mxu0 0
      %543 = vmatpush1.bf16.msra.mxu0 %v522
      %544 = vmatprep.subr.bf16.mxu0 0
      %545 = vmatpush1.bf16.msra.mxu0 %v523
      %546 = vmatprep.subr.bf16.mxu0 0
      %547 = vmatpush1.bf16.msra.mxu0 %v524
      %548 = vmatprep.subr.bf16.mxu0 0
      %549 = vmatpush1.bf16.msra.mxu0 %v525
      %550 = vmatprep.subr.bf16.mxu0 0
      %551 = vmatpush1.bf16.msra.mxu0 0
      %552 = vmatprep.subr.bf16.mxu0 0
      %553 = vmatpush1.bf16.msra.mxu0 0
      %554 = vmatprep.subr.bf16.mxu0 0
      %555 = vmatpush1.bf16.msra.mxu0 0
      %556 = vmatprep.subr.bf16.mxu0 0
      %557 = vmatpush1.bf16.msra.mxu0 0
      %558 = vmatprep.subr.bf16.mxu0 0
      %559 = vmatpush1.bf16.msra.mxu0 0
      %560 = vmatprep.subr.bf16.mxu0 0
      %561 = vmatpush1.bf16.msra.mxu0 0
      %562 = vmatprep.subr.bf16.mxu0 0
      %563 = vmatpush1.bf16.msra.mxu0 0
      %564 = vmatprep.subr.bf16.mxu0 0
      %565 = vmatpush1.bf16.msra.mxu0 0
      %566 = vmatprep.mubr.bf16.mxu0 0
      %567 = vmatmul.mubr.bf16.gmra.mrb[0].mxu0 %v462
      %v568 = vpop.f32.mrb[0].mxu0
      %v569 = vadd.f32 %v484, %v568
      %v570 = vpop.f32.mrb[0].mxu0
      %v571 = vpop.f32.mrb[0].mxu0
      %v572 = vpop.f32.mrb[0].mxu0
      %573 = vdwg.mxu0
      %v574 = vmax.f32 %v569, 0.0
      %v575 = vpack.c.bf16 %v574, %v574
      %v576 = vld [vmem:[%s5] sm:$0xf]
      %v577 = vld [vmem:[%s5 + $0x4] sm:$0xf]
      %v578 = vld [vmem:[%s5 + $0x8] sm:$0xf]
      %v579 = vld [vmem:[%s5 + $0xc] sm:$0xf]
      %v580 = vld [vmem:[%s5 + $0x10] sm:$0xf]
      %v581 = vld [vmem:[%s5 + $0x14] sm:$0xf]
      %v582 = vld [vmem:[%s5 + $0x18] sm:$0xf]
      %v583 = vld [vmem:[%s5 + $0x1c] sm:$0xf]
      %v584 = vld [vmem:[%s5 + $0x20] sm:$0xf]
      %v585 = vld [vmem:[%s5 + $0x24] sm:$0xf]
      %v586 = vld [vmem:[%s5 + $0x28] sm:$0xf]
      %v587 = vld [vmem:[%s5 + $0x2c] sm:$0xf]
      %v588 = vld [vmem:[%s5 + $0x30] sm:$0xf]
      %v589 = vld [vmem:[%s5 + $0x34] sm:$0xf]
      %v590 = vld [vmem:[%s5 + $0x38] sm:$0xf]
      %v591 = vld [vmem:[%s5 + $0x3c] sm:$0xf]
      %v592 = vld [vmem:[%s6] sm:$0x1]
      %v594 = vlaneseq
      %v595 = vshrl.u32 %v594, 7
      %v596 = vsub.s32 0, %v595
      %v597 = vrot.slane %v592, %v596
      %v615 = vunpack.c.l.b16 %v576
      %v616 = vunpack.c.l.b16 %v577
      %v617 = vunpack.c.l.b16 %v578
      %v618 = vunpack.c.l.b16 %v579
      %v619 = vunpack.c.l.b16 %v580
      %v620 = vunpack.c.l.b16 %v581
      %v621 = vunpack.c.l.b16 %v582
      %v622 = vunpack.c.l.b16 %v583
      %v623 = vunpack.c.l.b16 %v584
      %v624 = vunpack.c.l.b16 %v585
      %v625 = vunpack.c.l.b16 %v586
      %v626 = vunpack.c.l.b16 %v587
      %v627 = vunpack.c.l.b16 %v588
      %v628 = vunpack.c.l.b16 %v589
      %v629 = vunpack.c.l.b16 %v590
      %v630 = vunpack.c.l.b16 %v591
      %v631 = vpack.c.b16 %v616, %v615
      %v632 = vpack.c.b16 %v618, %v617
      %v633 = vpack.c.b16 %v620, %v619
      %v634 = vpack.c.b16 %v622, %v621
      %v635 = vpack.c.b16 %v624, %v623
      %v636 = vpack.c.b16 %v626, %v625
      %v637 = vpack.c.b16 %v628, %v627
      %v638 = vpack.c.b16 %v630, %v629
      %647 = vmatprep.subr.bf16.mxu0 0
      %648 = vmatpush1.bf16.msra.mxu0 %v631
      %649 = vmatprep.subr.bf16.mxu0 0
      %650 = vmatpush1.bf16.msra.mxu0 %v632
      %651 = vmatprep.subr.bf16.mxu0 0
      %652 = vmatpush1.bf16.msra.mxu0 %v633
      %653 = vmatprep.subr.bf16.mxu0 0
      %654 = vmatpush1.bf16.msra.mxu0 %v634
      %655 = vmatprep.subr.bf16.mxu0 0
      %656 = vmatpush1.bf16.msra.mxu0 %v635
      %657 = vmatprep.subr.bf16.mxu0 0
      %658 = vmatpush1.bf16.msra.mxu0 %v636
      %659 = vmatprep.subr.bf16.mxu0 0
      %660 = vmatpush1.bf16.msra.mxu0 %v637
      %661 = vmatprep.subr.bf16.mxu0 0
      %662 = vmatpush1.bf16.msra.mxu0 %v638
      %663 = vmatprep.subr.bf16.mxu0 0
      %664 = vmatpush1.bf16.msra.mxu0 0
      %665 = vmatprep.subr.bf16.mxu0 0
      %666 = vmatpush1.bf16.msra.mxu0 0
      %667 = vmatprep.subr.bf16.mxu0 0
      %668 = vmatpush1.bf16.msra.mxu0 0
      %669 = vmatprep.subr.bf16.mxu0 0
      %670 = vmatpush1.bf16.msra.mxu0 0
      %671 = vmatprep.subr.bf16.mxu0 0
      %672 = vmatpush1.bf16.msra.mxu0 0
      %673 = vmatprep.subr.bf16.mxu0 0
      %674 = vmatpush1.bf16.msra.mxu0 0
      %675 = vmatprep.subr.bf16.mxu0 0
      %676 = vmatpush1.bf16.msra.mxu0 0
      %677 = vmatprep.subr.bf16.mxu0 0
      %678 = vmatpush1.bf16.msra.mxu0 0
      %679 = vmatprep.mubr.bf16.mxu0 0
      %680 = vmatmul.mubr.bf16.gmra.mrb[0].mxu0 %v575
      %v681 = vpop.f32.mrb[0].mxu0
      %v682 = vadd.f32 %v597, %v681
      %v683 = vpop.f32.mrb[0].mxu0
      %v684 = vpop.f32.mrb[0].mxu0
      %v685 = vpop.f32.mrb[0].mxu0
      %686 = vdwg.mxu0
      %687 = vst [vmem:[%s276] sm:$0xff] %v682
      %p688 = scmp.lt.s32.totalorder %s18, 1
      %s689 = scalar_select %p688, %s18, 1
      %s690 = smul.addr %s689, 8
      %s691 = scalar_lea.vmem %s7, %s690
      // Predicated region
      $region49: #{gwnet_forward.9} parent=47 // pred_check
        %p692 = pneg %p188
      $region50: #{gwnet_forward.9} parent=47 // pred_check_branch
        %694 = sbr.rel (%p692) target = $region52
      $region51: #{gwnet_forward.9} parent=47 // pred_region
        _
      $region52: #{gwnet_forward.9} parent=47 // pred_fallthru
        _
    $region48: #{gwnet_forward.9} parent=5 // pred_fallthru
      _
    %p695 = scmp.le.s32.totalorder 2, %s13
    // Predicated region
    $region53: #{gwnet_forward.9} parent=5 // pred_check
      %p696 = pneg %p695
    $region54: #{gwnet_forward.9} parent=5 // pred_check_branch
      %698 = sbr.rel (%p696) target = $region56
    $region55: #{gwnet_forward.9} parent=5 // pred_region
      %s699 = ssub.s32 %s13, 2
      // Predicated region
      $region57: #{gwnet_forward.9} parent=55 // pred_check
        %p700 = pneg %p194
      $region58: #{gwnet_forward.9} parent=55 // pred_check_branch
        %702 = sbr.rel (%p700) target = $region60
      $region59: #{gwnet_forward.9} parent=55 // pred_region
        %p703 = scmp.lt.s32.totalorder %s19, 1
        %s704 = scalar_select %p703, %s19, 1
        %s705 = smul.addr %s704, 8
        %s706 = scalar_lea.vmem %s7, %s705
      $region60: #{gwnet_forward.9} parent=55 // pred_fallthru
        _
    $region56: #{gwnet_forward.9} parent=5 // pred_fallthru
      _
  $region6: #{gwnet_forward.9} parent=0 // loop_footer
    %s17 = sadd.s32 1, %s13
  $region7: #{gwnet_forward.9} parent=0 // loop_footer_branch
    %12 = sbr.rel target = $region3
  $region8: #{gwnet_forward.9} parent=0 // loop_exit
    _

// kernel: gwnet_forward.7
$region0: #{gwnet_forward.7}
  #allocation0 [shape = 'u32[]', space=smem, size = 0x4, offset = 0x4, fixed_abs, tag = 'smem constant byte address 0x4 - core index']
  #allocation1 [shape = 'u32[144,128]{1,0:T(1,128)}', space=vmem, size = 0x12000, scoped, tag = 'internal scratch']
  %s0 = inlined_call_operand.vmem [shape: bf16[2,4,8,128], index: 0, kind: input, shape index: {}]
  %s1 = inlined_call_operand.vmem [shape: bf16[7,8,8], index: 1, kind: input, shape index: {}]
  %s2 = inlined_call_operand.hbm [shape: bf16[2,128,256], index: 2, kind: input, shape index: {}]
  %s3 = inlined_call_operand.vmem [shape: f32[1,256], index: 3, kind: input, shape index: {}]
  %s4 = inlined_call_operand.vmem [shape: bf16[7,128,128], index: 4, kind: input, shape index: {}]
  %s5 = inlined_call_operand.vmem [shape: f32[1,128], index: 5, kind: input, shape index: {}]
  %s6 = inlined_call_operand.vmem [shape: bf16[2,3,8,128], index: 6, kind: output, shape index: {0}]
  %s7 = inlined_call_operand.vmem [shape: bf16[2,8,128], index: 7, kind: output, shape index: {1}]
  %8 = xla_tuple %s6, %s7
  %s9 = sld [smem:[#allocation0]]
  $region69: #{gwnet_forward.7} parent=0
    _
  %s11 = ssub.s32 1, %s9
  %s12 = scalar_select 0, %s11, %s9
  $region1: #{gwnet_forward.7} parent=0
    #allocation2 [shape = 'u8[131072]{0}', space=vmem, size = 0x20000, scoped, tag = 'input window, operand 2, single buffered']
    #allocation3 [shape = 's32[2]{0}', space=sflag, size = 0x8, scoped, tag = 'scoped memory for gwnet_forward.7']
    %13 = vsyncpa [#allocation3], 0
    loop: start=0, step=1, limit=4
    $region2: #{gwnet_forward.7} parent=1 // loop_pre_header
      _
    $region3: #{gwnet_forward.7} parent=1 // loop_header
      %s15 = sphi 0, %s19
      %p16 = scmp.ge.s32.totalorder %s15, 4
      %s25 = sphi 0, %s27
      %s28 = sphi 0, %s25
      %s29 = sphi 0, %s28
      %s45 = sphi 0, %s29
      %s49 = sphi 0, %s49
      %s51 = sphi 0, %s49
      %s52 = sphi 0, %s51
      %s66 = sphi 0, %s52
      %s70 = sphi 0, %s70
      %s72 = sphi 0, %s70
      %s73 = sphi 0, %s72
      %s87 = sphi 0, %s73
      %s91 = sphi 0, %s91
      %s93 = sphi 0, %s91
      %s94 = sphi 0, %s93
      %s108 = sphi 0, %s94
      %s112 = sphi 0, %s112
      %s114 = sphi 0, %s112
      %s115 = sphi 0, %s114
      %s129 = sphi 0, %s115
      %s133 = sphi 0, %s133
      %s135 = sphi 0, %s133
      %s136 = sphi 0, %s135
      %s150 = sphi 0, %s136
      %s156 = sphi 0, %s158
      %s159 = sphi 0, %s156
      %s160 = sphi 0, %s159
      %s176 = sphi 0, %s160
      %s182 = sphi 0, %s184
      %s185 = sphi 0, %s182
      %s186 = sphi 0, %s185
      %s202 = sphi 0, %s186
    $region4: #{gwnet_forward.7} parent=1 // loop_header_branch
      %18 = sbr.rel (%p16) target = $region8
    $region5: #{gwnet_forward.7} parent=1 // loop_body
      %s20 = ssub.s32 %s15, 1
      %s21 = ssub.s32 %s15, 2
      %s22 = sadd.s32 %s15, 1
      %s23 = ssub.s32 %s15, %s22
      %p24 = scmp.eq.s32.totalorder %s23, 0
      %s26 = sadd.s32 %s25, 1
      %s27 = scalar_select %p24, %s25, %s26
      %p30 = pneg %p24
      %p31 = scmp.eq.s32.totalorder %s15, 1
      %p32 = por %p30, %p31
      %p33 = scmp.ne.s32.totalorder %s25, %s28
      %p34 = scmp.eq.s32.totalorder %s15, 0
      %p35 = por %p33, %p34
      %p36 = scmp.ne.s32.totalorder %s25, %s28
      %p37 = scmp.eq.s32.totalorder %s20, 1
      %p38 = por %p36, %p37
      %p39 = scmp.ne.s32.totalorder %s28, %s29
      %p40 = scmp.eq.s32.totalorder %s20, 0
      %p41 = por %p39, %p40
      %p42 = scmp.ne.s32.totalorder %s28, %s29
      %p43 = scmp.eq.s32.totalorder %s21, 1
      %p44 = por %p42, %p43
      %p46 = scmp.ne.s32.totalorder %s29, %s45
      %p47 = scmp.eq.s32.totalorder %s21, 0
      %p48 = por %p46, %p47
      %s50 = sadd.s32 %s49, 1
      %p53 = scmp.eq.s32.totalorder %s15, 1
      %p54 = scmp.ne.s32.totalorder %s49, %s51
      %p55 = scmp.eq.s32.totalorder %s15, 0
      %p56 = por %p54, %p55
      %p57 = scmp.ne.s32.totalorder %s49, %s51
      %p58 = scmp.eq.s32.totalorder %s20, 1
      %p59 = por %p57, %p58
      %p60 = scmp.ne.s32.totalorder %s51, %s52
      %p61 = scmp.eq.s32.totalorder %s20, 0
      %p62 = por %p60, %p61
      %p63 = scmp.ne.s32.totalorder %s51, %s52
      %p64 = scmp.eq.s32.totalorder %s21, 1
      %p65 = por %p63, %p64
      %p67 = scmp.ne.s32.totalorder %s52, %s66
      %p68 = scmp.eq.s32.totalorder %s21, 0
      %p69 = por %p67, %p68
      %s71 = sadd.s32 %s70, 1
      %p74 = scmp.eq.s32.totalorder %s15, 1
      %p75 = scmp.ne.s32.totalorder %s70, %s72
      %p76 = scmp.eq.s32.totalorder %s15, 0
      %p77 = por %p75, %p76
      %p78 = scmp.ne.s32.totalorder %s70, %s72
      %p79 = scmp.eq.s32.totalorder %s20, 1
      %p80 = por %p78, %p79
      %p81 = scmp.ne.s32.totalorder %s72, %s73
      %p82 = scmp.eq.s32.totalorder %s20, 0
      %p83 = por %p81, %p82
      %p84 = scmp.ne.s32.totalorder %s72, %s73
      %p85 = scmp.eq.s32.totalorder %s21, 1
      %p86 = por %p84, %p85
      %p88 = scmp.ne.s32.totalorder %s73, %s87
      %p89 = scmp.eq.s32.totalorder %s21, 0
      %p90 = por %p88, %p89
      %s92 = sadd.s32 %s91, 1
      %p95 = scmp.eq.s32.totalorder %s15, 1
      %p96 = scmp.ne.s32.totalorder %s91, %s93
      %p97 = scmp.eq.s32.totalorder %s15, 0
      %p98 = por %p96, %p97
      %p99 = scmp.ne.s32.totalorder %s91, %s93
      %p100 = scmp.eq.s32.totalorder %s20, 1
      %p101 = por %p99, %p100
      %p102 = scmp.ne.s32.totalorder %s93, %s94
      %p103 = scmp.eq.s32.totalorder %s20, 0
      %p104 = por %p102, %p103
      %p105 = scmp.ne.s32.totalorder %s93, %s94
      %p106 = scmp.eq.s32.totalorder %s21, 1
      %p107 = por %p105, %p106
      %p109 = scmp.ne.s32.totalorder %s94, %s108
      %p110 = scmp.eq.s32.totalorder %s21, 0
      %p111 = por %p109, %p110
      %s113 = sadd.s32 %s112, 1
      %p116 = scmp.eq.s32.totalorder %s15, 1
      %p117 = scmp.ne.s32.totalorder %s112, %s114
      %p118 = scmp.eq.s32.totalorder %s15, 0
      %p119 = por %p117, %p118
      %p120 = scmp.ne.s32.totalorder %s112, %s114
      %p121 = scmp.eq.s32.totalorder %s20, 1
      %p122 = por %p120, %p121
      %p123 = scmp.ne.s32.totalorder %s114, %s115
      %p124 = scmp.eq.s32.totalorder %s20, 0
      %p125 = por %p123, %p124
      %p126 = scmp.ne.s32.totalorder %s114, %s115
      %p127 = scmp.eq.s32.totalorder %s21, 1
      %p128 = por %p126, %p127
      %p130 = scmp.ne.s32.totalorder %s115, %s129
      %p131 = scmp.eq.s32.totalorder %s21, 0
      %p132 = por %p130, %p131
      %s134 = sadd.s32 %s133, 1
      %p137 = scmp.eq.s32.totalorder %s15, 1
      %p138 = scmp.ne.s32.totalorder %s133, %s135
      %p139 = scmp.eq.s32.totalorder %s15, 0
      %p140 = por %p138, %p139
      %p141 = scmp.ne.s32.totalorder %s133, %s135
      %p142 = scmp.eq.s32.totalorder %s20, 1
      %p143 = por %p141, %p142
      %p144 = scmp.ne.s32.totalorder %s135, %s136
      %p145 = scmp.eq.s32.totalorder %s20, 0
      %p146 = por %p144, %p145
      %p147 = scmp.ne.s32.totalorder %s135, %s136
      %p148 = scmp.eq.s32.totalorder %s21, 1
      %p149 = por %p147, %p148
      %p151 = scmp.ne.s32.totalorder %s136, %s150
      %p152 = scmp.eq.s32.totalorder %s21, 0
      %p153 = por %p151, %p152
      %s154 = ssub.s32 %s15, %s22
      %p155 = scmp.eq.s32.totalorder %s154, 0
      %s157 = sadd.s32 %s156, 1
      %s158 = scalar_select %p155, %s156, %s157
      %p161 = pneg %p155
      %p162 = scmp.eq.s32.totalorder %s15, 1
      %p163 = por %p161, %p162
      %p164 = scmp.ne.s32.totalorder %s156, %s159
      %p165 = scmp.eq.s32.totalorder %s15, 0
      %p166 = por %p164, %p165
      %p167 = scmp.ne.s32.totalorder %s156, %s159
      %p168 = scmp.eq.s32.totalorder %s20, 1
      %p169 = por %p167, %p168
      %p170 = scmp.ne.s32.totalorder %s159, %s160
      %p171 = scmp.eq.s32.totalorder %s20, 0
      %p172 = por %p170, %p171
      %p173 = scmp.ne.s32.totalorder %s159, %s160
      %p174 = scmp.eq.s32.totalorder %s21, 1
      %p175 = por %p173, %p174
      %p177 = scmp.ne.s32.totalorder %s160, %s176
      %p178 = scmp.eq.s32.totalorder %s21, 0
      %p179 = por %p177, %p178
      %s180 = ssub.s32 %s15, %s22
      %p181 = scmp.eq.s32.totalorder %s180, 0
      %s183 = sadd.s32 %s182, 1
      %s184 = scalar_select %p181, %s182, %s183
      %p187 = pneg %p181
      %p188 = scmp.eq.s32.totalorder %s15, 1
      %p189 = por %p187, %p188
      %p190 = scmp.ne.s32.totalorder %s182, %s185
      %p191 = scmp.eq.s32.totalorder %s15, 0
      %p192 = por %p190, %p191
      %p193 = scmp.ne.s32.totalorder %s182, %s185
      %p194 = scmp.eq.s32.totalorder %s20, 1
      %p195 = por %p193, %p194
      %p196 = scmp.ne.s32.totalorder %s185, %s186
      %p197 = scmp.eq.s32.totalorder %s20, 0
      %p198 = por %p196, %p197
      %p199 = scmp.ne.s32.totalorder %s185, %s186
      %p200 = scmp.eq.s32.totalorder %s21, 1
      %p201 = por %p199, %p200
      %p203 = scmp.ne.s32.totalorder %s186, %s202
      %p204 = scmp.eq.s32.totalorder %s21, 0
      %p205 = por %p203, %p204
      %p206 = scmp.le.s32.totalorder 1, %s15
      %p207 = scmp.lt.s32.totalorder %s15, 3
      %p208 = pnand %p206, %p207
      %p209 = pneg %p208
      // Predicated region
      $region9: #{gwnet_forward.7} parent=5 // pred_check
        _
      $region10: #{gwnet_forward.7} parent=5 // pred_check_branch
        %211 = sbr.rel (%p208) target = $region12
      $region11: #{gwnet_forward.7} parent=5 // pred_region
        %s212 = ssub.s32 %s15, 1
        // Predicated region
        $region13: #{gwnet_forward.7} parent=11 // pred_check
          %p213 = pneg %p62
        $region14: #{gwnet_forward.7} parent=11 // pred_check_branch
          %215 = sbr.rel (%p213) target = $region16
        $region15: #{gwnet_forward.7} parent=11 // pred_region
          _
        $region16: #{gwnet_forward.7} parent=11 // pred_fallthru
          _
        // Predicated region
        $region17: #{gwnet_forward.7} parent=11 // pred_check
          %p216 = pneg %p83
        $region18: #{gwnet_forward.7} parent=11 // pred_check_branch
          %218 = sbr.rel (%p216) target = $region20
        $region19: #{gwnet_forward.7} parent=11 // pred_region
          %s220 = ssub.s32 4096, 4096
          %221 = vsyncadd [#allocation3], %s220
          %s222 = sshll.u32 [#allocation2], 4
          %s223 = int_to_ptr.vmem [resolvable:$true] %s222
          %228 = dma.hbm_to_vmem [thread:$0]  %s2, 4096, %s223, [#allocation3], 128, 128, 8
        $region20: #{gwnet_forward.7} parent=11 // pred_fallthru
          _
        // Predicated region
        $region21: #{gwnet_forward.7} parent=11 // pred_check
          %p229 = pneg %p104
        $region22: #{gwnet_forward.7} parent=11 // pred_check_branch
          %231 = sbr.rel (%p229) target = $region24
        $region23: #{gwnet_forward.7} parent=11 // pred_region
          _
        $region24: #{gwnet_forward.7} parent=11 // pred_fallthru
          _
        // Predicated region
        $region25: #{gwnet_forward.7} parent=11 // pred_check
          %p232 = pneg %p125
        $region26: #{gwnet_forward.7} parent=11 // pred_check_branch
          %234 = sbr.rel (%p232) target = $region28
        $region27: #{gwnet_forward.7} parent=11 // pred_region
          _
        $region28: #{gwnet_forward.7} parent=11 // pred_fallthru
          _
        // Predicated region
        $region29: #{gwnet_forward.7} parent=11 // pred_check
          %p235 = pneg %p146
        $region30: #{gwnet_forward.7} parent=11 // pred_check_branch
          %237 = sbr.rel (%p235) target = $region32
        $region31: #{gwnet_forward.7} parent=11 // pred_region
          _
        $region32: #{gwnet_forward.7} parent=11 // pred_fallthru
          _
      $region12: #{gwnet_forward.7} parent=5 // pred_fallthru
        _
      %p238 = scmp.lt.s32.totalorder %s15, 2
      // Predicated region
      $region33: #{gwnet_forward.7} parent=5 // pred_check
        %p239 = pneg %p238
      $region34: #{gwnet_forward.7} parent=5 // pred_check_branch
        %241 = sbr.rel (%p239) target = $region36
      $region35: #{gwnet_forward.7} parent=5 // pred_region
        // Predicated region
        $region37: #{gwnet_forward.7} parent=35 // pred_check
          %p242 = pneg %p35
        $region38: #{gwnet_forward.7} parent=35 // pred_check_branch
          %244 = sbr.rel (%p242) target = $region40
        $region39: #{gwnet_forward.7} parent=35 // pred_region
          %p245 = scmp.lt.s32.totalorder %s15, 1
          %s246 = scalar_select %p245, %s15, 1
          %s247 = smul.addr %s246, 4
          %s248 = smul.addr %s247, 4
          %s249 = scalar_lea.vmem %s0, %s248
        $region40: #{gwnet_forward.7} parent=35 // pred_fallthru
          _
      $region36: #{gwnet_forward.7} parent=5 // pred_fallthru
        _
      %p250 = scmp.le.s32.totalorder 1, %s15
      %p251 = scmp.lt.s32.totalorder %s15, 3
      %p252 = pnand %p250, %p251
      %p253 = pneg %p252
      // Predicated region
      $region41: #{gwnet_forward.7} parent=5 // pred_check
        _
      $region42: #{gwnet_forward.7} parent=5 // pred_check_branch
        %255 = sbr.rel (%p252) target = $region44
      $region43: #{gwnet_forward.7} parent=5 // pred_region
        %s256 = ssub.s32 %s15, 1
        // Predicated region
        $region45: #{gwnet_forward.7} parent=43 // pred_check
          %p257 = pneg %p83
        $region46: #{gwnet_forward.7} parent=43 // pred_check_branch
          %259 = sbr.rel (%p257) target = $region48
        $region47: #{gwnet_forward.7} parent=43 // pred_region
          %260 = dma.done [#allocation3], 4096
        $region48: #{gwnet_forward.7} parent=43 // pred_fallthru
          _
        %p261 = scmp.lt.s32.totalorder %s20, 1
        %s262 = scalar_select %p261, %s20, 1
        %s263 = smul.addr %s262, 4
        %s264 = smul.addr %s263, 4
        %s265 = scalar_lea.vmem %s0, %s264
        %p266 = pneg %p41
        %p267 = pneg %p38
        %p268 = pneg %p62
        %p269 = pneg %p59
        %p270 = pneg %p83
        %p271 = pneg %p80
        %p272 = pneg %p104
        %p273 = pneg %p101
        %p274 = pneg %p125
        %p275 = pneg %p122
        %p276 = pneg %p146
        %p277 = pneg %p143
        %p278 = pneg %p172
        %p279 = pneg %p169
        %p280 = scmp.lt.s32.totalorder %s20, 1
        %s281 = scalar_select %p280, %s20, 1
        %s282 = smul.addr %s281, 3
        %s283 = smul.addr %s282, 4
        %s284 = scalar_lea.vmem %s6, %s283
        %p285 = pneg %p198
        %p286 = pneg %p195
        %p287 = scmp.lt.s32.totalorder %s20, 1
        %s288 = scalar_select %p287, %s20, 1
        %s289 = smul.addr %s288, 4
        %s290 = scalar_lea.vmem %s7, %s289
        %p291 = scmp.lt.s32.totalorder %s20, 1
        %s292 = scalar_select %p291, %s20, 1
        %s293 = smul.addr %s292, 4
        %s294 = smul.addr %s293, 4
        %s295 = scalar_lea.vmem %s0, %s294
        %p296 = scmp.lt.s32.totalorder %s20, 1
        %s297 = scalar_select %p296, %s20, 1
        %s298 = smul.addr %s297, 3
        %s299 = smul.addr %s298, 4
        %s300 = scalar_lea.vmem %s6, %s299
        %p301 = scmp.lt.s32.totalorder %s20, 1
        %s302 = scalar_select %p301, %s20, 1
        %s303 = smul.addr %s302, 4
        %s304 = scalar_lea.vmem %s7, %s303
        %v306 = vld [vmem:[%s295] sm:$0xf]
        %v307 = vld [vmem:[%s295 + $0x4] sm:$0xf]
        %v308 = vld [vmem:[%s295 + $0x8] sm:$0xf]
        %v309 = vld [vmem:[%s295 + $0xc] sm:$0xf]
        %v310 = vld [vmem:[%s3] sm:$0x3]
        %v311 = vld [vmem:[#allocation2] sm:$0xff]
        %v312 = vld [vmem:[#allocation2 + $0x8] sm:$0xff]
        %v313 = vld [vmem:[#allocation2 + $0x10] sm:$0xff]
        %v314 = vld [vmem:[#allocation2 + $0x18] sm:$0xff]
        %v315 = vld [vmem:[#allocation2 + $0x20] sm:$0xff]
        %v316 = vld [vmem:[#allocation2 + $0x28] sm:$0xff]
        %v317 = vld [vmem:[#allocation2 + $0x30] sm:$0xff]
        %v318 = vld [vmem:[#allocation2 + $0x38] sm:$0xff]
        %v319 = vld [vmem:[#allocation2 + $0x40] sm:$0xff]
        %v320 = vld [vmem:[#allocation2 + $0x48] sm:$0xff]
        %v321 = vld [vmem:[#allocation2 + $0x50] sm:$0xff]
        %v322 = vld [vmem:[#allocation2 + $0x58] sm:$0xff]
        %v323 = vld [vmem:[#allocation2 + $0x60] sm:$0xff]
        %v324 = vld [vmem:[#allocation2 + $0x68] sm:$0xff]
        %v325 = vld [vmem:[#allocation2 + $0x70] sm:$0xff]
        %v326 = vld [vmem:[#allocation2 + $0x78] sm:$0xff]
        %v330 = vunpack.c.l.b16 %v306
        %v331 = vunpack.c.l.b16 %v307
        %v332 = vunpack.c.l.b16 %v308
        %v333 = vpack.c.b16 %v331, %v330
        %v334 = vpack.c.b16 %v332, %v332
        %v353 = vunpack.c.l.b16 %v311
        %v354 = vunpack.c.h.b16 %v311
        %v355 = vunpack.c.l.b16 %v312
        %v356 = vunpack.c.h.b16 %v312
        %v357 = vunpack.c.l.b16 %v313
        %v358 = vunpack.c.h.b16 %v313
        %v359 = vunpack.c.l.b16 %v314
        %v360 = vunpack.c.h.b16 %v314
        %v361 = vunpack.c.l.b16 %v315
        %v362 = vunpack.c.h.b16 %v315
        %v363 = vunpack.c.l.b16 %v316
        %v364 = vunpack.c.h.b16 %v316
        %v365 = vunpack.c.l.b16 %v317
        %v366 = vunpack.c.h.b16 %v317
        %v367 = vunpack.c.l.b16 %v318
        %v368 = vunpack.c.h.b16 %v318
        %v369 = vunpack.c.l.b16 %v319
        %v370 = vunpack.c.h.b16 %v319
        %v371 = vunpack.c.l.b16 %v320
        %v372 = vunpack.c.h.b16 %v320
        %v373 = vunpack.c.l.b16 %v321
        %v374 = vunpack.c.h.b16 %v321
        %v375 = vunpack.c.l.b16 %v322
        %v376 = vunpack.c.h.b16 %v322
        %v377 = vunpack.c.l.b16 %v323
        %v378 = vunpack.c.h.b16 %v323
        %v379 = vunpack.c.l.b16 %v324
        %v380 = vunpack.c.h.b16 %v324
        %v381 = vunpack.c.l.b16 %v325
        %v382 = vunpack.c.h.b16 %v325
        %v383 = vunpack.c.l.b16 %v326
        %v384 = vunpack.c.h.b16 %v326
        %v385 = vpack.c.b16 %v355, %v353
        %v386 = vpack.c.b16 %v356, %v354
        %v387 = vpack.c.b16 %v359, %v357
        %v388 = vpack.c.b16 %v360, %v358
        %v389 = vpack.c.b16 %v363, %v361
        %v390 = vpack.c.b16 %v364, %v362
        %v391 = vpack.c.b16 %v367, %v365
        %v392 = vpack.c.b16 %v368, %v366
        %v393 = vpack.c.b16 %v371, %v369
        %v394 = vpack.c.b16 %v372, %v370
        %v395 = vpack.c.b16 %v375, %v373
        %v396 = vpack.c.b16 %v376, %v374
        %v397 = vpack.c.b16 %v379, %v377
        %v398 = vpack.c.b16 %v380, %v378
        %v399 = vpack.c.b16 %v383, %v381
        %v400 = vpack.c.b16 %v384, %v382
        %417 = vmatprep.subr.bf16.mxu0 %v386
        %418 = vmatpush1.bf16.msra.mxu0 %v385
        %419 = vmatprep.subr.bf16.mxu0 %v388
        %420 = vmatpush1.bf16.msra.mxu0 %v387
        %421 = vmatprep.subr.bf16.mxu0 %v390
        %422 = vmatpush1.bf16.msra.mxu0 %v389
        %423 = vmatprep.subr.bf16.mxu0 %v392
        %424 = vmatpush1.bf16.msra.mxu0 %v391
        %425 = vmatprep.subr.bf16.mxu0 %v394
        %426 = vmatpush1.bf16.msra.mxu0 %v393
        %427 = vmatprep.subr.bf16.mxu0 %v396
        %428 = vmatpush1.bf16.msra.mxu0 %v395
        %429 = vmatprep.subr.bf16.mxu0 %v398
        %430 = vmatpush1.bf16.msra.mxu0 %v397
        %431 = vmatprep.subr.bf16.mxu0 %v400
        %432 = vmatpush1.bf16.msra.mxu0 %v399
        %433 = vmatprep.subr.bf16.mxu0 0
        %434 = vmatpush1.bf16.msra.mxu0 0
        %435 = vmatprep.subr.bf16.mxu0 0
        %436 = vmatpush1.bf16.msra.mxu0 0
        %437 = vmatprep.subr.bf16.mxu0 0
        %438 = vmatpush1.bf16.msra.mxu0 0
        %439 = vmatprep.subr.bf16.mxu0 0
        %440 = vmatpush1.bf16.msra.mxu0 0
        %441 = vmatprep.subr.bf16.mxu0 0
        %442 = vmatpush1.bf16.msra.mxu0 0
        %443 = vmatprep.subr.bf16.mxu0 0
        %444 = vmatpush1.bf16.msra.mxu0 0
        %445 = vmatprep.subr.bf16.mxu0 0
        %446 = vmatpush1.bf16.msra.mxu0 0
        %447 = vmatprep.subr.bf16.mxu0 0
        %448 = vmatpush1.bf16.msra.mxu0 0
        %449 = vmatprep.mubr.bf16.mxu0 0
        %450 = vmatmul.mubr.bf16.gmra.mrb[0].mxu0 %v333
        %v451 = vpop.f32.mrb[0].mxu0
        %v452 = vadd.f32 0.0, %v451
        %v453 = vpop.f32.mrb[0].mxu0
        %v454 = vadd.f32 0.0, %v453
        %v455 = vpop.f32.mrb[0].mxu0
        %v456 = vadd.f32 0.0, %v455
        %v457 = vpop.f32.mrb[0].mxu0
        %v458 = vadd.f32 0.0, %v457
        %459 = vmatprep.mubr.bf16.mxu0 0
        %460 = vmatmul.mubr.bf16.gmra.mrb[0].mxu0 %v334
        %v461 = vpop.f32.mrb[0].mxu0
        %v462 = vadd.f32 0.0, %v461
        %v463 = vpop.f32.mrb[0].mxu0
        %v464 = vadd.f32 0.0, %v463
        %v465 = vpop.f32.mrb[0].mxu0
        %v466 = vpop.f32.mrb[0].mxu0
        %467 = vdwg.mxu0
        %v469 = vlaneseq
        %v470 = vshrl.u32 %v469, 7
        %v471 = vsub.s32 0, %v470
        %v472 = vrot.slane %v310, %v471
        %v473 = vlaneseq
        %v474 = vshrl.u32 %v473, 7
        %v475 = vsub.s32 1, %v474
        %v476 = vrot.slane %v310, %v475
        %v479 = vadd.f32 %v472, %v452
        %v480 = vadd.f32 %v476, %v454
        %v481 = vadd.f32 %v472, %v456
        %v482 = vadd.f32 %v476, %v458
        %v483 = vadd.f32 %v472, %v462
        %v484 = vadd.f32 %v476, %v464
        %s485 = scalar_lea.vmem [#allocation2], 128
        %v486 = vld [vmem:[%s485] sm:$0xff]
        %v487 = vld [vmem:[%s485 + $0x8] sm:$0xff]
        %v488 = vld [vmem:[%s485 + $0x10] sm:$0xff]
        %v489 = vld [vmem:[%s485 + $0x18] sm:$0xff]
        %v490 = vld [vmem:[%s485 + $0x20] sm:$0xff]
        %v491 = vld [vmem:[%s485 + $0x28] sm:$0xff]
        %v492 = vld [vmem:[%s485 + $0x30] sm:$0xff]
        %v493 = vld [vmem:[%s485 + $0x38] sm:$0xff]
        %v494 = vld [vmem:[%s485 + $0x40] sm:$0xff]
        %v495 = vld [vmem:[%s485 + $0x48] sm:$0xff]
        %v496 = vld [vmem:[%s485 + $0x50] sm:$0xff]
        %v497 = vld [vmem:[%s485 + $0x58] sm:$0xff]
        %v498 = vld [vmem:[%s485 + $0x60] sm:$0xff]
        %v499 = vld [vmem:[%s485 + $0x68] sm:$0xff]
        %v500 = vld [vmem:[%s485 + $0x70] sm:$0xff]
        %v501 = vld [vmem:[%s485 + $0x78] sm:$0xff]
        %v503 = vunpack.c.l.b16 %v309
        %v504 = vpack.c.b16 %v332, %v331
        %v505 = vpack.c.b16 %v503, %v503
        %v524 = vunpack.c.l.b16 %v486
        %v525 = vunpack.c.h.b16 %v486
        %v526 = vunpack.c.l.b16 %v487
        %v527 = vunpack.c.h.b16 %v487
        %v528 = vunpack.c.l.b16 %v488
        %v529 = vunpack.c.h.b16 %v488
        %v530 = vunpack.c.l.b16 %v489
        %v531 = vunpack.c.h.b16 %v489
        %v532 = vunpack.c.l.b16 %v490
        %v533 = vunpack.c.h.b16 %v490
        %v534 = vunpack.c.l.b16 %v491
        %v535 = vunpack.c.h.b16 %v491
        %v536 = vunpack.c.l.b16 %v492
        %v537 = vunpack.c.h.b16 %v492
        %v538 = vunpack.c.l.b16 %v493
        %v539 = vunpack.c.h.b16 %v493
        %v540 = vunpack.c.l.b16 %v494
        %v541 = vunpack.c.h.b16 %v494
        %v542 = vunpack.c.l.b16 %v495
        %v543 = vunpack.c.h.b16 %v495
        %v544 = vunpack.c.l.b16 %v496
        %v545 = vunpack.c.h.b16 %v496
        %v546 = vunpack.c.l.b16 %v497
        %v547 = vunpack.c.h.b16 %v497
        %v548 = vunpack.c.l.b16 %v498
        %v549 = vunpack.c.h.b16 %v498
        %v550 = vunpack.c.l.b16 %v499
        %v551 = vunpack.c.h.b16 %v499
        %v552 = vunpack.c.l.b16 %v500
        %v553 = vunpack.c.h.b16 %v500
        %v554 = vunpack.c.l.b16 %v501
        %v555 = vunpack.c.h.b16 %v501
        %v556 = vpack.c.b16 %v526, %v524
        %v557 = vpack.c.b16 %v527, %v525
        %v558 = vpack.c.b16 %v530, %v528
        %v559 = vpack.c.b16 %v531, %v529
        %v560 = vpack.c.b16 %v534, %v532
        %v561 = vpack.c.b16 %v535, %v533
        %v562 = vpack.c.b16 %v538, %v536
        %v563 = vpack.c.b16 %v539, %v537
        %v564 = vpack.c.b16 %v542, %v540
        %v565 = vpack.c.b16 %v543, %v541
        %v566 = vpack.c.b16 %v546, %v544
        %v567 = vpack.c.b16 %v547, %v545
        %v568 = vpack.c.b16 %v550, %v548
        %v569 = vpack.c.b16 %v551, %v549
        %v570 = vpack.c.b16 %v554, %v552
        %v571 = vpack.c.b16 %v555, %v553
        %588 = vmatprep.subr.bf16.mxu0 %v557
        %589 = vmatpush1.bf16.msra.mxu0 %v556
        %590 = vmatprep.subr.bf16.mxu0 %v559
        %591 = vmatpush1.bf16.msra.mxu0 %v558
        %592 = vmatprep.subr.bf16.mxu0 %v561
        %593 = vmatpush1.bf16.msra.mxu0 %v560
        %594 = vmatprep.subr.bf16.mxu0 %v563
        %595 = vmatpush1.bf16.msra.mxu0 %v562
        %596 = vmatprep.subr.bf16.mxu0 %v565
        %597 = vmatpush1.bf16.msra.mxu0 %v564
        %598 = vmatprep.subr.bf16.mxu0 %v567
        %599 = vmatpush1.bf16.msra.mxu0 %v566
        %600 = vmatprep.subr.bf16.mxu0 %v569
        %601 = vmatpush1.bf16.msra.mxu0 %v568
        %602 = vmatprep.subr.bf16.mxu0 %v571
        %603 = vmatpush1.bf16.msra.mxu0 %v570
        %604 = vmatprep.subr.bf16.mxu0 0
        %605 = vmatpush1.bf16.msra.mxu0 0
        %606 = vmatprep.subr.bf16.mxu0 0
        %607 = vmatpush1.bf16.msra.mxu0 0
        %608 = vmatprep.subr.bf16.mxu0 0
        %609 = vmatpush1.bf16.msra.mxu0 0
        %610 = vmatprep.subr.bf16.mxu0 0
        %611 = vmatpush1.bf16.msra.mxu0 0
        %612 = vmatprep.subr.bf16.mxu0 0
        %613 = vmatpush1.bf16.msra.mxu0 0
        %614 = vmatprep.subr.bf16.mxu0 0
        %615 = vmatpush1.bf16.msra.mxu0 0
        %616 = vmatprep.subr.bf16.mxu0 0
        %617 = vmatpush1.bf16.msra.mxu0 0
        %618 = vmatprep.subr.bf16.mxu0 0
        %619 = vmatpush1.bf16.msra.mxu0 0
        %620 = vmatprep.mubr.bf16.mxu0 0
        %621 = vmatmul.mubr.bf16.gmra.mrb[0].mxu0 %v504
        %v622 = vpop.f32.mrb[0].mxu0
        %v623 = vadd.f32 0.0, %v622
        %v624 = vpop.f32.mrb[0].mxu0
        %v625 = vadd.f32 0.0, %v624
        %v626 = vpop.f32.mrb[0].mxu0
        %v627 = vadd.f32 0.0, %v626
        %v628 = vpop.f32.mrb[0].mxu0
        %v629 = vadd.f32 0.0, %v628
        %630 = vmatprep.mubr.bf16.mxu0 0
        %631 = vmatmul.mubr.bf16.gmra.mrb[0].mxu0 %v505
        %v632 = vpop.f32.mrb[0].mxu0
        %v633 = vadd.f32 0.0, %v632
        %v634 = vpop.f32.mrb[0].mxu0
        %v635 = vadd.f32 0.0, %v634
        %v636 = vpop.f32.mrb[0].mxu0
        %v637 = vpop.f32.mrb[0].mxu0
        %638 = vdwg.mxu0
        %v639 = vadd.f32 %v479, %v623
        %v640 = vadd.f32 %v480, %v625
        %v641 = vadd.f32 %v481, %v627
        %v642 = vadd.f32 %v482, %v629
        %v643 = vadd.f32 %v483, %v633
        %v644 = vadd.f32 %v484, %v635
        %v645 = vtanh.pop %v639
        %v646 = vtanh.pop %v641
        %v647 = vtanh.pop %v643
        %v648 = vxor.u32 %v640, 2147483648
        %v649 = vxor.u32 %v642, 2147483648
        %v650 = vxor.u32 %v644, 2147483648
        %v651 = vmul.f32 %v648, 1.442695
        %v652 = vpow.pop %v651
        %v653 = vmul.f32 %v649, 1.442695
        %v654 = vpow.pop %v653
        %v655 = vmul.f32 %v650, 1.442695
        %v656 = vpow.pop %v655
        %v657 = vadd.f32 %v652, 1.0
        %v658 = vadd.f32 %v654, 1.0
        %v659 = vadd.f32 %v656, 1.0
        %v660 = vrcp.pop %v657
        %v661 = vmul.f32 1.0, %v660
        %v662 = vrcp.pop %v658
        %v663 = vmul.f32 1.0, %v662
        %v664 = vrcp.pop %v659
        %v665 = vmul.f32 1.0, %v664
        %v666 = vmul.f32 %v645, %v661
        %v667 = vmul.f32 %v646, %v663
        %v668 = vmul.f32 %v647, %v665
        %v669 = vpack.c.bf16 %v668, %v668
        %670 = vst [vmem:[%s304] sm:$0xf] %v669
        %v671 = vpack.c.bf16 %v667, %v666
        %v672 = vld [vmem:[%s4] sm:$0xf]
        %v673 = vld [vmem:[%s4 + $0x4] sm:$0xf]
        %v674 = vld [vmem:[%s4 + $0x8] sm:$0xf]
        %v675 = vld [vmem:[%s4 + $0xc] sm:$0xf]
        %v676 = vld [vmem:[%s4 + $0x10] sm:$0xf]
        %v677 = vld [vmem:[%s4 + $0x14] sm:$0xf]
        %v678 = vld [vmem:[%s4 + $0x18] sm:$0xf]
        %v679 = vld [vmem:[%s4 + $0x1c] sm:$0xf]
        %v680 = vld [vmem:[%s4 + $0x20] sm:$0xf]
        %v681 = vld [vmem:[%s4 + $0x24] sm:$0xf]
        %v682 = vld [vmem:[%s4 + $0x28] sm:$0xf]
        %v683 = vld [vmem:[%s4 + $0x2c] sm:$0xf]
        %v684 = vld [vmem:[%s4 + $0x30] sm:$0xf]
        %v685 = vld [vmem:[%s4 + $0x34] sm:$0xf]
        %v686 = vld [vmem:[%s4 + $0x38] sm:$0xf]
        %v687 = vld [vmem:[%s4 + $0x3c] sm:$0xf]
        %v688 = vld [vmem:[%s5] sm:$0x1]
        %v690 = vlaneseq
        %v691 = vshrl.u32 %v690, 7
        %v692 = vsub.s32 0, %v691
        %v693 = vrot.slane %v688, %v692
        %v711 = vunpack.c.l.b16 %v672
        %v712 = vunpack.c.l.b16 %v673
        %v713 = vunpack.c.l.b16 %v674
        %v714 = vunpack.c.l.b16 %v675
        %v715 = vunpack.c.l.b16 %v676
        %v716 = vunpack.c.l.b16 %v677
        %v717 = vunpack.c.l.b16 %v678
        %v718 = vunpack.c.l.b16 %v679
        %v719 = vunpack.c.l.b16 %v680
        %v720 = vunpack.c.l.b16 %v681
        %v721 = vunpack.c.l.b16 %v682
        %v722 = vunpack.c.l.b16 %v683
        %v723 = vunpack.c.l.b16 %v684
        %v724 = vunpack.c.l.b16 %v685
        %v725 = vunpack.c.l.b16 %v686
        %v726 = vunpack.c.l.b16 %v687
        %v727 = vpack.c.b16 %v712, %v711
        %v728 = vpack.c.b16 %v714, %v713
        %v729 = vpack.c.b16 %v716, %v715
        %v730 = vpack.c.b16 %v718, %v717
        %v731 = vpack.c.b16 %v720, %v719
        %v732 = vpack.c.b16 %v722, %v721
        %v733 = vpack.c.b16 %v724, %v723
        %v734 = vpack.c.b16 %v726, %v725
        %743 = vmatprep.subr.bf16.mxu0 0
        %744 = vmatpush1.bf16.msra.mxu0 %v727
        %745 = vmatprep.subr.bf16.mxu0 0
        %746 = vmatpush1.bf16.msra.mxu0 %v728
        %747 = vmatprep.subr.bf16.mxu0 0
        %748 = vmatpush1.bf16.msra.mxu0 %v729
        %749 = vmatprep.subr.bf16.mxu0 0
        %750 = vmatpush1.bf16.msra.mxu0 %v730
        %751 = vmatprep.subr.bf16.mxu0 0
        %752 = vmatpush1.bf16.msra.mxu0 %v731
        %753 = vmatprep.subr.bf16.mxu0 0
        %754 = vmatpush1.bf16.msra.mxu0 %v732
        %755 = vmatprep.subr.bf16.mxu0 0
        %756 = vmatpush1.bf16.msra.mxu0 %v733
        %757 = vmatprep.subr.bf16.mxu0 0
        %758 = vmatpush1.bf16.msra.mxu0 %v734
        %759 = vmatprep.subr.bf16.mxu0 0
        %760 = vmatpush1.bf16.msra.mxu0 0
        %761 = vmatprep.subr.bf16.mxu0 0
        %762 = vmatpush1.bf16.msra.mxu0 0
        %763 = vmatprep.subr.bf16.mxu0 0
        %764 = vmatpush1.bf16.msra.mxu0 0
        %765 = vmatprep.subr.bf16.mxu0 0
        %766 = vmatpush1.bf16.msra.mxu0 0
        %767 = vmatprep.subr.bf16.mxu0 0
        %768 = vmatpush1.bf16.msra.mxu0 0
        %769 = vmatprep.subr.bf16.mxu0 0
        %770 = vmatpush1.bf16.msra.mxu0 0
        %771 = vmatprep.subr.bf16.mxu0 0
        %772 = vmatpush1.bf16.msra.mxu0 0
        %773 = vmatprep.subr.bf16.mxu0 0
        %774 = vmatpush1.bf16.msra.mxu0 0
        %775 = vmatprep.mubr.bf16.mxu0 0
        %776 = vmatmul.mubr.bf16.gmra.mrb[0].mxu0 %v671
        %v777 = vpop.f32.mrb[0].mxu0
        %v778 = vadd.f32 %v693, %v777
        %v779 = vpop.f32.mrb[0].mxu0
        %v780 = vpop.f32.mrb[0].mxu0
        %v781 = vadd.f32 %v693, %v780
        %v782 = vpop.f32.mrb[0].mxu0
        %783 = vmatprep.mubr.bf16.mxu0 0
        %784 = vmatmul.mubr.bf16.gmra.mrb[0].mxu0 %v669
        %v785 = vpop.f32.mrb[0].mxu0
        %v786 = vadd.f32 %v693, %v785
        %v787 = vpop.f32.mrb[0].mxu0
        %v788 = vpop.f32.mrb[0].mxu0
        %v789 = vpop.f32.mrb[0].mxu0
        %790 = vdwg.mxu0
        %v791 = vunpack.c.l.bf16 %v307
        %v792 = vunpack.c.l.bf16 %v308
        %v793 = vunpack.c.l.bf16 %v309
        %v794 = vadd.f32 %v778, %v791
        %v795 = vadd.f32 %v781, %v792
        %v796 = vadd.f32 %v786, %v793
        %s797 = scalar_lea.vmem %s4, 64
        %v798 = vld [vmem:[%s797] sm:$0xf]
        %v799 = vld [vmem:[%s797 + $0x4] sm:$0xf]
        %v800 = vld [vmem:[%s797 + $0x8] sm:$0xf]
        %v801 = vld [vmem:[%s797 + $0xc] sm:$0xf]
        %v802 = vld [vmem:[%s797 + $0x10] sm:$0xf]
        %v803 = vld [vmem:[%s797 + $0x14] sm:$0xf]
        %v804 = vld [vmem:[%s797 + $0x18] sm:$0xf]
        %v805 = vld [vmem:[%s797 + $0x1c] sm:$0xf]
        %v806 = vld [vmem:[%s797 + $0x20] sm:$0xf]
        %v807 = vld [vmem:[%s797 + $0x24] sm:$0xf]
        %v808 = vld [vmem:[%s797 + $0x28] sm:$0xf]
        %v809 = vld [vmem:[%s797 + $0x2c] sm:$0xf]
        %v810 = vld [vmem:[%s797 + $0x30] sm:$0xf]
        %v811 = vld [vmem:[%s797 + $0x34] sm:$0xf]
        %v812 = vld [vmem:[%s797 + $0x38] sm:$0xf]
        %v813 = vld [vmem:[%s797 + $0x3c] sm:$0xf]
        %v830 = vunpack.c.l.b16 %v798
        %v831 = vunpack.c.l.b16 %v799
        %v832 = vunpack.c.l.b16 %v800
        %v833 = vunpack.c.l.b16 %v801
        %v834 = vunpack.c.l.b16 %v802
        %v835 = vunpack.c.l.b16 %v803
        %v836 = vunpack.c.l.b16 %v804
        %v837 = vunpack.c.l.b16 %v805
        %v838 = vunpack.c.l.b16 %v806
        %v839 = vunpack.c.l.b16 %v807
        %v840 = vunpack.c.l.b16 %v808
        %v841 = vunpack.c.l.b16 %v809
        %v842 = vunpack.c.l.b16 %v810
        %v843 = vunpack.c.l.b16 %v811
        %v844 = vunpack.c.l.b16 %v812
        %v845 = vunpack.c.l.b16 %v813
        %v846 = vpack.c.b16 %v831, %v830
        %v847 = vpack.c.b16 %v833, %v832
        %v848 = vpack.c.b16 %v835, %v834
        %v849 = vpack.c.b16 %v837, %v836
        %v850 = vpack.c.b16 %v839, %v838
        %v851 = vpack.c.b16 %v841, %v840
        %v852 = vpack.c.b16 %v843, %v842
        %v853 = vpack.c.b16 %v845, %v844
        %862 = vmatprep.subr.bf16.mxu0 0
        %863 = vmatpush1.bf16.msra.mxu0 %v846
        %864 = vmatprep.subr.bf16.mxu0 0
        %865 = vmatpush1.bf16.msra.mxu0 %v847
        %866 = vmatprep.subr.bf16.mxu0 0
        %867 = vmatpush1.bf16.msra.mxu0 %v848
        %868 = vmatprep.subr.bf16.mxu0 0
        %869 = vmatpush1.bf16.msra.mxu0 %v849
        %870 = vmatprep.subr.bf16.mxu0 0
        %871 = vmatpush1.bf16.msra.mxu0 %v850
        %872 = vmatprep.subr.bf16.mxu0 0
        %873 = vmatpush1.bf16.msra.mxu0 %v851
        %874 = vmatprep.subr.bf16.mxu0 0
        %875 = vmatpush1.bf16.msra.mxu0 %v852
        %876 = vmatprep.subr.bf16.mxu0 0
        %877 = vmatpush1.bf16.msra.mxu0 %v853
        %878 = vmatprep.subr.bf16.mxu0 0
        %879 = vmatpush1.bf16.msra.mxu0 0
        %880 = vmatprep.subr.bf16.mxu0 0
        %881 = vmatpush1.bf16.msra.mxu0 0
        %882 = vmatprep.subr.bf16.mxu0 0
        %883 = vmatpush1.bf16.msra.mxu0 0
        %884 = vmatprep.subr.bf16.mxu0 0
        %885 = vmatpush1.bf16.msra.mxu0 0
        %886 = vmatprep.subr.bf16.mxu0 0
        %887 = vmatpush1.bf16.msra.mxu0 0
        %888 = vmatprep.subr.bf16.mxu0 0
        %889 = vmatpush1.bf16.msra.mxu0 0
        %890 = vmatprep.subr.bf16.mxu0 0
        %891 = vmatpush1.bf16.msra.mxu0 0
        %892 = vmatprep.subr.bf16.mxu0 0
        %893 = vmatpush1.bf16.msra.mxu0 0
        %894 = vmatprep.mubr.bf16.mxu0 0
        %895 = vmatmul.mubr.bf16.gmra.mrb[0].mxu0 %v671
        %v896 = vpop.f32.mrb[0].mxu0
        %v897 = vadd.f32 0.0, %v896
        %v898 = vpop.f32.mrb[0].mxu0
        %v899 = vpop.f32.mrb[0].mxu0
        %v900 = vadd.f32 0.0, %v899
        %v901 = vpop.f32.mrb[0].mxu0
        %902 = vmatprep.mubr.bf16.mxu0 0
        %903 = vmatmul.mubr.bf16.gmra.mrb[0].mxu0 %v669
        %v904 = vpop.f32.mrb[0].mxu0
        %v905 = vadd.f32 0.0, %v904
        %v906 = vpop.f32.mrb[0].mxu0
        %v907 = vpop.f32.mrb[0].mxu0
        %v908 = vpop.f32.mrb[0].mxu0
        %909 = vdwg.mxu0
        %v910 = vpack.c.bf16 %v900, %v897
        %v911 = vpack.c.bf16 %v905, %v905
        %v914 = vunpack.c.l.b16 %v910
        %v915 = vunpack.c.h.b16 %v910
        %v916 = vunpack.c.l.b16 %v911
        %v917 = vpack.c.b16 %v914, %v914
        %v918 = vpack.c.b16 %v915, %v915
        %v919 = vpack.c.b16 %v916, %v916
        %s920 = scalar_lea.vmem %s1, 4
        %v921 = vld [vmem:[%s920] sm:$0xf]
        %vm922 = vcmask 64512
        %v924 = vsel %vm922, %v921, 0
        %vm926 = vcmask 1043456
        %v928 = vsel %vm926, %v917, 0
        %930 = vmatprep.subr.bf16.mxu0 0
        %931 = vmatpush1.bf16.msra.mxu0 %v928
        %932 = vmatprep.subr.bf16.mxu0 0
        %933 = vmatpush1.bf16.msra.mxu0 0
        %934 = vmatprep.subr.bf16.mxu0 0
        %935 = vmatpush1.bf16.msra.mxu0 0
        %936 = vmatprep.subr.bf16.mxu0 0
        %937 = vmatpush1.bf16.msra.mxu0 0
        %938 = vmatprep.subr.bf16.mxu0 0
        %939 = vmatpush1.bf16.msra.mxu0 0
        %940 = vmatprep.subr.bf16.mxu0 0
        %941 = vmatpush1.bf16.msra.mxu0 0
        %942 = vmatprep.subr.bf16.mxu0 0
        %943 = vmatpush1.bf16.msra.mxu0 0
        %944 = vmatprep.subr.bf16.mxu0 0
        %945 = vmatpush1.bf16.msra.mxu0 0
        %946 = vmatprep.subr.bf16.mxu0 0
        %947 = vmatpush1.bf16.msra.mxu0 0
        %948 = vmatprep.subr.bf16.mxu0 0
        %949 = vmatpush1.bf16.msra.mxu0 0
        %950 = vmatprep.subr.bf16.mxu0 0
        %951 = vmatpush1.bf16.msra.mxu0 0
        %952 = vmatprep.subr.bf16.mxu0 0
        %953 = vmatpush1.bf16.msra.mxu0 0
        %954 = vmatprep.subr.bf16.mxu0 0
        %955 = vmatpush1.bf16.msra.mxu0 0
        %956 = vmatprep.subr.bf16.mxu0 0
        %957 = vmatpush1.bf16.msra.mxu0 0
        %958 = vmatprep.subr.bf16.mxu0 0
        %959 = vmatpush1.bf16.msra.mxu0 0
        %960 = vmatprep.subr.bf16.mxu0 0
        %961 = vmatpush1.bf16.msra.mxu0 0
        %962 = vmatprep.mubr.bf16.mxu0 0
        %963 = vmatmul.mubr.bf16.gmra.mrb[0].mxu0 %v924
        %v964 = vpop.f32.mrb[0].mxu0
        %v965 = vadd.f32 0.0, %v964
        %v966 = vpop.f32.mrb[0].mxu0
        %v967 = vpop.f32.mrb[0].mxu0
        %v968 = vpop.f32.mrb[0].mxu0
        %969 = vdwg.mxu0
        %v970 = vadd.f32 %v794, %v965
        %v972 = vsel %vm926, %v918, 0
        %974 = vmatprep.subr.bf16.mxu0 0
        %975 = vmatpush1.bf16.msra.mxu0 %v972
        %976 = vmatprep.subr.bf16.mxu0 0
        %977 = vmatpush1.bf16.msra.mxu0 0
        %978 = vmatprep.subr.bf16.mxu0 0
        %979 = vmatpush1.bf16.msra.mxu0 0
        %980 = vmatprep.subr.bf16.mxu0 0
        %981 = vmatpush1.bf16.msra.mxu0 0
        %982 = vmatprep.subr.bf16.mxu0 0
        %983 = vmatpush1.bf16.msra.mxu0 0
        %984 = vmatprep.subr.bf16.mxu0 0
        %985 = vmatpush1.bf16.msra.mxu0 0
        %986 = vmatprep.subr.bf16.mxu0 0
        %987 = vmatpush1.bf16.msra.mxu0 0
        %988 = vmatprep.subr.bf16.mxu0 0
        %989 = vmatpush1.bf16.msra.mxu0 0
        %990 = vmatprep.subr.bf16.mxu0 0
        %991 = vmatpush1.bf16.msra.mxu0 0
        %992 = vmatprep.subr.bf16.mxu0 0
        %993 = vmatpush1.bf16.msra.mxu0 0
        %994 = vmatprep.subr.bf16.mxu0 0
        %995 = vmatpush1.bf16.msra.mxu0 0
        %996 = vmatprep.subr.bf16.mxu0 0
        %997 = vmatpush1.bf16.msra.mxu0 0
        %998 = vmatprep.subr.bf16.mxu0 0
        %999 = vmatpush1.bf16.msra.mxu0 0
        %1000 = vmatprep.subr.bf16.mxu0 0
        %1001 = vmatpush1.bf16.msra.mxu0 0
        %1002 = vmatprep.subr.bf16.mxu0 0
        %1003 = vmatpush1.bf16.msra.mxu0 0
        %1004 = vmatprep.subr.bf16.mxu0 0
        %1005 = vmatpush1.bf16.msra.mxu0 0
        %1006 = vmatprep.mubr.bf16.mxu0 0
        %1007 = vmatmul.mubr.bf16.gmra.mrb[0].mxu0 %v924
        %v1008 = vpop.f32.mrb[0].mxu0
        %v1009 = vadd.f32 0.0, %v1008
        %v1010 = vpop.f32.mrb[0].mxu0
        %v1011 = vpop.f32.mrb[0].mxu0
        %v1012 = vpop.f32.mrb[0].mxu0
        %1013 = vdwg.mxu0
        %v1014 = vadd.f32 %v795, %v1009
        %v1016 = vsel %vm926, %v919, 0
        %1018 = vmatprep.subr.bf16.mxu0 0
        %1019 = vmatpush1.bf16.msra.mxu0 %v1016
        %1020 = vmatprep.subr.bf16.mxu0 0
        %1021 = vmatpush1.bf16.msra.mxu0 0
        %1022 = vmatprep.subr.bf16.mxu0 0
        %1023 = vmatpush1.bf16.msra.mxu0 0
        %1024 = vmatprep.subr.bf16.mxu0 0
        %1025 = vmatpush1.bf16.msra.mxu0 0
        %1026 = vmatprep.subr.bf16.mxu0 0
        %1027 = vmatpush1.bf16.msra.mxu0 0
        %1028 = vmatprep.subr.bf16.mxu0 0
        %1029 = vmatpush1.bf16.msra.mxu0 0
        %1030 = vmatprep.subr.bf16.mxu0 0
        %1031 = vmatpush1.bf16.msra.mxu0 0
        %1032 = vmatprep.subr.bf16.mxu0 0
        %1033 = vmatpush1.bf16.msra.mxu0 0
        %1034 = vmatprep.subr.bf16.mxu0 0
        %1035 = vmatpush1.bf16.msra.mxu0 0
        %1036 = vmatprep.subr.bf16.mxu0 0
        %1037 = vmatpush1.bf16.msra.mxu0 0
        %1038 = vmatprep.subr.bf16.mxu0 0
        %1039 = vmatpush1.bf16.msra.mxu0 0
        %1040 = vmatprep.subr.bf16.mxu0 0
        %1041 = vmatpush1.bf16.msra.mxu0 0
        %1042 = vmatprep.subr.bf16.mxu0 0
        %1043 = vmatpush1.bf16.msra.mxu0 0
        %1044 = vmatprep.subr.bf16.mxu0 0
        %1045 = vmatpush1.bf16.msra.mxu0 0
        %1046 = vmatprep.subr.bf16.mxu0 0
        %1047 = vmatpush1.bf16.msra.mxu0 0
        %1048 = vmatprep.subr.bf16.mxu0 0
        %1049 = vmatpush1.bf16.msra.mxu0 0
        %1050 = vmatprep.mubr.bf16.mxu0 0
        %1051 = vmatmul.mubr.bf16.gmra.mrb[0].mxu0 %v924
        %v1052 = vpop.f32.mrb[0].mxu0
        %v1053 = vadd.f32 0.0, %v1052
        %v1054 = vpop.f32.mrb[0].mxu0
        %v1055 = vpop.f32.mrb[0].mxu0
        %v1056 = vpop.f32.mrb[0].mxu0
        %1057 = vdwg.mxu0
        %v1058 = vadd.f32 %v796, %v1053
        %s1059 = scalar_lea.vmem %s4, 128
        %v1060 = vld [vmem:[%s1059] sm:$0xf]
        %v1061 = vld [vmem:[%s1059 + $0x4] sm:$0xf]
        %v1062 = vld [vmem:[%s1059 + $0x8] sm:$0xf]
        %v1063 = vld [vmem:[%s1059 + $0xc] sm:$0xf]
        %v1064 = vld [vmem:[%s1059 + $0x10] sm:$0xf]
        %v1065 = vld [vmem:[%s1059 + $0x14] sm:$0xf]
        %v1066 = vld [vmem:[%s1059 + $0x18] sm:$0xf]
        %v1067 = vld [vmem:[%s1059 + $0x1c] sm:$0xf]
        %v1068 = vld [vmem:[%s1059 + $0x20] sm:$0xf]
        %v1069 = vld [vmem:[%s1059 + $0x24] sm:$0xf]
        %v1070 = vld [vmem:[%s1059 + $0x28] sm:$0xf]
        %v1071 = vld [vmem:[%s1059 + $0x2c] sm:$0xf]
        %v1072 = vld [vmem:[%s1059 + $0x30] sm:$0xf]
        %v1073 = vld [vmem:[%s1059 + $0x34] sm:$0xf]
        %v1074 = vld [vmem:[%s1059 + $0x38] sm:$0xf]
        %v1075 = vld [vmem:[%s1059 + $0x3c] sm:$0xf]
        %v1092 = vunpack.c.l.b16 %v1060
        %v1093 = vunpack.c.l.b16 %v1061
        %v1094 = vunpack.c.l.b16 %v1062
        %v1095 = vunpack.c.l.b16 %v1063
        %v1096 = vunpack.c.l.b16 %v1064
        %v1097 = vunpack.c.l.b16 %v1065
        %v1098 = vunpack.c.l.b16 %v1066
        %v1099 = vunpack.c.l.b16 %v1067
        %v1100 = vunpack.c.l.b16 %v1068
        %v1101 = vunpack.c.l.b16 %v1069
        %v1102 = vunpack.c.l.b16 %v1070
        %v1103 = vunpack.c.l.b16 %v1071
        %v1104 = vunpack.c.l.b16 %v1072
        %v1105 = vunpack.c.l.b16 %v1073
        %v1106 = vunpack.c.l.b16 %v1074
        %v1107 = vunpack.c.l.b16 %v1075
        %v1108 = vpack.c.b16 %v1093, %v1092
        %v1109 = vpack.c.b16 %v1095, %v1094
        %v1110 = vpack.c.b16 %v1097, %v1096
        %v1111 = vpack.c.b16 %v1099, %v1098
        %v1112 = vpack.c.b16 %v1101, %v1100
        %v1113 = vpack.c.b16 %v1103, %v1102
        %v1114 = vpack.c.b16 %v1105, %v1104
        %v1115 = vpack.c.b16 %v1107, %v1106
        %1124 = vmatprep.subr.bf16.mxu0 0
        %1125 = vmatpush1.bf16.msra.mxu0 %v1108
        %1126 = vmatprep.subr.bf16.mxu0 0
        %1127 = vmatpush1.bf16.msra.mxu0 %v1109
        %1128 = vmatprep.subr.bf16.mxu0 0
        %1129 = vmatpush1.bf16.msra.mxu0 %v1110
        %1130 = vmatprep.subr.bf16.mxu0 0
        %1131 = vmatpush1.bf16.msra.mxu0 %v1111
        %1132 = vmatprep.subr.bf16.mxu0 0
        %1133 = vmatpush1.bf16.msra.mxu0 %v1112
        %1134 = vmatprep.subr.bf16.mxu0 0
        %1135 = vmatpush1.bf16.msra.mxu0 %v1113
        %1136 = vmatprep.subr.bf16.mxu0 0
        %1137 = vmatpush1.bf16.msra.mxu0 %v1114
        %1138 = vmatprep.subr.bf16.mxu0 0
        %1139 = vmatpush1.bf16.msra.mxu0 %v1115
        %1140 = vmatprep.subr.bf16.mxu0 0
        %1141 = vmatpush1.bf16.msra.mxu0 0
        %1142 = vmatprep.subr.bf16.mxu0 0
        %1143 = vmatpush1.bf16.msra.mxu0 0
        %1144 = vmatprep.subr.bf16.mxu0 0
        %1145 = vmatpush1.bf16.msra.mxu0 0
        %1146 = vmatprep.subr.bf16.mxu0 0
        %1147 = vmatpush1.bf16.msra.mxu0 0
        %1148 = vmatprep.subr.bf16.mxu0 0
        %1149 = vmatpush1.bf16.msra.mxu0 0
        %1150 = vmatprep.subr.bf16.mxu0 0
        %1151 = vmatpush1.bf16.msra.mxu0 0
        %1152 = vmatprep.subr.bf16.mxu0 0
        %1153 = vmatpush1.bf16.msra.mxu0 0
        %1154 = vmatprep.subr.bf16.mxu0 0
        %1155 = vmatpush1.bf16.msra.mxu0 0
        %1156 = vmatprep.mubr.bf16.mxu0 0
        %1157 = vmatmul.mubr.bf16.gmra.mrb[0].mxu0 %v671
        %v1158 = vpop.f32.mrb[0].mxu0
        %v1159 = vadd.f32 0.0, %v1158
        %v1160 = vpop.f32.mrb[0].mxu0
        %v1161 = vpop.f32.mrb[0].mxu0
        %v1162 = vadd.f32 0.0, %v1161
        %v1163 = vpop.f32.mrb[0].mxu0
        %1164 = vmatprep.mubr.bf16.mxu0 0
        %1165 = vmatmul.mubr.bf16.gmra.mrb[0].mxu0 %v669
        %v1166 = vpop.f32.mrb[0].mxu0
        %v1167 = vadd.f32 0.0, %v1166
        %v1168 = vpop.f32.mrb[0].mxu0
        %v1169 = vpop.f32.mrb[0].mxu0
        %v1170 = vpop.f32.mrb[0].mxu0
        %1171 = vdwg.mxu0
        %v1172 = vpack.c.bf16 %v1162, %v1159
        %v1173 = vpack.c.bf16 %v1167, %v1167
        %v1176 = vunpack.c.l.b16 %v1172
        %v1177 = vunpack.c.h.b16 %v1172
        %v1178 = vunpack.c.l.b16 %v1173
        %v1179 = vpack.c.b16 %v1176, %v1176
        %v1180 = vpack.c.b16 %v1177, %v1177
        %v1181 = vpack.c.b16 %v1178, %v1178
        %s1182 = scalar_lea.vmem %s1, 8
        %v1183 = vld [vmem:[%s1182] sm:$0xf]
        %v1185 = vsel %vm922, %v1183, 0
        %v1188 = vsel %vm926, %v1179, 0
        %1190 = vmatprep.subr.bf16.mxu0 0
        %1191 = vmatpush1.bf16.msra.mxu0 %v1188
        %1192 = vmatprep.subr.bf16.mxu0 0
        %1193 = vmatpush1.bf16.msra.mxu0 0
        %1194 = vmatprep.subr.bf16.mxu0 0
        %1195 = vmatpush1.bf16.msra.mxu0 0
        %1196 = vmatprep.subr.bf16.mxu0 0
        %1197 = vmatpush1.bf16.msra.mxu0 0
        %1198 = vmatprep.subr.bf16.mxu0 0
        %1199 = vmatpush1.bf16.msra.mxu0 0
        %1200 = vmatprep.subr.bf16.mxu0 0
        %1201 = vmatpush1.bf16.msra.mxu0 0
        %1202 = vmatprep.subr.bf16.mxu0 0
        %1203 = vmatpush1.bf16.msra.mxu0 0
        %1204 = vmatprep.subr.bf16.mxu0 0
        %1205 = vmatpush1.bf16.msra.mxu0 0
        %1206 = vmatprep.subr.bf16.mxu0 0
        %1207 = vmatpush1.bf16.msra.mxu0 0
        %1208 = vmatprep.subr.bf16.mxu0 0
        %1209 = vmatpush1.bf16.msra.mxu0 0
        %1210 = vmatprep.subr.bf16.mxu0 0
        %1211 = vmatpush1.bf16.msra.mxu0 0
        %1212 = vmatprep.subr.bf16.mxu0 0
        %1213 = vmatpush1.bf16.msra.mxu0 0
        %1214 = vmatprep.subr.bf16.mxu0 0
        %1215 = vmatpush1.bf16.msra.mxu0 0
        %1216 = vmatprep.subr.bf16.mxu0 0
        %1217 = vmatpush1.bf16.msra.mxu0 0
        %1218 = vmatprep.subr.bf16.mxu0 0
        %1219 = vmatpush1.bf16.msra.mxu0 0
        %1220 = vmatprep.subr.bf16.mxu0 0
        %1221 = vmatpush1.bf16.msra.mxu0 0
        %1222 = vmatprep.mubr.bf16.mxu0 0
        %1223 = vmatmul.mubr.bf16.gmra.mrb[0].mxu0 %v1185
        %v1224 = vpop.f32.mrb[0].mxu0
        %v1225 = vadd.f32 0.0, %v1224
        %v1226 = vpop.f32.mrb[0].mxu0
        %v1227 = vpop.f32.mrb[0].mxu0
        %v1228 = vpop.f32.mrb[0].mxu0
        %1229 = vdwg.mxu0
        %v1230 = vadd.f32 %v970, %v1225
        %v1232 = vsel %vm926, %v1180, 0
        %1234 = vmatprep.subr.bf16.mxu0 0
        %1235 = vmatpush1.bf16.msra.mxu0 %v1232
        %1236 = vmatprep.subr.bf16.mxu0 0
        %1237 = vmatpush1.bf16.msra.mxu0 0
        %1238 = vmatprep.subr.bf16.mxu0 0
        %1239 = vmatpush1.bf16.msra.mxu0 0
        %1240 = vmatprep.subr.bf16.mxu0 0
        %1241 = vmatpush1.bf16.msra.mxu0 0
        %1242 = vmatprep.subr.bf16.mxu0 0
        %1243 = vmatpush1.bf16.msra.mxu0 0
        %1244 = vmatprep.subr.bf16.mxu0 0
        %1245 = vmatpush1.bf16.msra.mxu0 0
        %1246 = vmatprep.subr.bf16.mxu0 0
        %1247 = vmatpush1.bf16.msra.mxu0 0
        %1248 = vmatprep.subr.bf16.mxu0 0
        %1249 = vmatpush1.bf16.msra.mxu0 0
        %1250 = vmatprep.subr.bf16.mxu0 0
        %1251 = vmatpush1.bf16.msra.mxu0 0
        %1252 = vmatprep.subr.bf16.mxu0 0
        %1253 = vmatpush1.bf16.msra.mxu0 0
        %1254 = vmatprep.subr.bf16.mxu0 0
        %1255 = vmatpush1.bf16.msra.mxu0 0
        %1256 = vmatprep.subr.bf16.mxu0 0
        %1257 = vmatpush1.bf16.msra.mxu0 0
        %1258 = vmatprep.subr.bf16.mxu0 0
        %1259 = vmatpush1.bf16.msra.mxu0 0
        %1260 = vmatprep.subr.bf16.mxu0 0
        %1261 = vmatpush1.bf16.msra.mxu0 0
        %1262 = vmatprep.subr.bf16.mxu0 0
        %1263 = vmatpush1.bf16.msra.mxu0 0
        %1264 = vmatprep.subr.bf16.mxu0 0
        %1265 = vmatpush1.bf16.msra.mxu0 0
        %1266 = vmatprep.mubr.bf16.mxu0 0
        %1267 = vmatmul.mubr.bf16.gmra.mrb[0].mxu0 %v1185
        %v1268 = vpop.f32.mrb[0].mxu0
        %v1269 = vadd.f32 0.0, %v1268
        %v1270 = vpop.f32.mrb[0].mxu0
        %v1271 = vpop.f32.mrb[0].mxu0
        %v1272 = vpop.f32.mrb[0].mxu0
        %1273 = vdwg.mxu0
        %v1274 = vadd.f32 %v1014, %v1269
        %v1276 = vsel %vm926, %v1181, 0
        %1278 = vmatprep.subr.bf16.mxu0 0
        %1279 = vmatpush1.bf16.msra.mxu0 %v1276
        %1280 = vmatprep.subr.bf16.mxu0 0
        %1281 = vmatpush1.bf16.msra.mxu0 0
        %1282 = vmatprep.subr.bf16.mxu0 0
        %1283 = vmatpush1.bf16.msra.mxu0 0
        %1284 = vmatprep.subr.bf16.mxu0 0
        %1285 = vmatpush1.bf16.msra.mxu0 0
        %1286 = vmatprep.subr.bf16.mxu0 0
        %1287 = vmatpush1.bf16.msra.mxu0 0
        %1288 = vmatprep.subr.bf16.mxu0 0
        %1289 = vmatpush1.bf16.msra.mxu0 0
        %1290 = vmatprep.subr.bf16.mxu0 0
        %1291 = vmatpush1.bf16.msra.mxu0 0
        %1292 = vmatprep.subr.bf16.mxu0 0
        %1293 = vmatpush1.bf16.msra.mxu0 0
        %1294 = vmatprep.subr.bf16.mxu0 0
        %1295 = vmatpush1.bf16.msra.mxu0 0
        %1296 = vmatprep.subr.bf16.mxu0 0
        %1297 = vmatpush1.bf16.msra.mxu0 0
        %1298 = vmatprep.subr.bf16.mxu0 0
        %1299 = vmatpush1.bf16.msra.mxu0 0
        %1300 = vmatprep.subr.bf16.mxu0 0
        %1301 = vmatpush1.bf16.msra.mxu0 0
        %1302 = vmatprep.subr.bf16.mxu0 0
        %1303 = vmatpush1.bf16.msra.mxu0 0
        %1304 = vmatprep.subr.bf16.mxu0 0
        %1305 = vmatpush1.bf16.msra.mxu0 0
        %1306 = vmatprep.subr.bf16.mxu0 0
        %1307 = vmatpush1.bf16.msra.mxu0 0
        %1308 = vmatprep.subr.bf16.mxu0 0
        %1309 = vmatpush1.bf16.msra.mxu0 0
        %1310 = vmatprep.mubr.bf16.mxu0 0
        %1311 = vmatmul.mubr.bf16.gmra.mrb[0].mxu0 %v1185
        %v1312 = vpop.f32.mrb[0].mxu0
        %v1313 = vadd.f32 0.0, %v1312
        %v1314 = vpop.f32.mrb[0].mxu0
        %v1315 = vpop.f32.mrb[0].mxu0
        %v1316 = vpop.f32.mrb[0].mxu0
        %1317 = vdwg.mxu0
        %v1318 = vadd.f32 %v1058, %v1313
        %s1319 = scalar_lea.vmem %s4, 192
        %v1320 = vld [vmem:[%s1319] sm:$0xf]
        %v1321 = vld [vmem:[%s1319 + $0x4] sm:$0xf]
        %v1322 = vld [vmem:[%s1319 + $0x8] sm:$0xf]
        %v1323 = vld [vmem:[%s1319 + $0xc] sm:$0xf]
        %v1324 = vld [vmem:[%s1319 + $0x10] sm:$0xf]
        %v1325 = vld [vmem:[%s1319 + $0x14] sm:$0xf]
        %v1326 = vld [vmem:[%s1319 + $0x18] sm:$0xf]
        %v1327 = vld [vmem:[%s1319 + $0x1c] sm:$0xf]
        %v1328 = vld [vmem:[%s1319 + $0x20] sm:$0xf]
        %v1329 = vld [vmem:[%s1319 + $0x24] sm:$0xf]
        %v1330 = vld [vmem:[%s1319 + $0x28] sm:$0xf]
        %v1331 = vld [vmem:[%s1319 + $0x2c] sm:$0xf]
        %v1332 = vld [vmem:[%s1319 + $0x30] sm:$0xf]
        %v1333 = vld [vmem:[%s1319 + $0x34] sm:$0xf]
        %v1334 = vld [vmem:[%s1319 + $0x38] sm:$0xf]
        %v1335 = vld [vmem:[%s1319 + $0x3c] sm:$0xf]
        %v1352 = vunpack.c.l.b16 %v1320
        %v1353 = vunpack.c.l.b16 %v1321
        %v1354 = vunpack.c.l.b16 %v1322
        %v1355 = vunpack.c.l.b16 %v1323
        %v1356 = vunpack.c.l.b16 %v1324
        %v1357 = vunpack.c.l.b16 %v1325
        %v1358 = vunpack.c.l.b16 %v1326
        %v1359 = vunpack.c.l.b16 %v1327
        %v1360 = vunpack.c.l.b16 %v1328
        %v1361 = vunpack.c.l.b16 %v1329
        %v1362 = vunpack.c.l.b16 %v1330
        %v1363 = vunpack.c.l.b16 %v1331
        %v1364 = vunpack.c.l.b16 %v1332
        %v1365 = vunpack.c.l.b16 %v1333
        %v1366 = vunpack.c.l.b16 %v1334
        %v1367 = vunpack.c.l.b16 %v1335
        %v1368 = vpack.c.b16 %v1353, %v1352
        %v1369 = vpack.c.b16 %v1355, %v1354
        %v1370 = vpack.c.b16 %v1357, %v1356
        %v1371 = vpack.c.b16 %v1359, %v1358
        %v1372 = vpack.c.b16 %v1361, %v1360
        %v1373 = vpack.c.b16 %v1363, %v1362
        %v1374 = vpack.c.b16 %v1365, %v1364
        %v1375 = vpack.c.b16 %v1367, %v1366
        %1384 = vmatprep.subr.bf16.mxu0 0
        %1385 = vmatpush1.bf16.msra.mxu0 %v1368
        %1386 = vmatprep.subr.bf16.mxu0 0
        %1387 = vmatpush1.bf16.msra.mxu0 %v1369
        %1388 = vmatprep.subr.bf16.mxu0 0
        %1389 = vmatpush1.bf16.msra.mxu0 %v1370
        %1390 = vmatprep.subr.bf16.mxu0 0
        %1391 = vmatpush1.bf16.msra.mxu0 %v1371
        %1392 = vmatprep.subr.bf16.mxu0 0
        %1393 = vmatpush1.bf16.msra.mxu0 %v1372
        %1394 = vmatprep.subr.bf16.mxu0 0
        %1395 = vmatpush1.bf16.msra.mxu0 %v1373
        %1396 = vmatprep.subr.bf16.mxu0 0
        %1397 = vmatpush1.bf16.msra.mxu0 %v1374
        %1398 = vmatprep.subr.bf16.mxu0 0
        %1399 = vmatpush1.bf16.msra.mxu0 %v1375
        %1400 = vmatprep.subr.bf16.mxu0 0
        %1401 = vmatpush1.bf16.msra.mxu0 0
        %1402 = vmatprep.subr.bf16.mxu0 0
        %1403 = vmatpush1.bf16.msra.mxu0 0
        %1404 = vmatprep.subr.bf16.mxu0 0
        %1405 = vmatpush1.bf16.msra.mxu0 0
        %1406 = vmatprep.subr.bf16.mxu0 0
        %1407 = vmatpush1.bf16.msra.mxu0 0
        %1408 = vmatprep.subr.bf16.mxu0 0
        %1409 = vmatpush1.bf16.msra.mxu0 0
        %1410 = vmatprep.subr.bf16.mxu0 0
        %1411 = vmatpush1.bf16.msra.mxu0 0
        %1412 = vmatprep.subr.bf16.mxu0 0
        %1413 = vmatpush1.bf16.msra.mxu0 0
        %1414 = vmatprep.subr.bf16.mxu0 0
        %1415 = vmatpush1.bf16.msra.mxu0 0
        %1416 = vmatprep.mubr.bf16.mxu0 0
        %1417 = vmatmul.mubr.bf16.gmra.mrb[0].mxu0 %v671
        %v1418 = vpop.f32.mrb[0].mxu0
        %v1419 = vadd.f32 0.0, %v1418
        %v1420 = vpop.f32.mrb[0].mxu0
        %v1421 = vpop.f32.mrb[0].mxu0
        %v1422 = vadd.f32 0.0, %v1421
        %v1423 = vpop.f32.mrb[0].mxu0
        %1424 = vmatprep.mubr.bf16.mxu0 0
        %1425 = vmatmul.mubr.bf16.gmra.mrb[0].mxu0 %v669
        %v1426 = vpop.f32.mrb[0].mxu0
        %v1427 = vadd.f32 0.0, %v1426
        %v1428 = vpop.f32.mrb[0].mxu0
        %v1429 = vpop.f32.mrb[0].mxu0
        %v1430 = vpop.f32.mrb[0].mxu0
        %1431 = vdwg.mxu0
        %v1432 = vpack.c.bf16 %v1422, %v1419
        %v1433 = vpack.c.bf16 %v1427, %v1427
        %v1436 = vunpack.c.l.b16 %v1432
        %v1437 = vunpack.c.h.b16 %v1432
        %v1438 = vunpack.c.l.b16 %v1433
        %v1439 = vpack.c.b16 %v1436, %v1436
        %v1440 = vpack.c.b16 %v1437, %v1437
        %v1441 = vpack.c.b16 %v1438, %v1438
        %s1442 = scalar_lea.vmem %s1, 12
        %v1443 = vld [vmem:[%s1442] sm:$0xf]
        %v1445 = vsel %vm922, %v1443, 0
        %v1448 = vsel %vm926, %v1439, 0
        %1450 = vmatprep.subr.bf16.mxu0 0
        %1451 = vmatpush1.bf16.msra.mxu0 %v1448
        %1452 = vmatprep.subr.bf16.mxu0 0
        %1453 = vmatpush1.bf16.msra.mxu0 0
        %1454 = vmatprep.subr.bf16.mxu0 0
        %1455 = vmatpush1.bf16.msra.mxu0 0
        %1456 = vmatprep.subr.bf16.mxu0 0
        %1457 = vmatpush1.bf16.msra.mxu0 0
        %1458 = vmatprep.subr.bf16.mxu0 0
        %1459 = vmatpush1.bf16.msra.mxu0 0
        %1460 = vmatprep.subr.bf16.mxu0 0
        %1461 = vmatpush1.bf16.msra.mxu0 0
        %1462 = vmatprep.subr.bf16.mxu0 0
        %1463 = vmatpush1.bf16.msra.mxu0 0
        %1464 = vmatprep.subr.bf16.mxu0 0
        %1465 = vmatpush1.bf16.msra.mxu0 0
        %1466 = vmatprep.subr.bf16.mxu0 0
        %1467 = vmatpush1.bf16.msra.mxu0 0
        %1468 = vmatprep.subr.bf16.mxu0 0
        %1469 = vmatpush1.bf16.msra.mxu0 0
        %1470 = vmatprep.subr.bf16.mxu0 0
        %1471 = vmatpush1.bf16.msra.mxu0 0
        %1472 = vmatprep.subr.bf16.mxu0 0
        %1473 = vmatpush1.bf16.msra.mxu0 0
        %1474 = vmatprep.subr.bf16.mxu0 0
        %1475 = vmatpush1.bf16.msra.mxu0 0
        %1476 = vmatprep.subr.bf16.mxu0 0
        %1477 = vmatpush1.bf16.msra.mxu0 0
        %1478 = vmatprep.subr.bf16.mxu0 0
        %1479 = vmatpush1.bf16.msra.mxu0 0
        %1480 = vmatprep.subr.bf16.mxu0 0
        %1481 = vmatpush1.bf16.msra.mxu0 0
        %1482 = vmatprep.mubr.bf16.mxu0 0
        %1483 = vmatmul.mubr.bf16.gmra.mrb[0].mxu0 %v1445
        %v1484 = vpop.f32.mrb[0].mxu0
        %v1485 = vadd.f32 0.0, %v1484
        %v1486 = vpop.f32.mrb[0].mxu0
        %v1487 = vpop.f32.mrb[0].mxu0
        %v1488 = vpop.f32.mrb[0].mxu0
        %1489 = vdwg.mxu0
        %v1490 = vadd.f32 %v1230, %v1485
        %v1492 = vsel %vm926, %v1440, 0
        %1494 = vmatprep.subr.bf16.mxu0 0
        %1495 = vmatpush1.bf16.msra.mxu0 %v1492
        %1496 = vmatprep.subr.bf16.mxu0 0
        %1497 = vmatpush1.bf16.msra.mxu0 0
        %1498 = vmatprep.subr.bf16.mxu0 0
        %1499 = vmatpush1.bf16.msra.mxu0 0
        %1500 = vmatprep.subr.bf16.mxu0 0
        %1501 = vmatpush1.bf16.msra.mxu0 0
        %1502 = vmatprep.subr.bf16.mxu0 0
        %1503 = vmatpush1.bf16.msra.mxu0 0
        %1504 = vmatprep.subr.bf16.mxu0 0
        %1505 = vmatpush1.bf16.msra.mxu0 0
        %1506 = vmatprep.subr.bf16.mxu0 0
        %1507 = vmatpush1.bf16.msra.mxu0 0
        %1508 = vmatprep.subr.bf16.mxu0 0
        %1509 = vmatpush1.bf16.msra.mxu0 0
        %1510 = vmatprep.subr.bf16.mxu0 0
        %1511 = vmatpush1.bf16.msra.mxu0 0
        %1512 = vmatprep.subr.bf16.mxu0 0
        %1513 = vmatpush1.bf16.msra.mxu0 0
        %1514 = vmatprep.subr.bf16.mxu0 0
        %1515 = vmatpush1.bf16.msra.mxu0 0
        %1516 = vmatprep.subr.bf16.mxu0 0
        %1517 = vmatpush1.bf16.msra.mxu0 0
        %1518 = vmatprep.subr.bf16.mxu0 0
        %1519 = vmatpush1.bf16.msra.mxu0 0
        %1520 = vmatprep.subr.bf16.mxu0 0
        %1521 = vmatpush1.bf16.msra.mxu0 0
        %1522 = vmatprep.subr.bf16.mxu0 0
        %1523 = vmatpush1.bf16.msra.mxu0 0
        %1524 = vmatprep.subr.bf16.mxu0 0
        %1525 = vmatpush1.bf16.msra.mxu0 0
        %1526 = vmatprep.mubr.bf16.mxu0 0
        %1527 = vmatmul.mubr.bf16.gmra.mrb[0].mxu0 %v1445
        %v1528 = vpop.f32.mrb[0].mxu0
        %v1529 = vadd.f32 0.0, %v1528
        %v1530 = vpop.f32.mrb[0].mxu0
        %v1531 = vpop.f32.mrb[0].mxu0
        %v1532 = vpop.f32.mrb[0].mxu0
        %1533 = vdwg.mxu0
        %v1534 = vadd.f32 %v1274, %v1529
        %v1536 = vsel %vm926, %v1441, 0
        %1538 = vmatprep.subr.bf16.mxu0 0
        %1539 = vmatpush1.bf16.msra.mxu0 %v1536
        %1540 = vmatprep.subr.bf16.mxu0 0
        %1541 = vmatpush1.bf16.msra.mxu0 0
        %1542 = vmatprep.subr.bf16.mxu0 0
        %1543 = vmatpush1.bf16.msra.mxu0 0
        %1544 = vmatprep.subr.bf16.mxu0 0
        %1545 = vmatpush1.bf16.msra.mxu0 0
        %1546 = vmatprep.subr.bf16.mxu0 0
        %1547 = vmatpush1.bf16.msra.mxu0 0
        %1548 = vmatprep.subr.bf16.mxu0 0
        %1549 = vmatpush1.bf16.msra.mxu0 0
        %1550 = vmatprep.subr.bf16.mxu0 0
        %1551 = vmatpush1.bf16.msra.mxu0 0
        %1552 = vmatprep.subr.bf16.mxu0 0
        %1553 = vmatpush1.bf16.msra.mxu0 0
        %1554 = vmatprep.subr.bf16.mxu0 0
        %1555 = vmatpush1.bf16.msra.mxu0 0
        %1556 = vmatprep.subr.bf16.mxu0 0
        %1557 = vmatpush1.bf16.msra.mxu0 0
        %1558 = vmatprep.subr.bf16.mxu0 0
        %1559 = vmatpush1.bf16.msra.mxu0 0
        %1560 = vmatprep.subr.bf16.mxu0 0
        %1561 = vmatpush1.bf16.msra.mxu0 0
        %1562 = vmatprep.subr.bf16.mxu0 0
        %1563 = vmatpush1.bf16.msra.mxu0 0
        %1564 = vmatprep.subr.bf16.mxu0 0
        %1565 = vmatpush1.bf16.msra.mxu0 0
        %1566 = vmatprep.subr.bf16.mxu0 0
        %1567 = vmatpush1.bf16.msra.mxu0 0
        %1568 = vmatprep.subr.bf16.mxu0 0
        %1569 = vmatpush1.bf16.msra.mxu0 0
        %1570 = vmatprep.mubr.bf16.mxu0 0
        %1571 = vmatmul.mubr.bf16.gmra.mrb[0].mxu0 %v1445
        %v1572 = vpop.f32.mrb[0].mxu0
        %v1573 = vadd.f32 0.0, %v1572
        %v1574 = vpop.f32.mrb[0].mxu0
        %v1575 = vpop.f32.mrb[0].mxu0
        %v1576 = vpop.f32.mrb[0].mxu0
        %1577 = vdwg.mxu0
        %v1578 = vadd.f32 %v1318, %v1573
        %s1579 = scalar_lea.vmem %s4, 256
        %v1580 = vld [vmem:[%s1579] sm:$0xf]
        %v1581 = vld [vmem:[%s1579 + $0x4] sm:$0xf]
        %v1582 = vld [vmem:[%s1579 + $0x8] sm:$0xf]
        %v1583 = vld [vmem:[%s1579 + $0xc] sm:$0xf]
        %v1584 = vld [vmem:[%s1579 + $0x10] sm:$0xf]
        %v1585 = vld [vmem:[%s1579 + $0x14] sm:$0xf]
        %v1586 = vld [vmem:[%s1579 + $0x18] sm:$0xf]
        %v1587 = vld [vmem:[%s1579 + $0x1c] sm:$0xf]
        %v1588 = vld [vmem:[%s1579 + $0x20] sm:$0xf]
        %v1589 = vld [vmem:[%s1579 + $0x24] sm:$0xf]
        %v1590 = vld [vmem:[%s1579 + $0x28] sm:$0xf]
        %v1591 = vld [vmem:[%s1579 + $0x2c] sm:$0xf]
        %v1592 = vld [vmem:[%s1579 + $0x30] sm:$0xf]
        %v1593 = vld [vmem:[%s1579 + $0x34] sm:$0xf]
        %v1594 = vld [vmem:[%s1579 + $0x38] sm:$0xf]
        %v1595 = vld [vmem:[%s1579 + $0x3c] sm:$0xf]
        %v1612 = vunpack.c.l.b16 %v1580
        %v1613 = vunpack.c.l.b16 %v1581
        %v1614 = vunpack.c.l.b16 %v1582
        %v1615 = vunpack.c.l.b16 %v1583
        %v1616 = vunpack.c.l.b16 %v1584
        %v1617 = vunpack.c.l.b16 %v1585
        %v1618 = vunpack.c.l.b16 %v1586
        %v1619 = vunpack.c.l.b16 %v1587
        %v1620 = vunpack.c.l.b16 %v1588
        %v1621 = vunpack.c.l.b16 %v1589
        %v1622 = vunpack.c.l.b16 %v1590
        %v1623 = vunpack.c.l.b16 %v1591
        %v1624 = vunpack.c.l.b16 %v1592
        %v1625 = vunpack.c.l.b16 %v1593
        %v1626 = vunpack.c.l.b16 %v1594
        %v1627 = vunpack.c.l.b16 %v1595
        %v1628 = vpack.c.b16 %v1613, %v1612
        %v1629 = vpack.c.b16 %v1615, %v1614
        %v1630 = vpack.c.b16 %v1617, %v1616
        %v1631 = vpack.c.b16 %v1619, %v1618
        %v1632 = vpack.c.b16 %v1621, %v1620
        %v1633 = vpack.c.b16 %v1623, %v1622
        %v1634 = vpack.c.b16 %v1625, %v1624
        %v1635 = vpack.c.b16 %v1627, %v1626
        %1644 = vmatprep.subr.bf16.mxu0 0
        %1645 = vmatpush1.bf16.msra.mxu0 %v1628
        %1646 = vmatprep.subr.bf16.mxu0 0
        %1647 = vmatpush1.bf16.msra.mxu0 %v1629
        %1648 = vmatprep.subr.bf16.mxu0 0
        %1649 = vmatpush1.bf16.msra.mxu0 %v1630
        %1650 = vmatprep.subr.bf16.mxu0 0
        %1651 = vmatpush1.bf16.msra.mxu0 %v1631
        %1652 = vmatprep.subr.bf16.mxu0 0
        %1653 = vmatpush1.bf16.msra.mxu0 %v1632
        %1654 = vmatprep.subr.bf16.mxu0 0
        %1655 = vmatpush1.bf16.msra.mxu0 %v1633
        %1656 = vmatprep.subr.bf16.mxu0 0
        %1657 = vmatpush1.bf16.msra.mxu0 %v1634
        %1658 = vmatprep.subr.bf16.mxu0 0
        %1659 = vmatpush1.bf16.msra.mxu0 %v1635
        %1660 = vmatprep.subr.bf16.mxu0 0
        %1661 = vmatpush1.bf16.msra.mxu0 0
        %1662 = vmatprep.subr.bf16.mxu0 0
        %1663 = vmatpush1.bf16.msra.mxu0 0
        %1664 = vmatprep.subr.bf16.mxu0 0
        %1665 = vmatpush1.bf16.msra.mxu0 0
        %1666 = vmatprep.subr.bf16.mxu0 0
        %1667 = vmatpush1.bf16.msra.mxu0 0
        %1668 = vmatprep.subr.bf16.mxu0 0
        %1669 = vmatpush1.bf16.msra.mxu0 0
        %1670 = vmatprep.subr.bf16.mxu0 0
        %1671 = vmatpush1.bf16.msra.mxu0 0
        %1672 = vmatprep.subr.bf16.mxu0 0
        %1673 = vmatpush1.bf16.msra.mxu0 0
        %1674 = vmatprep.subr.bf16.mxu0 0
        %1675 = vmatpush1.bf16.msra.mxu0 0
        %1676 = vmatprep.mubr.bf16.mxu0 0
        %1677 = vmatmul.mubr.bf16.gmra.mrb[0].mxu0 %v671
        %v1678 = vpop.f32.mrb[0].mxu0
        %v1679 = vadd.f32 0.0, %v1678
        %v1680 = vpop.f32.mrb[0].mxu0
        %v1681 = vpop.f32.mrb[0].mxu0
        %v1682 = vadd.f32 0.0, %v1681
        %v1683 = vpop.f32.mrb[0].mxu0
        %1684 = vmatprep.mubr.bf16.mxu0 0
        %1685 = vmatmul.mubr.bf16.gmra.mrb[0].mxu0 %v669
        %v1686 = vpop.f32.mrb[0].mxu0
        %v1687 = vadd.f32 0.0, %v1686
        %v1688 = vpop.f32.mrb[0].mxu0
        %v1689 = vpop.f32.mrb[0].mxu0
        %v1690 = vpop.f32.mrb[0].mxu0
        %1691 = vdwg.mxu0
        %v1692 = vpack.c.bf16 %v1682, %v1679
        %v1693 = vpack.c.bf16 %v1687, %v1687
        %v1696 = vunpack.c.l.b16 %v1692
        %v1697 = vunpack.c.h.b16 %v1692
        %v1698 = vunpack.c.l.b16 %v1693
        %v1699 = vpack.c.b16 %v1696, %v1696
        %v1700 = vpack.c.b16 %v1697, %v1697
        %v1701 = vpack.c.b16 %v1698, %v1698
        %s1702 = scalar_lea.vmem %s1, 16
        %v1703 = vld [vmem:[%s1702] sm:$0xf]
        %v1705 = vsel %vm922, %v1703, 0
        %v1708 = vsel %vm926, %v1699, 0
        %1710 = vmatprep.subr.bf16.mxu0 0
        %1711 = vmatpush1.bf16.msra.mxu0 %v1708
        %1712 = vmatprep.subr.bf16.mxu0 0
        %1713 = vmatpush1.bf16.msra.mxu0 0
        %1714 = vmatprep.subr.bf16.mxu0 0
        %1715 = vmatpush1.bf16.msra.mxu0 0
        %1716 = vmatprep.subr.bf16.mxu0 0
        %1717 = vmatpush1.bf16.msra.mxu0 0
        %1718 = vmatprep.subr.bf16.mxu0 0
        %1719 = vmatpush1.bf16.msra.mxu0 0
        %1720 = vmatprep.subr.bf16.mxu0 0
        %1721 = vmatpush1.bf16.msra.mxu0 0
        %1722 = vmatprep.subr.bf16.mxu0 0
        %1723 = vmatpush1.bf16.msra.mxu0 0
        %1724 = vmatprep.subr.bf16.mxu0 0
        %1725 = vmatpush1.bf16.msra.mxu0 0
        %1726 = vmatprep.subr.bf16.mxu0 0
        %1727 = vmatpush1.bf16.msra.mxu0 0
        %1728 = vmatprep.subr.bf16.mxu0 0
        %1729 = vmatpush1.bf16.msra.mxu0 0
        %1730 = vmatprep.subr.bf16.mxu0 0
        %1731 = vmatpush1.bf16.msra.mxu0 0
        %1732 = vmatprep.subr.bf16.mxu0 0
        %1733 = vmatpush1.bf16.msra.mxu0 0
        %1734 = vmatprep.subr.bf16.mxu0 0
        %1735 = vmatpush1.bf16.msra.mxu0 0
        %1736 = vmatprep.subr.bf16.mxu0 0
        %1737 = vmatpush1.bf16.msra.mxu0 0
        %1738 = vmatprep.subr.bf16.mxu0 0
        %1739 = vmatpush1.bf16.msra.mxu0 0
        %1740 = vmatprep.subr.bf16.mxu0 0
        %1741 = vmatpush1.bf16.msra.mxu0 0
        %1742 = vmatprep.mubr.bf16.mxu0 0
        %1743 = vmatmul.mubr.bf16.gmra.mrb[0].mxu0 %v1705
        %v1744 = vpop.f32.mrb[0].mxu0
        %v1745 = vadd.f32 0.0, %v1744
        %v1746 = vpop.f32.mrb[0].mxu0
        %v1747 = vpop.f32.mrb[0].mxu0
        %v1748 = vpop.f32.mrb[0].mxu0
        %1749 = vdwg.mxu0
        %v1750 = vadd.f32 %v1490, %v1745
        %v1752 = vsel %vm926, %v1700, 0
        %1754 = vmatprep.subr.bf16.mxu0 0
        %1755 = vmatpush1.bf16.msra.mxu0 %v1752
        %1756 = vmatprep.subr.bf16.mxu0 0
        %1757 = vmatpush1.bf16.msra.mxu0 0
        %1758 = vmatprep.subr.bf16.mxu0 0
        %1759 = vmatpush1.bf16.msra.mxu0 0
        %1760 = vmatprep.subr.bf16.mxu0 0
        %1761 = vmatpush1.bf16.msra.mxu0 0
        %1762 = vmatprep.subr.bf16.mxu0 0
        %1763 = vmatpush1.bf16.msra.mxu0 0
        %1764 = vmatprep.subr.bf16.mxu0 0
        %1765 = vmatpush1.bf16.msra.mxu0 0
        %1766 = vmatprep.subr.bf16.mxu0 0
        %1767 = vmatpush1.bf16.msra.mxu0 0
        %1768 = vmatprep.subr.bf16.mxu0 0
        %1769 = vmatpush1.bf16.msra.mxu0 0
        %1770 = vmatprep.subr.bf16.mxu0 0
        %1771 = vmatpush1.bf16.msra.mxu0 0
        %1772 = vmatprep.subr.bf16.mxu0 0
        %1773 = vmatpush1.bf16.msra.mxu0 0
        %1774 = vmatprep.subr.bf16.mxu0 0
        %1775 = vmatpush1.bf16.msra.mxu0 0
        %1776 = vmatprep.subr.bf16.mxu0 0
        %1777 = vmatpush1.bf16.msra.mxu0 0
        %1778 = vmatprep.subr.bf16.mxu0 0
        %1779 = vmatpush1.bf16.msra.mxu0 0
        %1780 = vmatprep.subr.bf16.mxu0 0
        %1781 = vmatpush1.bf16.msra.mxu0 0
        %1782 = vmatprep.subr.bf16.mxu0 0
        %1783 = vmatpush1.bf16.msra.mxu0 0
        %1784 = vmatprep.subr.bf16.mxu0 0
        %1785 = vmatpush1.bf16.msra.mxu0 0
        %1786 = vmatprep.mubr.bf16.mxu0 0
        %1787 = vmatmul.mubr.bf16.gmra.mrb[0].mxu0 %v1705
        %v1788 = vpop.f32.mrb[0].mxu0
        %v1789 = vadd.f32 0.0, %v1788
        %v1790 = vpop.f32.mrb[0].mxu0
        %v1791 = vpop.f32.mrb[0].mxu0
        %v1792 = vpop.f32.mrb[0].mxu0
        %1793 = vdwg.mxu0
        %v1794 = vadd.f32 %v1534, %v1789
        %v1796 = vsel %vm926, %v1701, 0
        %1798 = vmatprep.subr.bf16.mxu0 0
        %1799 = vmatpush1.bf16.msra.mxu0 %v1796
        %1800 = vmatprep.subr.bf16.mxu0 0
        %1801 = vmatpush1.bf16.msra.mxu0 0
        %1802 = vmatprep.subr.bf16.mxu0 0
        %1803 = vmatpush1.bf16.msra.mxu0 0
        %1804 = vmatprep.subr.bf16.mxu0 0
        %1805 = vmatpush1.bf16.msra.mxu0 0
        %1806 = vmatprep.subr.bf16.mxu0 0
        %1807 = vmatpush1.bf16.msra.mxu0 0
        %1808 = vmatprep.subr.bf16.mxu0 0
        %1809 = vmatpush1.bf16.msra.mxu0 0
        %1810 = vmatprep.subr.bf16.mxu0 0
        %1811 = vmatpush1.bf16.msra.mxu0 0
        %1812 = vmatprep.subr.bf16.mxu0 0
        %1813 = vmatpush1.bf16.msra.mxu0 0
        %1814 = vmatprep.subr.bf16.mxu0 0
        %1815 = vmatpush1.bf16.msra.mxu0 0
        %1816 = vmatprep.subr.bf16.mxu0 0
        %1817 = vmatpush1.bf16.msra.mxu0 0
        %1818 = vmatprep.subr.bf16.mxu0 0
        %1819 = vmatpush1.bf16.msra.mxu0 0
        %1820 = vmatprep.subr.bf16.mxu0 0
        %1821 = vmatpush1.bf16.msra.mxu0 0
        %1822 = vmatprep.subr.bf16.mxu0 0
        %1823 = vmatpush1.bf16.msra.mxu0 0
        %1824 = vmatprep.subr.bf16.mxu0 0
        %1825 = vmatpush1.bf16.msra.mxu0 0
        %1826 = vmatprep.subr.bf16.mxu0 0
        %1827 = vmatpush1.bf16.msra.mxu0 0
        %1828 = vmatprep.subr.bf16.mxu0 0
        %1829 = vmatpush1.bf16.msra.mxu0 0
        %1830 = vmatprep.mubr.bf16.mxu0 0
        %1831 = vmatmul.mubr.bf16.gmra.mrb[0].mxu0 %v1705
        %v1832 = vpop.f32.mrb[0].mxu0
        %v1833 = vadd.f32 0.0, %v1832
        %v1834 = vpop.f32.mrb[0].mxu0
        %v1835 = vpop.f32.mrb[0].mxu0
        %v1836 = vpop.f32.mrb[0].mxu0
        %1837 = vdwg.mxu0
        %v1838 = vadd.f32 %v1578, %v1833
        %s1839 = scalar_lea.vmem %s4, 320
        %v1840 = vld [vmem:[%s1839] sm:$0xf]
        %v1841 = vld [vmem:[%s1839 + $0x4] sm:$0xf]
        %v1842 = vld [vmem:[%s1839 + $0x8] sm:$0xf]
        %v1843 = vld [vmem:[%s1839 + $0xc] sm:$0xf]
        %v1844 = vld [vmem:[%s1839 + $0x10] sm:$0xf]
        %v1845 = vld [vmem:[%s1839 + $0x14] sm:$0xf]
        %v1846 = vld [vmem:[%s1839 + $0x18] sm:$0xf]
        %v1847 = vld [vmem:[%s1839 + $0x1c] sm:$0xf]
        %v1848 = vld [vmem:[%s1839 + $0x20] sm:$0xf]
        %v1849 = vld [vmem:[%s1839 + $0x24] sm:$0xf]
        %v1850 = vld [vmem:[%s1839 + $0x28] sm:$0xf]
        %v1851 = vld [vmem:[%s1839 + $0x2c] sm:$0xf]
        %v1852 = vld [vmem:[%s1839 + $0x30] sm:$0xf]
        %v1853 = vld [vmem:[%s1839 + $0x34] sm:$0xf]
        %v1854 = vld [vmem:[%s1839 + $0x38] sm:$0xf]
        %v1855 = vld [vmem:[%s1839 + $0x3c] sm:$0xf]
        %v1872 = vunpack.c.l.b16 %v1840
        %v1873 = vunpack.c.l.b16 %v1841
        %v1874 = vunpack.c.l.b16 %v1842
        %v1875 = vunpack.c.l.b16 %v1843
        %v1876 = vunpack.c.l.b16 %v1844
        %v1877 = vunpack.c.l.b16 %v1845
        %v1878 = vunpack.c.l.b16 %v1846
        %v1879 = vunpack.c.l.b16 %v1847
        %v1880 = vunpack.c.l.b16 %v1848
        %v1881 = vunpack.c.l.b16 %v1849
        %v1882 = vunpack.c.l.b16 %v1850
        %v1883 = vunpack.c.l.b16 %v1851
        %v1884 = vunpack.c.l.b16 %v1852
        %v1885 = vunpack.c.l.b16 %v1853
        %v1886 = vunpack.c.l.b16 %v1854
        %v1887 = vunpack.c.l.b16 %v1855
        %v1888 = vpack.c.b16 %v1873, %v1872
        %v1889 = vpack.c.b16 %v1875, %v1874
        %v1890 = vpack.c.b16 %v1877, %v1876
        %v1891 = vpack.c.b16 %v1879, %v1878
        %v1892 = vpack.c.b16 %v1881, %v1880
        %v1893 = vpack.c.b16 %v1883, %v1882
        %v1894 = vpack.c.b16 %v1885, %v1884
        %v1895 = vpack.c.b16 %v1887, %v1886
        %1904 = vmatprep.subr.bf16.mxu0 0
        %1905 = vmatpush1.bf16.msra.mxu0 %v1888
        %1906 = vmatprep.subr.bf16.mxu0 0
        %1907 = vmatpush1.bf16.msra.mxu0 %v1889
        %1908 = vmatprep.subr.bf16.mxu0 0
        %1909 = vmatpush1.bf16.msra.mxu0 %v1890
        %1910 = vmatprep.subr.bf16.mxu0 0
        %1911 = vmatpush1.bf16.msra.mxu0 %v1891
        %1912 = vmatprep.subr.bf16.mxu0 0
        %1913 = vmatpush1.bf16.msra.mxu0 %v1892
        %1914 = vmatprep.subr.bf16.mxu0 0
        %1915 = vmatpush1.bf16.msra.mxu0 %v1893
        %1916 = vmatprep.subr.bf16.mxu0 0
        %1917 = vmatpush1.bf16.msra.mxu0 %v1894
        %1918 = vmatprep.subr.bf16.mxu0 0
        %1919 = vmatpush1.bf16.msra.mxu0 %v1895
        %1920 = vmatprep.subr.bf16.mxu0 0
        %1921 = vmatpush1.bf16.msra.mxu0 0
        %1922 = vmatprep.subr.bf16.mxu0 0
        %1923 = vmatpush1.bf16.msra.mxu0 0
        %1924 = vmatprep.subr.bf16.mxu0 0
        %1925 = vmatpush1.bf16.msra.mxu0 0
        %1926 = vmatprep.subr.bf16.mxu0 0
        %1927 = vmatpush1.bf16.msra.mxu0 0
        %1928 = vmatprep.subr.bf16.mxu0 0
        %1929 = vmatpush1.bf16.msra.mxu0 0
        %1930 = vmatprep.subr.bf16.mxu0 0
        %1931 = vmatpush1.bf16.msra.mxu0 0
        %1932 = vmatprep.subr.bf16.mxu0 0
        %1933 = vmatpush1.bf16.msra.mxu0 0
        %1934 = vmatprep.subr.bf16.mxu0 0
        %1935 = vmatpush1.bf16.msra.mxu0 0
        %1936 = vmatprep.mubr.bf16.mxu0 0
        %1937 = vmatmul.mubr.bf16.gmra.mrb[0].mxu0 %v671
        %v1938 = vpop.f32.mrb[0].mxu0
        %v1939 = vadd.f32 0.0, %v1938
        %v1940 = vpop.f32.mrb[0].mxu0
        %v1941 = vpop.f32.mrb[0].mxu0
        %v1942 = vadd.f32 0.0, %v1941
        %v1943 = vpop.f32.mrb[0].mxu0
        %1944 = vmatprep.mubr.bf16.mxu0 0
        %1945 = vmatmul.mubr.bf16.gmra.mrb[0].mxu0 %v669
        %v1946 = vpop.f32.mrb[0].mxu0
        %v1947 = vadd.f32 0.0, %v1946
        %v1948 = vpop.f32.mrb[0].mxu0
        %v1949 = vpop.f32.mrb[0].mxu0
        %v1950 = vpop.f32.mrb[0].mxu0
        %1951 = vdwg.mxu0
        %v1952 = vpack.c.bf16 %v1942, %v1939
        %v1953 = vpack.c.bf16 %v1947, %v1947
        %v1956 = vunpack.c.l.b16 %v1952
        %v1957 = vunpack.c.h.b16 %v1952
        %v1958 = vunpack.c.l.b16 %v1953
        %v1959 = vpack.c.b16 %v1956, %v1956
        %v1960 = vpack.c.b16 %v1957, %v1957
        %v1961 = vpack.c.b16 %v1958, %v1958
        %s1962 = scalar_lea.vmem %s1, 20
        %v1963 = vld [vmem:[%s1962] sm:$0xf]
        %v1965 = vsel %vm922, %v1963, 0
        %v1968 = vsel %vm926, %v1959, 0
        %1970 = vmatprep.subr.bf16.mxu0 0
        %1971 = vmatpush1.bf16.msra.mxu0 %v1968
        %1972 = vmatprep.subr.bf16.mxu0 0
        %1973 = vmatpush1.bf16.msra.mxu0 0
        %1974 = vmatprep.subr.bf16.mxu0 0
        %1975 = vmatpush1.bf16.msra.mxu0 0
        %1976 = vmatprep.subr.bf16.mxu0 0
        %1977 = vmatpush1.bf16.msra.mxu0 0
        %1978 = vmatprep.subr.bf16.mxu0 0
        %1979 = vmatpush1.bf16.msra.mxu0 0
        %1980 = vmatprep.subr.bf16.mxu0 0
        %1981 = vmatpush1.bf16.msra.mxu0 0
        %1982 = vmatprep.subr.bf16.mxu0 0
        %1983 = vmatpush1.bf16.msra.mxu0 0
        %1984 = vmatprep.subr.bf16.mxu0 0
        %1985 = vmatpush1.bf16.msra.mxu0 0
        %1986 = vmatprep.subr.bf16.mxu0 0
        %1987 = vmatpush1.bf16.msra.mxu0 0
        %1988 = vmatprep.subr.bf16.mxu0 0
        %1989 = vmatpush1.bf16.msra.mxu0 0
        %1990 = vmatprep.subr.bf16.mxu0 0
        %1991 = vmatpush1.bf16.msra.mxu0 0
        %1992 = vmatprep.subr.bf16.mxu0 0
        %1993 = vmatpush1.bf16.msra.mxu0 0
        %1994 = vmatprep.subr.bf16.mxu0 0
        %1995 = vmatpush1.bf16.msra.mxu0 0
        %1996 = vmatprep.subr.bf16.mxu0 0
        %1997 = vmatpush1.bf16.msra.mxu0 0
        %1998 = vmatprep.subr.bf16.mxu0 0
        %1999 = vmatpush1.bf16.msra.mxu0 0
        %2000 = vmatprep.subr.bf16.mxu0 0
        %2001 = vmatpush1.bf16.msra.mxu0 0
        %2002 = vmatprep.mubr.bf16.mxu0 0
        %2003 = vmatmul.mubr.bf16.gmra.mrb[0].mxu0 %v1965
        %v2004 = vpop.f32.mrb[0].mxu0
        %v2005 = vadd.f32 0.0, %v2004
        %v2006 = vpop.f32.mrb[0].mxu0
        %v2007 = vpop.f32.mrb[0].mxu0
        %v2008 = vpop.f32.mrb[0].mxu0
        %2009 = vdwg.mxu0
        %v2010 = vadd.f32 %v1750, %v2005
        %v2012 = vsel %vm926, %v1960, 0
        %2014 = vmatprep.subr.bf16.mxu0 0
        %2015 = vmatpush1.bf16.msra.mxu0 %v2012
        %2016 = vmatprep.subr.bf16.mxu0 0
        %2017 = vmatpush1.bf16.msra.mxu0 0
        %2018 = vmatprep.subr.bf16.mxu0 0
        %2019 = vmatpush1.bf16.msra.mxu0 0
        %2020 = vmatprep.subr.bf16.mxu0 0
        %2021 = vmatpush1.bf16.msra.mxu0 0
        %2022 = vmatprep.subr.bf16.mxu0 0
        %2023 = vmatpush1.bf16.msra.mxu0 0
        %2024 = vmatprep.subr.bf16.mxu0 0
        %2025 = vmatpush1.bf16.msra.mxu0 0
        %2026 = vmatprep.subr.bf16.mxu0 0
        %2027 = vmatpush1.bf16.msra.mxu0 0
        %2028 = vmatprep.subr.bf16.mxu0 0
        %2029 = vmatpush1.bf16.msra.mxu0 0
        %2030 = vmatprep.subr.bf16.mxu0 0
        %2031 = vmatpush1.bf16.msra.mxu0 0
        %2032 = vmatprep.subr.bf16.mxu0 0
        %2033 = vmatpush1.bf16.msra.mxu0 0
        %2034 = vmatprep.subr.bf16.mxu0 0
        %2035 = vmatpush1.bf16.msra.mxu0 0
        %2036 = vmatprep.subr.bf16.mxu0 0
        %2037 = vmatpush1.bf16.msra.mxu0 0
        %2038 = vmatprep.subr.bf16.mxu0 0
        %2039 = vmatpush1.bf16.msra.mxu0 0
        %2040 = vmatprep.subr.bf16.mxu0 0
        %2041 = vmatpush1.bf16.msra.mxu0 0
        %2042 = vmatprep.subr.bf16.mxu0 0
        %2043 = vmatpush1.bf16.msra.mxu0 0
        %2044 = vmatprep.subr.bf16.mxu0 0
        %2045 = vmatpush1.bf16.msra.mxu0 0
        %2046 = vmatprep.mubr.bf16.mxu0 0
        %2047 = vmatmul.mubr.bf16.gmra.mrb[0].mxu0 %v1965
        %v2048 = vpop.f32.mrb[0].mxu0
        %v2049 = vadd.f32 0.0, %v2048
        %v2050 = vpop.f32.mrb[0].mxu0
        %v2051 = vpop.f32.mrb[0].mxu0
        %v2052 = vpop.f32.mrb[0].mxu0
        %2053 = vdwg.mxu0
        %v2054 = vadd.f32 %v1794, %v2049
        %v2056 = vsel %vm926, %v1961, 0
        %2058 = vmatprep.subr.bf16.mxu0 0
        %2059 = vmatpush1.bf16.msra.mxu0 %v2056
        %2060 = vmatprep.subr.bf16.mxu0 0
        %2061 = vmatpush1.bf16.msra.mxu0 0
        %2062 = vmatprep.subr.bf16.mxu0 0
        %2063 = vmatpush1.bf16.msra.mxu0 0
        %2064 = vmatprep.subr.bf16.mxu0 0
        %2065 = vmatpush1.bf16.msra.mxu0 0
        %2066 = vmatprep.subr.bf16.mxu0 0
        %2067 = vmatpush1.bf16.msra.mxu0 0
        %2068 = vmatprep.subr.bf16.mxu0 0
        %2069 = vmatpush1.bf16.msra.mxu0 0
        %2070 = vmatprep.subr.bf16.mxu0 0
        %2071 = vmatpush1.bf16.msra.mxu0 0
        %2072 = vmatprep.subr.bf16.mxu0 0
        %2073 = vmatpush1.bf16.msra.mxu0 0
        %2074 = vmatprep.subr.bf16.mxu0 0
        %2075 = vmatpush1.bf16.msra.mxu0 0
        %2076 = vmatprep.subr.bf16.mxu0 0
        %2077 = vmatpush1.bf16.msra.mxu0 0
        %2078 = vmatprep.subr.bf16.mxu0 0
        %2079 = vmatpush1.bf16.msra.mxu0 0
        %2080 = vmatprep.subr.bf16.mxu0 0
        %2081 = vmatpush1.bf16.msra.mxu0 0
        %2082 = vmatprep.subr.bf16.mxu0 0
        %2083 = vmatpush1.bf16.msra.mxu0 0
        %2084 = vmatprep.subr.bf16.mxu0 0
        %2085 = vmatpush1.bf16.msra.mxu0 0
        %2086 = vmatprep.subr.bf16.mxu0 0
        %2087 = vmatpush1.bf16.msra.mxu0 0
        %2088 = vmatprep.subr.bf16.mxu0 0
        %2089 = vmatpush1.bf16.msra.mxu0 0
        %2090 = vmatprep.mubr.bf16.mxu0 0
        %2091 = vmatmul.mubr.bf16.gmra.mrb[0].mxu0 %v1965
        %v2092 = vpop.f32.mrb[0].mxu0
        %v2093 = vadd.f32 0.0, %v2092
        %v2094 = vpop.f32.mrb[0].mxu0
        %v2095 = vpop.f32.mrb[0].mxu0
        %v2096 = vpop.f32.mrb[0].mxu0
        %2097 = vdwg.mxu0
        %v2098 = vadd.f32 %v1838, %v2093
        %s2099 = scalar_lea.vmem %s4, 384
        %v2100 = vld [vmem:[%s2099] sm:$0xf]
        %v2101 = vld [vmem:[%s2099 + $0x4] sm:$0xf]
        %v2102 = vld [vmem:[%s2099 + $0x8] sm:$0xf]
        %v2103 = vld [vmem:[%s2099 + $0xc] sm:$0xf]
        %v2104 = vld [vmem:[%s2099 + $0x10] sm:$0xf]
        %v2105 = vld [vmem:[%s2099 + $0x14] sm:$0xf]
        %v2106 = vld [vmem:[%s2099 + $0x18] sm:$0xf]
        %v2107 = vld [vmem:[%s2099 + $0x1c] sm:$0xf]
        %v2108 = vld [vmem:[%s2099 + $0x20] sm:$0xf]
        %v2109 = vld [vmem:[%s2099 + $0x24] sm:$0xf]
        %v2110 = vld [vmem:[%s2099 + $0x28] sm:$0xf]
        %v2111 = vld [vmem:[%s2099 + $0x2c] sm:$0xf]
        %v2112 = vld [vmem:[%s2099 + $0x30] sm:$0xf]
        %v2113 = vld [vmem:[%s2099 + $0x34] sm:$0xf]
        %v2114 = vld [vmem:[%s2099 + $0x38] sm:$0xf]
        %v2115 = vld [vmem:[%s2099 + $0x3c] sm:$0xf]
        %v2132 = vunpack.c.l.b16 %v2100
        %v2133 = vunpack.c.l.b16 %v2101
        %v2134 = vunpack.c.l.b16 %v2102
        %v2135 = vunpack.c.l.b16 %v2103
        %v2136 = vunpack.c.l.b16 %v2104
        %v2137 = vunpack.c.l.b16 %v2105
        %v2138 = vunpack.c.l.b16 %v2106
        %v2139 = vunpack.c.l.b16 %v2107
        %v2140 = vunpack.c.l.b16 %v2108
        %v2141 = vunpack.c.l.b16 %v2109
        %v2142 = vunpack.c.l.b16 %v2110
        %v2143 = vunpack.c.l.b16 %v2111
        %v2144 = vunpack.c.l.b16 %v2112
        %v2145 = vunpack.c.l.b16 %v2113
        %v2146 = vunpack.c.l.b16 %v2114
        %v2147 = vunpack.c.l.b16 %v2115
        %v2148 = vpack.c.b16 %v2133, %v2132
        %v2149 = vpack.c.b16 %v2135, %v2134
        %v2150 = vpack.c.b16 %v2137, %v2136
        %v2151 = vpack.c.b16 %v2139, %v2138
        %v2152 = vpack.c.b16 %v2141, %v2140
        %v2153 = vpack.c.b16 %v2143, %v2142
        %v2154 = vpack.c.b16 %v2145, %v2144
        %v2155 = vpack.c.b16 %v2147, %v2146
        %2164 = vmatprep.subr.bf16.mxu0 0
        %2165 = vmatpush1.bf16.msra.mxu0 %v2148
        %2166 = vmatprep.subr.bf16.mxu0 0
        %2167 = vmatpush1.bf16.msra.mxu0 %v2149
        %2168 = vmatprep.subr.bf16.mxu0 0
        %2169 = vmatpush1.bf16.msra.mxu0 %v2150
        %2170 = vmatprep.subr.bf16.mxu0 0
        %2171 = vmatpush1.bf16.msra.mxu0 %v2151
        %2172 = vmatprep.subr.bf16.mxu0 0
        %2173 = vmatpush1.bf16.msra.mxu0 %v2152
        %2174 = vmatprep.subr.bf16.mxu0 0
        %2175 = vmatpush1.bf16.msra.mxu0 %v2153
        %2176 = vmatprep.subr.bf16.mxu0 0
        %2177 = vmatpush1.bf16.msra.mxu0 %v2154
        %2178 = vmatprep.subr.bf16.mxu0 0
        %2179 = vmatpush1.bf16.msra.mxu0 %v2155
        %2180 = vmatprep.subr.bf16.mxu0 0
        %2181 = vmatpush1.bf16.msra.mxu0 0
        %2182 = vmatprep.subr.bf16.mxu0 0
        %2183 = vmatpush1.bf16.msra.mxu0 0
        %2184 = vmatprep.subr.bf16.mxu0 0
        %2185 = vmatpush1.bf16.msra.mxu0 0
        %2186 = vmatprep.subr.bf16.mxu0 0
        %2187 = vmatpush1.bf16.msra.mxu0 0
        %2188 = vmatprep.subr.bf16.mxu0 0
        %2189 = vmatpush1.bf16.msra.mxu0 0
        %2190 = vmatprep.subr.bf16.mxu0 0
        %2191 = vmatpush1.bf16.msra.mxu0 0
        %2192 = vmatprep.subr.bf16.mxu0 0
        %2193 = vmatpush1.bf16.msra.mxu0 0
        %2194 = vmatprep.subr.bf16.mxu0 0
        %2195 = vmatpush1.bf16.msra.mxu0 0
        %2196 = vmatprep.mubr.bf16.mxu0 0
        %2197 = vmatmul.mubr.bf16.gmra.mrb[0].mxu0 %v671
        %v2198 = vpop.f32.mrb[0].mxu0
        %v2199 = vadd.f32 0.0, %v2198
        %v2200 = vpop.f32.mrb[0].mxu0
        %v2201 = vpop.f32.mrb[0].mxu0
        %v2202 = vadd.f32 0.0, %v2201
        %v2203 = vpop.f32.mrb[0].mxu0
        %2204 = vmatprep.mubr.bf16.mxu0 0
        %2205 = vmatmul.mubr.bf16.gmra.mrb[0].mxu0 %v669
        %v2206 = vpop.f32.mrb[0].mxu0
        %v2207 = vadd.f32 0.0, %v2206
        %v2208 = vpop.f32.mrb[0].mxu0
        %v2209 = vpop.f32.mrb[0].mxu0
        %v2210 = vpop.f32.mrb[0].mxu0
        %2211 = vdwg.mxu0
        %v2212 = vpack.c.bf16 %v2202, %v2199
        %v2213 = vpack.c.bf16 %v2207, %v2207
        %v2216 = vunpack.c.l.b16 %v2212
        %v2217 = vunpack.c.h.b16 %v2212
        %v2218 = vunpack.c.l.b16 %v2213
        %v2219 = vpack.c.b16 %v2216, %v2216
        %v2220 = vpack.c.b16 %v2217, %v2217
        %v2221 = vpack.c.b16 %v2218, %v2218
        %s2222 = scalar_lea.vmem %s1, 24
        %v2223 = vld [vmem:[%s2222] sm:$0xf]
        %v2225 = vsel %vm922, %v2223, 0
        %v2228 = vsel %vm926, %v2219, 0
        %2230 = vmatprep.subr.bf16.mxu0 0
        %2231 = vmatpush1.bf16.msra.mxu0 %v2228
        %2232 = vmatprep.subr.bf16.mxu0 0
        %2233 = vmatpush1.bf16.msra.mxu0 0
        %2234 = vmatprep.subr.bf16.mxu0 0
        %2235 = vmatpush1.bf16.msra.mxu0 0
        %2236 = vmatprep.subr.bf16.mxu0 0
        %2237 = vmatpush1.bf16.msra.mxu0 0
        %2238 = vmatprep.subr.bf16.mxu0 0
        %2239 = vmatpush1.bf16.msra.mxu0 0
        %2240 = vmatprep.subr.bf16.mxu0 0
        %2241 = vmatpush1.bf16.msra.mxu0 0
        %2242 = vmatprep.subr.bf16.mxu0 0
        %2243 = vmatpush1.bf16.msra.mxu0 0
        %2244 = vmatprep.subr.bf16.mxu0 0
        %2245 = vmatpush1.bf16.msra.mxu0 0
        %2246 = vmatprep.subr.bf16.mxu0 0
        %2247 = vmatpush1.bf16.msra.mxu0 0
        %2248 = vmatprep.subr.bf16.mxu0 0
        %2249 = vmatpush1.bf16.msra.mxu0 0
        %2250 = vmatprep.subr.bf16.mxu0 0
        %2251 = vmatpush1.bf16.msra.mxu0 0
        %2252 = vmatprep.subr.bf16.mxu0 0
        %2253 = vmatpush1.bf16.msra.mxu0 0
        %2254 = vmatprep.subr.bf16.mxu0 0
        %2255 = vmatpush1.bf16.msra.mxu0 0
        %2256 = vmatprep.subr.bf16.mxu0 0
        %2257 = vmatpush1.bf16.msra.mxu0 0
        %2258 = vmatprep.subr.bf16.mxu0 0
        %2259 = vmatpush1.bf16.msra.mxu0 0
        %2260 = vmatprep.subr.bf16.mxu0 0
        %2261 = vmatpush1.bf16.msra.mxu0 0
        %2262 = vmatprep.mubr.bf16.mxu0 0
        %2263 = vmatmul.mubr.bf16.gmra.mrb[0].mxu0 %v2225
        %v2264 = vpop.f32.mrb[0].mxu0
        %v2265 = vadd.f32 0.0, %v2264
        %v2266 = vpop.f32.mrb[0].mxu0
        %v2267 = vpop.f32.mrb[0].mxu0
        %v2268 = vpop.f32.mrb[0].mxu0
        %2269 = vdwg.mxu0
        %v2270 = vadd.f32 %v2010, %v2265
        %v2272 = vsel %vm926, %v2220, 0
        %2274 = vmatprep.subr.bf16.mxu0 0
        %2275 = vmatpush1.bf16.msra.mxu0 %v2272
        %2276 = vmatprep.subr.bf16.mxu0 0
        %2277 = vmatpush1.bf16.msra.mxu0 0
        %2278 = vmatprep.subr.bf16.mxu0 0
        %2279 = vmatpush1.bf16.msra.mxu0 0
        %2280 = vmatprep.subr.bf16.mxu0 0
        %2281 = vmatpush1.bf16.msra.mxu0 0
        %2282 = vmatprep.subr.bf16.mxu0 0
        %2283 = vmatpush1.bf16.msra.mxu0 0
        %2284 = vmatprep.subr.bf16.mxu0 0
        %2285 = vmatpush1.bf16.msra.mxu0 0
        %2286 = vmatprep.subr.bf16.mxu0 0
        %2287 = vmatpush1.bf16.msra.mxu0 0
        %2288 = vmatprep.subr.bf16.mxu0 0
        %2289 = vmatpush1.bf16.msra.mxu0 0
        %2290 = vmatprep.subr.bf16.mxu0 0
        %2291 = vmatpush1.bf16.msra.mxu0 0
        %2292 = vmatprep.subr.bf16.mxu0 0
        %2293 = vmatpush1.bf16.msra.mxu0 0
        %2294 = vmatprep.subr.bf16.mxu0 0
        %2295 = vmatpush1.bf16.msra.mxu0 0
        %2296 = vmatprep.subr.bf16.mxu0 0
        %2297 = vmatpush1.bf16.msra.mxu0 0
        %2298 = vmatprep.subr.bf16.mxu0 0
        %2299 = vmatpush1.bf16.msra.mxu0 0
        %2300 = vmatprep.subr.bf16.mxu0 0
        %2301 = vmatpush1.bf16.msra.mxu0 0
        %2302 = vmatprep.subr.bf16.mxu0 0
        %2303 = vmatpush1.bf16.msra.mxu0 0
        %2304 = vmatprep.subr.bf16.mxu0 0
        %2305 = vmatpush1.bf16.msra.mxu0 0
        %2306 = vmatprep.mubr.bf16.mxu0 0
        %2307 = vmatmul.mubr.bf16.gmra.mrb[0].mxu0 %v2225
        %v2308 = vpop.f32.mrb[0].mxu0
        %v2309 = vadd.f32 0.0, %v2308
        %v2310 = vpop.f32.mrb[0].mxu0
        %v2311 = vpop.f32.mrb[0].mxu0
        %v2312 = vpop.f32.mrb[0].mxu0
        %2313 = vdwg.mxu0
        %v2314 = vadd.f32 %v2054, %v2309
        %v2316 = vsel %vm926, %v2221, 0
        %2318 = vmatprep.subr.bf16.mxu0 0
        %2319 = vmatpush1.bf16.msra.mxu0 %v2316
        %2320 = vmatprep.subr.bf16.mxu0 0
        %2321 = vmatpush1.bf16.msra.mxu0 0
        %2322 = vmatprep.subr.bf16.mxu0 0
        %2323 = vmatpush1.bf16.msra.mxu0 0
        %2324 = vmatprep.subr.bf16.mxu0 0
        %2325 = vmatpush1.bf16.msra.mxu0 0
        %2326 = vmatprep.subr.bf16.mxu0 0
        %2327 = vmatpush1.bf16.msra.mxu0 0
        %2328 = vmatprep.subr.bf16.mxu0 0
        %2329 = vmatpush1.bf16.msra.mxu0 0
        %2330 = vmatprep.subr.bf16.mxu0 0
        %2331 = vmatpush1.bf16.msra.mxu0 0
        %2332 = vmatprep.subr.bf16.mxu0 0
        %2333 = vmatpush1.bf16.msra.mxu0 0
        %2334 = vmatprep.subr.bf16.mxu0 0
        %2335 = vmatpush1.bf16.msra.mxu0 0
        %2336 = vmatprep.subr.bf16.mxu0 0
        %2337 = vmatpush1.bf16.msra.mxu0 0
        %2338 = vmatprep.subr.bf16.mxu0 0
        %2339 = vmatpush1.bf16.msra.mxu0 0
        %2340 = vmatprep.subr.bf16.mxu0 0
        %2341 = vmatpush1.bf16.msra.mxu0 0
        %2342 = vmatprep.subr.bf16.mxu0 0
        %2343 = vmatpush1.bf16.msra.mxu0 0
        %2344 = vmatprep.subr.bf16.mxu0 0
        %2345 = vmatpush1.bf16.msra.mxu0 0
        %2346 = vmatprep.subr.bf16.mxu0 0
        %2347 = vmatpush1.bf16.msra.mxu0 0
        %2348 = vmatprep.subr.bf16.mxu0 0
        %2349 = vmatpush1.bf16.msra.mxu0 0
        %2350 = vmatprep.mubr.bf16.mxu0 0
        %2351 = vmatmul.mubr.bf16.gmra.mrb[0].mxu0 %v2225
        %v2352 = vpop.f32.mrb[0].mxu0
        %v2353 = vadd.f32 0.0, %v2352
        %v2354 = vpop.f32.mrb[0].mxu0
        %v2355 = vpop.f32.mrb[0].mxu0
        %v2356 = vpop.f32.mrb[0].mxu0
        %2357 = vdwg.mxu0
        %v2358 = vadd.f32 %v2098, %v2353
        %v2359 = vpack.c.bf16 %v2270, %v2270
        %2360 = vst [vmem:[%s300] sm:$0xf] %v2359
        %v2361 = vpack.c.bf16 %v2314, %v2314
        %s2362 = scalar_lea.vmem %s300, 4
        %2363 = vst [vmem:[%s2362] sm:$0xf] %v2361
        %v2364 = vpack.c.bf16 %v2358, %v2358
        %s2365 = scalar_lea.vmem %s300, 8
        %2366 = vst [vmem:[%s2365] sm:$0xf] %v2364
        %p2367 = scmp.lt.s32.totalorder %s20, 1
        %s2368 = scalar_select %p2367, %s20, 1
        %s2369 = smul.addr %s2368, 3
        %s2370 = smul.addr %s2369, 4
        %s2371 = scalar_lea.vmem %s6, %s2370
        %p2372 = scmp.lt.s32.totalorder %s20, 1
        %s2373 = scalar_select %p2372, %s20, 1
        %s2374 = smul.addr %s2373, 4
        %s2375 = scalar_lea.vmem %s7, %s2374
        // Predicated region
        $region49: #{gwnet_forward.7} parent=43 // pred_check
          %p2376 = pneg %p169
        $region50: #{gwnet_forward.7} parent=43 // pred_check_branch
          %2378 = sbr.rel (%p2376) target = $region52
        $region51: #{gwnet_forward.7} parent=43 // pred_region
          _
        $region52: #{gwnet_forward.7} parent=43 // pred_fallthru
          _
        // Predicated region
        $region53: #{gwnet_forward.7} parent=43 // pred_check
          %p2379 = pneg %p195
        $region54: #{gwnet_forward.7} parent=43 // pred_check_branch
          %2381 = sbr.rel (%p2379) target = $region56
        $region55: #{gwnet_forward.7} parent=43 // pred_region
          _
        $region56: #{gwnet_forward.7} parent=43 // pred_fallthru
          _
      $region44: #{gwnet_forward.7} parent=5 // pred_fallthru
        _
      %p2382 = scmp.le.s32.totalorder 2, %s15
      // Predicated region
      $region57: #{gwnet_forward.7} parent=5 // pred_check
        %p2383 = pneg %p2382
      $region58: #{gwnet_forward.7} parent=5 // pred_check_branch
        %2385 = sbr.rel (%p2383) target = $region60
      $region59: #{gwnet_forward.7} parent=5 // pred_region
        %s2386 = ssub.s32 %s15, 2
        // Predicated region
        $region61: #{gwnet_forward.7} parent=59 // pred_check
          %p2387 = pneg %p175
        $region62: #{gwnet_forward.7} parent=59 // pred_check_branch
          %2389 = sbr.rel (%p2387) target = $region64
        $region63: #{gwnet_forward.7} parent=59 // pred_region
          %p2390 = scmp.lt.s32.totalorder %s21, 1
          %s2391 = scalar_select %p2390, %s21, 1
          %s2392 = smul.addr %s2391, 3
          %s2393 = smul.addr %s2392, 4
          %s2394 = scalar_lea.vmem %s6, %s2393
        $region64: #{gwnet_forward.7} parent=59 // pred_fallthru
          _
        // Predicated region
        $region65: #{gwnet_forward.7} parent=59 // pred_check
          %p2395 = pneg %p201
        $region66: #{gwnet_forward.7} parent=59 // pred_check_branch
          %2397 = sbr.rel (%p2395) target = $region68
        $region67: #{gwnet_forward.7} parent=59 // pred_region
          %p2398 = scmp.lt.s32.totalorder %s21, 1
          %s2399 = scalar_select %p2398, %s21, 1
          %s2400 = smul.addr %s2399, 4
          %s2401 = scalar_lea.vmem %s7, %s2400
        $region68: #{gwnet_forward.7} parent=59 // pred_fallthru
          _
      $region60: #{gwnet_forward.7} parent=5 // pred_fallthru
        _
    $region6: #{gwnet_forward.7} parent=1 // loop_footer
      %s19 = sadd.s32 1, %s15
    $region7: #{gwnet_forward.7} parent=1 // loop_footer_branch
      %14 = sbr.rel target = $region3
    $region8: #{gwnet_forward.7} parent=1 // loop_exit
      _
    %2402 = vsyncpa [#allocation3], 1
    %s2403 = scalar_lea.sflag [#allocation3], 1
    %2404 = vsyncpa %s2403, 1

</llo_original>
